<compile_context>
chip_gen: v7x
topology: tpu7x:2x2x1
jax: 0.10.0
libtpu: 0.0.40
codegen_flags: <defaults>
</compile_context>

<pallas_src>
import functools

import jax
import jax.numpy as jnp
from jax.experimental import pallas as pl
from jax.experimental.pallas import tpu as pltpu


def _round_up(x, m):
    return (x + m - 1) // m * m


def _pick_bb(batch, bb_max=8):
    """Images per conv grid step; guarantees >=2 grid steps whenever batch >= 2."""
    if batch < 2:
        return 1
    return max(1, min(bb_max, batch // 2))


# ----------------------- Kernel 1: conv1 + ReLU + pool -----------------------
# p_ref : [bb, 4, 208, 9] bf16  row-permuted im2col patches, one row block per pool
#                               tap, positions padded 196 -> 208 (tile-aligned merge)
# w_ref : [9, 32]         bf16
# b_ref : [1, 32]         f32
# o_ref : [bb, 196, 32]   bf16  pooled conv1 activation, rows = ph*14 + pw

def _conv1_pool_kernel(p_ref, w_ref, b_ref, o_ref, *, bb):
    p = p_ref[...].reshape(bb * 4 * 208, 9)              # taps stacked along M
    s = jnp.dot(p, w_ref[...], preferred_element_type=jnp.float32)
    s = s.reshape(bb, 4, 208, 32)
    m = jnp.maximum(jnp.maximum(s[:, 0], s[:, 1]),
                    jnp.maximum(s[:, 2], s[:, 3]))        # max over the 4 pool taps
    y = jnp.maximum(m + b_ref[...], 0.0)                  # bias + ReLU after tap-max
    o_ref[...] = y[:, :196, :].astype(o_ref.dtype)


def conv1_relu_pool(x_hw, w1, b1, bb):
    """x_hw: [Bp, 28, 28] (Bp multiple of bb) -> pooled conv1 act [Bp, 196, 32] bf16."""
    Bp = x_hw.shape[0]
    xp = jnp.pad(x_hw, ((0, 0), (1, 1), (1, 1)))                      # [Bp,30,30]
    taps = []
    for i in range(2):                                    # pool tap row offset
        for j in range(2):                                # pool tap col offset
            cols = [xp[:, i + dh:i + dh + 28:2, j + dw:j + dw + 28:2]
                    for dh in range(3) for dw in range(3)]            # each [Bp,14,14]
            taps.append(jnp.stack(cols, axis=-1).reshape(Bp, 196, 9))
    p1 = jnp.stack(taps, axis=1)                                       # [Bp,4,196,9]
    p1 = jnp.pad(p1, ((0, 0), (0, 0), (0, 12), (0, 0))).astype(jnp.bfloat16)
    return pl.pallas_call(
        functools.partial(_conv1_pool_kernel, bb=bb),
        out_shape=jax.ShapeDtypeStruct((Bp, 196, 32), jnp.bfloat16),
        grid=(Bp // bb,),
        in_specs=[
            pl.BlockSpec((bb, 4, 208, 9), lambda b: (b, 0, 0, 0)),
            pl.BlockSpec((9, 32), lambda b: (0, 0)),
            pl.BlockSpec((1, 32), lambda b: (0, 0)),
        ],
        out_specs=pl.BlockSpec((bb, 196, 32), lambda b: (b, 0, 0)),
        compiler_params=pltpu.CompilerParams(dimension_semantics=("parallel",)),
    )(p1, w1.astype(jnp.bfloat16), b1.reshape(1, 32))


# --------------- Kernel 2: conv2 (implicit im2col) + ReLU + pool -------------
# p_ref     : [bb, 4, 2, 80, 32] bf16  stride-2 parity fields of the padded 16x16x32
#                                      input (q=0 base, q=1 rolled-by-1 -> all slices
#                                      start on sublane multiples of 8)
# w_ref     : [288, 64]          bf16  conv2 weight, rows = (dh*3+dw)*32 + cin
# b_ref     : [1, 64]            f32
# o_ref     : [bb, 64, 64]       bf16  pooled output on an 8x8 grid (row/col 7 junk)
# patch_ref : [bb*64, 288]       bf16  VMEM scratch: per-tap implicit-im2col operand

def _conv2_pool_kernel(p_ref, w_ref, b_ref, o_ref, patch_ref, *, bb):
    mb = bb * 64
    m = None
    for i in range(2):                                    # pool tap row offset
        for j in range(2):                                # pool tap col offset
            for dh in range(3):                           # assemble [mb, 288] operand
                for dw in range(3):
                    e, f = i + dh, j + dw
                    par = (e % 2) * 2 + (f % 2)           # which parity field
                    q = f // 2                            # base (0) / rolled-by-1 (1)
                    r0 = (e // 2) * 8                     # sublane-aligned row shift
                    k = dh * 3 + dw
                    slab = p_ref[:, par, q, r0:r0 + 64, :].reshape(mb, 32)
                    patch_ref[:, k * 32:(k + 1) * 32] = slab
            s = jnp.dot(patch_ref[...], w_ref[...],
                        preferred_element_type=jnp.float32)           # one K=288 dot
            m = s if m is None else jnp.maximum(m, s)
    y = jnp.maximum(m + b_ref[...], 0.0)
    o_ref[...] = y.reshape(bb, 64, 64).astype(o_ref.dtype)


def conv2_relu_pool(y1, w2, b2, bb):
    """y1: [Bp, 196, 32] bf16 -> pooled conv2 features [Bp, 4096] bf16 in the padded
    8x8x64 layout (junk positions neutralized by zero rows of the fc weight)."""
    Bp = y1.shape[0]
    x2p = jnp.pad(y1.reshape(Bp, 14, 14, 32), ((0, 0), (1, 1), (1, 1), (0, 0)))
    fields = []
    for r in range(2):
        for s in range(2):
            f0 = x2p[:, r::2, s::2, :].reshape(Bp, 64, 32)            # parity field
            base = jnp.pad(f0, ((0, 0), (0, 16), (0, 0)))             # rows 0.. + pad
            roll = jnp.pad(f0[:, 1:, :], ((0, 0), (0, 17), (0, 0)))   # rows 1.. + pad
            fields.append(jnp.stack([base, roll], axis=1))            # [Bp,2,80,32]
    par_all = jnp.stack(fields, axis=1)                               # [Bp,4,2,80,32]
    out = pl.pallas_call(
        functools.partial(_conv2_pool_kernel, bb=bb),
        out_shape=jax.ShapeDtypeStruct((Bp, 64, 64), jnp.bfloat16),
        grid=(Bp // bb,),
        in_specs=[
            pl.BlockSpec((bb, 4, 2, 80, 32), lambda b: (b, 0, 0, 0, 0)),
            pl.BlockSpec((288, 64), lambda b: (0, 0)),
            pl.BlockSpec((1, 64), lambda b: (0, 0)),
        ],
        out_specs=pl.BlockSpec((bb, 64, 64), lambda b: (b, 0, 0)),
        scratch_shapes=[pltpu.VMEM((bb * 64, 288), jnp.bfloat16)],
        compiler_params=pltpu.CompilerParams(dimension_semantics=("parallel",)),
    )(par_all, w2.astype(jnp.bfloat16), b2.reshape(1, 64))
    return out.reshape(Bp, 4096)                          # row-major, layout-free


# --------------------- Kernel 3: fc + ReLU + fused heads ---------------------
# x_ref   : [tm, 4096] bf16   pooled features (M-tiled, "parallel" grid)
# wfc_ref : [4096,128] bf16   fc weight reordered to the padded 8x8x64 layout
# bfc_ref : [1, 128]   f32
# wh_ref  : [128, 128] bf16   digit|rotation head weights, zero-padded -> lane dense
# bh_ref  : [1, 128]   f32
# o_ref   : [tm, 128]  f32    head output (cols 0..5 digit, 6..9 rotation)

def _fc_heads_kernel(x_ref, wfc_ref, bfc_ref, wh_ref, bh_ref, o_ref):
    h = jnp.dot(x_ref[...], wfc_ref[...], preferred_element_type=jnp.float32)
    h = jnp.maximum(h + bfc_ref[...], 0.0)
    o = jnp.dot(h.astype(jnp.bfloat16), wh_ref[...],
                preferred_element_type=jnp.float32)
    o_ref[...] = o + bh_ref[...]


def fc_and_heads(feat, wfc, bfc, whead, bhead):
    """feat: [Bp, 4096] bf16 -> fused head output [Bp, 10] f32."""
    Bp = feat.shape[0]
    m_pad = _round_up(Bp, 8)
    tm = min(256, m_pad)
    if m_pad // tm < 2 and m_pad >= 16:                   # >=2 steps for v7x megacore
        tm = _round_up(m_pad // 2, 8)
    m_pad = _round_up(Bp, tm)
    feat_p = jnp.pad(feat, ((0, m_pad - Bp), (0, 0)))
    # fc weight: valid 7x7x64 (h, w, c) rows placed into the padded 8x8x64 layout,
    # junk (h==7 or w==7) rows are zero so the junk feature columns are inert.
    wfc_pad = jnp.pad(wfc.reshape(7, 7, 64, 128),
                      ((0, 1), (0, 1), (0, 0), (0, 0))).reshape(4096, 128)
    wh_p = jnp.zeros((128, 128), jnp.float32).at[:, :10].set(whead)
    bh_p = jnp.zeros((1, 128), jnp.float32).at[0, :10].set(bhead)
    out = pl.pallas_call(
        _fc_heads_kernel,
        out_shape=jax.ShapeDtypeStruct((m_pad, 128), jnp.float32),
        grid=(m_pad // tm,),
        in_specs=[
            pl.BlockSpec((tm, 4096), lambda i: (i, 0)),
            pl.BlockSpec((4096, 128), lambda i: (0, 0)),
            pl.BlockSpec((1, 128), lambda i: (0, 0)),
            pl.BlockSpec((128, 128), lambda i: (0, 0)),
            pl.BlockSpec((1, 128), lambda i: (0, 0)),
        ],
        out_specs=pl.BlockSpec((tm, 128), lambda i: (i, 0)),
        compiler_params=pltpu.CompilerParams(dimension_semantics=("parallel",)),
    )(feat_p, wfc_pad.astype(jnp.bfloat16), bfc.reshape(1, 128),
      wh_p.astype(jnp.bfloat16), bh_p)
    return out[:Bp, :10]


# ------------------------------ Model forward --------------------------------

def init_params(key):
    ks = jax.random.split(key, 10)
    s = 0.05
    return {
        # conv1: 1 -> 32, 3x3 (im2col weight layout: row = dh*3 + dw)
        "w1": s * jax.random.normal(ks[0], (9, 32), jnp.float32),
        "b1": s * jax.random.normal(ks[1], (32,), jnp.float32),
        # conv2: 32 -> 64, 3x3 (row = (dh*3+dw)*32 + cin)
        "w2": s * jax.random.normal(ks[2], (288, 64), jnp.float32),
        "b2": s * jax.random.normal(ks[3], (64,), jnp.float32),
        # fc: 64*7*7 -> 128 (rows ordered by NHWC flatten: h, w, c)
        "wfc": s * jax.random.normal(ks[4], (7 * 7 * 64, 128), jnp.float32),
        "bfc": s * jax.random.normal(ks[5], (128,), jnp.float32),
        # heads: 128 -> 6 (digit) and 128 -> 4 (rotation)
        "w_digit": s * jax.random.normal(ks[6], (128, 6), jnp.float32),
        "b_digit": s * jax.random.normal(ks[7], (6,), jnp.float32),
        "w_rot": s * jax.random.normal(ks[8], (128, 4), jnp.float32),
        "b_rot": s * jax.random.normal(ks[9], (4,), jnp.float32),
    }


def rotated_nn_forward(x_nchw, params):
    B = x_nchw.shape[0]
    bb = _pick_bb(B)
    Bp = _round_up(B, bb)
    x_hw = jnp.pad(x_nchw[:, 0], ((0, Bp - B), (0, 0), (0, 0)))       # [Bp,28,28]
    y1 = conv1_relu_pool(x_hw, params["w1"], params["b1"], bb)        # [Bp,196,32]
    feat = conv2_relu_pool(y1, params["w2"], params["b2"], bb)        # [Bp,4096]
    whead = jnp.concatenate([params["w_digit"], params["w_rot"]], axis=1)   # [128,10]
    bhead = jnp.concatenate([params["b_digit"], params["b_rot"]])           # [10]
    out = fc_and_heads(feat, params["wfc"], params["bfc"], whead, bhead)    # [Bp,10]
    return out[:B, :6], out[:B, 6:10]                     # (digit, rotation)


# ---------------------------- pure-JAX reference -----------------------------

def _im2col_ref(x, k=3, pad=1):
    B, H, W, C = x.shape
    xp = jnp.pad(x, ((0, 0), (pad, pad), (pad, pad), (0, 0)))
    cols = [xp[:, dh:dh + H, dw:dw + W, :] for dh in range(k) for dw in range(k)]
    return jnp.stack(cols, axis=3).reshape(B * H * W, k * k * C)


def _pool_ref(y_flat, B, H, W, C):
    return jnp.max(y_flat.reshape(B, H // 2, 2, W // 2, 2, C), axis=(2, 4))


def reference_forward(x_nchw, params, mm_dtype=jnp.float32):
    """XLA reference.  mm_dtype=bfloat16 mirrors the kernels' GEMM operand precision
    (f32 accumulation either way)."""
    def mm(a, b):
        return jnp.dot(a.astype(mm_dtype), b.astype(mm_dtype),
                       preferred_element_type=jnp.float32)
    B = x_nchw.shape[0]
    x = jnp.transpose(x_nchw, (0, 2, 3, 1))
    y1 = jnp.maximum(mm(_im2col_ref(x), params["w1"]) + params["b1"], 0.0)
    x2 = _pool_ref(y1, B, 28, 28, 32)                                 # [B,14,14,32]
    y2 = jnp.maximum(mm(_im2col_ref(x2), params["w2"]) + params["b2"], 0.0)
    y2p = _pool_ref(y2, B, 14, 14, 64)                                # [B,7,7,64]
    feat = y2p.reshape(B, 7 * 7 * 64)
    h = jnp.maximum(mm(feat, params["wfc"]) + params["bfc"], 0.0)
    digit = mm(h, params["w_digit"]) + params["b_digit"]
    rotation = mm(h, params["w_rot"]) + params["b_rot"]
    return digit, rotation


# ----------------------------------- main ------------------------------------

if __name__ == "__main__":
    key = jax.random.PRNGKey(0)
    k_x, k_p = jax.random.split(key)

    # MNIST-sized input implied by fc_layers (64*7*7): [B, 1, 28, 28]
    x = jax.random.normal(k_x, (2, 1, 28, 28), jnp.float32)
    params = init_params(k_p)

    digit, rotation = jax.jit(rotated_nn_forward)(x, params)
    jax.block_until_ready((digit, rotation))
    assert digit.shape == (2, 6) and rotation.shape == (2, 4)

    # Precision-matched reference (bf16 GEMM operands, f32 accumulation) — tight.
    d_bf, r_bf = reference_forward(x, params, jnp.bfloat16)
    assert jnp.allclose(digit, d_bf, atol=5e-3, rtol=5e-2)
    assert jnp.allclose(rotation, r_bf, atol=5e-3, rtol=5e-2)
    # Full-f32 reference — loose (bounds the bf16 operand rounding).
    d_f32, r_f32 = reference_forward(x, params, jnp.float32)
    assert jnp.allclose(digit, d_f32, atol=3e-2, rtol=5e-2)
    assert jnp.allclose(rotation, r_f32, atol=3e-2, rtol=5e-2)

    print("KERNEL_OK")
</pallas_src>

<mosaic_0001>
module attributes {stable_mosaic.version = 11 : i64} {
  func.func @_conv1_pool_kernel(%arg0: i32, %arg1: memref<1x4x208x9xbf16, #tpu.memory_space<vmem>>, %arg2: memref<9x32xbf16, #tpu.memory_space<vmem>>, %arg3: memref<1x32xf32, #tpu.memory_space<vmem>>, %arg4: memref<1x196x32xbf16, #tpu.memory_space<vmem>>) attributes {dimension_semantics = [#tpu.dimension_semantics<parallel>], iteration_bounds = array<i64: 2>, scalar_prefetch = 0 : i64, scratch_operands = 0 : i64, tpu.core_type = #tpu.core_type<tc>, window_params = [{transform_indices = @transform_0, window_bounds = array<i64: 1, 4, 208, 9>}, {pipeline_mode = #tpu.pipeline_mode<synchronous>, transform_indices = @transform_1, window_bounds = array<i64: 9, 32>}, {pipeline_mode = #tpu.pipeline_mode<synchronous>, transform_indices = @transform_2, window_bounds = array<i64: 1, 32>}, {transform_indices = @transform_3, window_bounds = array<i64: 1, 196, 32>}]} {
    %c0 = arith.constant 0 : index
    %c0_0 = arith.constant 0 : index
    %c0_1 = arith.constant 0 : index
    %c0_2 = arith.constant 0 : index
    %0 = vector.load %arg1[%c0, %c0_0, %c0_1, %c0_2] : memref<1x4x208x9xbf16, #tpu.memory_space<vmem>>, vector<1x4x208x9xbf16>
    %1 = vector.shape_cast %0 : vector<1x4x208x9xbf16> to vector<832x9xbf16>
    %c0_3 = arith.constant 0 : index
    %c0_4 = arith.constant 0 : index
    %2 = vector.load %arg2[%c0_3, %c0_4] : memref<9x32xbf16, #tpu.memory_space<vmem>>, vector<9x32xbf16>
    %cst = arith.constant dense<0.000000e+00> : vector<832x32xf32>
    %3 = tpu.matmul %1, %2, %cst {dimension_numbers = #tpu.dot_dimension_numbers<[1], [0], [0], [1], [0, 0, 1, 1], [], []>} : vector<832x9xbf16>, vector<9x32xbf16>, vector<832x32xf32> -> vector<832x32xf32>
    %4 = vector.shape_cast %3 : vector<832x32xf32> to vector<1x4x208x32xf32>
    %5 = vector.extract_strided_slice %4 {offsets = [0, 0, 0, 0], sizes = [1, 1, 208, 32], strides = [1, 1, 1, 1]} : vector<1x4x208x32xf32> to vector<1x1x208x32xf32>
    %6 = vector.shape_cast %5 : vector<1x1x208x32xf32> to vector<1x208x32xf32>
    %7 = vector.extract_strided_slice %4 {offsets = [0, 1, 0, 0], sizes = [1, 1, 208, 32], strides = [1, 1, 1, 1]} : vector<1x4x208x32xf32> to vector<1x1x208x32xf32>
    %8 = vector.shape_cast %7 : vector<1x1x208x32xf32> to vector<1x208x32xf32>
    %9 = arith.maximumf %6, %8 : vector<1x208x32xf32>
    %10 = vector.extract_strided_slice %4 {offsets = [0, 2, 0, 0], sizes = [1, 1, 208, 32], strides = [1, 1, 1, 1]} : vector<1x4x208x32xf32> to vector<1x1x208x32xf32>
    %11 = vector.shape_cast %10 : vector<1x1x208x32xf32> to vector<1x208x32xf32>
    %12 = vector.extract_strided_slice %4 {offsets = [0, 3, 0, 0], sizes = [1, 1, 208, 32], strides = [1, 1, 1, 1]} : vector<1x4x208x32xf32> to vector<1x1x208x32xf32>
    %13 = vector.shape_cast %12 : vector<1x1x208x32xf32> to vector<1x208x32xf32>
    %14 = arith.maximumf %11, %13 : vector<1x208x32xf32>
    %15 = arith.maximumf %9, %14 : vector<1x208x32xf32>
    %c0_5 = arith.constant 0 : index
    %c0_6 = arith.constant 0 : index
    %16 = vector.load %arg3[%c0_5, %c0_6] : memref<1x32xf32, #tpu.memory_space<vmem>>, vector<1x32xf32>
    %17 = vector.shape_cast %16 : vector<1x32xf32> to vector<1x1x32xf32>
    %18 = vector.broadcast %17 : vector<1x1x32xf32> to vector<1x208x32xf32>
    %19 = arith.addf %15, %18 : vector<1x208x32xf32>
    %cst_7 = arith.constant 0.000000e+00 : f32
    %20 = vector.broadcast %cst_7 : f32 to vector<1x208x32xf32>
    %21 = arith.maximumf %19, %20 : vector<1x208x32xf32>
    %22 = vector.extract_strided_slice %21 {offsets = [0, 0, 0], sizes = [1, 196, 32], strides = [1, 1, 1]} : vector<1x208x32xf32> to vector<1x196x32xf32>
    %23 = arith.truncf %22 : vector<1x196x32xf32> to vector<1x196x32xbf16>
    %c0_8 = arith.constant 0 : index
    %c0_9 = arith.constant 0 : index
    %c0_10 = arith.constant 0 : index
    %24 = vector.load %arg4[%c0_8, %c0_9, %c0_10] : memref<1x196x32xbf16, #tpu.memory_space<vmem>>, vector<1x196x32xbf16>
    tpu.vector_store %arg4[%c0_8, %c0_9, %c0_10], %23 {strides = array<i32>} : memref<1x196x32xbf16, #tpu.memory_space<vmem>>, vector<1x196x32xbf16>,
    return
  }
  func.func @transform_0(%arg0: i32) -> (i32, i32, i32, i32) {
    %c0_i32 = arith.constant 0 : i32
    %c0_i32_0 = arith.constant 0 : i32
    %c0_i32_1 = arith.constant 0 : i32
    %c0_i32_2 = arith.constant 0 : i32
    return %arg0, %c0_i32, %c0_i32_0, %c0_i32_1 : i32, i32, i32, i32
  }
  func.func @transform_1(%arg0: i32) -> (i32, i32) {
    %c0_i32 = arith.constant 0 : i32
    %c0_i32_0 = arith.constant 0 : i32
    %c0_i32_1 = arith.constant 0 : i32
    return %c0_i32, %c0_i32_0 : i32, i32
  }
  func.func @transform_2(%arg0: i32) -> (i32, i32) {
    %c0_i32 = arith.constant 0 : i32
    %c0_i32_0 = arith.constant 0 : i32
    %c0_i32_1 = arith.constant 0 : i32
    return %c0_i32, %c0_i32_0 : i32, i32
  }
  func.func @transform_3(%arg0: i32) -> (i32, i32, i32) {
    %c0_i32 = arith.constant 0 : i32
    %c0_i32_0 = arith.constant 0 : i32
    %c0_i32_1 = arith.constant 0 : i32
    return %arg0, %c0_i32, %c0_i32_0 : i32, i32, i32
  }
}

module attributes {stable_mosaic.version = 11 : i64} {
  func.func @_conv2_pool_kernel(%arg0: i32, %arg1: memref<1x4x2x80x32xbf16, #tpu.memory_space<vmem>>, %arg2: memref<288x64xbf16, #tpu.memory_space<vmem>>, %arg3: memref<1x64xf32, #tpu.memory_space<vmem>>, %arg4: memref<1x64x64xbf16, #tpu.memory_space<vmem>>, %arg5: memref<64x288xbf16, #tpu.memory_space<vmem>>) attributes {dimension_semantics = [#tpu.dimension_semantics<parallel>], iteration_bounds = array<i64: 2>, scalar_prefetch = 0 : i64, scratch_operands = 1 : i64, tpu.core_type = #tpu.core_type<tc>, window_params = [{transform_indices = @transform_0, window_bounds = array<i64: 1, 4, 2, 80, 32>}, {pipeline_mode = #tpu.pipeline_mode<synchronous>, transform_indices = @transform_1, window_bounds = array<i64: 288, 64>}, {pipeline_mode = #tpu.pipeline_mode<synchronous>, transform_indices = @transform_2, window_bounds = array<i64: 1, 64>}, {transform_indices = @transform_3, window_bounds = array<i64: 1, 64, 64>}]} {
    %c0 = arith.constant 0 : index
    %c0_0 = arith.constant 0 : index
    %c0_1 = arith.constant 0 : index
    %c0_2 = arith.constant 0 : index
    %c0_3 = arith.constant 0 : index
    %0 = vector.load %arg1[%c0, %c0_0, %c0_1, %c0_2, %c0_3] : memref<1x4x2x80x32xbf16, #tpu.memory_space<vmem>>, vector<1x1x1x64x32xbf16>
    %1 = vector.shape_cast %0 : vector<1x1x1x64x32xbf16> to vector<1x64x32xbf16>
    %2 = vector.shape_cast %1 : vector<1x64x32xbf16> to vector<64x32xbf16>
    %c0_4 = arith.constant 0 : index
    %c0_5 = arith.constant 0 : index
    %3 = vector.load %arg5[%c0_4, %c0_5] : memref<64x288xbf16, #tpu.memory_space<vmem>>, vector<64x32xbf16>
    tpu.vector_store %arg5[%c0_4, %c0_5], %2 {strides = array<i32>} : memref<64x288xbf16, #tpu.memory_space<vmem>>, vector<64x32xbf16>,
    %c0_6 = arith.constant 0 : index
    %c1 = arith.constant 1 : index
    %c0_7 = arith.constant 0 : index
    %c0_8 = arith.constant 0 : index
    %c0_9 = arith.constant 0 : index
    %4 = vector.load %arg1[%c0_6, %c1, %c0_7, %c0_8, %c0_9] : memref<1x4x2x80x32xbf16, #tpu.memory_space<vmem>>, vector<1x1x1x64x32xbf16>
    %5 = vector.shape_cast %4 : vector<1x1x1x64x32xbf16> to vector<1x64x32xbf16>
    %6 = vector.shape_cast %5 : vector<1x64x32xbf16> to vector<64x32xbf16>
    %c0_10 = arith.constant 0 : index
    %c32 = arith.constant 32 : index
    %7 = vector.load %arg5[%c0_10, %c32] : memref<64x288xbf16, #tpu.memory_space<vmem>>, vector<64x32xbf16>
    tpu.vector_store %arg5[%c0_10, %c32], %6 {strides = array<i32>} : memref<64x288xbf16, #tpu.memory_space<vmem>>, vector<64x32xbf16>,
    %c0_11 = arith.constant 0 : index
    %c0_12 = arith.constant 0 : index
    %c1_13 = arith.constant 1 : index
    %c0_14 = arith.constant 0 : index
    %c0_15 = arith.constant 0 : index
    %8 = vector.load %arg1[%c0_11, %c0_12, %c1_13, %c0_14, %c0_15] : memref<1x4x2x80x32xbf16, #tpu.memory_space<vmem>>, vector<1x1x1x64x32xbf16>
    %9 = vector.shape_cast %8 : vector<1x1x1x64x32xbf16> to vector<1x64x32xbf16>
    %10 = vector.shape_cast %9 : vector<1x64x32xbf16> to vector<64x32xbf16>
    %c0_16 = arith.constant 0 : index
    %c64 = arith.constant 64 : index
    %11 = vector.load %arg5[%c0_16, %c64] : memref<64x288xbf16, #tpu.memory_space<vmem>>, vector<64x32xbf16>
    tpu.vector_store %arg5[%c0_16, %c64], %10 {strides = array<i32>} : memref<64x288xbf16, #tpu.memory_space<vmem>>, vector<64x32xbf16>,
    %c0_17 = arith.constant 0 : index
    %c2 = arith.constant 2 : index
    %c0_18 = arith.constant 0 : index
    %c0_19 = arith.constant 0 : index
    %c0_20 = arith.constant 0 : index
    %12 = vector.load %arg1[%c0_17, %c2, %c0_18, %c0_19, %c0_20] : memref<1x4x2x80x32xbf16, #tpu.memory_space<vmem>>, vector<1x1x1x64x32xbf16>
    %13 = vector.shape_cast %12 : vector<1x1x1x64x32xbf16> to vector<1x64x32xbf16>
    %14 = vector.shape_cast %13 : vector<1x64x32xbf16> to vector<64x32xbf16>
    %c0_21 = arith.constant 0 : index
    %c96 = arith.constant 96 : index
    %15 = vector.load %arg5[%c0_21, %c96] : memref<64x288xbf16, #tpu.memory_space<vmem>>, vector<64x32xbf16>
    tpu.vector_store %arg5[%c0_21, %c96], %14 {strides = array<i32>} : memref<64x288xbf16, #tpu.memory_space<vmem>>, vector<64x32xbf16>,
    %c0_22 = arith.constant 0 : index
    %c3 = arith.constant 3 : index
    %c0_23 = arith.constant 0 : index
    %c0_24 = arith.constant 0 : index
    %c0_25 = arith.constant 0 : index
    %16 = vector.load %arg1[%c0_22, %c3, %c0_23, %c0_24, %c0_25] : memref<1x4x2x80x32xbf16, #tpu.memory_space<vmem>>, vector<1x1x1x64x32xbf16>
    %17 = vector.shape_cast %16 : vector<1x1x1x64x32xbf16> to vector<1x64x32xbf16>
    %18 = vector.shape_cast %17 : vector<1x64x32xbf16> to vector<64x32xbf16>
    %c0_26 = arith.constant 0 : index
    %c128 = arith.constant 128 : index
    %19 = vector.load %arg5[%c0_26, %c128] : memref<64x288xbf16, #tpu.memory_space<vmem>>, vector<64x32xbf16>
    tpu.vector_store %arg5[%c0_26, %c128], %18 {strides = array<i32>} : memref<64x288xbf16, #tpu.memory_space<vmem>>, vector<64x32xbf16>,
    %c0_27 = arith.constant 0 : index
    %c2_28 = arith.constant 2 : index
    %c1_29 = arith.constant 1 : index
    %c0_30 = arith.constant 0 : index
    %c0_31 = arith.constant 0 : index
    %20 = vector.load %arg1[%c0_27, %c2_28, %c1_29, %c0_30, %c0_31] : memref<1x4x2x80x32xbf16, #tpu.memory_space<vmem>>, vector<1x1x1x64x32xbf16>
    %21 = vector.shape_cast %20 : vector<1x1x1x64x32xbf16> to vector<1x64x32xbf16>
    %22 = vector.shape_cast %21 : vector<1x64x32xbf16> to vector<64x32xbf16>
    %c0_32 = arith.constant 0 : index
    %c160 = arith.constant 160 : index
    %23 = vector.load %arg5[%c0_32, %c160] : memref<64x288xbf16, #tpu.memory_space<vmem>>, vector<64x32xbf16>
    tpu.vector_store %arg5[%c0_32, %c160], %22 {strides = array<i32>} : memref<64x288xbf16, #tpu.memory_space<vmem>>, vector<64x32xbf16>,
    %c0_33 = arith.constant 0 : index
    %c0_34 = arith.constant 0 : index
    %c0_35 = arith.constant 0 : index
    %c8 = arith.constant 8 : index
    %c0_36 = arith.constant 0 : index
    %24 = vector.load %arg1[%c0_33, %c0_34, %c0_35, %c8, %c0_36] : memref<1x4x2x80x32xbf16, #tpu.memory_space<vmem>>, vector<1x1x1x64x32xbf16>
    %25 = vector.shape_cast %24 : vector<1x1x1x64x32xbf16> to vector<1x64x32xbf16>
    %26 = vector.shape_cast %25 : vector<1x64x32xbf16> to vector<64x32xbf16>
    %c0_37 = arith.constant 0 : index
    %c192 = arith.constant 192 : index
    %27 = vector.load %arg5[%c0_37, %c192] : memref<64x288xbf16, #tpu.memory_space<vmem>>, vector<64x32xbf16>
    tpu.vector_store %arg5[%c0_37, %c192], %26 {strides = array<i32>} : memref<64x288xbf16, #tpu.memory_space<vmem>>, vector<64x32xbf16>,
    %c0_38 = arith.constant 0 : index
    %c1_39 = arith.constant 1 : index
    %c0_40 = arith.constant 0 : index
    %c8_41 = arith.constant 8 : index
    %c0_42 = arith.constant 0 : index
    %28 = vector.load %arg1[%c0_38, %c1_39, %c0_40, %c8_41, %c0_42] : memref<1x4x2x80x32xbf16, #tpu.memory_space<vmem>>, vector<1x1x1x64x32xbf16>
    %29 = vector.shape_cast %28 : vector<1x1x1x64x32xbf16> to vector<1x64x32xbf16>
    %30 = vector.shape_cast %29 : vector<1x64x32xbf16> to vector<64x32xbf16>
    %c0_43 = arith.constant 0 : index
    %c224 = arith.constant 224 : index
    %31 = vector.load %arg5[%c0_43, %c224] : memref<64x288xbf16, #tpu.memory_space<vmem>>, vector<64x32xbf16>
    tpu.vector_store %arg5[%c0_43, %c224], %30 {strides = array<i32>} : memref<64x288xbf16, #tpu.memory_space<vmem>>, vector<64x32xbf16>,
    %c0_44 = arith.constant 0 : index
    %c0_45 = arith.constant 0 : index
    %c1_46 = arith.constant 1 : index
    %c8_47 = arith.constant 8 : index
    %c0_48 = arith.constant 0 : index
    %32 = vector.load %arg1[%c0_44, %c0_45, %c1_46, %c8_47, %c0_48] : memref<1x4x2x80x32xbf16, #tpu.memory_space<vmem>>, vector<1x1x1x64x32xbf16>
    %33 = vector.shape_cast %32 : vector<1x1x1x64x32xbf16> to vector<1x64x32xbf16>
    %34 = vector.shape_cast %33 : vector<1x64x32xbf16> to vector<64x32xbf16>
    %c0_49 = arith.constant 0 : index
    %c256 = arith.constant 256 : index
    %35 = vector.load %arg5[%c0_49, %c256] : memref<64x288xbf16, #tpu.memory_space<vmem>>, vector<64x32xbf16>
    tpu.vector_store %arg5[%c0_49, %c256], %34 {strides = array<i32>} : memref<64x288xbf16, #tpu.memory_space<vmem>>, vector<64x32xbf16>,
    %c0_50 = arith.constant 0 : index
    %c0_51 = arith.constant 0 : index
    %36 = vector.load %arg5[%c0_50, %c0_51] : memref<64x288xbf16, #tpu.memory_space<vmem>>, vector<64x288xbf16>
    %c0_52 = arith.constant 0 : index
    %c0_53 = arith.constant 0 : index
    %37 = vector.load %arg2[%c0_52, %c0_53] : memref<288x64xbf16, #tpu.memory_space<vmem>>, vector<288x64xbf16>
    %cst = arith.constant dense<0.000000e+00> : vector<64x64xf32>
    %38 = tpu.matmul %36, %37, %cst {dimension_numbers = #tpu.dot_dimension_numbers<[1], [0], [0], [1], [0, 0, 1, 1], [], []>} : vector<64x288xbf16>, vector<288x64xbf16>, vector<64x64xf32> -> vector<64x64xf32>
    %c0_54 = arith.constant 0 : index
    %c1_55 = arith.constant 1 : index
    %c0_56 = arith.constant 0 : index
    %c0_57 = arith.constant 0 : index
    %c0_58 = arith.constant 0 : index
    %39 = vector.load %arg1[%c0_54, %c1_55, %c0_56, %c0_57, %c0_58] : memref<1x4x2x80x32xbf16, #tpu.memory_space<vmem>>, vector<1x1x1x64x32xbf16>
    %40 = vector.shape_cast %39 : vector<1x1x1x64x32xbf16> to vector<1x64x32xbf16>
    %41 = vector.shape_cast %40 : vector<1x64x32xbf16> to vector<64x32xbf16>
    %c0_59 = arith.constant 0 : index
    %c0_60 = arith.constant 0 : index
    %42 = vector.load %arg5[%c0_59, %c0_60] : memref<64x288xbf16, #tpu.memory_space<vmem>>, vector<64x32xbf16>
    tpu.vector_store %arg5[%c0_59, %c0_60], %41 {strides = array<i32>} : memref<64x288xbf16, #tpu.memory_space<vmem>>, vector<64x32xbf16>,
    %c0_61 = arith.constant 0 : index
    %c0_62 = arith.constant 0 : index
    %c1_63 = arith.constant 1 : index
    %c0_64 = arith.constant 0 : index
    %c0_65 = arith.constant 0 : index
    %43 = vector.load %arg1[%c0_61, %c0_62, %c1_63, %c0_64, %c0_65] : memref<1x4x2x80x32xbf16, #tpu.memory_space<vmem>>, vector<1x1x1x64x32xbf16>
    %44 = vector.shape_cast %43 : vector<1x1x1x64x32xbf16> to vector<1x64x32xbf16>
    %45 = vector.shape_cast %44 : vector<1x64x32xbf16> to vector<64x32xbf16>
    %c0_66 = arith.constant 0 : index
    %c32_67 = arith.constant 32 : index
    %46 = vector.load %arg5[%c0_66, %c32_67] : memref<64x288xbf16, #tpu.memory_space<vmem>>, vector<64x32xbf16>
    tpu.vector_store %arg5[%c0_66, %c32_67], %45 {strides = array<i32>} : memref<64x288xbf16, #tpu.memory_space<vmem>>, vector<64x32xbf16>,
    %c0_68 = arith.constant 0 : index
    %c1_69 = arith.constant 1 : index
    %c1_70 = arith.constant 1 : index
    %c0_71 = arith.constant 0 : index
    %c0_72 = arith.constant 0 : index
    %47 = vector.load %arg1[%c0_68, %c1_69, %c1_70, %c0_71, %c0_72] : memref<1x4x2x80x32xbf16, #tpu.memory_space<vmem>>, vector<1x1x1x64x32xbf16>
    %48 = vector.shape_cast %47 : vector<1x1x1x64x32xbf16> to vector<1x64x32xbf16>
    %49 = vector.shape_cast %48 : vector<1x64x32xbf16> to vector<64x32xbf16>
    %c0_73 = arith.constant 0 : index
    %c64_74 = arith.constant 64 : index
    %50 = vector.load %arg5[%c0_73, %c64_74] : memref<64x288xbf16, #tpu.memory_space<vmem>>, vector<64x32xbf16>
    tpu.vector_store %arg5[%c0_73, %c64_74], %49 {strides = array<i32>} : memref<64x288xbf16, #tpu.memory_space<vmem>>, vector<64x32xbf16>,
    %c0_75 = arith.constant 0 : index
    %c3_76 = arith.constant 3 : index
    %c0_77 = arith.constant 0 : index
    %c0_78 = arith.constant 0 : index
    %c0_79 = arith.constant 0 : index
    %51 = vector.load %arg1[%c0_75, %c3_76, %c0_77, %c0_78, %c0_79] : memref<1x4x2x80x32xbf16, #tpu.memory_space<vmem>>, vector<1x1x1x64x32xbf16>
    %52 = vector.shape_cast %51 : vector<1x1x1x64x32xbf16> to vector<1x64x32xbf16>
    %53 = vector.shape_cast %52 : vector<1x64x32xbf16> to vector<64x32xbf16>
    %c0_80 = arith.constant 0 : index
    %c96_81 = arith.constant 96 : index
    %54 = vector.load %arg5[%c0_80, %c96_81] : memref<64x288xbf16, #tpu.memory_space<vmem>>, vector<64x32xbf16>
    tpu.vector_store %arg5[%c0_80, %c96_81], %53 {strides = array<i32>} : memref<64x288xbf16, #tpu.memory_space<vmem>>, vector<64x32xbf16>,
    %c0_82 = arith.constant 0 : index
    %c2_83 = arith.constant 2 : index
    %c1_84 = arith.constant 1 : index
    %c0_85 = arith.constant 0 : index
    %c0_86 = arith.constant 0 : index
    %55 = vector.load %arg1[%c0_82, %c2_83, %c1_84, %c0_85, %c0_86] : memref<1x4x2x80x32xbf16, #tpu.memory_space<vmem>>, vector<1x1x1x64x32xbf16>
    %56 = vector.shape_cast %55 : vector<1x1x1x64x32xbf16> to vector<1x64x32xbf16>
    %57 = vector.shape_cast %56 : vector<1x64x32xbf16> to vector<64x32xbf16>
    %c0_87 = arith.constant 0 : index
    %c128_88 = arith.constant 128 : index
    %58 = vector.load %arg5[%c0_87, %c128_88] : memref<64x288xbf16, #tpu.memory_space<vmem>>, vector<64x32xbf16>
    tpu.vector_store %arg5[%c0_87, %c128_88], %57 {strides = array<i32>} : memref<64x288xbf16, #tpu.memory_space<vmem>>, vector<64x32xbf16>,
    %c0_89 = arith.constant 0 : index
    %c3_90 = arith.constant 3 : index
    %c1_91 = arith.constant 1 : index
    %c0_92 = arith.constant 0 : index
    %c0_93 = arith.constant 0 : index
    %59 = vector.load %arg1[%c0_89, %c3_90, %c1_91, %c0_92, %c0_93] : memref<1x4x2x80x32xbf16, #tpu.memory_space<vmem>>, vector<1x1x1x64x32xbf16>
    %60 = vector.shape_cast %59 : vector<1x1x1x64x32xbf16> to vector<1x64x32xbf16>
    %61 = vector.shape_cast %60 : vector<1x64x32xbf16> to vector<64x32xbf16>
    %c0_94 = arith.constant 0 : index
    %c160_95 = arith.constant 160 : index
    %62 = vector.load %arg5[%c0_94, %c160_95] : memref<64x288xbf16, #tpu.memory_space<vmem>>, vector<64x32xbf16>
    tpu.vector_store %arg5[%c0_94, %c160_95], %61 {strides = array<i32>} : memref<64x288xbf16, #tpu.memory_space<vmem>>, vector<64x32xbf16>,
    %c0_96 = arith.constant 0 : index
    %c1_97 = arith.constant 1 : index
    %c0_98 = arith.constant 0 : index
    %c8_99 = arith.constant 8 : index
    %c0_100 = arith.constant 0 : index
    %63 = vector.load %arg1[%c0_96, %c1_97, %c0_98, %c8_99, %c0_100] : memref<1x4x2x80x32xbf16, #tpu.memory_space<vmem>>, vector<1x1x1x64x32xbf16>
    %64 = vector.shape_cast %63 : vector<1x1x1x64x32xbf16> to vector<1x64x32xbf16>
    %65 = vector.shape_cast %64 : vector<1x64x32xbf16> to vector<64x32xbf16>
    %c0_101 = arith.constant 0 : index
    %c192_102 = arith.constant 192 : index
    %66 = vector.load %arg5[%c0_101, %c192_102] : memref<64x288xbf16, #tpu.memory_space<vmem>>, vector<64x32xbf16>
    tpu.vector_store %arg5[%c0_101, %c192_102], %65 {strides = array<i32>} : memref<64x288xbf16, #tpu.memory_space<vmem>>, vector<64x32xbf16>,
    %c0_103 = arith.constant 0 : index
    %c0_104 = arith.constant 0 : index
    %c1_105 = arith.constant 1 : index
    %c8_106 = arith.constant 8 : index
    %c0_107 = arith.constant 0 : index
    %67 = vector.load %arg1[%c0_103, %c0_104, %c1_105, %c8_106, %c0_107] : memref<1x4x2x80x32xbf16, #tpu.memory_space<vmem>>, vector<1x1x1x64x32xbf16>
    %68 = vector.shape_cast %67 : vector<1x1x1x64x32xbf16> to vector<1x64x32xbf16>
    %69 = vector.shape_cast %68 : vector<1x64x32xbf16> to vector<64x32xbf16>
    %c0_108 = arith.constant 0 : index
    %c224_109 = arith.constant 224 : index
    %70 = vector.load %arg5[%c0_108, %c224_109] : memref<64x288xbf16, #tpu.memory_space<vmem>>, vector<64x32xbf16>
    tpu.vector_store %arg5[%c0_108, %c224_109], %69 {strides = array<i32>} : memref<64x288xbf16, #tpu.memory_space<vmem>>, vector<64x32xbf16>,
    %c0_110 = arith.constant 0 : index
    %c1_111 = arith.constant 1 : index
    %c1_112 = arith.constant 1 : index
    %c8_113 = arith.constant 8 : index
    %c0_114 = arith.constant 0 : index
    %71 = vector.load %arg1[%c0_110, %c1_111, %c1_112, %c8_113, %c0_114] : memref<1x4x2x80x32xbf16, #tpu.memory_space<vmem>>, vector<1x1x1x64x32xbf16>
    %72 = vector.shape_cast %71 : vector<1x1x1x64x32xbf16> to vector<1x64x32xbf16>
    %73 = vector.shape_cast %72 : vector<1x64x32xbf16> to vector<64x32xbf16>
    %c0_115 = arith.constant 0 : index
    %c256_116 = arith.constant 256 : index
    %74 = vector.load %arg5[%c0_115, %c256_116] : memref<64x288xbf16, #tpu.memory_space<vmem>>, vector<64x32xbf16>
    tpu.vector_store %arg5[%c0_115, %c256_116], %73 {strides = array<i32>} : memref<64x288xbf16, #tpu.memory_space<vmem>>, vector<64x32xbf16>,
    %c0_117 = arith.constant 0 : index
    %c0_118 = arith.constant 0 : index
    %75 = vector.load %arg5[%c0_117, %c0_118] : memref<64x288xbf16, #tpu.memory_space<vmem>>, vector<64x288xbf16>
    %c0_119 = arith.constant 0 : index
    %c0_120 = arith.constant 0 : index
    %76 = vector.load %arg2[%c0_119, %c0_120] : memref<288x64xbf16, #tpu.memory_space<vmem>>, vector<288x64xbf16>
    %cst_121 = arith.constant dense<0.000000e+00> : vector<64x64xf32>
    %77 = tpu.matmul %75, %76, %cst_121 {dimension_numbers = #tpu.dot_dimension_numbers<[1], [0], [0], [1], [0, 0, 1, 1], [], []>} : vector<64x288xbf16>, vector<288x64xbf16>, vector<64x64xf32> -> vector<64x64xf32>
    %78 = arith.maximumf %38, %77 : vector<64x64xf32>
    %c0_122 = arith.constant 0 : index
    %c2_123 = arith.constant 2 : index
    %c0_124 = arith.constant 0 : index
    %c0_125 = arith.constant 0 : index
    %c0_126 = arith.constant 0 : index
    %79 = vector.load %arg1[%c0_122, %c2_123, %c0_124, %c0_125, %c0_126] : memref<1x4x2x80x32xbf16, #tpu.memory_space<vmem>>, vector<1x1x1x64x32xbf16>
    %80 = vector.shape_cast %79 : vector<1x1x1x64x32xbf16> to vector<1x64x32xbf16>
    %81 = vector.shape_cast %80 : vector<1x64x32xbf16> to vector<64x32xbf16>
    %c0_127 = arith.constant 0 : index
    %c0_128 = arith.constant 0 : index
    %82 = vector.load %arg5[%c0_127, %c0_128] : memref<64x288xbf16, #tpu.memory_space<vmem>>, vector<64x32xbf16>
    tpu.vector_store %arg5[%c0_127, %c0_128], %81 {strides = array<i32>} : memref<64x288xbf16, #tpu.memory_space<vmem>>, vector<64x32xbf16>,
    %c0_129 = arith.constant 0 : index
    %c3_130 = arith.constant 3 : index
    %c0_131 = arith.constant 0 : index
    %c0_132 = arith.constant 0 : index
    %c0_133 = arith.constant 0 : index
    %83 = vector.load %arg1[%c0_129, %c3_130, %c0_131, %c0_132, %c0_133] : memref<1x4x2x80x32xbf16, #tpu.memory_space<vmem>>, vector<1x1x1x64x32xbf16>
    %84 = vector.shape_cast %83 : vector<1x1x1x64x32xbf16> to vector<1x64x32xbf16>
    %85 = vector.shape_cast %84 : vector<1x64x32xbf16> to vector<64x32xbf16>
    %c0_134 = arith.constant 0 : index
    %c32_135 = arith.constant 32 : index
    %86 = vector.load %arg5[%c0_134, %c32_135] : memref<64x288xbf16, #tpu.memory_space<vmem>>, vector<64x32xbf16>
    tpu.vector_store %arg5[%c0_134, %c32_135], %85 {strides = array<i32>} : memref<64x288xbf16, #tpu.memory_space<vmem>>, vector<64x32xbf16>,
    %c0_136 = arith.constant 0 : index
    %c2_137 = arith.constant 2 : index
    %c1_138 = arith.constant 1 : index
    %c0_139 = arith.constant 0 : index
    %c0_140 = arith.constant 0 : index
    %87 = vector.load %arg1[%c0_136, %c2_137, %c1_138, %c0_139, %c0_140] : memref<1x4x2x80x32xbf16, #tpu.memory_space<vmem>>, vector<1x1x1x64x32xbf16>
    %88 = vector.shape_cast %87 : vector<1x1x1x64x32xbf16> to vector<1x64x32xbf16>
    %89 = vector.shape_cast %88 : vector<1x64x32xbf16> to vector<64x32xbf16>
    %c0_141 = arith.constant 0 : index
    %c64_142 = arith.constant 64 : index
    %90 = vector.load %arg5[%c0_141, %c64_142] : memref<64x288xbf16, #tpu.memory_space<vmem>>, vector<64x32xbf16>
    tpu.vector_store %arg5[%c0_141, %c64_142], %89 {strides = array<i32>} : memref<64x288xbf16, #tpu.memory_space<vmem>>, vector<64x32xbf16>,
    %c0_143 = arith.constant 0 : index
    %c0_144 = arith.constant 0 : index
    %c0_145 = arith.constant 0 : index
    %c8_146 = arith.constant 8 : index
    %c0_147 = arith.constant 0 : index
    %91 = vector.load %arg1[%c0_143, %c0_144, %c0_145, %c8_146, %c0_147] : memref<1x4x2x80x32xbf16, #tpu.memory_space<vmem>>, vector<1x1x1x64x32xbf16>
    %92 = vector.shape_cast %91 : vector<1x1x1x64x32xbf16> to vector<1x64x32xbf16>
    %93 = vector.shape_cast %92 : vector<1x64x32xbf16> to vector<64x32xbf16>
    %c0_148 = arith.constant 0 : index
    %c96_149 = arith.constant 96 : index
    %94 = vector.load %arg5[%c0_148, %c96_149] : memref<64x288xbf16, #tpu.memory_space<vmem>>, vector<64x32xbf16>
    tpu.vector_store %arg5[%c0_148, %c96_149], %93 {strides = array<i32>} : memref<64x288xbf16, #tpu.memory_space<vmem>>, vector<64x32xbf16>,
    %c0_150 = arith.constant 0 : index
    %c1_151 = arith.constant 1 : index
    %c0_152 = arith.constant 0 : index
    %c8_153 = arith.constant 8 : index
    %c0_154 = arith.constant 0 : index
    %95 = vector.load %arg1[%c0_150, %c1_151, %c0_152, %c8_153, %c0_154] : memref<1x4x2x80x32xbf16, #tpu.memory_space<vmem>>, vector<1x1x1x64x32xbf16>
    %96 = vector.shape_cast %95 : vector<1x1x1x64x32xbf16> to vector<1x64x32xbf16>
    %97 = vector.shape_cast %96 : vector<1x64x32xbf16> to vector<64x32xbf16>
    %c0_155 = arith.constant 0 : index
    %c128_156 = arith.constant 128 : index
    %98 = vector.load %arg5[%c0_155, %c128_156] : memref<64x288xbf16, #tpu.memory_space<vmem>>, vector<64x32xbf16>
    tpu.vector_store %arg5[%c0_155, %c128_156], %97 {strides = array<i32>} : memref<64x288xbf16, #tpu.memory_space<vmem>>, vector<64x32xbf16>,
    %c0_157 = arith.constant 0 : index
    %c0_158 = arith.constant 0 : index
    %c1_159 = arith.constant 1 : index
    %c8_160 = arith.constant 8 : index
    %c0_161 = arith.constant 0 : index
    %99 = vector.load %arg1[%c0_157, %c0_158, %c1_159, %c8_160, %c0_161] : memref<1x4x2x80x32xbf16, #tpu.memory_space<vmem>>, vector<1x1x1x64x32xbf16>
    %100 = vector.shape_cast %99 : vector<1x1x1x64x32xbf16> to vector<1x64x32xbf16>
    %101 = vector.shape_cast %100 : vector<1x64x32xbf16> to vector<64x32xbf16>
    %c0_162 = arith.constant 0 : index
    %c160_163 = arith.constant 160 : index
    %102 = vector.load %arg5[%c0_162, %c160_163] : memref<64x288xbf16, #tpu.memory_space<vmem>>, vector<64x32xbf16>
    tpu.vector_store %arg5[%c0_162, %c160_163], %101 {strides = array<i32>} : memref<64x288xbf16, #tpu.memory_space<vmem>>, vector<64x32xbf16>,
    %c0_164 = arith.constant 0 : index
    %c2_165 = arith.constant 2 : index
    %c0_166 = arith.constant 0 : index
    %c8_167 = arith.constant 8 : index
    %c0_168 = arith.constant 0 : index
    %103 = vector.load %arg1[%c0_164, %c2_165, %c0_166, %c8_167, %c0_168] : memref<1x4x2x80x32xbf16, #tpu.memory_space<vmem>>, vector<1x1x1x64x32xbf16>
    %104 = vector.shape_cast %103 : vector<1x1x1x64x32xbf16> to vector<1x64x32xbf16>
    %105 = vector.shape_cast %104 : vector<1x64x32xbf16> to vector<64x32xbf16>
    %c0_169 = arith.constant 0 : index
    %c192_170 = arith.constant 192 : index
    %106 = vector.load %arg5[%c0_169, %c192_170] : memref<64x288xbf16, #tpu.memory_space<vmem>>, vector<64x32xbf16>
    tpu.vector_store %arg5[%c0_169, %c192_170], %105 {strides = array<i32>} : memref<64x288xbf16, #tpu.memory_space<vmem>>, vector<64x32xbf16>,
    %c0_171 = arith.constant 0 : index
    %c3_172 = arith.constant 3 : index
    %c0_173 = arith.constant 0 : index
    %c8_174 = arith.constant 8 : index
    %c0_175 = arith.constant 0 : index
    %107 = vector.load %arg1[%c0_171, %c3_172, %c0_173, %c8_174, %c0_175] : memref<1x4x2x80x32xbf16, #tpu.memory_space<vmem>>, vector<1x1x1x64x32xbf16>
    %108 = vector.shape_cast %107 : vector<1x1x1x64x32xbf16> to vector<1x64x32xbf16>
    %109 = vector.shape_cast %108 : vector<1x64x32xbf16> to vector<64x32xbf16>
    %c0_176 = arith.constant 0 : index
    %c224_177 = arith.constant 224 : index
    %110 = vector.load %arg5[%c0_176, %c224_177] : memref<64x288xbf16, #tpu.memory_space<vmem>>, vector<64x32xbf16>
    tpu.vector_store %arg5[%c0_176, %c224_177], %109 {strides = array<i32>} : memref<64x288xbf16, #tpu.memory_space<vmem>>, vector<64x32xbf16>,
    %c0_178 = arith.constant 0 : index
    %c2_179 = arith.constant 2 : index
    %c1_180 = arith.constant 1 : index
    %c8_181 = arith.constant 8 : index
    %c0_182 = arith.constant 0 : index
    %111 = vector.load %arg1[%c0_178, %c2_179, %c1_180, %c8_181, %c0_182] : memref<1x4x2x80x32xbf16, #tpu.memory_space<vmem>>, vector<1x1x1x64x32xbf16>
    %112 = vector.shape_cast %111 : vector<1x1x1x64x32xbf16> to vector<1x64x32xbf16>
    %113 = vector.shape_cast %112 : vector<1x64x32xbf16> to vector<64x32xbf16>
    %c0_183 = arith.constant 0 : index
    %c256_184 = arith.constant 256 : index
    %114 = vector.load %arg5[%c0_183, %c256_184] : memref<64x288xbf16, #tpu.memory_space<vmem>>, vector<64x32xbf16>
    tpu.vector_store %arg5[%c0_183, %c256_184], %113 {strides = array<i32>} : memref<64x288xbf16, #tpu.memory_space<vmem>>, vector<64x32xbf16>,
    %c0_185 = arith.constant 0 : index
    %c0_186 = arith.constant 0 : index
    %115 = vector.load %arg5[%c0_185, %c0_186] : memref<64x288xbf16, #tpu.memory_space<vmem>>, vector<64x288xbf16>
    %c0_187 = arith.constant 0 : index
    %c0_188 = arith.constant 0 : index
    %116 = vector.load %arg2[%c0_187, %c0_188] : memref<288x64xbf16, #tpu.memory_space<vmem>>, vector<288x64xbf16>
    %cst_189 = arith.constant dense<0.000000e+00> : vector<64x64xf32>
    %117 = tpu.matmul %115, %116, %cst_189 {dimension_numbers = #tpu.dot_dimension_numbers<[1], [0], [0], [1], [0, 0, 1, 1], [], []>} : vector<64x288xbf16>, vector<288x64xbf16>, vector<64x64xf32> -> vector<64x64xf32>
    %118 = arith.maximumf %78, %117 : vector<64x64xf32>
    %c0_190 = arith.constant 0 : index
    %c3_191 = arith.constant 3 : index
    %c0_192 = arith.constant 0 : index
    %c0_193 = arith.constant 0 : index
    %c0_194 = arith.constant 0 : index
    %119 = vector.load %arg1[%c0_190, %c3_191, %c0_192, %c0_193, %c0_194] : memref<1x4x2x80x32xbf16, #tpu.memory_space<vmem>>, vector<1x1x1x64x32xbf16>
    %120 = vector.shape_cast %119 : vector<1x1x1x64x32xbf16> to vector<1x64x32xbf16>
    %121 = vector.shape_cast %120 : vector<1x64x32xbf16> to vector<64x32xbf16>
    %c0_195 = arith.constant 0 : index
    %c0_196 = arith.constant 0 : index
    %122 = vector.load %arg5[%c0_195, %c0_196] : memref<64x288xbf16, #tpu.memory_space<vmem>>, vector<64x32xbf16>
    tpu.vector_store %arg5[%c0_195, %c0_196], %121 {strides = array<i32>} : memref<64x288xbf16, #tpu.memory_space<vmem>>, vector<64x32xbf16>,
    %c0_197 = arith.constant 0 : index
    %c2_198 = arith.constant 2 : index
    %c1_199 = arith.constant 1 : index
    %c0_200 = arith.constant 0 : index
    %c0_201 = arith.constant 0 : index
    %123 = vector.load %arg1[%c0_197, %c2_198, %c1_199, %c0_200, %c0_201] : memref<1x4x2x80x32xbf16, #tpu.memory_space<vmem>>, vector<1x1x1x64x32xbf16>
    %124 = vector.shape_cast %123 : vector<1x1x1x64x32xbf16> to vector<1x64x32xbf16>
    %125 = vector.shape_cast %124 : vector<1x64x32xbf16> to vector<64x32xbf16>
    %c0_202 = arith.constant 0 : index
    %c32_203 = arith.constant 32 : index
    %126 = vector.load %arg5[%c0_202, %c32_203] : memref<64x288xbf16, #tpu.memory_space<vmem>>, vector<64x32xbf16>
    tpu.vector_store %arg5[%c0_202, %c32_203], %125 {strides = array<i32>} : memref<64x288xbf16, #tpu.memory_space<vmem>>, vector<64x32xbf16>,
    %c0_204 = arith.constant 0 : index
    %c3_205 = arith.constant 3 : index
    %c1_206 = arith.constant 1 : index
    %c0_207 = arith.constant 0 : index
    %c0_208 = arith.constant 0 : index
    %127 = vector.load %arg1[%c0_204, %c3_205, %c1_206, %c0_207, %c0_208] : memref<1x4x2x80x32xbf16, #tpu.memory_space<vmem>>, vector<1x1x1x64x32xbf16>
    %128 = vector.shape_cast %127 : vector<1x1x1x64x32xbf16> to vector<1x64x32xbf16>
    %129 = vector.shape_cast %128 : vector<1x64x32xbf16> to vector<64x32xbf16>
    %c0_209 = arith.constant 0 : index
    %c64_210 = arith.constant 64 : index
    %130 = vector.load %arg5[%c0_209, %c64_210] : memref<64x288xbf16, #tpu.memory_space<vmem>>, vector<64x32xbf16>
    tpu.vector_store %arg5[%c0_209, %c64_210], %129 {strides = array<i32>} : memref<64x288xbf16, #tpu.memory_space<vmem>>, vector<64x32xbf16>,
    %c0_211 = arith.constant 0 : index
    %c1_212 = arith.constant 1 : index
    %c0_213 = arith.constant 0 : index
    %c8_214 = arith.constant 8 : index
    %c0_215 = arith.constant 0 : index
    %131 = vector.load %arg1[%c0_211, %c1_212, %c0_213, %c8_214, %c0_215] : memref<1x4x2x80x32xbf16, #tpu.memory_space<vmem>>, vector<1x1x1x64x32xbf16>
    %132 = vector.shape_cast %131 : vector<1x1x1x64x32xbf16> to vector<1x64x32xbf16>
    %133 = vector.shape_cast %132 : vector<1x64x32xbf16> to vector<64x32xbf16>
    %c0_216 = arith.constant 0 : index
    %c96_217 = arith.constant 96 : index
    %134 = vector.load %arg5[%c0_216, %c96_217] : memref<64x288xbf16, #tpu.memory_space<vmem>>, vector<64x32xbf16>
    tpu.vector_store %arg5[%c0_216, %c96_217], %133 {strides = array<i32>} : memref<64x288xbf16, #tpu.memory_space<vmem>>, vector<64x32xbf16>,
    %c0_218 = arith.constant 0 : index
    %c0_219 = arith.constant 0 : index
    %c1_220 = arith.constant 1 : index
    %c8_221 = arith.constant 8 : index
    %c0_222 = arith.constant 0 : index
    %135 = vector.load %arg1[%c0_218, %c0_219, %c1_220, %c8_221, %c0_222] : memref<1x4x2x80x32xbf16, #tpu.memory_space<vmem>>, vector<1x1x1x64x32xbf16>
    %136 = vector.shape_cast %135 : vector<1x1x1x64x32xbf16> to vector<1x64x32xbf16>
    %137 = vector.shape_cast %136 : vector<1x64x32xbf16> to vector<64x32xbf16>
    %c0_223 = arith.constant 0 : index
    %c128_224 = arith.constant 128 : index
    %138 = vector.load %arg5[%c0_223, %c128_224] : memref<64x288xbf16, #tpu.memory_space<vmem>>, vector<64x32xbf16>
    tpu.vector_store %arg5[%c0_223, %c128_224], %137 {strides = array<i32>} : memref<64x288xbf16, #tpu.memory_space<vmem>>, vector<64x32xbf16>,
    %c0_225 = arith.constant 0 : index
    %c1_226 = arith.constant 1 : index
    %c1_227 = arith.constant 1 : index
    %c8_228 = arith.constant 8 : index
    %c0_229 = arith.constant 0 : index
    %139 = vector.load %arg1[%c0_225, %c1_226, %c1_227, %c8_228, %c0_229] : memref<1x4x2x80x32xbf16, #tpu.memory_space<vmem>>, vector<1x1x1x64x32xbf16>
    %140 = vector.shape_cast %139 : vector<1x1x1x64x32xbf16> to vector<1x64x32xbf16>
    %141 = vector.shape_cast %140 : vector<1x64x32xbf16> to vector<64x32xbf16>
    %c0_230 = arith.constant 0 : index
    %c160_231 = arith.constant 160 : index
    %142 = vector.load %arg5[%c0_230, %c160_231] : memref<64x288xbf16, #tpu.memory_space<vmem>>, vector<64x32xbf16>
    tpu.vector_store %arg5[%c0_230, %c160_231], %141 {strides = array<i32>} : memref<64x288xbf16, #tpu.memory_space<vmem>>, vector<64x32xbf16>,
    %c0_232 = arith.constant 0 : index
    %c3_233 = arith.constant 3 : index
    %c0_234 = arith.constant 0 : index
    %c8_235 = arith.constant 8 : index
    %c0_236 = arith.constant 0 : index
    %143 = vector.load %arg1[%c0_232, %c3_233, %c0_234, %c8_235, %c0_236] : memref<1x4x2x80x32xbf16, #tpu.memory_space<vmem>>, vector<1x1x1x64x32xbf16>
    %144 = vector.shape_cast %143 : vector<1x1x1x64x32xbf16> to vector<1x64x32xbf16>
    %145 = vector.shape_cast %144 : vector<1x64x32xbf16> to vector<64x32xbf16>
    %c0_237 = arith.constant 0 : index
    %c192_238 = arith.constant 192 : index
    %146 = vector.load %arg5[%c0_237, %c192_238] : memref<64x288xbf16, #tpu.memory_space<vmem>>, vector<64x32xbf16>
    tpu.vector_store %arg5[%c0_237, %c192_238], %145 {strides = array<i32>} : memref<64x288xbf16, #tpu.memory_space<vmem>>, vector<64x32xbf16>,
    %c0_239 = arith.constant 0 : index
    %c2_240 = arith.constant 2 : index
    %c1_241 = arith.constant 1 : index
    %c8_242 = arith.constant 8 : index
    %c0_243 = arith.constant 0 : index
    %147 = vector.load %arg1[%c0_239, %c2_240, %c1_241, %c8_242, %c0_243] : memref<1x4x2x80x32xbf16, #tpu.memory_space<vmem>>, vector<1x1x1x64x32xbf16>
    %148 = vector.shape_cast %147 : vector<1x1x1x64x32xbf16> to vector<1x64x32xbf16>
    %149 = vector.shape_cast %148 : vector<1x64x32xbf16> to vector<64x32xbf16>
    %c0_244 = arith.constant 0 : index
    %c224_245 = arith.constant 224 : index
    %150 = vector.load %arg5[%c0_244, %c224_245] : memref<64x288xbf16, #tpu.memory_space<vmem>>, vector<64x32xbf16>
    tpu.vector_store %arg5[%c0_244, %c224_245], %149 {strides = array<i32>} : memref<64x288xbf16, #tpu.memory_space<vmem>>, vector<64x32xbf16>,
    %c0_246 = arith.constant 0 : index
    %c3_247 = arith.constant 3 : index
    %c1_248 = arith.constant 1 : index
    %c8_249 = arith.constant 8 : index
    %c0_250 = arith.constant 0 : index
    %151 = vector.load %arg1[%c0_246, %c3_247, %c1_248, %c8_249, %c0_250] : memref<1x4x2x80x32xbf16, #tpu.memory_space<vmem>>, vector<1x1x1x64x32xbf16>
    %152 = vector.shape_cast %151 : vector<1x1x1x64x32xbf16> to vector<1x64x32xbf16>
    %153 = vector.shape_cast %152 : vector<1x64x32xbf16> to vector<64x32xbf16>
    %c0_251 = arith.constant 0 : index
    %c256_252 = arith.constant 256 : index
    %154 = vector.load %arg5[%c0_251, %c256_252] : memref<64x288xbf16, #tpu.memory_space<vmem>>, vector<64x32xbf16>
    tpu.vector_store %arg5[%c0_251, %c256_252], %153 {strides = array<i32>} : memref<64x288xbf16, #tpu.memory_space<vmem>>, vector<64x32xbf16>,
    %c0_253 = arith.constant 0 : index
    %c0_254 = arith.constant 0 : index
    %155 = vector.load %arg5[%c0_253, %c0_254] : memref<64x288xbf16, #tpu.memory_space<vmem>>, vector<64x288xbf16>
    %c0_255 = arith.constant 0 : index
    %c0_256 = arith.constant 0 : index
    %156 = vector.load %arg2[%c0_255, %c0_256] : memref<288x64xbf16, #tpu.memory_space<vmem>>, vector<288x64xbf16>
    %cst_257 = arith.constant dense<0.000000e+00> : vector<64x64xf32>
    %157 = tpu.matmul %155, %156, %cst_257 {dimension_numbers = #tpu.dot_dimension_numbers<[1], [0], [0], [1], [0, 0, 1, 1], [], []>} : vector<64x288xbf16>, vector<288x64xbf16>, vector<64x64xf32> -> vector<64x64xf32>
    %158 = arith.maximumf %118, %157 : vector<64x64xf32>
    %c0_258 = arith.constant 0 : index
    %c0_259 = arith.constant 0 : index
    %159 = vector.load %arg3[%c0_258, %c0_259] : memref<1x64xf32, #tpu.memory_space<vmem>>, vector<1x64xf32>
    %160 = vector.broadcast %159 : vector<1x64xf32> to vector<64x64xf32>
    %161 = arith.addf %158, %160 : vector<64x64xf32>
    %cst_260 = arith.constant 0.000000e+00 : f32
    %162 = vector.broadcast %cst_260 : f32 to vector<64x64xf32>
    %163 = arith.maximumf %161, %162 : vector<64x64xf32>
    %164 = vector.shape_cast %163 : vector<64x64xf32> to vector<1x64x64xf32>
    %165 = arith.truncf %164 : vector<1x64x64xf32> to vector<1x64x64xbf16>
    %c0_261 = arith.constant 0 : index
    %c0_262 = arith.constant 0 : index
    %c0_263 = arith.constant 0 : index
    %166 = vector.load %arg4[%c0_261, %c0_262, %c0_263] : memref<1x64x64xbf16, #tpu.memory_space<vmem>>, vector<1x64x64xbf16>
    tpu.vector_store %arg4[%c0_261, %c0_262, %c0_263], %165 {strides = array<i32>} : memref<1x64x64xbf16, #tpu.memory_space<vmem>>, vector<1x64x64xbf16>,
    return
  }
  func.func @transform_0(%arg0: i32) -> (i32, i32, i32, i32, i32) {
    %c0_i32 = arith.constant 0 : i32
    %c0_i32_0 = arith.constant 0 : i32
    %c0_i32_1 = arith.constant 0 : i32
    %c0_i32_2 = arith.constant 0 : i32
    %c0_i32_3 = arith.constant 0 : i32
    return %arg0, %c0_i32, %c0_i32_0, %c0_i32_1, %c0_i32_2 : i32, i32, i32, i32, i32
  }
  func.func @transform_1(%arg0: i32) -> (i32, i32) {
    %c0_i32 = arith.constant 0 : i32
    %c0_i32_0 = arith.constant 0 : i32
    %c0_i32_1 = arith.constant 0 : i32
    return %c0_i32, %c0_i32_0 : i32, i32
  }
  func.func @transform_2(%arg0: i32) -> (i32, i32) {
    %c0_i32 = arith.constant 0 : i32
    %c0_i32_0 = arith.constant 0 : i32
    %c0_i32_1 = arith.constant 0 : i32
    return %c0_i32, %c0_i32_0 : i32, i32
  }
  func.func @transform_3(%arg0: i32) -> (i32, i32, i32) {
    %c0_i32 = arith.constant 0 : i32
    %c0_i32_0 = arith.constant 0 : i32
    %c0_i32_1 = arith.constant 0 : i32
    return %arg0, %c0_i32, %c0_i32_0 : i32, i32, i32
  }
}

module attributes {stable_mosaic.version = 11 : i64} {
  func.func @_fc_heads_kernel(%arg0: i32, %arg1: memref<8x4096xbf16, #tpu.memory_space<vmem>>, %arg2: memref<4096x128xbf16, #tpu.memory_space<vmem>>, %arg3: memref<1x128xf32, #tpu.memory_space<vmem>>, %arg4: memref<128x128xbf16, #tpu.memory_space<vmem>>, %arg5: memref<1x128xf32, #tpu.memory_space<vmem>>, %arg6: memref<8x128xf32, #tpu.memory_space<vmem>>) attributes {dimension_semantics = [#tpu.dimension_semantics<parallel>], iteration_bounds = array<i64: 1>, scalar_prefetch = 0 : i64, scratch_operands = 0 : i64, tpu.core_type = #tpu.core_type<tc>, window_params = [{transform_indices = @transform_0, window_bounds = array<i64: 8, 4096>}, {pipeline_mode = #tpu.pipeline_mode<synchronous>, transform_indices = @transform_1, window_bounds = array<i64: 4096, 128>}, {pipeline_mode = #tpu.pipeline_mode<synchronous>, transform_indices = @transform_2, window_bounds = array<i64: 1, 128>}, {pipeline_mode = #tpu.pipeline_mode<synchronous>, transform_indices = @transform_3, window_bounds = array<i64: 128, 128>}, {pipeline_mode = #tpu.pipeline_mode<synchronous>, transform_indices = @transform_4, window_bounds = array<i64: 1, 128>}, {transform_indices = @transform_5, window_bounds = array<i64: 8, 128>}]} {
    %c0 = arith.constant 0 : index
    %c0_0 = arith.constant 0 : index
    %0 = vector.load %arg1[%c0, %c0_0] : memref<8x4096xbf16, #tpu.memory_space<vmem>>, vector<8x4096xbf16>
    %c0_1 = arith.constant 0 : index
    %c0_2 = arith.constant 0 : index
    %1 = vector.load %arg2[%c0_1, %c0_2] : memref<4096x128xbf16, #tpu.memory_space<vmem>>, vector<4096x128xbf16>
    %cst = arith.constant dense<0.000000e+00> : vector<8x128xf32>
    %2 = tpu.matmul %0, %1, %cst {dimension_numbers = #tpu.dot_dimension_numbers<[1], [0], [0], [1], [0, 0, 1, 1], [], []>} : vector<8x4096xbf16>, vector<4096x128xbf16>, vector<8x128xf32> -> vector<8x128xf32>
    %c0_3 = arith.constant 0 : index
    %c0_4 = arith.constant 0 : index
    %3 = vector.load %arg3[%c0_3, %c0_4] : memref<1x128xf32, #tpu.memory_space<vmem>>, vector<1x128xf32>
    %4 = vector.broadcast %3 : vector<1x128xf32> to vector<8x128xf32>
    %5 = arith.addf %2, %4 : vector<8x128xf32>
    %cst_5 = arith.constant 0.000000e+00 : f32
    %6 = vector.broadcast %cst_5 : f32 to vector<8x128xf32>
    %7 = arith.maximumf %5, %6 : vector<8x128xf32>
    %8 = arith.truncf %7 : vector<8x128xf32> to vector<8x128xbf16>
    %c0_6 = arith.constant 0 : index
    %c0_7 = arith.constant 0 : index
    %9 = vector.load %arg4[%c0_6, %c0_7] : memref<128x128xbf16, #tpu.memory_space<vmem>>, vector<128x128xbf16>
    %cst_8 = arith.constant dense<0.000000e+00> : vector<8x128xf32>
    %10 = tpu.matmul %8, %9, %cst_8 {dimension_numbers = #tpu.dot_dimension_numbers<[1], [0], [0], [1], [0, 0, 1, 1], [], []>} : vector<8x128xbf16>, vector<128x128xbf16>, vector<8x128xf32> -> vector<8x128xf32>
    %c0_9 = arith.constant 0 : index
    %c0_10 = arith.constant 0 : index
    %11 = vector.load %arg5[%c0_9, %c0_10] : memref<1x128xf32, #tpu.memory_space<vmem>>, vector<1x128xf32>
    %12 = vector.broadcast %11 : vector<1x128xf32> to vector<8x128xf32>
    %13 = arith.addf %10, %12 : vector<8x128xf32>
    %c0_11 = arith.constant 0 : index
    %c0_12 = arith.constant 0 : index
    %14 = vector.load %arg6[%c0_11, %c0_12] : memref<8x128xf32, #tpu.memory_space<vmem>>, vector<8x128xf32>
    tpu.vector_store %arg6[%c0_11, %c0_12], %13 {strides = array<i32>} : memref<8x128xf32, #tpu.memory_space<vmem>>, vector<8x128xf32>,
    return
  }
  func.func @transform_0(%arg0: i32) -> (i32, i32) {
    %c0_i32 = arith.constant 0 : i32
    %c0_i32_0 = arith.constant 0 : i32
    return %arg0, %c0_i32 : i32, i32
  }
  func.func @transform_1(%arg0: i32) -> (i32, i32) {
    %c0_i32 = arith.constant 0 : i32
    %c0_i32_0 = arith.constant 0 : i32
    %c0_i32_1 = arith.constant 0 : i32
    return %c0_i32, %c0_i32_0 : i32, i32
  }
  func.func @transform_2(%arg0: i32) -> (i32, i32) {
    %c0_i32 = arith.constant 0 : i32
    %c0_i32_0 = arith.constant 0 : i32
    %c0_i32_1 = arith.constant 0 : i32
    return %c0_i32, %c0_i32_0 : i32, i32
  }
  func.func @transform_3(%arg0: i32) -> (i32, i32) {
    %c0_i32 = arith.constant 0 : i32
    %c0_i32_0 = arith.constant 0 : i32
    %c0_i32_1 = arith.constant 0 : i32
    return %c0_i32, %c0_i32_0 : i32, i32
  }
  func.func @transform_4(%arg0: i32) -> (i32, i32) {
    %c0_i32 = arith.constant 0 : i32
    %c0_i32_0 = arith.constant 0 : i32
    %c0_i32_1 = arith.constant 0 : i32
    return %c0_i32, %c0_i32_0 : i32, i32
  }
  func.func @transform_5(%arg0: i32) -> (i32, i32) {
    %c0_i32 = arith.constant 0 : i32
    %c0_i32_0 = arith.constant 0 : i32
    return %arg0, %c0_i32 : i32, i32
  }
}

</mosaic_0001>

<llo_original>
// kernel: rotated_nn_forward.3
$region0: #{rotated_nn_forward.3}
  #allocation0 [shape = 'u32[]', space=smem, size = 0x4, offset = 0x4, fixed_abs, tag = 'smem constant byte address 0x4 - core index']
  #allocation1 [shape = 'u32[144,128]{1,0:T(1,128)}', space=vmem, size = 0x12000, scoped, tag = 'internal scratch']
  %s0 = inlined_call_operand.vmem [shape: bf16[2,4,208,9], index: 0, kind: input, shape index: {}]
  %s1 = inlined_call_operand.vmem [shape: bf16[9,32], index: 1, kind: input, shape index: {}]
  %s2 = inlined_call_operand.vmem [shape: f32[1,32], index: 2, kind: input, shape index: {}]
  %s3 = inlined_call_operand.vmem [shape: bf16[2,196,32], index: 3, kind: output, shape index: {}]
  %s4 = sld [smem:[#allocation0]]
  $region45: #{rotated_nn_forward.3} parent=0
    _
  %s6 = ssub.s32 1, %s4
  %s7 = scalar_select 0, %s6, %s4
  loop: start=0, step=1, limit=4
  $region2: #{rotated_nn_forward.3} parent=0 // loop_pre_header
    _
  $region3: #{rotated_nn_forward.3} parent=0 // loop_header
    %s9 = sphi 0, %s13
    %p10 = scmp.ge.s32.totalorder %s9, 4
    %s19 = sphi 0, %s21
    %s22 = sphi 0, %s19
    %s23 = sphi 0, %s22
    %s39 = sphi 0, %s23
    %s43 = sphi 0, %s43
    %s45 = sphi 0, %s43
    %s46 = sphi 0, %s45
    %s60 = sphi 0, %s46
    %s64 = sphi 0, %s64
    %s66 = sphi 0, %s64
    %s67 = sphi 0, %s66
    %s81 = sphi 0, %s67
    %s87 = sphi 0, %s89
    %s90 = sphi 0, %s87
    %s91 = sphi 0, %s90
    %s107 = sphi 0, %s91
  $region4: #{rotated_nn_forward.3} parent=0 // loop_header_branch
    %12 = sbr.rel (%p10) target = $region8
  $region5: #{rotated_nn_forward.3} parent=0 // loop_body
    %s14 = ssub.s32 %s9, 1
    %s15 = ssub.s32 %s9, 2
    %s16 = sadd.s32 %s9, 1
    %s17 = ssub.s32 %s9, %s16
    %p18 = scmp.eq.s32.totalorder %s17, 0
    %s20 = sadd.s32 %s19, 1
    %s21 = scalar_select %p18, %s19, %s20
    %p24 = pneg %p18
    %p25 = scmp.eq.s32.totalorder %s9, 1
    %p26 = por %p24, %p25
    %p27 = scmp.ne.s32.totalorder %s19, %s22
    %p28 = scmp.eq.s32.totalorder %s9, 0
    %p29 = por %p27, %p28
    %p30 = scmp.ne.s32.totalorder %s19, %s22
    %p31 = scmp.eq.s32.totalorder %s14, 1
    %p32 = por %p30, %p31
    %p33 = scmp.ne.s32.totalorder %s22, %s23
    %p34 = scmp.eq.s32.totalorder %s14, 0
    %p35 = por %p33, %p34
    %p36 = scmp.ne.s32.totalorder %s22, %s23
    %p37 = scmp.eq.s32.totalorder %s15, 1
    %p38 = por %p36, %p37
    %p40 = scmp.ne.s32.totalorder %s23, %s39
    %p41 = scmp.eq.s32.totalorder %s15, 0
    %p42 = por %p40, %p41
    %s44 = sadd.s32 %s43, 1
    %p47 = scmp.eq.s32.totalorder %s9, 1
    %p48 = scmp.ne.s32.totalorder %s43, %s45
    %p49 = scmp.eq.s32.totalorder %s9, 0
    %p50 = por %p48, %p49
    %p51 = scmp.ne.s32.totalorder %s43, %s45
    %p52 = scmp.eq.s32.totalorder %s14, 1
    %p53 = por %p51, %p52
    %p54 = scmp.ne.s32.totalorder %s45, %s46
    %p55 = scmp.eq.s32.totalorder %s14, 0
    %p56 = por %p54, %p55
    %p57 = scmp.ne.s32.totalorder %s45, %s46
    %p58 = scmp.eq.s32.totalorder %s15, 1
    %p59 = por %p57, %p58
    %p61 = scmp.ne.s32.totalorder %s46, %s60
    %p62 = scmp.eq.s32.totalorder %s15, 0
    %p63 = por %p61, %p62
    %s65 = sadd.s32 %s64, 1
    %p68 = scmp.eq.s32.totalorder %s9, 1
    %p69 = scmp.ne.s32.totalorder %s64, %s66
    %p70 = scmp.eq.s32.totalorder %s9, 0
    %p71 = por %p69, %p70
    %p72 = scmp.ne.s32.totalorder %s64, %s66
    %p73 = scmp.eq.s32.totalorder %s14, 1
    %p74 = por %p72, %p73
    %p75 = scmp.ne.s32.totalorder %s66, %s67
    %p76 = scmp.eq.s32.totalorder %s14, 0
    %p77 = por %p75, %p76
    %p78 = scmp.ne.s32.totalorder %s66, %s67
    %p79 = scmp.eq.s32.totalorder %s15, 1
    %p80 = por %p78, %p79
    %p82 = scmp.ne.s32.totalorder %s67, %s81
    %p83 = scmp.eq.s32.totalorder %s15, 0
    %p84 = por %p82, %p83
    %s85 = ssub.s32 %s9, %s16
    %p86 = scmp.eq.s32.totalorder %s85, 0
    %s88 = sadd.s32 %s87, 1
    %s89 = scalar_select %p86, %s87, %s88
    %p92 = pneg %p86
    %p93 = scmp.eq.s32.totalorder %s9, 1
    %p94 = por %p92, %p93
    %p95 = scmp.ne.s32.totalorder %s87, %s90
    %p96 = scmp.eq.s32.totalorder %s9, 0
    %p97 = por %p95, %p96
    %p98 = scmp.ne.s32.totalorder %s87, %s90
    %p99 = scmp.eq.s32.totalorder %s14, 1
    %p100 = por %p98, %p99
    %p101 = scmp.ne.s32.totalorder %s90, %s91
    %p102 = scmp.eq.s32.totalorder %s14, 0
    %p103 = por %p101, %p102
    %p104 = scmp.ne.s32.totalorder %s90, %s91
    %p105 = scmp.eq.s32.totalorder %s15, 1
    %p106 = por %p104, %p105
    %p108 = scmp.ne.s32.totalorder %s91, %s107
    %p109 = scmp.eq.s32.totalorder %s15, 0
    %p110 = por %p108, %p109
    %p111 = scmp.le.s32.totalorder 1, %s9
    %p112 = scmp.lt.s32.totalorder %s9, 3
    %p113 = pnand %p111, %p112
    %p114 = pneg %p113
    // Predicated region
    $region9: #{rotated_nn_forward.3} parent=5 // pred_check
      _
    $region10: #{rotated_nn_forward.3} parent=5 // pred_check_branch
      %116 = sbr.rel (%p113) target = $region12
    $region11: #{rotated_nn_forward.3} parent=5 // pred_region
      %s117 = ssub.s32 %s9, 1
      // Predicated region
      $region13: #{rotated_nn_forward.3} parent=11 // pred_check
        %p118 = pneg %p56
      $region14: #{rotated_nn_forward.3} parent=11 // pred_check_branch
        %120 = sbr.rel (%p118) target = $region16
      $region15: #{rotated_nn_forward.3} parent=11 // pred_region
        _
      $region16: #{rotated_nn_forward.3} parent=11 // pred_fallthru
        _
      // Predicated region
      $region17: #{rotated_nn_forward.3} parent=11 // pred_check
        %p121 = pneg %p77
      $region18: #{rotated_nn_forward.3} parent=11 // pred_check_branch
        %123 = sbr.rel (%p121) target = $region20
      $region19: #{rotated_nn_forward.3} parent=11 // pred_region
        _
      $region20: #{rotated_nn_forward.3} parent=11 // pred_fallthru
        _
    $region12: #{rotated_nn_forward.3} parent=5 // pred_fallthru
      _
    %p124 = scmp.lt.s32.totalorder %s9, 2
    // Predicated region
    $region21: #{rotated_nn_forward.3} parent=5 // pred_check
      %p125 = pneg %p124
    $region22: #{rotated_nn_forward.3} parent=5 // pred_check_branch
      %127 = sbr.rel (%p125) target = $region24
    $region23: #{rotated_nn_forward.3} parent=5 // pred_region
      // Predicated region
      $region25: #{rotated_nn_forward.3} parent=23 // pred_check
        %p128 = pneg %p29
      $region26: #{rotated_nn_forward.3} parent=23 // pred_check_branch
        %130 = sbr.rel (%p128) target = $region28
      $region27: #{rotated_nn_forward.3} parent=23 // pred_region
        %p131 = scmp.lt.s32.totalorder %s9, 1
        %s132 = scalar_select %p131, %s9, 1
        %s133 = smul.addr %s132, 104
        %s134 = smul.addr %s133, 4
        %s135 = scalar_lea.vmem %s0, %s134
      $region28: #{rotated_nn_forward.3} parent=23 // pred_fallthru
        _
    $region24: #{rotated_nn_forward.3} parent=5 // pred_fallthru
      _
    %p136 = scmp.le.s32.totalorder 1, %s9
    %p137 = scmp.lt.s32.totalorder %s9, 3
    %p138 = pnand %p136, %p137
    %p139 = pneg %p138
    // Predicated region
    $region29: #{rotated_nn_forward.3} parent=5 // pred_check
      _
    $region30: #{rotated_nn_forward.3} parent=5 // pred_check_branch
      %141 = sbr.rel (%p138) target = $region32
    $region31: #{rotated_nn_forward.3} parent=5 // pred_region
      %s142 = ssub.s32 %s9, 1
      %p143 = scmp.lt.s32.totalorder %s14, 1
      %s144 = scalar_select %p143, %s14, 1
      %s145 = smul.addr %s144, 104
      %s146 = smul.addr %s145, 4
      %s147 = scalar_lea.vmem %s0, %s146
      %p148 = pneg %p35
      %p149 = pneg %p32
      %p150 = pneg %p56
      %p151 = pneg %p53
      %p152 = pneg %p77
      %p153 = pneg %p74
      %p154 = pneg %p103
      %p155 = pneg %p100
      %p156 = scmp.lt.s32.totalorder %s14, 1
      %s157 = scalar_select %p156, %s14, 1
      %s158 = smul.addr %s157, 25
      %s159 = smul.addr %s158, 4
      %s160 = scalar_lea.vmem %s3, %s159
      %p161 = scmp.lt.s32.totalorder %s14, 1
      %s162 = scalar_select %p161, %s14, 1
      %s163 = smul.addr %s162, 104
      %s164 = smul.addr %s163, 4
      %s165 = scalar_lea.vmem %s0, %s164
      %p166 = scmp.lt.s32.totalorder %s14, 1
      %s167 = scalar_select %p166, %s14, 1
      %s168 = smul.addr %s167, 25
      %s169 = smul.addr %s168, 4
      %s170 = scalar_lea.vmem %s3, %s169
      %v172 = vld [vmem:[%s165] sm:$0xf]
      %v173 = vld [vmem:[%s165 + $0x4] sm:$0xf]
      %v174 = vld [vmem:[%s165 + $0x8] sm:$0xf]
      %v175 = vld [vmem:[%s165 + $0xc] sm:$0xf]
      %v176 = vld [vmem:[%s165 + $0x10] sm:$0xf]
      %v177 = vld [vmem:[%s165 + $0x14] sm:$0xf]
      %v178 = vld [vmem:[%s165 + $0x18] sm:$0xf]
      %v179 = vld [vmem:[%s165 + $0x1c] sm:$0xf]
      %v180 = vld [vmem:[%s165 + $0x20] sm:$0xf]
      %v181 = vld [vmem:[%s165 + $0x24] sm:$0xf]
      %v182 = vld [vmem:[%s165 + $0x28] sm:$0xf]
      %v183 = vld [vmem:[%s165 + $0x2c] sm:$0xf]
      %v184 = vld [vmem:[%s165 + $0x30] sm:$0xf]
      %v185 = vld [vmem:[%s165 + $0x34] sm:$0xf]
      %v186 = vld [vmem:[%s165 + $0x38] sm:$0xf]
      %v187 = vld [vmem:[%s165 + $0x3c] sm:$0xf]
      %v188 = vld [vmem:[%s165 + $0x40] sm:$0xf]
      %v189 = vld [vmem:[%s165 + $0x44] sm:$0xf]
      %v190 = vld [vmem:[%s165 + $0x48] sm:$0xf]
      %v191 = vld [vmem:[%s165 + $0x4c] sm:$0xf]
      %v192 = vld [vmem:[%s165 + $0x50] sm:$0xf]
      %v193 = vld [vmem:[%s165 + $0x54] sm:$0xf]
      %v194 = vld [vmem:[%s165 + $0x58] sm:$0xf]
      %v195 = vld [vmem:[%s165 + $0x5c] sm:$0xf]
      %v196 = vld [vmem:[%s165 + $0x60] sm:$0xf]
      %v197 = vld [vmem:[%s165 + $0x64] sm:$0xf]
      %v198 = vld [vmem:[%s165 + $0x68] sm:$0xf]
      %v199 = vld [vmem:[%s165 + $0x6c] sm:$0xf]
      %v200 = vld [vmem:[%s165 + $0x70] sm:$0xf]
      %v201 = vld [vmem:[%s165 + $0x74] sm:$0xf]
      %v202 = vld [vmem:[%s165 + $0x78] sm:$0xf]
      %v203 = vld [vmem:[%s165 + $0x7c] sm:$0xf]
      %v204 = vld [vmem:[%s165 + $0x80] sm:$0xf]
      %v205 = vld [vmem:[%s165 + $0x84] sm:$0xf]
      %v206 = vld [vmem:[%s165 + $0x88] sm:$0xf]
      %v207 = vld [vmem:[%s165 + $0x8c] sm:$0xf]
      %v208 = vld [vmem:[%s165 + $0x90] sm:$0xf]
      %v209 = vld [vmem:[%s165 + $0x94] sm:$0xf]
      %v210 = vld [vmem:[%s165 + $0x98] sm:$0xf]
      %v211 = vld [vmem:[%s165 + $0x9c] sm:$0xf]
      %v212 = vld [vmem:[%s165 + $0xa0] sm:$0xf]
      %v213 = vld [vmem:[%s165 + $0xa4] sm:$0xf]
      %v214 = vld [vmem:[%s165 + $0xa8] sm:$0xf]
      %v215 = vld [vmem:[%s165 + $0xac] sm:$0xf]
      %v216 = vld [vmem:[%s165 + $0xb0] sm:$0xf]
      %v217 = vld [vmem:[%s165 + $0xb4] sm:$0xf]
      %v218 = vld [vmem:[%s165 + $0xb8] sm:$0xf]
      %v219 = vld [vmem:[%s165 + $0xbc] sm:$0xf]
      %v220 = vld [vmem:[%s165 + $0xc0] sm:$0xf]
      %v221 = vld [vmem:[%s165 + $0xc4] sm:$0xf]
      %v222 = vld [vmem:[%s165 + $0xc8] sm:$0xf]
      %v223 = vld [vmem:[%s165 + $0xcc] sm:$0xf]
      %v224 = vld [vmem:[%s165 + $0xd0] sm:$0xf]
      %v225 = vld [vmem:[%s165 + $0xd4] sm:$0xf]
      %v226 = vld [vmem:[%s165 + $0xd8] sm:$0xf]
      %v227 = vld [vmem:[%s165 + $0xdc] sm:$0xf]
      %v228 = vld [vmem:[%s165 + $0xe0] sm:$0xf]
      %v229 = vld [vmem:[%s165 + $0xe4] sm:$0xf]
      %v230 = vld [vmem:[%s165 + $0xe8] sm:$0xf]
      %v231 = vld [vmem:[%s165 + $0xec] sm:$0xf]
      %v232 = vld [vmem:[%s165 + $0xf0] sm:$0xf]
      %v233 = vld [vmem:[%s165 + $0xf4] sm:$0xf]
      %v234 = vld [vmem:[%s165 + $0xf8] sm:$0xf]
      %v235 = vld [vmem:[%s165 + $0xfc] sm:$0xf]
      %v236 = vld [vmem:[%s165 + $0x100] sm:$0xf]
      %v237 = vld [vmem:[%s165 + $0x104] sm:$0xf]
      %v238 = vld [vmem:[%s165 + $0x108] sm:$0xf]
      %v239 = vld [vmem:[%s165 + $0x10c] sm:$0xf]
      %v240 = vld [vmem:[%s165 + $0x110] sm:$0xf]
      %v241 = vld [vmem:[%s165 + $0x114] sm:$0xf]
      %v242 = vld [vmem:[%s165 + $0x118] sm:$0xf]
      %v243 = vld [vmem:[%s165 + $0x11c] sm:$0xf]
      %v244 = vld [vmem:[%s165 + $0x120] sm:$0xf]
      %v245 = vld [vmem:[%s165 + $0x124] sm:$0xf]
      %v246 = vld [vmem:[%s165 + $0x128] sm:$0xf]
      %v247 = vld [vmem:[%s165 + $0x12c] sm:$0xf]
      %v248 = vld [vmem:[%s165 + $0x130] sm:$0xf]
      %v249 = vld [vmem:[%s165 + $0x134] sm:$0xf]
      %v250 = vld [vmem:[%s165 + $0x138] sm:$0xf]
      %v251 = vld [vmem:[%s165 + $0x13c] sm:$0xf]
      %v252 = vld [vmem:[%s165 + $0x140] sm:$0xf]
      %v253 = vld [vmem:[%s165 + $0x144] sm:$0xf]
      %v254 = vld [vmem:[%s165 + $0x148] sm:$0xf]
      %v255 = vld [vmem:[%s165 + $0x14c] sm:$0xf]
      %v256 = vld [vmem:[%s165 + $0x150] sm:$0xf]
      %v257 = vld [vmem:[%s165 + $0x154] sm:$0xf]
      %v258 = vld [vmem:[%s165 + $0x158] sm:$0xf]
      %v259 = vld [vmem:[%s165 + $0x15c] sm:$0xf]
      %v260 = vld [vmem:[%s165 + $0x160] sm:$0xf]
      %v261 = vld [vmem:[%s165 + $0x164] sm:$0xf]
      %v262 = vld [vmem:[%s165 + $0x168] sm:$0xf]
      %v263 = vld [vmem:[%s165 + $0x16c] sm:$0xf]
      %v264 = vld [vmem:[%s165 + $0x170] sm:$0xf]
      %v265 = vld [vmem:[%s165 + $0x174] sm:$0xf]
      %v266 = vld [vmem:[%s165 + $0x178] sm:$0xf]
      %v267 = vld [vmem:[%s165 + $0x17c] sm:$0xf]
      %v268 = vld [vmem:[%s165 + $0x180] sm:$0xf]
      %v269 = vld [vmem:[%s165 + $0x184] sm:$0xf]
      %v270 = vld [vmem:[%s165 + $0x188] sm:$0xf]
      %v271 = vld [vmem:[%s165 + $0x18c] sm:$0xf]
      %v272 = vld [vmem:[%s165 + $0x190] sm:$0xf]
      %v273 = vld [vmem:[%s165 + $0x194] sm:$0xf]
      %v274 = vld [vmem:[%s165 + $0x198] sm:$0xf]
      %v275 = vld [vmem:[%s165 + $0x19c] sm:$0xf]
      %v276 = vld [vmem:[%s1] sm:$0xf]
      %v277 = vld [vmem:[%s1 + $0x4] sm:$0x1]
      %v382 = vunpack.c.l.b16 %v172
      %v383 = vunpack.c.l.b16 %v173
      %v384 = vunpack.c.l.b16 %v174
      %v385 = vunpack.c.l.b16 %v175
      %v386 = vunpack.c.l.b16 %v176
      %v387 = vunpack.c.l.b16 %v177
      %v388 = vunpack.c.l.b16 %v178
      %v389 = vunpack.c.l.b16 %v179
      %v390 = vunpack.c.l.b16 %v180
      %v391 = vunpack.c.l.b16 %v181
      %v392 = vunpack.c.l.b16 %v182
      %v393 = vunpack.c.l.b16 %v183
      %v394 = vunpack.c.l.b16 %v184
      %v395 = vunpack.c.l.b16 %v185
      %v396 = vunpack.c.l.b16 %v186
      %v397 = vunpack.c.l.b16 %v187
      %v398 = vunpack.c.l.b16 %v188
      %v399 = vunpack.c.l.b16 %v189
      %v400 = vunpack.c.l.b16 %v190
      %v401 = vunpack.c.l.b16 %v191
      %v402 = vunpack.c.l.b16 %v192
      %v403 = vunpack.c.l.b16 %v193
      %v404 = vunpack.c.l.b16 %v194
      %v405 = vunpack.c.l.b16 %v195
      %v406 = vunpack.c.l.b16 %v196
      %v407 = vunpack.c.l.b16 %v197
      %v408 = vunpack.c.l.b16 %v198
      %v409 = vunpack.c.l.b16 %v199
      %v410 = vunpack.c.l.b16 %v200
      %v411 = vunpack.c.l.b16 %v201
      %v412 = vunpack.c.l.b16 %v202
      %v413 = vunpack.c.l.b16 %v203
      %v414 = vunpack.c.l.b16 %v204
      %v415 = vunpack.c.l.b16 %v205
      %v416 = vunpack.c.l.b16 %v206
      %v417 = vunpack.c.l.b16 %v207
      %v418 = vunpack.c.l.b16 %v208
      %v419 = vunpack.c.l.b16 %v209
      %v420 = vunpack.c.l.b16 %v210
      %v421 = vunpack.c.l.b16 %v211
      %v422 = vunpack.c.l.b16 %v212
      %v423 = vunpack.c.l.b16 %v213
      %v424 = vunpack.c.l.b16 %v214
      %v425 = vunpack.c.l.b16 %v215
      %v426 = vunpack.c.l.b16 %v216
      %v427 = vunpack.c.l.b16 %v217
      %v428 = vunpack.c.l.b16 %v218
      %v429 = vunpack.c.l.b16 %v219
      %v430 = vunpack.c.l.b16 %v220
      %v431 = vunpack.c.l.b16 %v221
      %v432 = vunpack.c.l.b16 %v222
      %v433 = vunpack.c.l.b16 %v223
      %v434 = vunpack.c.l.b16 %v224
      %v435 = vunpack.c.l.b16 %v225
      %v436 = vunpack.c.l.b16 %v226
      %v437 = vunpack.c.l.b16 %v227
      %v438 = vunpack.c.l.b16 %v228
      %v439 = vunpack.c.l.b16 %v229
      %v440 = vunpack.c.l.b16 %v230
      %v441 = vunpack.c.l.b16 %v231
      %v442 = vunpack.c.l.b16 %v232
      %v443 = vunpack.c.l.b16 %v233
      %v444 = vunpack.c.l.b16 %v234
      %v445 = vunpack.c.l.b16 %v235
      %v446 = vunpack.c.l.b16 %v236
      %v447 = vunpack.c.l.b16 %v237
      %v448 = vunpack.c.l.b16 %v238
      %v449 = vunpack.c.l.b16 %v239
      %v450 = vunpack.c.l.b16 %v240
      %v451 = vunpack.c.l.b16 %v241
      %v452 = vunpack.c.l.b16 %v242
      %v453 = vunpack.c.l.b16 %v243
      %v454 = vunpack.c.l.b16 %v244
      %v455 = vunpack.c.l.b16 %v245
      %v456 = vunpack.c.l.b16 %v246
      %v457 = vunpack.c.l.b16 %v247
      %v458 = vunpack.c.l.b16 %v248
      %v459 = vunpack.c.l.b16 %v249
      %v460 = vunpack.c.l.b16 %v250
      %v461 = vunpack.c.l.b16 %v251
      %v462 = vunpack.c.l.b16 %v252
      %v463 = vunpack.c.l.b16 %v253
      %v464 = vunpack.c.l.b16 %v254
      %v465 = vunpack.c.l.b16 %v255
      %v466 = vunpack.c.l.b16 %v256
      %v467 = vunpack.c.l.b16 %v257
      %v468 = vunpack.c.l.b16 %v258
      %v469 = vunpack.c.l.b16 %v259
      %v470 = vunpack.c.l.b16 %v260
      %v471 = vunpack.c.l.b16 %v261
      %v472 = vunpack.c.l.b16 %v262
      %v473 = vunpack.c.l.b16 %v263
      %v474 = vunpack.c.l.b16 %v264
      %v475 = vunpack.c.l.b16 %v265
      %v476 = vunpack.c.l.b16 %v266
      %v477 = vunpack.c.l.b16 %v267
      %v478 = vunpack.c.l.b16 %v268
      %v479 = vunpack.c.l.b16 %v269
      %v480 = vunpack.c.l.b16 %v270
      %v481 = vunpack.c.l.b16 %v271
      %v482 = vunpack.c.l.b16 %v272
      %v483 = vunpack.c.l.b16 %v273
      %v484 = vunpack.c.l.b16 %v274
      %v485 = vunpack.c.l.b16 %v275
      %v486 = vpack.c.b16 %v383, %v382
      %v487 = vpack.c.b16 %v385, %v384
      %v488 = vpack.c.b16 %v387, %v386
      %v489 = vpack.c.b16 %v389, %v388
      %v490 = vpack.c.b16 %v391, %v390
      %v491 = vpack.c.b16 %v393, %v392
      %v492 = vpack.c.b16 %v395, %v394
      %v493 = vpack.c.b16 %v397, %v396
      %v494 = vpack.c.b16 %v399, %v398
      %v495 = vpack.c.b16 %v401, %v400
      %v496 = vpack.c.b16 %v403, %v402
      %v497 = vpack.c.b16 %v405, %v404
      %v498 = vpack.c.b16 %v407, %v406
      %v499 = vpack.c.b16 %v409, %v408
      %v500 = vpack.c.b16 %v411, %v410
      %v501 = vpack.c.b16 %v413, %v412
      %v502 = vpack.c.b16 %v415, %v414
      %v503 = vpack.c.b16 %v417, %v416
      %v504 = vpack.c.b16 %v419, %v418
      %v505 = vpack.c.b16 %v421, %v420
      %v506 = vpack.c.b16 %v423, %v422
      %v507 = vpack.c.b16 %v425, %v424
      %v508 = vpack.c.b16 %v427, %v426
      %v509 = vpack.c.b16 %v429, %v428
      %v510 = vpack.c.b16 %v431, %v430
      %v511 = vpack.c.b16 %v433, %v432
      %v512 = vpack.c.b16 %v435, %v434
      %v513 = vpack.c.b16 %v437, %v436
      %v514 = vpack.c.b16 %v439, %v438
      %v515 = vpack.c.b16 %v441, %v440
      %v516 = vpack.c.b16 %v443, %v442
      %v517 = vpack.c.b16 %v445, %v444
      %v518 = vpack.c.b16 %v447, %v446
      %v519 = vpack.c.b16 %v449, %v448
      %v520 = vpack.c.b16 %v451, %v450
      %v521 = vpack.c.b16 %v453, %v452
      %v522 = vpack.c.b16 %v455, %v454
      %v523 = vpack.c.b16 %v457, %v456
      %v524 = vpack.c.b16 %v459, %v458
      %v525 = vpack.c.b16 %v461, %v460
      %v526 = vpack.c.b16 %v463, %v462
      %v527 = vpack.c.b16 %v465, %v464
      %v528 = vpack.c.b16 %v467, %v466
      %v529 = vpack.c.b16 %v469, %v468
      %v530 = vpack.c.b16 %v471, %v470
      %v531 = vpack.c.b16 %v473, %v472
      %v532 = vpack.c.b16 %v475, %v474
      %v533 = vpack.c.b16 %v477, %v476
      %v534 = vpack.c.b16 %v479, %v478
      %v535 = vpack.c.b16 %v481, %v480
      %v536 = vpack.c.b16 %v483, %v482
      %v537 = vpack.c.b16 %v485, %v484
      %v540 = vunpack.c.l.b16 %v276
      %v541 = vunpack.c.l.b16 %v277
      %v542 = vpack.c.b16 %v541, %v540
      %vm543 = vcmask 72704
      %v545 = vsel %vm543, %v486, 0
      %v548 = vsel %vm543, %v487, 0
      %v551 = vsel %vm543, %v488, 0
      %v554 = vsel %vm543, %v489, 0
      %v557 = vsel %vm543, %v490, 0
      %v560 = vsel %vm543, %v491, 0
      %v563 = vsel %vm543, %v492, 0
      %v566 = vsel %vm543, %v493, 0
      %v569 = vsel %vm543, %v494, 0
      %v572 = vsel %vm543, %v495, 0
      %v575 = vsel %vm543, %v496, 0
      %v578 = vsel %vm543, %v497, 0
      %v581 = vsel %vm543, %v498, 0
      %v584 = vsel %vm543, %v499, 0
      %v587 = vsel %vm543, %v500, 0
      %v590 = vsel %vm543, %v501, 0
      %v593 = vsel %vm543, %v502, 0
      %v596 = vsel %vm543, %v503, 0
      %v599 = vsel %vm543, %v504, 0
      %v602 = vsel %vm543, %v505, 0
      %v605 = vsel %vm543, %v506, 0
      %v608 = vsel %vm543, %v507, 0
      %v611 = vsel %vm543, %v508, 0
      %v614 = vsel %vm543, %v509, 0
      %v617 = vsel %vm543, %v510, 0
      %v620 = vsel %vm543, %v511, 0
      %v623 = vsel %vm543, %v512, 0
      %v626 = vsel %vm543, %v513, 0
      %v629 = vsel %vm543, %v514, 0
      %v632 = vsel %vm543, %v515, 0
      %v635 = vsel %vm543, %v516, 0
      %v638 = vsel %vm543, %v517, 0
      %v641 = vsel %vm543, %v518, 0
      %v644 = vsel %vm543, %v519, 0
      %v647 = vsel %vm543, %v520, 0
      %v650 = vsel %vm543, %v521, 0
      %v653 = vsel %vm543, %v522, 0
      %v656 = vsel %vm543, %v523, 0
      %v659 = vsel %vm543, %v524, 0
      %v662 = vsel %vm543, %v525, 0
      %v665 = vsel %vm543, %v526, 0
      %v668 = vsel %vm543, %v527, 0
      %v671 = vsel %vm543, %v528, 0
      %v674 = vsel %vm543, %v529, 0
      %v677 = vsel %vm543, %v530, 0
      %v680 = vsel %vm543, %v531, 0
      %v683 = vsel %vm543, %v532, 0
      %v686 = vsel %vm543, %v533, 0
      %v689 = vsel %vm543, %v534, 0
      %v692 = vsel %vm543, %v535, 0
      %v695 = vsel %vm543, %v536, 0
      %v698 = vsel %vm543, %v537, 0
      %vm700 = vcmask 1043456
      %vm701 = vcmask 1044480
      %v702 = vsel %vm700, 4294967295, 65535
      %v703 = vsel %vm701, %v702, 0
      %v705 = vand.u32 %v542, %v703
      %707 = vmatprep.subr.bf16.mxu0 0
      %708 = vmatpush1.bf16.msra.mxu0 %v705
      %709 = vmatprep.subr.bf16.mxu0 0
      %710 = vmatpush1.bf16.msra.mxu0 0
      %711 = vmatprep.subr.bf16.mxu0 0
      %712 = vmatpush1.bf16.msra.mxu0 0
      %713 = vmatprep.subr.bf16.mxu0 0
      %714 = vmatpush1.bf16.msra.mxu0 0
      %715 = vmatprep.subr.bf16.mxu0 0
      %716 = vmatpush1.bf16.msra.mxu0 0
      %717 = vmatprep.subr.bf16.mxu0 0
      %718 = vmatpush1.bf16.msra.mxu0 0
      %719 = vmatprep.subr.bf16.mxu0 0
      %720 = vmatpush1.bf16.msra.mxu0 0
      %721 = vmatprep.subr.bf16.mxu0 0
      %722 = vmatpush1.bf16.msra.mxu0 0
      %723 = vmatprep.subr.bf16.mxu0 0
      %724 = vmatpush1.bf16.msra.mxu0 0
      %725 = vmatprep.subr.bf16.mxu0 0
      %726 = vmatpush1.bf16.msra.mxu0 0
      %727 = vmatprep.subr.bf16.mxu0 0
      %728 = vmatpush1.bf16.msra.mxu0 0
      %729 = vmatprep.subr.bf16.mxu0 0
      %730 = vmatpush1.bf16.msra.mxu0 0
      %731 = vmatprep.subr.bf16.mxu0 0
      %732 = vmatpush1.bf16.msra.mxu0 0
      %733 = vmatprep.subr.bf16.mxu0 0
      %734 = vmatpush1.bf16.msra.mxu0 0
      %735 = vmatprep.subr.bf16.mxu0 0
      %736 = vmatpush1.bf16.msra.mxu0 0
      %737 = vmatprep.subr.bf16.mxu0 0
      %738 = vmatpush1.bf16.msra.mxu0 0
      %739 = vmatprep.mubr.bf16.mxu0 0
      %740 = vmatmul.mubr.bf16.gmra.mrb[0].mxu0 %v545
      %v741 = vpop.f32.mrb[0].mxu0
      %v742 = vadd.f32 0.0, %v741
      %v743 = vpop.f32.mrb[0].mxu0
      %v744 = vpop.f32.mrb[0].mxu0
      %v745 = vadd.f32 0.0, %v744
      %v746 = vpop.f32.mrb[0].mxu0
      %747 = vmatprep.mubr.bf16.mxu0 0
      %748 = vmatmul.mubr.bf16.gmra.mrb[0].mxu0 %v548
      %v749 = vpop.f32.mrb[0].mxu0
      %v750 = vadd.f32 0.0, %v749
      %v751 = vpop.f32.mrb[0].mxu0
      %v752 = vpop.f32.mrb[0].mxu0
      %v753 = vadd.f32 0.0, %v752
      %v754 = vpop.f32.mrb[0].mxu0
      %755 = vmatprep.mubr.bf16.mxu0 0
      %756 = vmatmul.mubr.bf16.gmra.mrb[0].mxu0 %v551
      %v757 = vpop.f32.mrb[0].mxu0
      %v758 = vadd.f32 0.0, %v757
      %v759 = vpop.f32.mrb[0].mxu0
      %v760 = vpop.f32.mrb[0].mxu0
      %v761 = vadd.f32 0.0, %v760
      %v762 = vpop.f32.mrb[0].mxu0
      %763 = vmatprep.mubr.bf16.mxu0 0
      %764 = vmatmul.mubr.bf16.gmra.mrb[0].mxu0 %v554
      %v765 = vpop.f32.mrb[0].mxu0
      %v766 = vadd.f32 0.0, %v765
      %v767 = vpop.f32.mrb[0].mxu0
      %v768 = vpop.f32.mrb[0].mxu0
      %v769 = vadd.f32 0.0, %v768
      %v770 = vpop.f32.mrb[0].mxu0
      %771 = vmatprep.mubr.bf16.mxu0 0
      %772 = vmatmul.mubr.bf16.gmra.mrb[0].mxu0 %v557
      %v773 = vpop.f32.mrb[0].mxu0
      %v774 = vadd.f32 0.0, %v773
      %v775 = vpop.f32.mrb[0].mxu0
      %v776 = vpop.f32.mrb[0].mxu0
      %v777 = vadd.f32 0.0, %v776
      %v778 = vpop.f32.mrb[0].mxu0
      %779 = vmatprep.mubr.bf16.mxu0 0
      %780 = vmatmul.mubr.bf16.gmra.mrb[0].mxu0 %v560
      %v781 = vpop.f32.mrb[0].mxu0
      %v782 = vadd.f32 0.0, %v781
      %v783 = vpop.f32.mrb[0].mxu0
      %v784 = vpop.f32.mrb[0].mxu0
      %v785 = vadd.f32 0.0, %v784
      %v786 = vpop.f32.mrb[0].mxu0
      %787 = vmatprep.mubr.bf16.mxu0 0
      %788 = vmatmul.mubr.bf16.gmra.mrb[0].mxu0 %v563
      %v789 = vpop.f32.mrb[0].mxu0
      %v790 = vadd.f32 0.0, %v789
      %v791 = vpop.f32.mrb[0].mxu0
      %v792 = vpop.f32.mrb[0].mxu0
      %v793 = vadd.f32 0.0, %v792
      %v794 = vpop.f32.mrb[0].mxu0
      %795 = vmatprep.mubr.bf16.mxu0 0
      %796 = vmatmul.mubr.bf16.gmra.mrb[0].mxu0 %v566
      %v797 = vpop.f32.mrb[0].mxu0
      %v798 = vadd.f32 0.0, %v797
      %v799 = vpop.f32.mrb[0].mxu0
      %v800 = vpop.f32.mrb[0].mxu0
      %v801 = vadd.f32 0.0, %v800
      %v802 = vpop.f32.mrb[0].mxu0
      %803 = vmatprep.mubr.bf16.mxu0 0
      %804 = vmatmul.mubr.bf16.gmra.mrb[0].mxu0 %v569
      %v805 = vpop.f32.mrb[0].mxu0
      %v806 = vadd.f32 0.0, %v805
      %v807 = vpop.f32.mrb[0].mxu0
      %v808 = vpop.f32.mrb[0].mxu0
      %v809 = vadd.f32 0.0, %v808
      %v810 = vpop.f32.mrb[0].mxu0
      %811 = vmatprep.mubr.bf16.mxu0 0
      %812 = vmatmul.mubr.bf16.gmra.mrb[0].mxu0 %v572
      %v813 = vpop.f32.mrb[0].mxu0
      %v814 = vadd.f32 0.0, %v813
      %v815 = vpop.f32.mrb[0].mxu0
      %v816 = vpop.f32.mrb[0].mxu0
      %v817 = vadd.f32 0.0, %v816
      %v818 = vpop.f32.mrb[0].mxu0
      %819 = vmatprep.mubr.bf16.mxu0 0
      %820 = vmatmul.mubr.bf16.gmra.mrb[0].mxu0 %v575
      %v821 = vpop.f32.mrb[0].mxu0
      %v822 = vadd.f32 0.0, %v821
      %v823 = vpop.f32.mrb[0].mxu0
      %v824 = vpop.f32.mrb[0].mxu0
      %v825 = vadd.f32 0.0, %v824
      %v826 = vpop.f32.mrb[0].mxu0
      %827 = vmatprep.mubr.bf16.mxu0 0
      %828 = vmatmul.mubr.bf16.gmra.mrb[0].mxu0 %v578
      %v829 = vpop.f32.mrb[0].mxu0
      %v830 = vadd.f32 0.0, %v829
      %v831 = vpop.f32.mrb[0].mxu0
      %v832 = vpop.f32.mrb[0].mxu0
      %v833 = vadd.f32 0.0, %v832
      %v834 = vpop.f32.mrb[0].mxu0
      %835 = vmatprep.mubr.bf16.mxu0 0
      %836 = vmatmul.mubr.bf16.gmra.mrb[0].mxu0 %v581
      %v837 = vpop.f32.mrb[0].mxu0
      %v838 = vadd.f32 0.0, %v837
      %v839 = vpop.f32.mrb[0].mxu0
      %v840 = vpop.f32.mrb[0].mxu0
      %v841 = vpop.f32.mrb[0].mxu0
      %842 = vmatprep.mubr.bf16.mxu0 0
      %843 = vmatmul.mubr.bf16.gmra.mrb[0].mxu0 %v584
      %v844 = vpop.f32.mrb[0].mxu0
      %v845 = vadd.f32 0.0, %v844
      %v846 = vpop.f32.mrb[0].mxu0
      %v847 = vpop.f32.mrb[0].mxu0
      %v848 = vadd.f32 0.0, %v847
      %v849 = vpop.f32.mrb[0].mxu0
      %850 = vmatprep.mubr.bf16.mxu0 0
      %851 = vmatmul.mubr.bf16.gmra.mrb[0].mxu0 %v587
      %v852 = vpop.f32.mrb[0].mxu0
      %v853 = vadd.f32 0.0, %v852
      %v854 = vpop.f32.mrb[0].mxu0
      %v855 = vpop.f32.mrb[0].mxu0
      %v856 = vadd.f32 0.0, %v855
      %v857 = vpop.f32.mrb[0].mxu0
      %858 = vmatprep.mubr.bf16.mxu0 0
      %859 = vmatmul.mubr.bf16.gmra.mrb[0].mxu0 %v590
      %v860 = vpop.f32.mrb[0].mxu0
      %v861 = vadd.f32 0.0, %v860
      %v862 = vpop.f32.mrb[0].mxu0
      %v863 = vpop.f32.mrb[0].mxu0
      %v864 = vadd.f32 0.0, %v863
      %v865 = vpop.f32.mrb[0].mxu0
      %866 = vmatprep.mubr.bf16.mxu0 0
      %867 = vmatmul.mubr.bf16.gmra.mrb[0].mxu0 %v593
      %v868 = vpop.f32.mrb[0].mxu0
      %v869 = vadd.f32 0.0, %v868
      %v870 = vpop.f32.mrb[0].mxu0
      %v871 = vpop.f32.mrb[0].mxu0
      %v872 = vadd.f32 0.0, %v871
      %v873 = vpop.f32.mrb[0].mxu0
      %874 = vmatprep.mubr.bf16.mxu0 0
      %875 = vmatmul.mubr.bf16.gmra.mrb[0].mxu0 %v596
      %v876 = vpop.f32.mrb[0].mxu0
      %v877 = vadd.f32 0.0, %v876
      %v878 = vpop.f32.mrb[0].mxu0
      %v879 = vpop.f32.mrb[0].mxu0
      %v880 = vadd.f32 0.0, %v879
      %v881 = vpop.f32.mrb[0].mxu0
      %882 = vmatprep.mubr.bf16.mxu0 0
      %883 = vmatmul.mubr.bf16.gmra.mrb[0].mxu0 %v599
      %v884 = vpop.f32.mrb[0].mxu0
      %v885 = vadd.f32 0.0, %v884
      %v886 = vpop.f32.mrb[0].mxu0
      %v887 = vpop.f32.mrb[0].mxu0
      %v888 = vadd.f32 0.0, %v887
      %v889 = vpop.f32.mrb[0].mxu0
      %890 = vmatprep.mubr.bf16.mxu0 0
      %891 = vmatmul.mubr.bf16.gmra.mrb[0].mxu0 %v602
      %v892 = vpop.f32.mrb[0].mxu0
      %v893 = vadd.f32 0.0, %v892
      %v894 = vpop.f32.mrb[0].mxu0
      %v895 = vpop.f32.mrb[0].mxu0
      %v896 = vadd.f32 0.0, %v895
      %v897 = vpop.f32.mrb[0].mxu0
      %898 = vmatprep.mubr.bf16.mxu0 0
      %899 = vmatmul.mubr.bf16.gmra.mrb[0].mxu0 %v605
      %v900 = vpop.f32.mrb[0].mxu0
      %v901 = vadd.f32 0.0, %v900
      %v902 = vpop.f32.mrb[0].mxu0
      %v903 = vpop.f32.mrb[0].mxu0
      %v904 = vadd.f32 0.0, %v903
      %v905 = vpop.f32.mrb[0].mxu0
      %906 = vmatprep.mubr.bf16.mxu0 0
      %907 = vmatmul.mubr.bf16.gmra.mrb[0].mxu0 %v608
      %v908 = vpop.f32.mrb[0].mxu0
      %v909 = vadd.f32 0.0, %v908
      %v910 = vpop.f32.mrb[0].mxu0
      %v911 = vpop.f32.mrb[0].mxu0
      %v912 = vadd.f32 0.0, %v911
      %v913 = vpop.f32.mrb[0].mxu0
      %914 = vmatprep.mubr.bf16.mxu0 0
      %915 = vmatmul.mubr.bf16.gmra.mrb[0].mxu0 %v611
      %v916 = vpop.f32.mrb[0].mxu0
      %v917 = vadd.f32 0.0, %v916
      %v918 = vpop.f32.mrb[0].mxu0
      %v919 = vpop.f32.mrb[0].mxu0
      %v920 = vadd.f32 0.0, %v919
      %v921 = vpop.f32.mrb[0].mxu0
      %922 = vmatprep.mubr.bf16.mxu0 0
      %923 = vmatmul.mubr.bf16.gmra.mrb[0].mxu0 %v614
      %v924 = vpop.f32.mrb[0].mxu0
      %v925 = vadd.f32 0.0, %v924
      %v926 = vpop.f32.mrb[0].mxu0
      %v927 = vpop.f32.mrb[0].mxu0
      %v928 = vadd.f32 0.0, %v927
      %v929 = vpop.f32.mrb[0].mxu0
      %930 = vmatprep.mubr.bf16.mxu0 0
      %931 = vmatmul.mubr.bf16.gmra.mrb[0].mxu0 %v617
      %v932 = vpop.f32.mrb[0].mxu0
      %v933 = vadd.f32 0.0, %v932
      %v934 = vpop.f32.mrb[0].mxu0
      %v935 = vpop.f32.mrb[0].mxu0
      %v936 = vadd.f32 0.0, %v935
      %v937 = vpop.f32.mrb[0].mxu0
      %938 = vmatprep.mubr.bf16.mxu0 0
      %939 = vmatmul.mubr.bf16.gmra.mrb[0].mxu0 %v620
      %v940 = vpop.f32.mrb[0].mxu0
      %v941 = vadd.f32 0.0, %v940
      %v942 = vpop.f32.mrb[0].mxu0
      %v943 = vpop.f32.mrb[0].mxu0
      %v944 = vpop.f32.mrb[0].mxu0
      %945 = vmatprep.mubr.bf16.mxu0 0
      %946 = vmatmul.mubr.bf16.gmra.mrb[0].mxu0 %v623
      %v947 = vpop.f32.mrb[0].mxu0
      %v948 = vadd.f32 0.0, %v947
      %v949 = vpop.f32.mrb[0].mxu0
      %v950 = vpop.f32.mrb[0].mxu0
      %v951 = vadd.f32 0.0, %v950
      %v952 = vpop.f32.mrb[0].mxu0
      %953 = vmatprep.mubr.bf16.mxu0 0
      %954 = vmatmul.mubr.bf16.gmra.mrb[0].mxu0 %v626
      %v955 = vpop.f32.mrb[0].mxu0
      %v956 = vadd.f32 0.0, %v955
      %v957 = vpop.f32.mrb[0].mxu0
      %v958 = vpop.f32.mrb[0].mxu0
      %v959 = vadd.f32 0.0, %v958
      %v960 = vpop.f32.mrb[0].mxu0
      %961 = vmatprep.mubr.bf16.mxu0 0
      %962 = vmatmul.mubr.bf16.gmra.mrb[0].mxu0 %v629
      %v963 = vpop.f32.mrb[0].mxu0
      %v964 = vadd.f32 0.0, %v963
      %v965 = vpop.f32.mrb[0].mxu0
      %v966 = vpop.f32.mrb[0].mxu0
      %v967 = vadd.f32 0.0, %v966
      %v968 = vpop.f32.mrb[0].mxu0
      %969 = vmatprep.mubr.bf16.mxu0 0
      %970 = vmatmul.mubr.bf16.gmra.mrb[0].mxu0 %v632
      %v971 = vpop.f32.mrb[0].mxu0
      %v972 = vadd.f32 0.0, %v971
      %v973 = vpop.f32.mrb[0].mxu0
      %v974 = vpop.f32.mrb[0].mxu0
      %v975 = vadd.f32 0.0, %v974
      %v976 = vpop.f32.mrb[0].mxu0
      %977 = vmatprep.mubr.bf16.mxu0 0
      %978 = vmatmul.mubr.bf16.gmra.mrb[0].mxu0 %v635
      %v979 = vpop.f32.mrb[0].mxu0
      %v980 = vadd.f32 0.0, %v979
      %v981 = vpop.f32.mrb[0].mxu0
      %v982 = vpop.f32.mrb[0].mxu0
      %v983 = vadd.f32 0.0, %v982
      %v984 = vpop.f32.mrb[0].mxu0
      %985 = vmatprep.mubr.bf16.mxu0 0
      %986 = vmatmul.mubr.bf16.gmra.mrb[0].mxu0 %v638
      %v987 = vpop.f32.mrb[0].mxu0
      %v988 = vadd.f32 0.0, %v987
      %v989 = vpop.f32.mrb[0].mxu0
      %v990 = vpop.f32.mrb[0].mxu0
      %v991 = vadd.f32 0.0, %v990
      %v992 = vpop.f32.mrb[0].mxu0
      %993 = vmatprep.mubr.bf16.mxu0 0
      %994 = vmatmul.mubr.bf16.gmra.mrb[0].mxu0 %v641
      %v995 = vpop.f32.mrb[0].mxu0
      %v996 = vadd.f32 0.0, %v995
      %v997 = vpop.f32.mrb[0].mxu0
      %v998 = vpop.f32.mrb[0].mxu0
      %v999 = vadd.f32 0.0, %v998
      %v1000 = vpop.f32.mrb[0].mxu0
      %1001 = vmatprep.mubr.bf16.mxu0 0
      %1002 = vmatmul.mubr.bf16.gmra.mrb[0].mxu0 %v644
      %v1003 = vpop.f32.mrb[0].mxu0
      %v1004 = vadd.f32 0.0, %v1003
      %v1005 = vpop.f32.mrb[0].mxu0
      %v1006 = vpop.f32.mrb[0].mxu0
      %v1007 = vadd.f32 0.0, %v1006
      %v1008 = vpop.f32.mrb[0].mxu0
      %1009 = vmatprep.mubr.bf16.mxu0 0
      %1010 = vmatmul.mubr.bf16.gmra.mrb[0].mxu0 %v647
      %v1011 = vpop.f32.mrb[0].mxu0
      %v1012 = vadd.f32 0.0, %v1011
      %v1013 = vpop.f32.mrb[0].mxu0
      %v1014 = vpop.f32.mrb[0].mxu0
      %v1015 = vadd.f32 0.0, %v1014
      %v1016 = vpop.f32.mrb[0].mxu0
      %1017 = vmatprep.mubr.bf16.mxu0 0
      %1018 = vmatmul.mubr.bf16.gmra.mrb[0].mxu0 %v650
      %v1019 = vpop.f32.mrb[0].mxu0
      %v1020 = vadd.f32 0.0, %v1019
      %v1021 = vpop.f32.mrb[0].mxu0
      %v1022 = vpop.f32.mrb[0].mxu0
      %v1023 = vadd.f32 0.0, %v1022
      %v1024 = vpop.f32.mrb[0].mxu0
      %1025 = vmatprep.mubr.bf16.mxu0 0
      %1026 = vmatmul.mubr.bf16.gmra.mrb[0].mxu0 %v653
      %v1027 = vpop.f32.mrb[0].mxu0
      %v1028 = vadd.f32 0.0, %v1027
      %v1029 = vpop.f32.mrb[0].mxu0
      %v1030 = vpop.f32.mrb[0].mxu0
      %v1031 = vadd.f32 0.0, %v1030
      %v1032 = vpop.f32.mrb[0].mxu0
      %1033 = vmatprep.mubr.bf16.mxu0 0
      %1034 = vmatmul.mubr.bf16.gmra.mrb[0].mxu0 %v656
      %v1035 = vpop.f32.mrb[0].mxu0
      %v1036 = vadd.f32 0.0, %v1035
      %v1037 = vpop.f32.mrb[0].mxu0
      %v1038 = vpop.f32.mrb[0].mxu0
      %v1039 = vadd.f32 0.0, %v1038
      %v1040 = vpop.f32.mrb[0].mxu0
      %1041 = vmatprep.mubr.bf16.mxu0 0
      %1042 = vmatmul.mubr.bf16.gmra.mrb[0].mxu0 %v659
      %v1043 = vpop.f32.mrb[0].mxu0
      %v1044 = vadd.f32 0.0, %v1043
      %v1045 = vpop.f32.mrb[0].mxu0
      %v1046 = vpop.f32.mrb[0].mxu0
      %v1047 = vpop.f32.mrb[0].mxu0
      %1048 = vmatprep.mubr.bf16.mxu0 0
      %1049 = vmatmul.mubr.bf16.gmra.mrb[0].mxu0 %v662
      %v1050 = vpop.f32.mrb[0].mxu0
      %v1051 = vadd.f32 0.0, %v1050
      %v1052 = vpop.f32.mrb[0].mxu0
      %v1053 = vpop.f32.mrb[0].mxu0
      %v1054 = vadd.f32 0.0, %v1053
      %v1055 = vpop.f32.mrb[0].mxu0
      %1056 = vmatprep.mubr.bf16.mxu0 0
      %1057 = vmatmul.mubr.bf16.gmra.mrb[0].mxu0 %v665
      %v1058 = vpop.f32.mrb[0].mxu0
      %v1059 = vadd.f32 0.0, %v1058
      %v1060 = vpop.f32.mrb[0].mxu0
      %v1061 = vpop.f32.mrb[0].mxu0
      %v1062 = vadd.f32 0.0, %v1061
      %v1063 = vpop.f32.mrb[0].mxu0
      %1064 = vmatprep.mubr.bf16.mxu0 0
      %1065 = vmatmul.mubr.bf16.gmra.mrb[0].mxu0 %v668
      %v1066 = vpop.f32.mrb[0].mxu0
      %v1067 = vadd.f32 0.0, %v1066
      %v1068 = vpop.f32.mrb[0].mxu0
      %v1069 = vpop.f32.mrb[0].mxu0
      %v1070 = vadd.f32 0.0, %v1069
      %v1071 = vpop.f32.mrb[0].mxu0
      %1072 = vmatprep.mubr.bf16.mxu0 0
      %1073 = vmatmul.mubr.bf16.gmra.mrb[0].mxu0 %v671
      %v1074 = vpop.f32.mrb[0].mxu0
      %v1075 = vadd.f32 0.0, %v1074
      %v1076 = vpop.f32.mrb[0].mxu0
      %v1077 = vpop.f32.mrb[0].mxu0
      %v1078 = vadd.f32 0.0, %v1077
      %v1079 = vpop.f32.mrb[0].mxu0
      %1080 = vmatprep.mubr.bf16.mxu0 0
      %1081 = vmatmul.mubr.bf16.gmra.mrb[0].mxu0 %v674
      %v1082 = vpop.f32.mrb[0].mxu0
      %v1083 = vadd.f32 0.0, %v1082
      %v1084 = vpop.f32.mrb[0].mxu0
      %v1085 = vpop.f32.mrb[0].mxu0
      %v1086 = vadd.f32 0.0, %v1085
      %v1087 = vpop.f32.mrb[0].mxu0
      %1088 = vmatprep.mubr.bf16.mxu0 0
      %1089 = vmatmul.mubr.bf16.gmra.mrb[0].mxu0 %v677
      %v1090 = vpop.f32.mrb[0].mxu0
      %v1091 = vadd.f32 0.0, %v1090
      %v1092 = vpop.f32.mrb[0].mxu0
      %v1093 = vpop.f32.mrb[0].mxu0
      %v1094 = vadd.f32 0.0, %v1093
      %v1095 = vpop.f32.mrb[0].mxu0
      %1096 = vmatprep.mubr.bf16.mxu0 0
      %1097 = vmatmul.mubr.bf16.gmra.mrb[0].mxu0 %v680
      %v1098 = vpop.f32.mrb[0].mxu0
      %v1099 = vadd.f32 0.0, %v1098
      %v1100 = vpop.f32.mrb[0].mxu0
      %v1101 = vpop.f32.mrb[0].mxu0
      %v1102 = vadd.f32 0.0, %v1101
      %v1103 = vpop.f32.mrb[0].mxu0
      %1104 = vmatprep.mubr.bf16.mxu0 0
      %1105 = vmatmul.mubr.bf16.gmra.mrb[0].mxu0 %v683
      %v1106 = vpop.f32.mrb[0].mxu0
      %v1107 = vadd.f32 0.0, %v1106
      %v1108 = vpop.f32.mrb[0].mxu0
      %v1109 = vpop.f32.mrb[0].mxu0
      %v1110 = vadd.f32 0.0, %v1109
      %v1111 = vpop.f32.mrb[0].mxu0
      %1112 = vmatprep.mubr.bf16.mxu0 0
      %1113 = vmatmul.mubr.bf16.gmra.mrb[0].mxu0 %v686
      %v1114 = vpop.f32.mrb[0].mxu0
      %v1115 = vadd.f32 0.0, %v1114
      %v1116 = vpop.f32.mrb[0].mxu0
      %v1117 = vpop.f32.mrb[0].mxu0
      %v1118 = vadd.f32 0.0, %v1117
      %v1119 = vpop.f32.mrb[0].mxu0
      %1120 = vmatprep.mubr.bf16.mxu0 0
      %1121 = vmatmul.mubr.bf16.gmra.mrb[0].mxu0 %v689
      %v1122 = vpop.f32.mrb[0].mxu0
      %v1123 = vadd.f32 0.0, %v1122
      %v1124 = vpop.f32.mrb[0].mxu0
      %v1125 = vpop.f32.mrb[0].mxu0
      %v1126 = vadd.f32 0.0, %v1125
      %v1127 = vpop.f32.mrb[0].mxu0
      %1128 = vmatprep.mubr.bf16.mxu0 0
      %1129 = vmatmul.mubr.bf16.gmra.mrb[0].mxu0 %v692
      %v1130 = vpop.f32.mrb[0].mxu0
      %v1131 = vadd.f32 0.0, %v1130
      %v1132 = vpop.f32.mrb[0].mxu0
      %v1133 = vpop.f32.mrb[0].mxu0
      %v1134 = vadd.f32 0.0, %v1133
      %v1135 = vpop.f32.mrb[0].mxu0
      %1136 = vmatprep.mubr.bf16.mxu0 0
      %1137 = vmatmul.mubr.bf16.gmra.mrb[0].mxu0 %v695
      %v1138 = vpop.f32.mrb[0].mxu0
      %v1139 = vadd.f32 0.0, %v1138
      %v1140 = vpop.f32.mrb[0].mxu0
      %v1141 = vpop.f32.mrb[0].mxu0
      %v1142 = vadd.f32 0.0, %v1141
      %v1143 = vpop.f32.mrb[0].mxu0
      %1144 = vmatprep.mubr.bf16.mxu0 0
      %1145 = vmatmul.mubr.bf16.gmra.mrb[0].mxu0 %v698
      %v1146 = vpop.f32.mrb[0].mxu0
      %v1147 = vadd.f32 0.0, %v1146
      %v1148 = vpop.f32.mrb[0].mxu0
      %v1149 = vpop.f32.mrb[0].mxu0
      %v1150 = vpop.f32.mrb[0].mxu0
      %1151 = vdwg.mxu0
      %v1152 = vmax.f32 %v742, %v845
      %v1153 = vmax.f32 %v745, %v848
      %v1154 = vmax.f32 %v750, %v853
      %v1155 = vmax.f32 %v753, %v856
      %v1156 = vmax.f32 %v758, %v861
      %v1157 = vmax.f32 %v761, %v864
      %v1158 = vmax.f32 %v766, %v869
      %v1159 = vmax.f32 %v769, %v872
      %v1160 = vmax.f32 %v774, %v877
      %v1161 = vmax.f32 %v777, %v880
      %v1162 = vmax.f32 %v782, %v885
      %v1163 = vmax.f32 %v785, %v888
      %v1164 = vmax.f32 %v790, %v893
      %v1165 = vmax.f32 %v793, %v896
      %v1166 = vmax.f32 %v798, %v901
      %v1167 = vmax.f32 %v801, %v904
      %v1168 = vmax.f32 %v806, %v909
      %v1169 = vmax.f32 %v809, %v912
      %v1170 = vmax.f32 %v814, %v917
      %v1171 = vmax.f32 %v817, %v920
      %v1172 = vmax.f32 %v822, %v925
      %v1173 = vmax.f32 %v825, %v928
      %v1174 = vmax.f32 %v830, %v933
      %v1175 = vmax.f32 %v833, %v936
      %v1176 = vmax.f32 %v838, %v941
      %v1177 = vmax.f32 %v948, %v1051
      %v1178 = vmax.f32 %v951, %v1054
      %v1179 = vmax.f32 %v956, %v1059
      %v1180 = vmax.f32 %v959, %v1062
      %v1181 = vmax.f32 %v964, %v1067
      %v1182 = vmax.f32 %v967, %v1070
      %v1183 = vmax.f32 %v972, %v1075
      %v1184 = vmax.f32 %v975, %v1078
      %v1185 = vmax.f32 %v980, %v1083
      %v1186 = vmax.f32 %v983, %v1086
      %v1187 = vmax.f32 %v988, %v1091
      %v1188 = vmax.f32 %v991, %v1094
      %v1189 = vmax.f32 %v996, %v1099
      %v1190 = vmax.f32 %v999, %v1102
      %v1191 = vmax.f32 %v1004, %v1107
      %v1192 = vmax.f32 %v1007, %v1110
      %v1193 = vmax.f32 %v1012, %v1115
      %v1194 = vmax.f32 %v1015, %v1118
      %v1195 = vmax.f32 %v1020, %v1123
      %v1196 = vmax.f32 %v1023, %v1126
      %v1197 = vmax.f32 %v1028, %v1131
      %v1198 = vmax.f32 %v1031, %v1134
      %v1199 = vmax.f32 %v1036, %v1139
      %v1200 = vmax.f32 %v1039, %v1142
      %v1201 = vmax.f32 %v1044, %v1147
      %v1202 = vmax.f32 %v1152, %v1177
      %v1203 = vmax.f32 %v1153, %v1178
      %v1204 = vmax.f32 %v1154, %v1179
      %v1205 = vmax.f32 %v1155, %v1180
      %v1206 = vmax.f32 %v1156, %v1181
      %v1207 = vmax.f32 %v1157, %v1182
      %v1208 = vmax.f32 %v1158, %v1183
      %v1209 = vmax.f32 %v1159, %v1184
      %v1210 = vmax.f32 %v1160, %v1185
      %v1211 = vmax.f32 %v1161, %v1186
      %v1212 = vmax.f32 %v1162, %v1187
      %v1213 = vmax.f32 %v1163, %v1188
      %v1214 = vmax.f32 %v1164, %v1189
      %v1215 = vmax.f32 %v1165, %v1190
      %v1216 = vmax.f32 %v1166, %v1191
      %v1217 = vmax.f32 %v1167, %v1192
      %v1218 = vmax.f32 %v1168, %v1193
      %v1219 = vmax.f32 %v1169, %v1194
      %v1220 = vmax.f32 %v1170, %v1195
      %v1221 = vmax.f32 %v1171, %v1196
      %v1222 = vmax.f32 %v1172, %v1197
      %v1223 = vmax.f32 %v1173, %v1198
      %v1224 = vmax.f32 %v1174, %v1199
      %v1225 = vmax.f32 %v1175, %v1200
      %v1226 = vmax.f32 %v1176, %v1201
      %v1227 = vld [vmem:[%s2] sm:$0x1]
      %v1229 = vlaneseq
      %v1230 = vshrl.u32 %v1229, 7
      %v1231 = vsub.s32 0, %v1230
      %v1232 = vrot.slane %v1227, %v1231
      %v1234 = vadd.f32 %v1202, %v1232
      %v1235 = vadd.f32 %v1203, %v1232
      %v1236 = vadd.f32 %v1204, %v1232
      %v1237 = vadd.f32 %v1205, %v1232
      %v1238 = vadd.f32 %v1206, %v1232
      %v1239 = vadd.f32 %v1207, %v1232
      %v1240 = vadd.f32 %v1208, %v1232
      %v1241 = vadd.f32 %v1209, %v1232
      %v1242 = vadd.f32 %v1210, %v1232
      %v1243 = vadd.f32 %v1211, %v1232
      %v1244 = vadd.f32 %v1212, %v1232
      %v1245 = vadd.f32 %v1213, %v1232
      %v1246 = vadd.f32 %v1214, %v1232
      %v1247 = vadd.f32 %v1215, %v1232
      %v1248 = vadd.f32 %v1216, %v1232
      %v1249 = vadd.f32 %v1217, %v1232
      %v1250 = vadd.f32 %v1218, %v1232
      %v1251 = vadd.f32 %v1219, %v1232
      %v1252 = vadd.f32 %v1220, %v1232
      %v1253 = vadd.f32 %v1221, %v1232
      %v1254 = vadd.f32 %v1222, %v1232
      %v1255 = vadd.f32 %v1223, %v1232
      %v1256 = vadd.f32 %v1224, %v1232
      %v1257 = vadd.f32 %v1225, %v1232
      %v1258 = vadd.f32 %v1226, %v1232
      %v1259 = vmax.f32 %v1234, 0.0
      %v1260 = vmax.f32 %v1235, 0.0
      %v1261 = vmax.f32 %v1236, 0.0
      %v1262 = vmax.f32 %v1237, 0.0
      %v1263 = vmax.f32 %v1238, 0.0
      %v1264 = vmax.f32 %v1239, 0.0
      %v1265 = vmax.f32 %v1240, 0.0
      %v1266 = vmax.f32 %v1241, 0.0
      %v1267 = vmax.f32 %v1242, 0.0
      %v1268 = vmax.f32 %v1243, 0.0
      %v1269 = vmax.f32 %v1244, 0.0
      %v1270 = vmax.f32 %v1245, 0.0
      %v1271 = vmax.f32 %v1246, 0.0
      %v1272 = vmax.f32 %v1247, 0.0
      %v1273 = vmax.f32 %v1248, 0.0
      %v1274 = vmax.f32 %v1249, 0.0
      %v1275 = vmax.f32 %v1250, 0.0
      %v1276 = vmax.f32 %v1251, 0.0
      %v1277 = vmax.f32 %v1252, 0.0
      %v1278 = vmax.f32 %v1253, 0.0
      %v1279 = vmax.f32 %v1254, 0.0
      %v1280 = vmax.f32 %v1255, 0.0
      %v1281 = vmax.f32 %v1256, 0.0
      %v1282 = vmax.f32 %v1257, 0.0
      %v1283 = vmax.f32 %v1258, 0.0
      %v1284 = vpack.c.bf16 %v1260, %v1259
      %v1285 = vpack.c.bf16 %v1262, %v1261
      %v1286 = vpack.c.bf16 %v1264, %v1263
      %v1287 = vpack.c.bf16 %v1266, %v1265
      %v1288 = vpack.c.bf16 %v1268, %v1267
      %v1289 = vpack.c.bf16 %v1270, %v1269
      %v1290 = vpack.c.bf16 %v1272, %v1271
      %v1291 = vpack.c.bf16 %v1274, %v1273
      %v1292 = vpack.c.bf16 %v1276, %v1275
      %v1293 = vpack.c.bf16 %v1278, %v1277
      %v1294 = vpack.c.bf16 %v1280, %v1279
      %v1295 = vpack.c.bf16 %v1282, %v1281
      %v1296 = vpack.c.bf16 %v1283, %v1283
      %v1310 = vunpack.c.l.b16 %v1284
      %v1311 = vunpack.c.h.b16 %v1284
      %v1312 = vunpack.c.l.b16 %v1285
      %v1313 = vunpack.c.h.b16 %v1285
      %v1314 = vunpack.c.l.b16 %v1286
      %v1315 = vunpack.c.h.b16 %v1286
      %v1316 = vunpack.c.l.b16 %v1287
      %v1317 = vunpack.c.h.b16 %v1287
      %v1318 = vunpack.c.l.b16 %v1288
      %v1319 = vunpack.c.h.b16 %v1288
      %v1320 = vunpack.c.l.b16 %v1289
      %v1321 = vunpack.c.h.b16 %v1289
      %v1322 = vunpack.c.l.b16 %v1290
      %v1323 = vunpack.c.h.b16 %v1290
      %v1324 = vunpack.c.l.b16 %v1291
      %v1325 = vunpack.c.h.b16 %v1291
      %v1326 = vunpack.c.l.b16 %v1292
      %v1327 = vunpack.c.h.b16 %v1292
      %v1328 = vunpack.c.l.b16 %v1293
      %v1329 = vunpack.c.h.b16 %v1293
      %v1330 = vunpack.c.l.b16 %v1294
      %v1331 = vunpack.c.h.b16 %v1294
      %v1332 = vunpack.c.l.b16 %v1295
      %v1333 = vunpack.c.h.b16 %v1295
      %v1334 = vunpack.c.l.b16 %v1296
      %v1335 = vpack.c.b16 %v1310, %v1310
      %v1336 = vpack.c.b16 %v1311, %v1311
      %v1337 = vpack.c.b16 %v1312, %v1312
      %v1338 = vpack.c.b16 %v1313, %v1313
      %v1339 = vpack.c.b16 %v1314, %v1314
      %v1340 = vpack.c.b16 %v1315, %v1315
      %v1341 = vpack.c.b16 %v1316, %v1316
      %v1342 = vpack.c.b16 %v1317, %v1317
      %v1343 = vpack.c.b16 %v1318, %v1318
      %v1344 = vpack.c.b16 %v1319, %v1319
      %v1345 = vpack.c.b16 %v1320, %v1320
      %v1346 = vpack.c.b16 %v1321, %v1321
      %v1347 = vpack.c.b16 %v1322, %v1322
      %v1348 = vpack.c.b16 %v1323, %v1323
      %v1349 = vpack.c.b16 %v1324, %v1324
      %v1350 = vpack.c.b16 %v1325, %v1325
      %v1351 = vpack.c.b16 %v1326, %v1326
      %v1352 = vpack.c.b16 %v1327, %v1327
      %v1353 = vpack.c.b16 %v1328, %v1328
      %v1354 = vpack.c.b16 %v1329, %v1329
      %v1355 = vpack.c.b16 %v1330, %v1330
      %v1356 = vpack.c.b16 %v1331, %v1331
      %v1357 = vpack.c.b16 %v1332, %v1332
      %v1358 = vpack.c.b16 %v1333, %v1333
      %v1359 = vpack.c.b16 %v1334, %v1334
      %vm1385 = vcmask 257024
      %1386 = vst.msk [vmem:[%s170] sm:$0xf] %vm1385, %v1335
      %1387 = vst.msk [vmem:[%s170 + $0x4] sm:$0xf] %vm1385, %v1336
      %1388 = vst.msk [vmem:[%s170 + $0x8] sm:$0xf] %vm1385, %v1337
      %1389 = vst.msk [vmem:[%s170 + $0xc] sm:$0xf] %vm1385, %v1338
      %1390 = vst.msk [vmem:[%s170 + $0x10] sm:$0xf] %vm1385, %v1339
      %1391 = vst.msk [vmem:[%s170 + $0x14] sm:$0xf] %vm1385, %v1340
      %1392 = vst.msk [vmem:[%s170 + $0x18] sm:$0xf] %vm1385, %v1341
      %1393 = vst.msk [vmem:[%s170 + $0x1c] sm:$0xf] %vm1385, %v1342
      %1394 = vst.msk [vmem:[%s170 + $0x20] sm:$0xf] %vm1385, %v1343
      %1395 = vst.msk [vmem:[%s170 + $0x24] sm:$0xf] %vm1385, %v1344
      %1396 = vst.msk [vmem:[%s170 + $0x28] sm:$0xf] %vm1385, %v1345
      %1397 = vst.msk [vmem:[%s170 + $0x2c] sm:$0xf] %vm1385, %v1346
      %1398 = vst.msk [vmem:[%s170 + $0x30] sm:$0xf] %vm1385, %v1347
      %1399 = vst.msk [vmem:[%s170 + $0x34] sm:$0xf] %vm1385, %v1348
      %1400 = vst.msk [vmem:[%s170 + $0x38] sm:$0xf] %vm1385, %v1349
      %1401 = vst.msk [vmem:[%s170 + $0x3c] sm:$0xf] %vm1385, %v1350
      %1402 = vst.msk [vmem:[%s170 + $0x40] sm:$0xf] %vm1385, %v1351
      %1403 = vst.msk [vmem:[%s170 + $0x44] sm:$0xf] %vm1385, %v1352
      %1404 = vst.msk [vmem:[%s170 + $0x48] sm:$0xf] %vm1385, %v1353
      %1405 = vst.msk [vmem:[%s170 + $0x4c] sm:$0xf] %vm1385, %v1354
      %1406 = vst.msk [vmem:[%s170 + $0x50] sm:$0xf] %vm1385, %v1355
      %1407 = vst.msk [vmem:[%s170 + $0x54] sm:$0xf] %vm1385, %v1356
      %1408 = vst.msk [vmem:[%s170 + $0x58] sm:$0xf] %vm1385, %v1357
      %1409 = vst.msk [vmem:[%s170 + $0x5c] sm:$0xf] %vm1385, %v1358
      %vm1410 = vcmask 254976
      %1411 = vst.msk [vmem:[%s170 + $0x60] sm:$0x3] %vm1410, %v1359
      %p1412 = scmp.lt.s32.totalorder %s14, 1
      %s1413 = scalar_select %p1412, %s14, 1
      %s1414 = smul.addr %s1413, 25
      %s1415 = smul.addr %s1414, 4
      %s1416 = scalar_lea.vmem %s3, %s1415
      // Predicated region
      $region33: #{rotated_nn_forward.3} parent=31 // pred_check
        %p1417 = pneg %p100
      $region34: #{rotated_nn_forward.3} parent=31 // pred_check_branch
        %1419 = sbr.rel (%p1417) target = $region36
      $region35: #{rotated_nn_forward.3} parent=31 // pred_region
        _
      $region36: #{rotated_nn_forward.3} parent=31 // pred_fallthru
        _
    $region32: #{rotated_nn_forward.3} parent=5 // pred_fallthru
      _
    %p1420 = scmp.le.s32.totalorder 2, %s9
    // Predicated region
    $region37: #{rotated_nn_forward.3} parent=5 // pred_check
      %p1421 = pneg %p1420
    $region38: #{rotated_nn_forward.3} parent=5 // pred_check_branch
      %1423 = sbr.rel (%p1421) target = $region40
    $region39: #{rotated_nn_forward.3} parent=5 // pred_region
      %s1424 = ssub.s32 %s9, 2
      // Predicated region
      $region41: #{rotated_nn_forward.3} parent=39 // pred_check
        %p1425 = pneg %p106
      $region42: #{rotated_nn_forward.3} parent=39 // pred_check_branch
        %1427 = sbr.rel (%p1425) target = $region44
      $region43: #{rotated_nn_forward.3} parent=39 // pred_region
        %p1428 = scmp.lt.s32.totalorder %s15, 1
        %s1429 = scalar_select %p1428, %s15, 1
        %s1430 = smul.addr %s1429, 25
        %s1431 = smul.addr %s1430, 4
        %s1432 = scalar_lea.vmem %s3, %s1431
      $region44: #{rotated_nn_forward.3} parent=39 // pred_fallthru
        _
    $region40: #{rotated_nn_forward.3} parent=5 // pred_fallthru
      _
  $region6: #{rotated_nn_forward.3} parent=0 // loop_footer
    %s13 = sadd.s32 1, %s9
  $region7: #{rotated_nn_forward.3} parent=0 // loop_footer_branch
    %8 = sbr.rel target = $region3
  $region8: #{rotated_nn_forward.3} parent=0 // loop_exit
    _

// kernel: rotated_nn_forward.4
$region0: #{rotated_nn_forward.4}
  #allocation0 [shape = 'u32[]', space=smem, size = 0x4, offset = 0x4, fixed_abs, tag = 'smem constant byte address 0x4 - core index']
  #allocation1 [shape = 'u32[144,128]{1,0:T(1,128)}', space=vmem, size = 0x12000, scoped, tag = 'internal scratch']
  #allocation2 [shape = 'bf16[64,288]{1,0:T(16,128)(2,1)}', space=vmem, size = 0xc000, scoped, tag = 'scratch operand']
  %s0 = inlined_call_operand.vmem [shape: bf16[2,4,2,80,32], index: 0, kind: input, shape index: {}]
  %s1 = inlined_call_operand.vmem [shape: bf16[288,64], index: 1, kind: input, shape index: {}]
  %s2 = inlined_call_operand.vmem [shape: f32[1,64], index: 2, kind: input, shape index: {}]
  %s3 = inlined_call_operand.vmem [shape: bf16[2,64,64], index: 3, kind: output, shape index: {}]
  %s4 = sld [smem:[#allocation0]]
  $region45: #{rotated_nn_forward.4} parent=0
    _
  %s6 = ssub.s32 1, %s4
  %s7 = scalar_select 0, %s6, %s4
  loop: start=0, step=1, limit=4
  $region2: #{rotated_nn_forward.4} parent=0 // loop_pre_header
    _
  $region3: #{rotated_nn_forward.4} parent=0 // loop_header
    %s9 = sphi 0, %s13
    %p10 = scmp.ge.s32.totalorder %s9, 4
    %s19 = sphi 0, %s21
    %s22 = sphi 0, %s19
    %s23 = sphi 0, %s22
    %s39 = sphi 0, %s23
    %s43 = sphi 0, %s43
    %s45 = sphi 0, %s43
    %s46 = sphi 0, %s45
    %s60 = sphi 0, %s46
    %s64 = sphi 0, %s64
    %s66 = sphi 0, %s64
    %s67 = sphi 0, %s66
    %s81 = sphi 0, %s67
    %s87 = sphi 0, %s89
    %s90 = sphi 0, %s87
    %s91 = sphi 0, %s90
    %s107 = sphi 0, %s91
  $region4: #{rotated_nn_forward.4} parent=0 // loop_header_branch
    %12 = sbr.rel (%p10) target = $region8
  $region5: #{rotated_nn_forward.4} parent=0 // loop_body
    %s14 = ssub.s32 %s9, 1
    %s15 = ssub.s32 %s9, 2
    %s16 = sadd.s32 %s9, 1
    %s17 = ssub.s32 %s9, %s16
    %p18 = scmp.eq.s32.totalorder %s17, 0
    %s20 = sadd.s32 %s19, 1
    %s21 = scalar_select %p18, %s19, %s20
    %p24 = pneg %p18
    %p25 = scmp.eq.s32.totalorder %s9, 1
    %p26 = por %p24, %p25
    %p27 = scmp.ne.s32.totalorder %s19, %s22
    %p28 = scmp.eq.s32.totalorder %s9, 0
    %p29 = por %p27, %p28
    %p30 = scmp.ne.s32.totalorder %s19, %s22
    %p31 = scmp.eq.s32.totalorder %s14, 1
    %p32 = por %p30, %p31
    %p33 = scmp.ne.s32.totalorder %s22, %s23
    %p34 = scmp.eq.s32.totalorder %s14, 0
    %p35 = por %p33, %p34
    %p36 = scmp.ne.s32.totalorder %s22, %s23
    %p37 = scmp.eq.s32.totalorder %s15, 1
    %p38 = por %p36, %p37
    %p40 = scmp.ne.s32.totalorder %s23, %s39
    %p41 = scmp.eq.s32.totalorder %s15, 0
    %p42 = por %p40, %p41
    %s44 = sadd.s32 %s43, 1
    %p47 = scmp.eq.s32.totalorder %s9, 1
    %p48 = scmp.ne.s32.totalorder %s43, %s45
    %p49 = scmp.eq.s32.totalorder %s9, 0
    %p50 = por %p48, %p49
    %p51 = scmp.ne.s32.totalorder %s43, %s45
    %p52 = scmp.eq.s32.totalorder %s14, 1
    %p53 = por %p51, %p52
    %p54 = scmp.ne.s32.totalorder %s45, %s46
    %p55 = scmp.eq.s32.totalorder %s14, 0
    %p56 = por %p54, %p55
    %p57 = scmp.ne.s32.totalorder %s45, %s46
    %p58 = scmp.eq.s32.totalorder %s15, 1
    %p59 = por %p57, %p58
    %p61 = scmp.ne.s32.totalorder %s46, %s60
    %p62 = scmp.eq.s32.totalorder %s15, 0
    %p63 = por %p61, %p62
    %s65 = sadd.s32 %s64, 1
    %p68 = scmp.eq.s32.totalorder %s9, 1
    %p69 = scmp.ne.s32.totalorder %s64, %s66
    %p70 = scmp.eq.s32.totalorder %s9, 0
    %p71 = por %p69, %p70
    %p72 = scmp.ne.s32.totalorder %s64, %s66
    %p73 = scmp.eq.s32.totalorder %s14, 1
    %p74 = por %p72, %p73
    %p75 = scmp.ne.s32.totalorder %s66, %s67
    %p76 = scmp.eq.s32.totalorder %s14, 0
    %p77 = por %p75, %p76
    %p78 = scmp.ne.s32.totalorder %s66, %s67
    %p79 = scmp.eq.s32.totalorder %s15, 1
    %p80 = por %p78, %p79
    %p82 = scmp.ne.s32.totalorder %s67, %s81
    %p83 = scmp.eq.s32.totalorder %s15, 0
    %p84 = por %p82, %p83
    %s85 = ssub.s32 %s9, %s16
    %p86 = scmp.eq.s32.totalorder %s85, 0
    %s88 = sadd.s32 %s87, 1
    %s89 = scalar_select %p86, %s87, %s88
    %p92 = pneg %p86
    %p93 = scmp.eq.s32.totalorder %s9, 1
    %p94 = por %p92, %p93
    %p95 = scmp.ne.s32.totalorder %s87, %s90
    %p96 = scmp.eq.s32.totalorder %s9, 0
    %p97 = por %p95, %p96
    %p98 = scmp.ne.s32.totalorder %s87, %s90
    %p99 = scmp.eq.s32.totalorder %s14, 1
    %p100 = por %p98, %p99
    %p101 = scmp.ne.s32.totalorder %s90, %s91
    %p102 = scmp.eq.s32.totalorder %s14, 0
    %p103 = por %p101, %p102
    %p104 = scmp.ne.s32.totalorder %s90, %s91
    %p105 = scmp.eq.s32.totalorder %s15, 1
    %p106 = por %p104, %p105
    %p108 = scmp.ne.s32.totalorder %s91, %s107
    %p109 = scmp.eq.s32.totalorder %s15, 0
    %p110 = por %p108, %p109
    %p111 = scmp.le.s32.totalorder 1, %s9
    %p112 = scmp.lt.s32.totalorder %s9, 3
    %p113 = pnand %p111, %p112
    %p114 = pneg %p113
    // Predicated region
    $region9: #{rotated_nn_forward.4} parent=5 // pred_check
      _
    $region10: #{rotated_nn_forward.4} parent=5 // pred_check_branch
      %116 = sbr.rel (%p113) target = $region12
    $region11: #{rotated_nn_forward.4} parent=5 // pred_region
      %s117 = ssub.s32 %s9, 1
      // Predicated region
      $region13: #{rotated_nn_forward.4} parent=11 // pred_check
        %p118 = pneg %p56
      $region14: #{rotated_nn_forward.4} parent=11 // pred_check_branch
        %120 = sbr.rel (%p118) target = $region16
      $region15: #{rotated_nn_forward.4} parent=11 // pred_region
        _
      $region16: #{rotated_nn_forward.4} parent=11 // pred_fallthru
        _
      // Predicated region
      $region17: #{rotated_nn_forward.4} parent=11 // pred_check
        %p121 = pneg %p77
      $region18: #{rotated_nn_forward.4} parent=11 // pred_check_branch
        %123 = sbr.rel (%p121) target = $region20
      $region19: #{rotated_nn_forward.4} parent=11 // pred_region
        _
      $region20: #{rotated_nn_forward.4} parent=11 // pred_fallthru
        _
    $region12: #{rotated_nn_forward.4} parent=5 // pred_fallthru
      _
    %p124 = scmp.lt.s32.totalorder %s9, 2
    // Predicated region
    $region21: #{rotated_nn_forward.4} parent=5 // pred_check
      %p125 = pneg %p124
    $region22: #{rotated_nn_forward.4} parent=5 // pred_check_branch
      %127 = sbr.rel (%p125) target = $region24
    $region23: #{rotated_nn_forward.4} parent=5 // pred_region
      // Predicated region
      $region25: #{rotated_nn_forward.4} parent=23 // pred_check
        %p128 = pneg %p29
      $region26: #{rotated_nn_forward.4} parent=23 // pred_check_branch
        %130 = sbr.rel (%p128) target = $region28
      $region27: #{rotated_nn_forward.4} parent=23 // pred_region
        %p131 = scmp.lt.s32.totalorder %s9, 1
        %s132 = scalar_select %p131, %s9, 1
        %s133 = smul.addr %s132, 80
        %s134 = smul.addr %s133, 4
        %s135 = scalar_lea.vmem %s0, %s134
      $region28: #{rotated_nn_forward.4} parent=23 // pred_fallthru
        _
    $region24: #{rotated_nn_forward.4} parent=5 // pred_fallthru
      _
    %p136 = scmp.le.s32.totalorder 1, %s9
    %p137 = scmp.lt.s32.totalorder %s9, 3
    %p138 = pnand %p136, %p137
    %p139 = pneg %p138
    // Predicated region
    $region29: #{rotated_nn_forward.4} parent=5 // pred_check
      _
    $region30: #{rotated_nn_forward.4} parent=5 // pred_check_branch
      %141 = sbr.rel (%p138) target = $region32
    $region31: #{rotated_nn_forward.4} parent=5 // pred_region
      %s142 = ssub.s32 %s9, 1
      %p143 = scmp.lt.s32.totalorder %s14, 1
      %s144 = scalar_select %p143, %s14, 1
      %s145 = smul.addr %s144, 80
      %s146 = smul.addr %s145, 4
      %s147 = scalar_lea.vmem %s0, %s146
      %p148 = pneg %p35
      %p149 = pneg %p32
      %p150 = pneg %p56
      %p151 = pneg %p53
      %p152 = pneg %p77
      %p153 = pneg %p74
      %p154 = pneg %p103
      %p155 = pneg %p100
      %p156 = scmp.lt.s32.totalorder %s14, 1
      %s157 = scalar_select %p156, %s14, 1
      %s158 = smul.addr %s157, 8
      %s159 = smul.addr %s158, 4
      %s160 = scalar_lea.vmem %s3, %s159
      %p161 = scmp.lt.s32.totalorder %s14, 1
      %s162 = scalar_select %p161, %s14, 1
      %s163 = smul.addr %s162, 80
      %s164 = smul.addr %s163, 4
      %s165 = scalar_lea.vmem %s0, %s164
      %p166 = scmp.lt.s32.totalorder %s14, 1
      %s167 = scalar_select %p166, %s14, 1
      %s168 = smul.addr %s167, 8
      %s169 = smul.addr %s168, 4
      %s170 = scalar_lea.vmem %s3, %s169
      %v172 = vld [vmem:[%s165] sm:$0xf]
      %v173 = vld [vmem:[%s165 + $0x4] sm:$0xf]
      %v174 = vld [vmem:[%s165 + $0x8] sm:$0xf]
      %v175 = vld [vmem:[%s165 + $0xc] sm:$0xf]
      %v176 = vld [vmem:[%s165 + $0x10] sm:$0xf]
      %v177 = vld [vmem:[%s165 + $0x14] sm:$0xf]
      %v178 = vld [vmem:[%s165 + $0x18] sm:$0xf]
      %v179 = vld [vmem:[%s165 + $0x1c] sm:$0xf]
      %v188 = vunpack.c.l.b16 %v172
      %v189 = vunpack.c.l.b16 %v173
      %v190 = vunpack.c.l.b16 %v174
      %v191 = vunpack.c.l.b16 %v175
      %v192 = vunpack.c.l.b16 %v176
      %v193 = vunpack.c.l.b16 %v177
      %v194 = vunpack.c.l.b16 %v178
      %v195 = vunpack.c.l.b16 %v179
      %v196 = vpack.c.b16 %v189, %v188
      %v197 = vpack.c.b16 %v191, %v190
      %v198 = vpack.c.b16 %v193, %v192
      %v199 = vpack.c.b16 %v195, %v194
      %vm204 = vcmask 261120
      %205 = vst.msk [vmem:[#allocation2] sm:$0xff] %vm204, %v196
      %206 = vst.msk [vmem:[#allocation2 + $0x18] sm:$0xff] %vm204, %v197
      %207 = vst.msk [vmem:[#allocation2 + $0x30] sm:$0xff] %vm204, %v198
      %208 = vst.msk [vmem:[#allocation2 + $0x48] sm:$0xff] %vm204, %v199
      %s209 = scalar_lea.vmem %s165, 80
      %v210 = vld [vmem:[%s209] sm:$0xf]
      %v211 = vld [vmem:[%s209 + $0x4] sm:$0xf]
      %v212 = vld [vmem:[%s209 + $0x8] sm:$0xf]
      %v213 = vld [vmem:[%s209 + $0xc] sm:$0xf]
      %v214 = vld [vmem:[%s209 + $0x10] sm:$0xf]
      %v215 = vld [vmem:[%s209 + $0x14] sm:$0xf]
      %v216 = vld [vmem:[%s209 + $0x18] sm:$0xf]
      %v217 = vld [vmem:[%s209 + $0x1c] sm:$0xf]
      %v226 = vunpack.c.l.b16 %v210
      %v227 = vunpack.c.l.b16 %v211
      %v228 = vunpack.c.l.b16 %v212
      %v229 = vunpack.c.l.b16 %v213
      %v230 = vunpack.c.l.b16 %v214
      %v231 = vunpack.c.l.b16 %v215
      %v232 = vunpack.c.l.b16 %v216
      %v233 = vunpack.c.l.b16 %v217
      %v234 = vpack.c.b16 %v227, %v226
      %v235 = vpack.c.b16 %v229, %v228
      %v236 = vpack.c.b16 %v231, %v230
      %v237 = vpack.c.b16 %v233, %v232
      %238 = vrot.lane.b32.xlu0 %v234, 32
      %v239 = vpop.permute.xlu0 %238
      %240 = vrot.lane.b32.xlu0 %v235, 32
      %v241 = vpop.permute.xlu0 %240
      %242 = vrot.lane.b32.xlu0 %v236, 32
      %v243 = vpop.permute.xlu0 %242
      %244 = vrot.lane.b32.xlu0 %v237, 32
      %v245 = vpop.permute.xlu0 %244
      %vm250 = vcmask 523520
      %251 = vst.msk [vmem:[#allocation2] sm:$0xff] %vm250, %v239
      %252 = vst.msk [vmem:[#allocation2 + $0x18] sm:$0xff] %vm250, %v241
      %253 = vst.msk [vmem:[#allocation2 + $0x30] sm:$0xff] %vm250, %v243
      %254 = vst.msk [vmem:[#allocation2 + $0x48] sm:$0xff] %vm250, %v245
      %s255 = scalar_lea.vmem %s165, 40
      %v256 = vld [vmem:[%s255] sm:$0xf]
      %v257 = vld [vmem:[%s255 + $0x4] sm:$0xf]
      %v258 = vld [vmem:[%s255 + $0x8] sm:$0xf]
      %v259 = vld [vmem:[%s255 + $0xc] sm:$0xf]
      %v260 = vld [vmem:[%s255 + $0x10] sm:$0xf]
      %v261 = vld [vmem:[%s255 + $0x14] sm:$0xf]
      %v262 = vld [vmem:[%s255 + $0x18] sm:$0xf]
      %v263 = vld [vmem:[%s255 + $0x1c] sm:$0xf]
      %v272 = vunpack.c.l.b16 %v256
      %v273 = vunpack.c.l.b16 %v257
      %v274 = vunpack.c.l.b16 %v258
      %v275 = vunpack.c.l.b16 %v259
      %v276 = vunpack.c.l.b16 %v260
      %v277 = vunpack.c.l.b16 %v261
      %v278 = vunpack.c.l.b16 %v262
      %v279 = vunpack.c.l.b16 %v263
      %v280 = vpack.c.b16 %v273, %v272
      %v281 = vpack.c.b16 %v275, %v274
      %v282 = vpack.c.b16 %v277, %v276
      %v283 = vpack.c.b16 %v279, %v278
      %284 = vrot.lane.b32.xlu0 %v280, 64
      %v285 = vpop.permute.xlu0 %284
      %286 = vrot.lane.b32.xlu0 %v281, 64
      %v287 = vpop.permute.xlu0 %286
      %288 = vrot.lane.b32.xlu0 %v282, 64
      %v289 = vpop.permute.xlu0 %288
      %290 = vrot.lane.b32.xlu0 %v283, 64
      %v291 = vpop.permute.xlu0 %290
      %vm296 = vcmask 785920
      %297 = vst.msk [vmem:[#allocation2] sm:$0xff] %vm296, %v285
      %298 = vst.msk [vmem:[#allocation2 + $0x18] sm:$0xff] %vm296, %v287
      %299 = vst.msk [vmem:[#allocation2 + $0x30] sm:$0xff] %vm296, %v289
      %300 = vst.msk [vmem:[#allocation2 + $0x48] sm:$0xff] %vm296, %v291
      %s301 = scalar_lea.vmem %s165, 160
      %v302 = vld [vmem:[%s301] sm:$0xf]
      %v303 = vld [vmem:[%s301 + $0x4] sm:$0xf]
      %v304 = vld [vmem:[%s301 + $0x8] sm:$0xf]
      %v305 = vld [vmem:[%s301 + $0xc] sm:$0xf]
      %v306 = vld [vmem:[%s301 + $0x10] sm:$0xf]
      %v307 = vld [vmem:[%s301 + $0x14] sm:$0xf]
      %v308 = vld [vmem:[%s301 + $0x18] sm:$0xf]
      %v309 = vld [vmem:[%s301 + $0x1c] sm:$0xf]
      %v318 = vunpack.c.l.b16 %v302
      %v319 = vunpack.c.l.b16 %v303
      %v320 = vunpack.c.l.b16 %v304
      %v321 = vunpack.c.l.b16 %v305
      %v322 = vunpack.c.l.b16 %v306
      %v323 = vunpack.c.l.b16 %v307
      %v324 = vunpack.c.l.b16 %v308
      %v325 = vunpack.c.l.b16 %v309
      %v326 = vpack.c.b16 %v319, %v318
      %v327 = vpack.c.b16 %v321, %v320
      %v328 = vpack.c.b16 %v323, %v322
      %v329 = vpack.c.b16 %v325, %v324
      %330 = vrot.lane.b32.xlu0 %v326, 96
      %v331 = vpop.permute.xlu0 %330
      %332 = vrot.lane.b32.xlu0 %v327, 96
      %v333 = vpop.permute.xlu0 %332
      %334 = vrot.lane.b32.xlu0 %v328, 96
      %v335 = vpop.permute.xlu0 %334
      %336 = vrot.lane.b32.xlu0 %v329, 96
      %v337 = vpop.permute.xlu0 %336
      %vm342 = vcmask 1048320
      %343 = vst.msk [vmem:[#allocation2] sm:$0xff] %vm342, %v331
      %344 = vst.msk [vmem:[#allocation2 + $0x18] sm:$0xff] %vm342, %v333
      %345 = vst.msk [vmem:[#allocation2 + $0x30] sm:$0xff] %vm342, %v335
      %346 = vst.msk [vmem:[#allocation2 + $0x48] sm:$0xff] %vm342, %v337
      %s347 = scalar_lea.vmem %s165, 240
      %v348 = vld [vmem:[%s347] sm:$0xf]
      %v349 = vld [vmem:[%s347 + $0x4] sm:$0xf]
      %v350 = vld [vmem:[%s347 + $0x8] sm:$0xf]
      %v351 = vld [vmem:[%s347 + $0xc] sm:$0xf]
      %v352 = vld [vmem:[%s347 + $0x10] sm:$0xf]
      %v353 = vld [vmem:[%s347 + $0x14] sm:$0xf]
      %v354 = vld [vmem:[%s347 + $0x18] sm:$0xf]
      %v355 = vld [vmem:[%s347 + $0x1c] sm:$0xf]
      %v364 = vunpack.c.l.b16 %v348
      %v365 = vunpack.c.l.b16 %v349
      %v366 = vunpack.c.l.b16 %v350
      %v367 = vunpack.c.l.b16 %v351
      %v368 = vunpack.c.l.b16 %v352
      %v369 = vunpack.c.l.b16 %v353
      %v370 = vunpack.c.l.b16 %v354
      %v371 = vunpack.c.l.b16 %v355
      %v372 = vpack.c.b16 %v365, %v364
      %v373 = vpack.c.b16 %v367, %v366
      %v374 = vpack.c.b16 %v369, %v368
      %v375 = vpack.c.b16 %v371, %v370
      %380 = vst.msk [vmem:[#allocation2 + $0x8] sm:$0xff] %vm204, %v372
      %381 = vst.msk [vmem:[#allocation2 + $0x20] sm:$0xff] %vm204, %v373
      %382 = vst.msk [vmem:[#allocation2 + $0x38] sm:$0xff] %vm204, %v374
      %383 = vst.msk [vmem:[#allocation2 + $0x50] sm:$0xff] %vm204, %v375
      %s384 = scalar_lea.vmem %s165, 200
      %v385 = vld [vmem:[%s384] sm:$0xf]
      %v386 = vld [vmem:[%s384 + $0x4] sm:$0xf]
      %v387 = vld [vmem:[%s384 + $0x8] sm:$0xf]
      %v388 = vld [vmem:[%s384 + $0xc] sm:$0xf]
      %v389 = vld [vmem:[%s384 + $0x10] sm:$0xf]
      %v390 = vld [vmem:[%s384 + $0x14] sm:$0xf]
      %v391 = vld [vmem:[%s384 + $0x18] sm:$0xf]
      %v392 = vld [vmem:[%s384 + $0x1c] sm:$0xf]
      %v401 = vunpack.c.l.b16 %v385
      %v402 = vunpack.c.l.b16 %v386
      %v403 = vunpack.c.l.b16 %v387
      %v404 = vunpack.c.l.b16 %v388
      %v405 = vunpack.c.l.b16 %v389
      %v406 = vunpack.c.l.b16 %v390
      %v407 = vunpack.c.l.b16 %v391
      %v408 = vunpack.c.l.b16 %v392
      %v409 = vpack.c.b16 %v402, %v401
      %v410 = vpack.c.b16 %v404, %v403
      %v411 = vpack.c.b16 %v406, %v405
      %v412 = vpack.c.b16 %v408, %v407
      %413 = vrot.lane.b32.xlu0 %v409, 32
      %v414 = vpop.permute.xlu0 %413
      %415 = vrot.lane.b32.xlu0 %v410, 32
      %v416 = vpop.permute.xlu0 %415
      %417 = vrot.lane.b32.xlu0 %v411, 32
      %v418 = vpop.permute.xlu0 %417
      %419 = vrot.lane.b32.xlu0 %v412, 32
      %v420 = vpop.permute.xlu0 %419
      %425 = vst.msk [vmem:[#allocation2 + $0x8] sm:$0xff] %vm250, %v414
      %426 = vst.msk [vmem:[#allocation2 + $0x20] sm:$0xff] %vm250, %v416
      %427 = vst.msk [vmem:[#allocation2 + $0x38] sm:$0xff] %vm250, %v418
      %428 = vst.msk [vmem:[#allocation2 + $0x50] sm:$0xff] %vm250, %v420
      %v429 = vld [vmem:[%s165 + $0x4] sm:$0xf]
      %v430 = vld [vmem:[%s165 + $0x8] sm:$0xf]
      %v431 = vld [vmem:[%s165 + $0xc] sm:$0xf]
      %v432 = vld [vmem:[%s165 + $0x10] sm:$0xf]
      %v433 = vld [vmem:[%s165 + $0x14] sm:$0xf]
      %v434 = vld [vmem:[%s165 + $0x18] sm:$0xf]
      %v435 = vld [vmem:[%s165 + $0x1c] sm:$0xf]
      %v436 = vld [vmem:[%s165 + $0x20] sm:$0xf]
      %v445 = vunpack.c.l.b16 %v429
      %v446 = vunpack.c.l.b16 %v430
      %v447 = vunpack.c.l.b16 %v431
      %v448 = vunpack.c.l.b16 %v432
      %v449 = vunpack.c.l.b16 %v433
      %v450 = vunpack.c.l.b16 %v434
      %v451 = vunpack.c.l.b16 %v435
      %v452 = vunpack.c.l.b16 %v436
      %v453 = vpack.c.b16 %v446, %v445
      %v454 = vpack.c.b16 %v448, %v447
      %v455 = vpack.c.b16 %v450, %v449
      %v456 = vpack.c.b16 %v452, %v451
      %457 = vrot.lane.b32.xlu0 %v453, 64
      %v458 = vpop.permute.xlu0 %457
      %459 = vrot.lane.b32.xlu0 %v454, 64
      %v460 = vpop.permute.xlu0 %459
      %461 = vrot.lane.b32.xlu0 %v455, 64
      %v462 = vpop.permute.xlu0 %461
      %463 = vrot.lane.b32.xlu0 %v456, 64
      %v464 = vpop.permute.xlu0 %463
      %469 = vst.msk [vmem:[#allocation2 + $0x8] sm:$0xff] %vm296, %v458
      %470 = vst.msk [vmem:[#allocation2 + $0x20] sm:$0xff] %vm296, %v460
      %471 = vst.msk [vmem:[#allocation2 + $0x38] sm:$0xff] %vm296, %v462
      %472 = vst.msk [vmem:[#allocation2 + $0x50] sm:$0xff] %vm296, %v464
      %v473 = vld [vmem:[%s209 + $0x4] sm:$0xf]
      %v474 = vld [vmem:[%s209 + $0x8] sm:$0xf]
      %v475 = vld [vmem:[%s209 + $0xc] sm:$0xf]
      %v476 = vld [vmem:[%s209 + $0x10] sm:$0xf]
      %v477 = vld [vmem:[%s209 + $0x14] sm:$0xf]
      %v478 = vld [vmem:[%s209 + $0x18] sm:$0xf]
      %v479 = vld [vmem:[%s209 + $0x1c] sm:$0xf]
      %v480 = vld [vmem:[%s209 + $0x20] sm:$0xf]
      %v489 = vunpack.c.l.b16 %v473
      %v490 = vunpack.c.l.b16 %v474
      %v491 = vunpack.c.l.b16 %v475
      %v492 = vunpack.c.l.b16 %v476
      %v493 = vunpack.c.l.b16 %v477
      %v494 = vunpack.c.l.b16 %v478
      %v495 = vunpack.c.l.b16 %v479
      %v496 = vunpack.c.l.b16 %v480
      %v497 = vpack.c.b16 %v490, %v489
      %v498 = vpack.c.b16 %v492, %v491
      %v499 = vpack.c.b16 %v494, %v493
      %v500 = vpack.c.b16 %v496, %v495
      %501 = vrot.lane.b32.xlu0 %v497, 96
      %v502 = vpop.permute.xlu0 %501
      %503 = vrot.lane.b32.xlu0 %v498, 96
      %v504 = vpop.permute.xlu0 %503
      %505 = vrot.lane.b32.xlu0 %v499, 96
      %v506 = vpop.permute.xlu0 %505
      %507 = vrot.lane.b32.xlu0 %v500, 96
      %v508 = vpop.permute.xlu0 %507
      %513 = vst.msk [vmem:[#allocation2 + $0x8] sm:$0xff] %vm342, %v502
      %514 = vst.msk [vmem:[#allocation2 + $0x20] sm:$0xff] %vm342, %v504
      %515 = vst.msk [vmem:[#allocation2 + $0x38] sm:$0xff] %vm342, %v506
      %516 = vst.msk [vmem:[#allocation2 + $0x50] sm:$0xff] %vm342, %v508
      %v517 = vld [vmem:[%s255 + $0x4] sm:$0xf]
      %v518 = vld [vmem:[%s255 + $0x8] sm:$0xf]
      %v519 = vld [vmem:[%s255 + $0xc] sm:$0xf]
      %v520 = vld [vmem:[%s255 + $0x10] sm:$0xf]
      %v521 = vld [vmem:[%s255 + $0x14] sm:$0xf]
      %v522 = vld [vmem:[%s255 + $0x18] sm:$0xf]
      %v523 = vld [vmem:[%s255 + $0x1c] sm:$0xf]
      %v524 = vld [vmem:[%s255 + $0x20] sm:$0xf]
      %v533 = vunpack.c.l.b16 %v517
      %v534 = vunpack.c.l.b16 %v518
      %v535 = vunpack.c.l.b16 %v519
      %v536 = vunpack.c.l.b16 %v520
      %v537 = vunpack.c.l.b16 %v521
      %v538 = vunpack.c.l.b16 %v522
      %v539 = vunpack.c.l.b16 %v523
      %v540 = vunpack.c.l.b16 %v524
      %v541 = vpack.c.b16 %v534, %v533
      %v542 = vpack.c.b16 %v536, %v535
      %v543 = vpack.c.b16 %v538, %v537
      %v544 = vpack.c.b16 %v540, %v539
      %549 = vst.msk [vmem:[#allocation2 + $0x10] sm:$0xff] %vm204, %v541
      %550 = vst.msk [vmem:[#allocation2 + $0x28] sm:$0xff] %vm204, %v542
      %551 = vst.msk [vmem:[#allocation2 + $0x40] sm:$0xff] %vm204, %v543
      %552 = vst.msk [vmem:[#allocation2 + $0x58] sm:$0xff] %vm204, %v544
      %v553 = vld [vmem:[#allocation2] sm:$0xff]
      %v554 = vld [vmem:[#allocation2 + $0x8] sm:$0xff]
      %v555 = vld [vmem:[#allocation2 + $0x10] sm:$0xff]
      %v556 = vld [vmem:[#allocation2 + $0x18] sm:$0xff]
      %v557 = vld [vmem:[#allocation2 + $0x20] sm:$0xff]
      %v558 = vld [vmem:[#allocation2 + $0x28] sm:$0xff]
      %v559 = vld [vmem:[#allocation2 + $0x30] sm:$0xff]
      %v560 = vld [vmem:[#allocation2 + $0x38] sm:$0xff]
      %v561 = vld [vmem:[#allocation2 + $0x40] sm:$0xff]
      %v562 = vld [vmem:[#allocation2 + $0x48] sm:$0xff]
      %v563 = vld [vmem:[#allocation2 + $0x50] sm:$0xff]
      %v564 = vld [vmem:[#allocation2 + $0x58] sm:$0xff]
      %v565 = vld [vmem:[%s1] sm:$0xf]
      %v566 = vld [vmem:[%s1 + $0x4] sm:$0xf]
      %v567 = vld [vmem:[%s1 + $0x8] sm:$0xf]
      %v568 = vld [vmem:[%s1 + $0xc] sm:$0xf]
      %v569 = vld [vmem:[%s1 + $0x10] sm:$0xf]
      %v570 = vld [vmem:[%s1 + $0x14] sm:$0xf]
      %v571 = vld [vmem:[%s1 + $0x18] sm:$0xf]
      %v572 = vld [vmem:[%s1 + $0x1c] sm:$0xf]
      %v573 = vld [vmem:[%s1 + $0x20] sm:$0xf]
      %v574 = vld [vmem:[%s1 + $0x24] sm:$0xf]
      %v575 = vld [vmem:[%s1 + $0x28] sm:$0xf]
      %v576 = vld [vmem:[%s1 + $0x2c] sm:$0xf]
      %v577 = vld [vmem:[%s1 + $0x30] sm:$0xf]
      %v578 = vld [vmem:[%s1 + $0x34] sm:$0xf]
      %v579 = vld [vmem:[%s1 + $0x38] sm:$0xf]
      %v580 = vld [vmem:[%s1 + $0x3c] sm:$0xf]
      %v581 = vld [vmem:[%s1 + $0x40] sm:$0xf]
      %v582 = vld [vmem:[%s1 + $0x44] sm:$0xf]
      %v583 = vld [vmem:[%s1 + $0x48] sm:$0xf]
      %v584 = vld [vmem:[%s1 + $0x4c] sm:$0xf]
      %v585 = vld [vmem:[%s1 + $0x50] sm:$0xf]
      %v586 = vld [vmem:[%s1 + $0x54] sm:$0xf]
      %v587 = vld [vmem:[%s1 + $0x58] sm:$0xf]
      %v588 = vld [vmem:[%s1 + $0x5c] sm:$0xf]
      %v589 = vld [vmem:[%s1 + $0x60] sm:$0xf]
      %v590 = vld [vmem:[%s1 + $0x64] sm:$0xf]
      %v591 = vld [vmem:[%s1 + $0x68] sm:$0xf]
      %v592 = vld [vmem:[%s1 + $0x6c] sm:$0xf]
      %v593 = vld [vmem:[%s1 + $0x70] sm:$0xf]
      %v594 = vld [vmem:[%s1 + $0x74] sm:$0xf]
      %v595 = vld [vmem:[%s1 + $0x78] sm:$0xf]
      %v596 = vld [vmem:[%s1 + $0x7c] sm:$0xf]
      %v597 = vld [vmem:[%s1 + $0x80] sm:$0xf]
      %v598 = vld [vmem:[%s1 + $0x84] sm:$0xf]
      %v599 = vld [vmem:[%s1 + $0x88] sm:$0xf]
      %v600 = vld [vmem:[%s1 + $0x8c] sm:$0xf]
      %v637 = vunpack.c.l.b16 %v565
      %v638 = vunpack.c.l.b16 %v566
      %v639 = vunpack.c.l.b16 %v567
      %v640 = vunpack.c.l.b16 %v568
      %v641 = vunpack.c.l.b16 %v569
      %v642 = vunpack.c.l.b16 %v570
      %v643 = vunpack.c.l.b16 %v571
      %v644 = vunpack.c.l.b16 %v572
      %v645 = vunpack.c.l.b16 %v573
      %v646 = vunpack.c.l.b16 %v574
      %v647 = vunpack.c.l.b16 %v575
      %v648 = vunpack.c.l.b16 %v576
      %v649 = vunpack.c.l.b16 %v577
      %v650 = vunpack.c.l.b16 %v578
      %v651 = vunpack.c.l.b16 %v579
      %v652 = vunpack.c.l.b16 %v580
      %v653 = vunpack.c.l.b16 %v581
      %v654 = vunpack.c.l.b16 %v582
      %v655 = vunpack.c.l.b16 %v583
      %v656 = vunpack.c.l.b16 %v584
      %v657 = vunpack.c.l.b16 %v585
      %v658 = vunpack.c.l.b16 %v586
      %v659 = vunpack.c.l.b16 %v587
      %v660 = vunpack.c.l.b16 %v588
      %v661 = vunpack.c.l.b16 %v589
      %v662 = vunpack.c.l.b16 %v590
      %v663 = vunpack.c.l.b16 %v591
      %v664 = vunpack.c.l.b16 %v592
      %v665 = vunpack.c.l.b16 %v593
      %v666 = vunpack.c.l.b16 %v594
      %v667 = vunpack.c.l.b16 %v595
      %v668 = vunpack.c.l.b16 %v596
      %v669 = vunpack.c.l.b16 %v597
      %v670 = vunpack.c.l.b16 %v598
      %v671 = vunpack.c.l.b16 %v599
      %v672 = vunpack.c.l.b16 %v600
      %v673 = vpack.c.b16 %v638, %v637
      %v674 = vpack.c.b16 %v640, %v639
      %v675 = vpack.c.b16 %v642, %v641
      %v676 = vpack.c.b16 %v644, %v643
      %v677 = vpack.c.b16 %v646, %v645
      %v678 = vpack.c.b16 %v648, %v647
      %v679 = vpack.c.b16 %v650, %v649
      %v680 = vpack.c.b16 %v652, %v651
      %v681 = vpack.c.b16 %v654, %v653
      %v682 = vpack.c.b16 %v656, %v655
      %v683 = vpack.c.b16 %v658, %v657
      %v684 = vpack.c.b16 %v660, %v659
      %v685 = vpack.c.b16 %v662, %v661
      %v686 = vpack.c.b16 %v664, %v663
      %v687 = vpack.c.b16 %v666, %v665
      %v688 = vpack.c.b16 %v668, %v667
      %v689 = vpack.c.b16 %v670, %v669
      %v690 = vpack.c.b16 %v672, %v671
      %v710 = vsel %vm204, %v555, 0
      %v713 = vsel %vm204, %v558, 0
      %v716 = vsel %vm204, %v561, 0
      %v719 = vsel %vm204, %v564, 0
      %721 = vmatprep.subr.bf16.mxu0 0
      %722 = vmatpush1.bf16.msra.mxu0 %v673
      %723 = vmatprep.subr.bf16.mxu0 0
      %724 = vmatpush1.bf16.msra.mxu0 %v674
      %725 = vmatprep.subr.bf16.mxu0 0
      %726 = vmatpush1.bf16.msra.mxu0 %v675
      %727 = vmatprep.subr.bf16.mxu0 0
      %728 = vmatpush1.bf16.msra.mxu0 %v676
      %729 = vmatprep.subr.bf16.mxu0 0
      %730 = vmatpush1.bf16.msra.mxu0 %v677
      %731 = vmatprep.subr.bf16.mxu0 0
      %732 = vmatpush1.bf16.msra.mxu0 %v678
      %733 = vmatprep.subr.bf16.mxu0 0
      %734 = vmatpush1.bf16.msra.mxu0 %v679
      %735 = vmatprep.subr.bf16.mxu0 0
      %736 = vmatpush1.bf16.msra.mxu0 %v680
      %737 = vmatprep.subr.bf16.mxu0 0
      %738 = vmatpush1.bf16.msra.mxu0 %v681
      %739 = vmatprep.subr.bf16.mxu0 0
      %740 = vmatpush1.bf16.msra.mxu0 %v682
      %741 = vmatprep.subr.bf16.mxu0 0
      %742 = vmatpush1.bf16.msra.mxu0 %v683
      %743 = vmatprep.subr.bf16.mxu0 0
      %744 = vmatpush1.bf16.msra.mxu0 %v684
      %745 = vmatprep.subr.bf16.mxu0 0
      %746 = vmatpush1.bf16.msra.mxu0 %v685
      %747 = vmatprep.subr.bf16.mxu0 0
      %748 = vmatpush1.bf16.msra.mxu0 %v686
      %749 = vmatprep.subr.bf16.mxu0 0
      %750 = vmatpush1.bf16.msra.mxu0 %v687
      %751 = vmatprep.subr.bf16.mxu0 0
      %752 = vmatpush1.bf16.msra.mxu0 %v688
      %753 = vmatprep.mubr.bf16.mxu0 %v554
      %754 = vmatmul.mubr.bf16.gmra.mrb[0].mxu0 %v553
      %v755 = vpop.f32.mrb[0].mxu0
      %v756 = vadd.f32 0.0, %v755
      %v757 = vpop.f32.mrb[0].mxu0
      %v758 = vpop.f32.mrb[0].mxu0
      %v759 = vadd.f32 0.0, %v758
      %v760 = vpop.f32.mrb[0].mxu0
      %761 = vmatprep.mubr.bf16.mxu0 %v557
      %762 = vmatmul.mubr.bf16.gmra.mrb[0].mxu0 %v556
      %v763 = vpop.f32.mrb[0].mxu0
      %v764 = vadd.f32 0.0, %v763
      %v765 = vpop.f32.mrb[0].mxu0
      %v766 = vpop.f32.mrb[0].mxu0
      %v767 = vadd.f32 0.0, %v766
      %v768 = vpop.f32.mrb[0].mxu0
      %769 = vmatprep.mubr.bf16.mxu0 %v560
      %770 = vmatmul.mubr.bf16.gmra.mrb[0].mxu0 %v559
      %v771 = vpop.f32.mrb[0].mxu0
      %v772 = vadd.f32 0.0, %v771
      %v773 = vpop.f32.mrb[0].mxu0
      %v774 = vpop.f32.mrb[0].mxu0
      %v775 = vadd.f32 0.0, %v774
      %v776 = vpop.f32.mrb[0].mxu0
      %777 = vmatprep.mubr.bf16.mxu0 %v563
      %778 = vmatmul.mubr.bf16.gmra.mrb[0].mxu0 %v562
      %v779 = vpop.f32.mrb[0].mxu0
      %v780 = vadd.f32 0.0, %v779
      %v781 = vpop.f32.mrb[0].mxu0
      %v782 = vpop.f32.mrb[0].mxu0
      %v783 = vadd.f32 0.0, %v782
      %v784 = vpop.f32.mrb[0].mxu0
      %785 = vdwg.mxu0
      %786 = vmatprep.subr.bf16.mxu0 0
      %787 = vmatpush1.bf16.msra.mxu0 %v689
      %788 = vmatprep.subr.bf16.mxu0 0
      %789 = vmatpush1.bf16.msra.mxu0 %v690
      %790 = vmatprep.subr.bf16.mxu0 0
      %791 = vmatpush1.bf16.msra.mxu0 0
      %792 = vmatprep.subr.bf16.mxu0 0
      %793 = vmatpush1.bf16.msra.mxu0 0
      %794 = vmatprep.subr.bf16.mxu0 0
      %795 = vmatpush1.bf16.msra.mxu0 0
      %796 = vmatprep.subr.bf16.mxu0 0
      %797 = vmatpush1.bf16.msra.mxu0 0
      %798 = vmatprep.subr.bf16.mxu0 0
      %799 = vmatpush1.bf16.msra.mxu0 0
      %800 = vmatprep.subr.bf16.mxu0 0
      %801 = vmatpush1.bf16.msra.mxu0 0
      %802 = vmatprep.subr.bf16.mxu0 0
      %803 = vmatpush1.bf16.msra.mxu0 0
      %804 = vmatprep.subr.bf16.mxu0 0
      %805 = vmatpush1.bf16.msra.mxu0 0
      %806 = vmatprep.subr.bf16.mxu0 0
      %807 = vmatpush1.bf16.msra.mxu0 0
      %808 = vmatprep.subr.bf16.mxu0 0
      %809 = vmatpush1.bf16.msra.mxu0 0
      %810 = vmatprep.subr.bf16.mxu0 0
      %811 = vmatpush1.bf16.msra.mxu0 0
      %812 = vmatprep.subr.bf16.mxu0 0
      %813 = vmatpush1.bf16.msra.mxu0 0
      %814 = vmatprep.subr.bf16.mxu0 0
      %815 = vmatpush1.bf16.msra.mxu0 0
      %816 = vmatprep.subr.bf16.mxu0 0
      %817 = vmatpush1.bf16.msra.mxu0 0
      %818 = vmatprep.mubr.bf16.mxu0 0
      %819 = vmatmul.mubr.bf16.gmra.mrb[0].mxu0 %v710
      %v820 = vpop.f32.mrb[0].mxu0
      %v821 = vadd.f32 %v756, %v820
      %v822 = vpop.f32.mrb[0].mxu0
      %v823 = vpop.f32.mrb[0].mxu0
      %v824 = vadd.f32 %v759, %v823
      %v825 = vpop.f32.mrb[0].mxu0
      %826 = vmatprep.mubr.bf16.mxu0 0
      %827 = vmatmul.mubr.bf16.gmra.mrb[0].mxu0 %v713
      %v828 = vpop.f32.mrb[0].mxu0
      %v829 = vadd.f32 %v764, %v828
      %v830 = vpop.f32.mrb[0].mxu0
      %v831 = vpop.f32.mrb[0].mxu0
      %v832 = vadd.f32 %v767, %v831
      %v833 = vpop.f32.mrb[0].mxu0
      %834 = vmatprep.mubr.bf16.mxu0 0
      %835 = vmatmul.mubr.bf16.gmra.mrb[0].mxu0 %v716
      %v836 = vpop.f32.mrb[0].mxu0
      %v837 = vadd.f32 %v772, %v836
      %v838 = vpop.f32.mrb[0].mxu0
      %v839 = vpop.f32.mrb[0].mxu0
      %v840 = vadd.f32 %v775, %v839
      %v841 = vpop.f32.mrb[0].mxu0
      %842 = vmatprep.mubr.bf16.mxu0 0
      %843 = vmatmul.mubr.bf16.gmra.mrb[0].mxu0 %v719
      %v844 = vpop.f32.mrb[0].mxu0
      %v845 = vadd.f32 %v780, %v844
      %v846 = vpop.f32.mrb[0].mxu0
      %v847 = vpop.f32.mrb[0].mxu0
      %v848 = vadd.f32 %v783, %v847
      %v849 = vpop.f32.mrb[0].mxu0
      %850 = vdwg.mxu0
      %v851 = vld [vmem:[%s209] sm:$0xf]
      %v852 = vld [vmem:[%s209 + $0x4] sm:$0xf]
      %v853 = vld [vmem:[%s209 + $0x8] sm:$0xf]
      %v854 = vld [vmem:[%s209 + $0xc] sm:$0xf]
      %v855 = vld [vmem:[%s209 + $0x10] sm:$0xf]
      %v856 = vld [vmem:[%s209 + $0x14] sm:$0xf]
      %v857 = vld [vmem:[%s209 + $0x18] sm:$0xf]
      %v858 = vld [vmem:[%s209 + $0x1c] sm:$0xf]
      %v867 = vunpack.c.l.b16 %v851
      %v868 = vunpack.c.l.b16 %v852
      %v869 = vunpack.c.l.b16 %v853
      %v870 = vunpack.c.l.b16 %v854
      %v871 = vunpack.c.l.b16 %v855
      %v872 = vunpack.c.l.b16 %v856
      %v873 = vunpack.c.l.b16 %v857
      %v874 = vunpack.c.l.b16 %v858
      %v875 = vpack.c.b16 %v868, %v867
      %v876 = vpack.c.b16 %v870, %v869
      %v877 = vpack.c.b16 %v872, %v871
      %v878 = vpack.c.b16 %v874, %v873
      %883 = vst.msk [vmem:[#allocation2] sm:$0xff] %vm204, %v875
      %884 = vst.msk [vmem:[#allocation2 + $0x18] sm:$0xff] %vm204, %v876
      %885 = vst.msk [vmem:[#allocation2 + $0x30] sm:$0xff] %vm204, %v877
      %886 = vst.msk [vmem:[#allocation2 + $0x48] sm:$0xff] %vm204, %v878
      %v887 = vld [vmem:[%s255] sm:$0xf]
      %v888 = vld [vmem:[%s255 + $0x4] sm:$0xf]
      %v889 = vld [vmem:[%s255 + $0x8] sm:$0xf]
      %v890 = vld [vmem:[%s255 + $0xc] sm:$0xf]
      %v891 = vld [vmem:[%s255 + $0x10] sm:$0xf]
      %v892 = vld [vmem:[%s255 + $0x14] sm:$0xf]
      %v893 = vld [vmem:[%s255 + $0x18] sm:$0xf]
      %v894 = vld [vmem:[%s255 + $0x1c] sm:$0xf]
      %v903 = vunpack.c.l.b16 %v887
      %v904 = vunpack.c.l.b16 %v888
      %v905 = vunpack.c.l.b16 %v889
      %v906 = vunpack.c.l.b16 %v890
      %v907 = vunpack.c.l.b16 %v891
      %v908 = vunpack.c.l.b16 %v892
      %v909 = vunpack.c.l.b16 %v893
      %v910 = vunpack.c.l.b16 %v894
      %v911 = vpack.c.b16 %v904, %v903
      %v912 = vpack.c.b16 %v906, %v905
      %v913 = vpack.c.b16 %v908, %v907
      %v914 = vpack.c.b16 %v910, %v909
      %915 = vrot.lane.b32.xlu0 %v911, 32
      %v916 = vpop.permute.xlu0 %915
      %917 = vrot.lane.b32.xlu0 %v912, 32
      %v918 = vpop.permute.xlu0 %917
      %919 = vrot.lane.b32.xlu0 %v913, 32
      %v920 = vpop.permute.xlu0 %919
      %921 = vrot.lane.b32.xlu0 %v914, 32
      %v922 = vpop.permute.xlu0 %921
      %927 = vst.msk [vmem:[#allocation2] sm:$0xff] %vm250, %v916
      %928 = vst.msk [vmem:[#allocation2 + $0x18] sm:$0xff] %vm250, %v918
      %929 = vst.msk [vmem:[#allocation2 + $0x30] sm:$0xff] %vm250, %v920
      %930 = vst.msk [vmem:[#allocation2 + $0x48] sm:$0xff] %vm250, %v922
      %s931 = scalar_lea.vmem %s165, 120
      %v932 = vld [vmem:[%s931] sm:$0xf]
      %v933 = vld [vmem:[%s931 + $0x4] sm:$0xf]
      %v934 = vld [vmem:[%s931 + $0x8] sm:$0xf]
      %v935 = vld [vmem:[%s931 + $0xc] sm:$0xf]
      %v936 = vld [vmem:[%s931 + $0x10] sm:$0xf]
      %v937 = vld [vmem:[%s931 + $0x14] sm:$0xf]
      %v938 = vld [vmem:[%s931 + $0x18] sm:$0xf]
      %v939 = vld [vmem:[%s931 + $0x1c] sm:$0xf]
      %v948 = vunpack.c.l.b16 %v932
      %v949 = vunpack.c.l.b16 %v933
      %v950 = vunpack.c.l.b16 %v934
      %v951 = vunpack.c.l.b16 %v935
      %v952 = vunpack.c.l.b16 %v936
      %v953 = vunpack.c.l.b16 %v937
      %v954 = vunpack.c.l.b16 %v938
      %v955 = vunpack.c.l.b16 %v939
      %v956 = vpack.c.b16 %v949, %v948
      %v957 = vpack.c.b16 %v951, %v950
      %v958 = vpack.c.b16 %v953, %v952
      %v959 = vpack.c.b16 %v955, %v954
      %960 = vrot.lane.b32.xlu0 %v956, 64
      %v961 = vpop.permute.xlu0 %960
      %962 = vrot.lane.b32.xlu0 %v957, 64
      %v963 = vpop.permute.xlu0 %962
      %964 = vrot.lane.b32.xlu0 %v958, 64
      %v965 = vpop.permute.xlu0 %964
      %966 = vrot.lane.b32.xlu0 %v959, 64
      %v967 = vpop.permute.xlu0 %966
      %972 = vst.msk [vmem:[#allocation2] sm:$0xff] %vm296, %v961
      %973 = vst.msk [vmem:[#allocation2 + $0x18] sm:$0xff] %vm296, %v963
      %974 = vst.msk [vmem:[#allocation2 + $0x30] sm:$0xff] %vm296, %v965
      %975 = vst.msk [vmem:[#allocation2 + $0x48] sm:$0xff] %vm296, %v967
      %v976 = vld [vmem:[%s347] sm:$0xf]
      %v977 = vld [vmem:[%s347 + $0x4] sm:$0xf]
      %v978 = vld [vmem:[%s347 + $0x8] sm:$0xf]
      %v979 = vld [vmem:[%s347 + $0xc] sm:$0xf]
      %v980 = vld [vmem:[%s347 + $0x10] sm:$0xf]
      %v981 = vld [vmem:[%s347 + $0x14] sm:$0xf]
      %v982 = vld [vmem:[%s347 + $0x18] sm:$0xf]
      %v983 = vld [vmem:[%s347 + $0x1c] sm:$0xf]
      %v992 = vunpack.c.l.b16 %v976
      %v993 = vunpack.c.l.b16 %v977
      %v994 = vunpack.c.l.b16 %v978
      %v995 = vunpack.c.l.b16 %v979
      %v996 = vunpack.c.l.b16 %v980
      %v997 = vunpack.c.l.b16 %v981
      %v998 = vunpack.c.l.b16 %v982
      %v999 = vunpack.c.l.b16 %v983
      %v1000 = vpack.c.b16 %v993, %v992
      %v1001 = vpack.c.b16 %v995, %v994
      %v1002 = vpack.c.b16 %v997, %v996
      %v1003 = vpack.c.b16 %v999, %v998
      %1004 = vrot.lane.b32.xlu0 %v1000, 96
      %v1005 = vpop.permute.xlu0 %1004
      %1006 = vrot.lane.b32.xlu0 %v1001, 96
      %v1007 = vpop.permute.xlu0 %1006
      %1008 = vrot.lane.b32.xlu0 %v1002, 96
      %v1009 = vpop.permute.xlu0 %1008
      %1010 = vrot.lane.b32.xlu0 %v1003, 96
      %v1011 = vpop.permute.xlu0 %1010
      %1016 = vst.msk [vmem:[#allocation2] sm:$0xff] %vm342, %v1005
      %1017 = vst.msk [vmem:[#allocation2 + $0x18] sm:$0xff] %vm342, %v1007
      %1018 = vst.msk [vmem:[#allocation2 + $0x30] sm:$0xff] %vm342, %v1009
      %1019 = vst.msk [vmem:[#allocation2 + $0x48] sm:$0xff] %vm342, %v1011
      %v1020 = vld [vmem:[%s384] sm:$0xf]
      %v1021 = vld [vmem:[%s384 + $0x4] sm:$0xf]
      %v1022 = vld [vmem:[%s384 + $0x8] sm:$0xf]
      %v1023 = vld [vmem:[%s384 + $0xc] sm:$0xf]
      %v1024 = vld [vmem:[%s384 + $0x10] sm:$0xf]
      %v1025 = vld [vmem:[%s384 + $0x14] sm:$0xf]
      %v1026 = vld [vmem:[%s384 + $0x18] sm:$0xf]
      %v1027 = vld [vmem:[%s384 + $0x1c] sm:$0xf]
      %v1036 = vunpack.c.l.b16 %v1020
      %v1037 = vunpack.c.l.b16 %v1021
      %v1038 = vunpack.c.l.b16 %v1022
      %v1039 = vunpack.c.l.b16 %v1023
      %v1040 = vunpack.c.l.b16 %v1024
      %v1041 = vunpack.c.l.b16 %v1025
      %v1042 = vunpack.c.l.b16 %v1026
      %v1043 = vunpack.c.l.b16 %v1027
      %v1044 = vpack.c.b16 %v1037, %v1036
      %v1045 = vpack.c.b16 %v1039, %v1038
      %v1046 = vpack.c.b16 %v1041, %v1040
      %v1047 = vpack.c.b16 %v1043, %v1042
      %1052 = vst.msk [vmem:[#allocation2 + $0x8] sm:$0xff] %vm204, %v1044
      %1053 = vst.msk [vmem:[#allocation2 + $0x20] sm:$0xff] %vm204, %v1045
      %1054 = vst.msk [vmem:[#allocation2 + $0x38] sm:$0xff] %vm204, %v1046
      %1055 = vst.msk [vmem:[#allocation2 + $0x50] sm:$0xff] %vm204, %v1047
      %s1056 = scalar_lea.vmem %s165, 280
      %v1057 = vld [vmem:[%s1056] sm:$0xf]
      %v1058 = vld [vmem:[%s1056 + $0x4] sm:$0xf]
      %v1059 = vld [vmem:[%s1056 + $0x8] sm:$0xf]
      %v1060 = vld [vmem:[%s1056 + $0xc] sm:$0xf]
      %v1061 = vld [vmem:[%s1056 + $0x10] sm:$0xf]
      %v1062 = vld [vmem:[%s1056 + $0x14] sm:$0xf]
      %v1063 = vld [vmem:[%s1056 + $0x18] sm:$0xf]
      %v1064 = vld [vmem:[%s1056 + $0x1c] sm:$0xf]
      %v1073 = vunpack.c.l.b16 %v1057
      %v1074 = vunpack.c.l.b16 %v1058
      %v1075 = vunpack.c.l.b16 %v1059
      %v1076 = vunpack.c.l.b16 %v1060
      %v1077 = vunpack.c.l.b16 %v1061
      %v1078 = vunpack.c.l.b16 %v1062
      %v1079 = vunpack.c.l.b16 %v1063
      %v1080 = vunpack.c.l.b16 %v1064
      %v1081 = vpack.c.b16 %v1074, %v1073
      %v1082 = vpack.c.b16 %v1076, %v1075
      %v1083 = vpack.c.b16 %v1078, %v1077
      %v1084 = vpack.c.b16 %v1080, %v1079
      %1085 = vrot.lane.b32.xlu0 %v1081, 32
      %v1086 = vpop.permute.xlu0 %1085
      %1087 = vrot.lane.b32.xlu0 %v1082, 32
      %v1088 = vpop.permute.xlu0 %1087
      %1089 = vrot.lane.b32.xlu0 %v1083, 32
      %v1090 = vpop.permute.xlu0 %1089
      %1091 = vrot.lane.b32.xlu0 %v1084, 32
      %v1092 = vpop.permute.xlu0 %1091
      %1097 = vst.msk [vmem:[#allocation2 + $0x8] sm:$0xff] %vm250, %v1086
      %1098 = vst.msk [vmem:[#allocation2 + $0x20] sm:$0xff] %vm250, %v1088
      %1099 = vst.msk [vmem:[#allocation2 + $0x38] sm:$0xff] %vm250, %v1090
      %1100 = vst.msk [vmem:[#allocation2 + $0x50] sm:$0xff] %vm250, %v1092
      %v1101 = vld [vmem:[%s209 + $0x4] sm:$0xf]
      %v1102 = vld [vmem:[%s209 + $0x8] sm:$0xf]
      %v1103 = vld [vmem:[%s209 + $0xc] sm:$0xf]
      %v1104 = vld [vmem:[%s209 + $0x10] sm:$0xf]
      %v1105 = vld [vmem:[%s209 + $0x14] sm:$0xf]
      %v1106 = vld [vmem:[%s209 + $0x18] sm:$0xf]
      %v1107 = vld [vmem:[%s209 + $0x1c] sm:$0xf]
      %v1108 = vld [vmem:[%s209 + $0x20] sm:$0xf]
      %v1117 = vunpack.c.l.b16 %v1101
      %v1118 = vunpack.c.l.b16 %v1102
      %v1119 = vunpack.c.l.b16 %v1103
      %v1120 = vunpack.c.l.b16 %v1104
      %v1121 = vunpack.c.l.b16 %v1105
      %v1122 = vunpack.c.l.b16 %v1106
      %v1123 = vunpack.c.l.b16 %v1107
      %v1124 = vunpack.c.l.b16 %v1108
      %v1125 = vpack.c.b16 %v1118, %v1117
      %v1126 = vpack.c.b16 %v1120, %v1119
      %v1127 = vpack.c.b16 %v1122, %v1121
      %v1128 = vpack.c.b16 %v1124, %v1123
      %1129 = vrot.lane.b32.xlu0 %v1125, 64
      %v1130 = vpop.permute.xlu0 %1129
      %1131 = vrot.lane.b32.xlu0 %v1126, 64
      %v1132 = vpop.permute.xlu0 %1131
      %1133 = vrot.lane.b32.xlu0 %v1127, 64
      %v1134 = vpop.permute.xlu0 %1133
      %1135 = vrot.lane.b32.xlu0 %v1128, 64
      %v1136 = vpop.permute.xlu0 %1135
      %1141 = vst.msk [vmem:[#allocation2 + $0x8] sm:$0xff] %vm296, %v1130
      %1142 = vst.msk [vmem:[#allocation2 + $0x20] sm:$0xff] %vm296, %v1132
      %1143 = vst.msk [vmem:[#allocation2 + $0x38] sm:$0xff] %vm296, %v1134
      %1144 = vst.msk [vmem:[#allocation2 + $0x50] sm:$0xff] %vm296, %v1136
      %v1145 = vld [vmem:[%s255 + $0x4] sm:$0xf]
      %v1146 = vld [vmem:[%s255 + $0x8] sm:$0xf]
      %v1147 = vld [vmem:[%s255 + $0xc] sm:$0xf]
      %v1148 = vld [vmem:[%s255 + $0x10] sm:$0xf]
      %v1149 = vld [vmem:[%s255 + $0x14] sm:$0xf]
      %v1150 = vld [vmem:[%s255 + $0x18] sm:$0xf]
      %v1151 = vld [vmem:[%s255 + $0x1c] sm:$0xf]
      %v1152 = vld [vmem:[%s255 + $0x20] sm:$0xf]
      %v1161 = vunpack.c.l.b16 %v1145
      %v1162 = vunpack.c.l.b16 %v1146
      %v1163 = vunpack.c.l.b16 %v1147
      %v1164 = vunpack.c.l.b16 %v1148
      %v1165 = vunpack.c.l.b16 %v1149
      %v1166 = vunpack.c.l.b16 %v1150
      %v1167 = vunpack.c.l.b16 %v1151
      %v1168 = vunpack.c.l.b16 %v1152
      %v1169 = vpack.c.b16 %v1162, %v1161
      %v1170 = vpack.c.b16 %v1164, %v1163
      %v1171 = vpack.c.b16 %v1166, %v1165
      %v1172 = vpack.c.b16 %v1168, %v1167
      %1173 = vrot.lane.b32.xlu0 %v1169, 96
      %v1174 = vpop.permute.xlu0 %1173
      %1175 = vrot.lane.b32.xlu0 %v1170, 96
      %v1176 = vpop.permute.xlu0 %1175
      %1177 = vrot.lane.b32.xlu0 %v1171, 96
      %v1178 = vpop.permute.xlu0 %1177
      %1179 = vrot.lane.b32.xlu0 %v1172, 96
      %v1180 = vpop.permute.xlu0 %1179
      %1185 = vst.msk [vmem:[#allocation2 + $0x8] sm:$0xff] %vm342, %v1174
      %1186 = vst.msk [vmem:[#allocation2 + $0x20] sm:$0xff] %vm342, %v1176
      %1187 = vst.msk [vmem:[#allocation2 + $0x38] sm:$0xff] %vm342, %v1178
      %1188 = vst.msk [vmem:[#allocation2 + $0x50] sm:$0xff] %vm342, %v1180
      %v1189 = vld [vmem:[%s931 + $0x4] sm:$0xf]
      %v1190 = vld [vmem:[%s931 + $0x8] sm:$0xf]
      %v1191 = vld [vmem:[%s931 + $0xc] sm:$0xf]
      %v1192 = vld [vmem:[%s931 + $0x10] sm:$0xf]
      %v1193 = vld [vmem:[%s931 + $0x14] sm:$0xf]
      %v1194 = vld [vmem:[%s931 + $0x18] sm:$0xf]
      %v1195 = vld [vmem:[%s931 + $0x1c] sm:$0xf]
      %v1196 = vld [vmem:[%s931 + $0x20] sm:$0xf]
      %v1205 = vunpack.c.l.b16 %v1189
      %v1206 = vunpack.c.l.b16 %v1190
      %v1207 = vunpack.c.l.b16 %v1191
      %v1208 = vunpack.c.l.b16 %v1192
      %v1209 = vunpack.c.l.b16 %v1193
      %v1210 = vunpack.c.l.b16 %v1194
      %v1211 = vunpack.c.l.b16 %v1195
      %v1212 = vunpack.c.l.b16 %v1196
      %v1213 = vpack.c.b16 %v1206, %v1205
      %v1214 = vpack.c.b16 %v1208, %v1207
      %v1215 = vpack.c.b16 %v1210, %v1209
      %v1216 = vpack.c.b16 %v1212, %v1211
      %1221 = vst.msk [vmem:[#allocation2 + $0x10] sm:$0xff] %vm204, %v1213
      %1222 = vst.msk [vmem:[#allocation2 + $0x28] sm:$0xff] %vm204, %v1214
      %1223 = vst.msk [vmem:[#allocation2 + $0x40] sm:$0xff] %vm204, %v1215
      %1224 = vst.msk [vmem:[#allocation2 + $0x58] sm:$0xff] %vm204, %v1216
      %v1225 = vld [vmem:[#allocation2] sm:$0xff]
      %v1226 = vld [vmem:[#allocation2 + $0x8] sm:$0xff]
      %v1227 = vld [vmem:[#allocation2 + $0x10] sm:$0xff]
      %v1228 = vld [vmem:[#allocation2 + $0x18] sm:$0xff]
      %v1229 = vld [vmem:[#allocation2 + $0x20] sm:$0xff]
      %v1230 = vld [vmem:[#allocation2 + $0x28] sm:$0xff]
      %v1231 = vld [vmem:[#allocation2 + $0x30] sm:$0xff]
      %v1232 = vld [vmem:[#allocation2 + $0x38] sm:$0xff]
      %v1233 = vld [vmem:[#allocation2 + $0x40] sm:$0xff]
      %v1234 = vld [vmem:[#allocation2 + $0x48] sm:$0xff]
      %v1235 = vld [vmem:[#allocation2 + $0x50] sm:$0xff]
      %v1236 = vld [vmem:[#allocation2 + $0x58] sm:$0xff]
      %v1237 = vld [vmem:[%s1] sm:$0xf]
      %v1238 = vld [vmem:[%s1 + $0x4] sm:$0xf]
      %v1239 = vld [vmem:[%s1 + $0x8] sm:$0xf]
      %v1240 = vld [vmem:[%s1 + $0xc] sm:$0xf]
      %v1241 = vld [vmem:[%s1 + $0x10] sm:$0xf]
      %v1242 = vld [vmem:[%s1 + $0x14] sm:$0xf]
      %v1243 = vld [vmem:[%s1 + $0x18] sm:$0xf]
      %v1244 = vld [vmem:[%s1 + $0x1c] sm:$0xf]
      %v1245 = vld [vmem:[%s1 + $0x20] sm:$0xf]
      %v1246 = vld [vmem:[%s1 + $0x24] sm:$0xf]
      %v1247 = vld [vmem:[%s1 + $0x28] sm:$0xf]
      %v1248 = vld [vmem:[%s1 + $0x2c] sm:$0xf]
      %v1249 = vld [vmem:[%s1 + $0x30] sm:$0xf]
      %v1250 = vld [vmem:[%s1 + $0x34] sm:$0xf]
      %v1251 = vld [vmem:[%s1 + $0x38] sm:$0xf]
      %v1252 = vld [vmem:[%s1 + $0x3c] sm:$0xf]
      %v1253 = vld [vmem:[%s1 + $0x40] sm:$0xf]
      %v1254 = vld [vmem:[%s1 + $0x44] sm:$0xf]
      %v1255 = vld [vmem:[%s1 + $0x48] sm:$0xf]
      %v1256 = vld [vmem:[%s1 + $0x4c] sm:$0xf]
      %v1257 = vld [vmem:[%s1 + $0x50] sm:$0xf]
      %v1258 = vld [vmem:[%s1 + $0x54] sm:$0xf]
      %v1259 = vld [vmem:[%s1 + $0x58] sm:$0xf]
      %v1260 = vld [vmem:[%s1 + $0x5c] sm:$0xf]
      %v1261 = vld [vmem:[%s1 + $0x60] sm:$0xf]
      %v1262 = vld [vmem:[%s1 + $0x64] sm:$0xf]
      %v1263 = vld [vmem:[%s1 + $0x68] sm:$0xf]
      %v1264 = vld [vmem:[%s1 + $0x6c] sm:$0xf]
      %v1265 = vld [vmem:[%s1 + $0x70] sm:$0xf]
      %v1266 = vld [vmem:[%s1 + $0x74] sm:$0xf]
      %v1267 = vld [vmem:[%s1 + $0x78] sm:$0xf]
      %v1268 = vld [vmem:[%s1 + $0x7c] sm:$0xf]
      %v1269 = vld [vmem:[%s1 + $0x80] sm:$0xf]
      %v1270 = vld [vmem:[%s1 + $0x84] sm:$0xf]
      %v1271 = vld [vmem:[%s1 + $0x88] sm:$0xf]
      %v1272 = vld [vmem:[%s1 + $0x8c] sm:$0xf]
      %v1309 = vunpack.c.l.b16 %v1237
      %v1310 = vunpack.c.l.b16 %v1238
      %v1311 = vunpack.c.l.b16 %v1239
      %v1312 = vunpack.c.l.b16 %v1240
      %v1313 = vunpack.c.l.b16 %v1241
      %v1314 = vunpack.c.l.b16 %v1242
      %v1315 = vunpack.c.l.b16 %v1243
      %v1316 = vunpack.c.l.b16 %v1244
      %v1317 = vunpack.c.l.b16 %v1245
      %v1318 = vunpack.c.l.b16 %v1246
      %v1319 = vunpack.c.l.b16 %v1247
      %v1320 = vunpack.c.l.b16 %v1248
      %v1321 = vunpack.c.l.b16 %v1249
      %v1322 = vunpack.c.l.b16 %v1250
      %v1323 = vunpack.c.l.b16 %v1251
      %v1324 = vunpack.c.l.b16 %v1252
      %v1325 = vunpack.c.l.b16 %v1253
      %v1326 = vunpack.c.l.b16 %v1254
      %v1327 = vunpack.c.l.b16 %v1255
      %v1328 = vunpack.c.l.b16 %v1256
      %v1329 = vunpack.c.l.b16 %v1257
      %v1330 = vunpack.c.l.b16 %v1258
      %v1331 = vunpack.c.l.b16 %v1259
      %v1332 = vunpack.c.l.b16 %v1260
      %v1333 = vunpack.c.l.b16 %v1261
      %v1334 = vunpack.c.l.b16 %v1262
      %v1335 = vunpack.c.l.b16 %v1263
      %v1336 = vunpack.c.l.b16 %v1264
      %v1337 = vunpack.c.l.b16 %v1265
      %v1338 = vunpack.c.l.b16 %v1266
      %v1339 = vunpack.c.l.b16 %v1267
      %v1340 = vunpack.c.l.b16 %v1268
      %v1341 = vunpack.c.l.b16 %v1269
      %v1342 = vunpack.c.l.b16 %v1270
      %v1343 = vunpack.c.l.b16 %v1271
      %v1344 = vunpack.c.l.b16 %v1272
      %v1345 = vpack.c.b16 %v1310, %v1309
      %v1346 = vpack.c.b16 %v1312, %v1311
      %v1347 = vpack.c.b16 %v1314, %v1313
      %v1348 = vpack.c.b16 %v1316, %v1315
      %v1349 = vpack.c.b16 %v1318, %v1317
      %v1350 = vpack.c.b16 %v1320, %v1319
      %v1351 = vpack.c.b16 %v1322, %v1321
      %v1352 = vpack.c.b16 %v1324, %v1323
      %v1353 = vpack.c.b16 %v1326, %v1325
      %v1354 = vpack.c.b16 %v1328, %v1327
      %v1355 = vpack.c.b16 %v1330, %v1329
      %v1356 = vpack.c.b16 %v1332, %v1331
      %v1357 = vpack.c.b16 %v1334, %v1333
      %v1358 = vpack.c.b16 %v1336, %v1335
      %v1359 = vpack.c.b16 %v1338, %v1337
      %v1360 = vpack.c.b16 %v1340, %v1339
      %v1361 = vpack.c.b16 %v1342, %v1341
      %v1362 = vpack.c.b16 %v1344, %v1343
      %v1382 = vsel %vm204, %v1227, 0
      %v1385 = vsel %vm204, %v1230, 0
      %v1388 = vsel %vm204, %v1233, 0
      %v1391 = vsel %vm204, %v1236, 0
      %1393 = vmatprep.subr.bf16.mxu0 0
      %1394 = vmatpush1.bf16.msra.mxu0 %v1345
      %1395 = vmatprep.subr.bf16.mxu0 0
      %1396 = vmatpush1.bf16.msra.mxu0 %v1346
      %1397 = vmatprep.subr.bf16.mxu0 0
      %1398 = vmatpush1.bf16.msra.mxu0 %v1347
      %1399 = vmatprep.subr.bf16.mxu0 0
      %1400 = vmatpush1.bf16.msra.mxu0 %v1348
      %1401 = vmatprep.subr.bf16.mxu0 0
      %1402 = vmatpush1.bf16.msra.mxu0 %v1349
      %1403 = vmatprep.subr.bf16.mxu0 0
      %1404 = vmatpush1.bf16.msra.mxu0 %v1350
      %1405 = vmatprep.subr.bf16.mxu0 0
      %1406 = vmatpush1.bf16.msra.mxu0 %v1351
      %1407 = vmatprep.subr.bf16.mxu0 0
      %1408 = vmatpush1.bf16.msra.mxu0 %v1352
      %1409 = vmatprep.subr.bf16.mxu0 0
      %1410 = vmatpush1.bf16.msra.mxu0 %v1353
      %1411 = vmatprep.subr.bf16.mxu0 0
      %1412 = vmatpush1.bf16.msra.mxu0 %v1354
      %1413 = vmatprep.subr.bf16.mxu0 0
      %1414 = vmatpush1.bf16.msra.mxu0 %v1355
      %1415 = vmatprep.subr.bf16.mxu0 0
      %1416 = vmatpush1.bf16.msra.mxu0 %v1356
      %1417 = vmatprep.subr.bf16.mxu0 0
      %1418 = vmatpush1.bf16.msra.mxu0 %v1357
      %1419 = vmatprep.subr.bf16.mxu0 0
      %1420 = vmatpush1.bf16.msra.mxu0 %v1358
      %1421 = vmatprep.subr.bf16.mxu0 0
      %1422 = vmatpush1.bf16.msra.mxu0 %v1359
      %1423 = vmatprep.subr.bf16.mxu0 0
      %1424 = vmatpush1.bf16.msra.mxu0 %v1360
      %1425 = vmatprep.mubr.bf16.mxu0 %v1226
      %1426 = vmatmul.mubr.bf16.gmra.mrb[0].mxu0 %v1225
      %v1427 = vpop.f32.mrb[0].mxu0
      %v1428 = vadd.f32 0.0, %v1427
      %v1429 = vpop.f32.mrb[0].mxu0
      %v1430 = vpop.f32.mrb[0].mxu0
      %v1431 = vadd.f32 0.0, %v1430
      %v1432 = vpop.f32.mrb[0].mxu0
      %1433 = vmatprep.mubr.bf16.mxu0 %v1229
      %1434 = vmatmul.mubr.bf16.gmra.mrb[0].mxu0 %v1228
      %v1435 = vpop.f32.mrb[0].mxu0
      %v1436 = vadd.f32 0.0, %v1435
      %v1437 = vpop.f32.mrb[0].mxu0
      %v1438 = vpop.f32.mrb[0].mxu0
      %v1439 = vadd.f32 0.0, %v1438
      %v1440 = vpop.f32.mrb[0].mxu0
      %1441 = vmatprep.mubr.bf16.mxu0 %v1232
      %1442 = vmatmul.mubr.bf16.gmra.mrb[0].mxu0 %v1231
      %v1443 = vpop.f32.mrb[0].mxu0
      %v1444 = vadd.f32 0.0, %v1443
      %v1445 = vpop.f32.mrb[0].mxu0
      %v1446 = vpop.f32.mrb[0].mxu0
      %v1447 = vadd.f32 0.0, %v1446
      %v1448 = vpop.f32.mrb[0].mxu0
      %1449 = vmatprep.mubr.bf16.mxu0 %v1235
      %1450 = vmatmul.mubr.bf16.gmra.mrb[0].mxu0 %v1234
      %v1451 = vpop.f32.mrb[0].mxu0
      %v1452 = vadd.f32 0.0, %v1451
      %v1453 = vpop.f32.mrb[0].mxu0
      %v1454 = vpop.f32.mrb[0].mxu0
      %v1455 = vadd.f32 0.0, %v1454
      %v1456 = vpop.f32.mrb[0].mxu0
      %1457 = vdwg.mxu0
      %1458 = vmatprep.subr.bf16.mxu0 0
      %1459 = vmatpush1.bf16.msra.mxu0 %v1361
      %1460 = vmatprep.subr.bf16.mxu0 0
      %1461 = vmatpush1.bf16.msra.mxu0 %v1362
      %1462 = vmatprep.subr.bf16.mxu0 0
      %1463 = vmatpush1.bf16.msra.mxu0 0
      %1464 = vmatprep.subr.bf16.mxu0 0
      %1465 = vmatpush1.bf16.msra.mxu0 0
      %1466 = vmatprep.subr.bf16.mxu0 0
      %1467 = vmatpush1.bf16.msra.mxu0 0
      %1468 = vmatprep.subr.bf16.mxu0 0
      %1469 = vmatpush1.bf16.msra.mxu0 0
      %1470 = vmatprep.subr.bf16.mxu0 0
      %1471 = vmatpush1.bf16.msra.mxu0 0
      %1472 = vmatprep.subr.bf16.mxu0 0
      %1473 = vmatpush1.bf16.msra.mxu0 0
      %1474 = vmatprep.subr.bf16.mxu0 0
      %1475 = vmatpush1.bf16.msra.mxu0 0
      %1476 = vmatprep.subr.bf16.mxu0 0
      %1477 = vmatpush1.bf16.msra.mxu0 0
      %1478 = vmatprep.subr.bf16.mxu0 0
      %1479 = vmatpush1.bf16.msra.mxu0 0
      %1480 = vmatprep.subr.bf16.mxu0 0
      %1481 = vmatpush1.bf16.msra.mxu0 0
      %1482 = vmatprep.subr.bf16.mxu0 0
      %1483 = vmatpush1.bf16.msra.mxu0 0
      %1484 = vmatprep.subr.bf16.mxu0 0
      %1485 = vmatpush1.bf16.msra.mxu0 0
      %1486 = vmatprep.subr.bf16.mxu0 0
      %1487 = vmatpush1.bf16.msra.mxu0 0
      %1488 = vmatprep.subr.bf16.mxu0 0
      %1489 = vmatpush1.bf16.msra.mxu0 0
      %1490 = vmatprep.mubr.bf16.mxu0 0
      %1491 = vmatmul.mubr.bf16.gmra.mrb[0].mxu0 %v1382
      %v1492 = vpop.f32.mrb[0].mxu0
      %v1493 = vadd.f32 %v1428, %v1492
      %v1494 = vpop.f32.mrb[0].mxu0
      %v1495 = vpop.f32.mrb[0].mxu0
      %v1496 = vadd.f32 %v1431, %v1495
      %v1497 = vpop.f32.mrb[0].mxu0
      %1498 = vmatprep.mubr.bf16.mxu0 0
      %1499 = vmatmul.mubr.bf16.gmra.mrb[0].mxu0 %v1385
      %v1500 = vpop.f32.mrb[0].mxu0
      %v1501 = vadd.f32 %v1436, %v1500
      %v1502 = vpop.f32.mrb[0].mxu0
      %v1503 = vpop.f32.mrb[0].mxu0
      %v1504 = vadd.f32 %v1439, %v1503
      %v1505 = vpop.f32.mrb[0].mxu0
      %1506 = vmatprep.mubr.bf16.mxu0 0
      %1507 = vmatmul.mubr.bf16.gmra.mrb[0].mxu0 %v1388
      %v1508 = vpop.f32.mrb[0].mxu0
      %v1509 = vadd.f32 %v1444, %v1508
      %v1510 = vpop.f32.mrb[0].mxu0
      %v1511 = vpop.f32.mrb[0].mxu0
      %v1512 = vadd.f32 %v1447, %v1511
      %v1513 = vpop.f32.mrb[0].mxu0
      %1514 = vmatprep.mubr.bf16.mxu0 0
      %1515 = vmatmul.mubr.bf16.gmra.mrb[0].mxu0 %v1391
      %v1516 = vpop.f32.mrb[0].mxu0
      %v1517 = vadd.f32 %v1452, %v1516
      %v1518 = vpop.f32.mrb[0].mxu0
      %v1519 = vpop.f32.mrb[0].mxu0
      %v1520 = vadd.f32 %v1455, %v1519
      %v1521 = vpop.f32.mrb[0].mxu0
      %1522 = vdwg.mxu0
      %v1523 = vmax.f32 %v821, %v1493
      %v1524 = vmax.f32 %v824, %v1496
      %v1525 = vmax.f32 %v829, %v1501
      %v1526 = vmax.f32 %v832, %v1504
      %v1527 = vmax.f32 %v837, %v1509
      %v1528 = vmax.f32 %v840, %v1512
      %v1529 = vmax.f32 %v845, %v1517
      %v1530 = vmax.f32 %v848, %v1520
      %v1531 = vld [vmem:[%s301] sm:$0xf]
      %v1532 = vld [vmem:[%s301 + $0x4] sm:$0xf]
      %v1533 = vld [vmem:[%s301 + $0x8] sm:$0xf]
      %v1534 = vld [vmem:[%s301 + $0xc] sm:$0xf]
      %v1535 = vld [vmem:[%s301 + $0x10] sm:$0xf]
      %v1536 = vld [vmem:[%s301 + $0x14] sm:$0xf]
      %v1537 = vld [vmem:[%s301 + $0x18] sm:$0xf]
      %v1538 = vld [vmem:[%s301 + $0x1c] sm:$0xf]
      %v1547 = vunpack.c.l.b16 %v1531
      %v1548 = vunpack.c.l.b16 %v1532
      %v1549 = vunpack.c.l.b16 %v1533
      %v1550 = vunpack.c.l.b16 %v1534
      %v1551 = vunpack.c.l.b16 %v1535
      %v1552 = vunpack.c.l.b16 %v1536
      %v1553 = vunpack.c.l.b16 %v1537
      %v1554 = vunpack.c.l.b16 %v1538
      %v1555 = vpack.c.b16 %v1548, %v1547
      %v1556 = vpack.c.b16 %v1550, %v1549
      %v1557 = vpack.c.b16 %v1552, %v1551
      %v1558 = vpack.c.b16 %v1554, %v1553
      %1563 = vst.msk [vmem:[#allocation2] sm:$0xff] %vm204, %v1555
      %1564 = vst.msk [vmem:[#allocation2 + $0x18] sm:$0xff] %vm204, %v1556
      %1565 = vst.msk [vmem:[#allocation2 + $0x30] sm:$0xff] %vm204, %v1557
      %1566 = vst.msk [vmem:[#allocation2 + $0x48] sm:$0xff] %vm204, %v1558
      %v1567 = vld [vmem:[%s347] sm:$0xf]
      %v1568 = vld [vmem:[%s347 + $0x4] sm:$0xf]
      %v1569 = vld [vmem:[%s347 + $0x8] sm:$0xf]
      %v1570 = vld [vmem:[%s347 + $0xc] sm:$0xf]
      %v1571 = vld [vmem:[%s347 + $0x10] sm:$0xf]
      %v1572 = vld [vmem:[%s347 + $0x14] sm:$0xf]
      %v1573 = vld [vmem:[%s347 + $0x18] sm:$0xf]
      %v1574 = vld [vmem:[%s347 + $0x1c] sm:$0xf]
      %v1583 = vunpack.c.l.b16 %v1567
      %v1584 = vunpack.c.l.b16 %v1568
      %v1585 = vunpack.c.l.b16 %v1569
      %v1586 = vunpack.c.l.b16 %v1570
      %v1587 = vunpack.c.l.b16 %v1571
      %v1588 = vunpack.c.l.b16 %v1572
      %v1589 = vunpack.c.l.b16 %v1573
      %v1590 = vunpack.c.l.b16 %v1574
      %v1591 = vpack.c.b16 %v1584, %v1583
      %v1592 = vpack.c.b16 %v1586, %v1585
      %v1593 = vpack.c.b16 %v1588, %v1587
      %v1594 = vpack.c.b16 %v1590, %v1589
      %1595 = vrot.lane.b32.xlu0 %v1591, 32
      %v1596 = vpop.permute.xlu0 %1595
      %1597 = vrot.lane.b32.xlu0 %v1592, 32
      %v1598 = vpop.permute.xlu0 %1597
      %1599 = vrot.lane.b32.xlu0 %v1593, 32
      %v1600 = vpop.permute.xlu0 %1599
      %1601 = vrot.lane.b32.xlu0 %v1594, 32
      %v1602 = vpop.permute.xlu0 %1601
      %1607 = vst.msk [vmem:[#allocation2] sm:$0xff] %vm250, %v1596
      %1608 = vst.msk [vmem:[#allocation2 + $0x18] sm:$0xff] %vm250, %v1598
      %1609 = vst.msk [vmem:[#allocation2 + $0x30] sm:$0xff] %vm250, %v1600
      %1610 = vst.msk [vmem:[#allocation2 + $0x48] sm:$0xff] %vm250, %v1602
      %v1611 = vld [vmem:[%s384] sm:$0xf]
      %v1612 = vld [vmem:[%s384 + $0x4] sm:$0xf]
      %v1613 = vld [vmem:[%s384 + $0x8] sm:$0xf]
      %v1614 = vld [vmem:[%s384 + $0xc] sm:$0xf]
      %v1615 = vld [vmem:[%s384 + $0x10] sm:$0xf]
      %v1616 = vld [vmem:[%s384 + $0x14] sm:$0xf]
      %v1617 = vld [vmem:[%s384 + $0x18] sm:$0xf]
      %v1618 = vld [vmem:[%s384 + $0x1c] sm:$0xf]
      %v1627 = vunpack.c.l.b16 %v1611
      %v1628 = vunpack.c.l.b16 %v1612
      %v1629 = vunpack.c.l.b16 %v1613
      %v1630 = vunpack.c.l.b16 %v1614
      %v1631 = vunpack.c.l.b16 %v1615
      %v1632 = vunpack.c.l.b16 %v1616
      %v1633 = vunpack.c.l.b16 %v1617
      %v1634 = vunpack.c.l.b16 %v1618
      %v1635 = vpack.c.b16 %v1628, %v1627
      %v1636 = vpack.c.b16 %v1630, %v1629
      %v1637 = vpack.c.b16 %v1632, %v1631
      %v1638 = vpack.c.b16 %v1634, %v1633
      %1639 = vrot.lane.b32.xlu0 %v1635, 64
      %v1640 = vpop.permute.xlu0 %1639
      %1641 = vrot.lane.b32.xlu0 %v1636, 64
      %v1642 = vpop.permute.xlu0 %1641
      %1643 = vrot.lane.b32.xlu0 %v1637, 64
      %v1644 = vpop.permute.xlu0 %1643
      %1645 = vrot.lane.b32.xlu0 %v1638, 64
      %v1646 = vpop.permute.xlu0 %1645
      %1651 = vst.msk [vmem:[#allocation2] sm:$0xff] %vm296, %v1640
      %1652 = vst.msk [vmem:[#allocation2 + $0x18] sm:$0xff] %vm296, %v1642
      %1653 = vst.msk [vmem:[#allocation2 + $0x30] sm:$0xff] %vm296, %v1644
      %1654 = vst.msk [vmem:[#allocation2 + $0x48] sm:$0xff] %vm296, %v1646
      %v1655 = vld [vmem:[%s165 + $0x4] sm:$0xf]
      %v1656 = vld [vmem:[%s165 + $0x8] sm:$0xf]
      %v1657 = vld [vmem:[%s165 + $0xc] sm:$0xf]
      %v1658 = vld [vmem:[%s165 + $0x10] sm:$0xf]
      %v1659 = vld [vmem:[%s165 + $0x14] sm:$0xf]
      %v1660 = vld [vmem:[%s165 + $0x18] sm:$0xf]
      %v1661 = vld [vmem:[%s165 + $0x1c] sm:$0xf]
      %v1662 = vld [vmem:[%s165 + $0x20] sm:$0xf]
      %v1671 = vunpack.c.l.b16 %v1655
      %v1672 = vunpack.c.l.b16 %v1656
      %v1673 = vunpack.c.l.b16 %v1657
      %v1674 = vunpack.c.l.b16 %v1658
      %v1675 = vunpack.c.l.b16 %v1659
      %v1676 = vunpack.c.l.b16 %v1660
      %v1677 = vunpack.c.l.b16 %v1661
      %v1678 = vunpack.c.l.b16 %v1662
      %v1679 = vpack.c.b16 %v1672, %v1671
      %v1680 = vpack.c.b16 %v1674, %v1673
      %v1681 = vpack.c.b16 %v1676, %v1675
      %v1682 = vpack.c.b16 %v1678, %v1677
      %1683 = vrot.lane.b32.xlu0 %v1679, 96
      %v1684 = vpop.permute.xlu0 %1683
      %1685 = vrot.lane.b32.xlu0 %v1680, 96
      %v1686 = vpop.permute.xlu0 %1685
      %1687 = vrot.lane.b32.xlu0 %v1681, 96
      %v1688 = vpop.permute.xlu0 %1687
      %1689 = vrot.lane.b32.xlu0 %v1682, 96
      %v1690 = vpop.permute.xlu0 %1689
      %1695 = vst.msk [vmem:[#allocation2] sm:$0xff] %vm342, %v1684
      %1696 = vst.msk [vmem:[#allocation2 + $0x18] sm:$0xff] %vm342, %v1686
      %1697 = vst.msk [vmem:[#allocation2 + $0x30] sm:$0xff] %vm342, %v1688
      %1698 = vst.msk [vmem:[#allocation2 + $0x48] sm:$0xff] %vm342, %v1690
      %v1699 = vld [vmem:[%s209 + $0x4] sm:$0xf]
      %v1700 = vld [vmem:[%s209 + $0x8] sm:$0xf]
      %v1701 = vld [vmem:[%s209 + $0xc] sm:$0xf]
      %v1702 = vld [vmem:[%s209 + $0x10] sm:$0xf]
      %v1703 = vld [vmem:[%s209 + $0x14] sm:$0xf]
      %v1704 = vld [vmem:[%s209 + $0x18] sm:$0xf]
      %v1705 = vld [vmem:[%s209 + $0x1c] sm:$0xf]
      %v1706 = vld [vmem:[%s209 + $0x20] sm:$0xf]
      %v1715 = vunpack.c.l.b16 %v1699
      %v1716 = vunpack.c.l.b16 %v1700
      %v1717 = vunpack.c.l.b16 %v1701
      %v1718 = vunpack.c.l.b16 %v1702
      %v1719 = vunpack.c.l.b16 %v1703
      %v1720 = vunpack.c.l.b16 %v1704
      %v1721 = vunpack.c.l.b16 %v1705
      %v1722 = vunpack.c.l.b16 %v1706
      %v1723 = vpack.c.b16 %v1716, %v1715
      %v1724 = vpack.c.b16 %v1718, %v1717
      %v1725 = vpack.c.b16 %v1720, %v1719
      %v1726 = vpack.c.b16 %v1722, %v1721
      %1731 = vst.msk [vmem:[#allocation2 + $0x8] sm:$0xff] %vm204, %v1723
      %1732 = vst.msk [vmem:[#allocation2 + $0x20] sm:$0xff] %vm204, %v1724
      %1733 = vst.msk [vmem:[#allocation2 + $0x38] sm:$0xff] %vm204, %v1725
      %1734 = vst.msk [vmem:[#allocation2 + $0x50] sm:$0xff] %vm204, %v1726
      %v1735 = vld [vmem:[%s255 + $0x4] sm:$0xf]
      %v1736 = vld [vmem:[%s255 + $0x8] sm:$0xf]
      %v1737 = vld [vmem:[%s255 + $0xc] sm:$0xf]
      %v1738 = vld [vmem:[%s255 + $0x10] sm:$0xf]
      %v1739 = vld [vmem:[%s255 + $0x14] sm:$0xf]
      %v1740 = vld [vmem:[%s255 + $0x18] sm:$0xf]
      %v1741 = vld [vmem:[%s255 + $0x1c] sm:$0xf]
      %v1742 = vld [vmem:[%s255 + $0x20] sm:$0xf]
      %v1751 = vunpack.c.l.b16 %v1735
      %v1752 = vunpack.c.l.b16 %v1736
      %v1753 = vunpack.c.l.b16 %v1737
      %v1754 = vunpack.c.l.b16 %v1738
      %v1755 = vunpack.c.l.b16 %v1739
      %v1756 = vunpack.c.l.b16 %v1740
      %v1757 = vunpack.c.l.b16 %v1741
      %v1758 = vunpack.c.l.b16 %v1742
      %v1759 = vpack.c.b16 %v1752, %v1751
      %v1760 = vpack.c.b16 %v1754, %v1753
      %v1761 = vpack.c.b16 %v1756, %v1755
      %v1762 = vpack.c.b16 %v1758, %v1757
      %1763 = vrot.lane.b32.xlu0 %v1759, 32
      %v1764 = vpop.permute.xlu0 %1763
      %1765 = vrot.lane.b32.xlu0 %v1760, 32
      %v1766 = vpop.permute.xlu0 %1765
      %1767 = vrot.lane.b32.xlu0 %v1761, 32
      %v1768 = vpop.permute.xlu0 %1767
      %1769 = vrot.lane.b32.xlu0 %v1762, 32
      %v1770 = vpop.permute.xlu0 %1769
      %1775 = vst.msk [vmem:[#allocation2 + $0x8] sm:$0xff] %vm250, %v1764
      %1776 = vst.msk [vmem:[#allocation2 + $0x20] sm:$0xff] %vm250, %v1766
      %1777 = vst.msk [vmem:[#allocation2 + $0x38] sm:$0xff] %vm250, %v1768
      %1778 = vst.msk [vmem:[#allocation2 + $0x50] sm:$0xff] %vm250, %v1770
      %v1779 = vld [vmem:[%s301 + $0x4] sm:$0xf]
      %v1780 = vld [vmem:[%s301 + $0x8] sm:$0xf]
      %v1781 = vld [vmem:[%s301 + $0xc] sm:$0xf]
      %v1782 = vld [vmem:[%s301 + $0x10] sm:$0xf]
      %v1783 = vld [vmem:[%s301 + $0x14] sm:$0xf]
      %v1784 = vld [vmem:[%s301 + $0x18] sm:$0xf]
      %v1785 = vld [vmem:[%s301 + $0x1c] sm:$0xf]
      %v1786 = vld [vmem:[%s301 + $0x20] sm:$0xf]
      %v1795 = vunpack.c.l.b16 %v1779
      %v1796 = vunpack.c.l.b16 %v1780
      %v1797 = vunpack.c.l.b16 %v1781
      %v1798 = vunpack.c.l.b16 %v1782
      %v1799 = vunpack.c.l.b16 %v1783
      %v1800 = vunpack.c.l.b16 %v1784
      %v1801 = vunpack.c.l.b16 %v1785
      %v1802 = vunpack.c.l.b16 %v1786
      %v1803 = vpack.c.b16 %v1796, %v1795
      %v1804 = vpack.c.b16 %v1798, %v1797
      %v1805 = vpack.c.b16 %v1800, %v1799
      %v1806 = vpack.c.b16 %v1802, %v1801
      %1807 = vrot.lane.b32.xlu0 %v1803, 64
      %v1808 = vpop.permute.xlu0 %1807
      %1809 = vrot.lane.b32.xlu0 %v1804, 64
      %v1810 = vpop.permute.xlu0 %1809
      %1811 = vrot.lane.b32.xlu0 %v1805, 64
      %v1812 = vpop.permute.xlu0 %1811
      %1813 = vrot.lane.b32.xlu0 %v1806, 64
      %v1814 = vpop.permute.xlu0 %1813
      %1819 = vst.msk [vmem:[#allocation2 + $0x8] sm:$0xff] %vm296, %v1808
      %1820 = vst.msk [vmem:[#allocation2 + $0x20] sm:$0xff] %vm296, %v1810
      %1821 = vst.msk [vmem:[#allocation2 + $0x38] sm:$0xff] %vm296, %v1812
      %1822 = vst.msk [vmem:[#allocation2 + $0x50] sm:$0xff] %vm296, %v1814
      %v1823 = vld [vmem:[%s347 + $0x4] sm:$0xf]
      %v1824 = vld [vmem:[%s347 + $0x8] sm:$0xf]
      %v1825 = vld [vmem:[%s347 + $0xc] sm:$0xf]
      %v1826 = vld [vmem:[%s347 + $0x10] sm:$0xf]
      %v1827 = vld [vmem:[%s347 + $0x14] sm:$0xf]
      %v1828 = vld [vmem:[%s347 + $0x18] sm:$0xf]
      %v1829 = vld [vmem:[%s347 + $0x1c] sm:$0xf]
      %v1830 = vld [vmem:[%s347 + $0x20] sm:$0xf]
      %v1839 = vunpack.c.l.b16 %v1823
      %v1840 = vunpack.c.l.b16 %v1824
      %v1841 = vunpack.c.l.b16 %v1825
      %v1842 = vunpack.c.l.b16 %v1826
      %v1843 = vunpack.c.l.b16 %v1827
      %v1844 = vunpack.c.l.b16 %v1828
      %v1845 = vunpack.c.l.b16 %v1829
      %v1846 = vunpack.c.l.b16 %v1830
      %v1847 = vpack.c.b16 %v1840, %v1839
      %v1848 = vpack.c.b16 %v1842, %v1841
      %v1849 = vpack.c.b16 %v1844, %v1843
      %v1850 = vpack.c.b16 %v1846, %v1845
      %1851 = vrot.lane.b32.xlu0 %v1847, 96
      %v1852 = vpop.permute.xlu0 %1851
      %1853 = vrot.lane.b32.xlu0 %v1848, 96
      %v1854 = vpop.permute.xlu0 %1853
      %1855 = vrot.lane.b32.xlu0 %v1849, 96
      %v1856 = vpop.permute.xlu0 %1855
      %1857 = vrot.lane.b32.xlu0 %v1850, 96
      %v1858 = vpop.permute.xlu0 %1857
      %1863 = vst.msk [vmem:[#allocation2 + $0x8] sm:$0xff] %vm342, %v1852
      %1864 = vst.msk [vmem:[#allocation2 + $0x20] sm:$0xff] %vm342, %v1854
      %1865 = vst.msk [vmem:[#allocation2 + $0x38] sm:$0xff] %vm342, %v1856
      %1866 = vst.msk [vmem:[#allocation2 + $0x50] sm:$0xff] %vm342, %v1858
      %v1867 = vld [vmem:[%s384 + $0x4] sm:$0xf]
      %v1868 = vld [vmem:[%s384 + $0x8] sm:$0xf]
      %v1869 = vld [vmem:[%s384 + $0xc] sm:$0xf]
      %v1870 = vld [vmem:[%s384 + $0x10] sm:$0xf]
      %v1871 = vld [vmem:[%s384 + $0x14] sm:$0xf]
      %v1872 = vld [vmem:[%s384 + $0x18] sm:$0xf]
      %v1873 = vld [vmem:[%s384 + $0x1c] sm:$0xf]
      %v1874 = vld [vmem:[%s384 + $0x20] sm:$0xf]
      %v1883 = vunpack.c.l.b16 %v1867
      %v1884 = vunpack.c.l.b16 %v1868
      %v1885 = vunpack.c.l.b16 %v1869
      %v1886 = vunpack.c.l.b16 %v1870
      %v1887 = vunpack.c.l.b16 %v1871
      %v1888 = vunpack.c.l.b16 %v1872
      %v1889 = vunpack.c.l.b16 %v1873
      %v1890 = vunpack.c.l.b16 %v1874
      %v1891 = vpack.c.b16 %v1884, %v1883
      %v1892 = vpack.c.b16 %v1886, %v1885
      %v1893 = vpack.c.b16 %v1888, %v1887
      %v1894 = vpack.c.b16 %v1890, %v1889
      %1899 = vst.msk [vmem:[#allocation2 + $0x10] sm:$0xff] %vm204, %v1891
      %1900 = vst.msk [vmem:[#allocation2 + $0x28] sm:$0xff] %vm204, %v1892
      %1901 = vst.msk [vmem:[#allocation2 + $0x40] sm:$0xff] %vm204, %v1893
      %1902 = vst.msk [vmem:[#allocation2 + $0x58] sm:$0xff] %vm204, %v1894
      %v1903 = vld [vmem:[#allocation2] sm:$0xff]
      %v1904 = vld [vmem:[#allocation2 + $0x8] sm:$0xff]
      %v1905 = vld [vmem:[#allocation2 + $0x10] sm:$0xff]
      %v1906 = vld [vmem:[#allocation2 + $0x18] sm:$0xff]
      %v1907 = vld [vmem:[#allocation2 + $0x20] sm:$0xff]
      %v1908 = vld [vmem:[#allocation2 + $0x28] sm:$0xff]
      %v1909 = vld [vmem:[#allocation2 + $0x30] sm:$0xff]
      %v1910 = vld [vmem:[#allocation2 + $0x38] sm:$0xff]
      %v1911 = vld [vmem:[#allocation2 + $0x40] sm:$0xff]
      %v1912 = vld [vmem:[#allocation2 + $0x48] sm:$0xff]
      %v1913 = vld [vmem:[#allocation2 + $0x50] sm:$0xff]
      %v1914 = vld [vmem:[#allocation2 + $0x58] sm:$0xff]
      %v1915 = vld [vmem:[%s1] sm:$0xf]
      %v1916 = vld [vmem:[%s1 + $0x4] sm:$0xf]
      %v1917 = vld [vmem:[%s1 + $0x8] sm:$0xf]
      %v1918 = vld [vmem:[%s1 + $0xc] sm:$0xf]
      %v1919 = vld [vmem:[%s1 + $0x10] sm:$0xf]
      %v1920 = vld [vmem:[%s1 + $0x14] sm:$0xf]
      %v1921 = vld [vmem:[%s1 + $0x18] sm:$0xf]
      %v1922 = vld [vmem:[%s1 + $0x1c] sm:$0xf]
      %v1923 = vld [vmem:[%s1 + $0x20] sm:$0xf]
      %v1924 = vld [vmem:[%s1 + $0x24] sm:$0xf]
      %v1925 = vld [vmem:[%s1 + $0x28] sm:$0xf]
      %v1926 = vld [vmem:[%s1 + $0x2c] sm:$0xf]
      %v1927 = vld [vmem:[%s1 + $0x30] sm:$0xf]
      %v1928 = vld [vmem:[%s1 + $0x34] sm:$0xf]
      %v1929 = vld [vmem:[%s1 + $0x38] sm:$0xf]
      %v1930 = vld [vmem:[%s1 + $0x3c] sm:$0xf]
      %v1931 = vld [vmem:[%s1 + $0x40] sm:$0xf]
      %v1932 = vld [vmem:[%s1 + $0x44] sm:$0xf]
      %v1933 = vld [vmem:[%s1 + $0x48] sm:$0xf]
      %v1934 = vld [vmem:[%s1 + $0x4c] sm:$0xf]
      %v1935 = vld [vmem:[%s1 + $0x50] sm:$0xf]
      %v1936 = vld [vmem:[%s1 + $0x54] sm:$0xf]
      %v1937 = vld [vmem:[%s1 + $0x58] sm:$0xf]
      %v1938 = vld [vmem:[%s1 + $0x5c] sm:$0xf]
      %v1939 = vld [vmem:[%s1 + $0x60] sm:$0xf]
      %v1940 = vld [vmem:[%s1 + $0x64] sm:$0xf]
      %v1941 = vld [vmem:[%s1 + $0x68] sm:$0xf]
      %v1942 = vld [vmem:[%s1 + $0x6c] sm:$0xf]
      %v1943 = vld [vmem:[%s1 + $0x70] sm:$0xf]
      %v1944 = vld [vmem:[%s1 + $0x74] sm:$0xf]
      %v1945 = vld [vmem:[%s1 + $0x78] sm:$0xf]
      %v1946 = vld [vmem:[%s1 + $0x7c] sm:$0xf]
      %v1947 = vld [vmem:[%s1 + $0x80] sm:$0xf]
      %v1948 = vld [vmem:[%s1 + $0x84] sm:$0xf]
      %v1949 = vld [vmem:[%s1 + $0x88] sm:$0xf]
      %v1950 = vld [vmem:[%s1 + $0x8c] sm:$0xf]
      %v1987 = vunpack.c.l.b16 %v1915
      %v1988 = vunpack.c.l.b16 %v1916
      %v1989 = vunpack.c.l.b16 %v1917
      %v1990 = vunpack.c.l.b16 %v1918
      %v1991 = vunpack.c.l.b16 %v1919
      %v1992 = vunpack.c.l.b16 %v1920
      %v1993 = vunpack.c.l.b16 %v1921
      %v1994 = vunpack.c.l.b16 %v1922
      %v1995 = vunpack.c.l.b16 %v1923
      %v1996 = vunpack.c.l.b16 %v1924
      %v1997 = vunpack.c.l.b16 %v1925
      %v1998 = vunpack.c.l.b16 %v1926
      %v1999 = vunpack.c.l.b16 %v1927
      %v2000 = vunpack.c.l.b16 %v1928
      %v2001 = vunpack.c.l.b16 %v1929
      %v2002 = vunpack.c.l.b16 %v1930
      %v2003 = vunpack.c.l.b16 %v1931
      %v2004 = vunpack.c.l.b16 %v1932
      %v2005 = vunpack.c.l.b16 %v1933
      %v2006 = vunpack.c.l.b16 %v1934
      %v2007 = vunpack.c.l.b16 %v1935
      %v2008 = vunpack.c.l.b16 %v1936
      %v2009 = vunpack.c.l.b16 %v1937
      %v2010 = vunpack.c.l.b16 %v1938
      %v2011 = vunpack.c.l.b16 %v1939
      %v2012 = vunpack.c.l.b16 %v1940
      %v2013 = vunpack.c.l.b16 %v1941
      %v2014 = vunpack.c.l.b16 %v1942
      %v2015 = vunpack.c.l.b16 %v1943
      %v2016 = vunpack.c.l.b16 %v1944
      %v2017 = vunpack.c.l.b16 %v1945
      %v2018 = vunpack.c.l.b16 %v1946
      %v2019 = vunpack.c.l.b16 %v1947
      %v2020 = vunpack.c.l.b16 %v1948
      %v2021 = vunpack.c.l.b16 %v1949
      %v2022 = vunpack.c.l.b16 %v1950
      %v2023 = vpack.c.b16 %v1988, %v1987
      %v2024 = vpack.c.b16 %v1990, %v1989
      %v2025 = vpack.c.b16 %v1992, %v1991
      %v2026 = vpack.c.b16 %v1994, %v1993
      %v2027 = vpack.c.b16 %v1996, %v1995
      %v2028 = vpack.c.b16 %v1998, %v1997
      %v2029 = vpack.c.b16 %v2000, %v1999
      %v2030 = vpack.c.b16 %v2002, %v2001
      %v2031 = vpack.c.b16 %v2004, %v2003
      %v2032 = vpack.c.b16 %v2006, %v2005
      %v2033 = vpack.c.b16 %v2008, %v2007
      %v2034 = vpack.c.b16 %v2010, %v2009
      %v2035 = vpack.c.b16 %v2012, %v2011
      %v2036 = vpack.c.b16 %v2014, %v2013
      %v2037 = vpack.c.b16 %v2016, %v2015
      %v2038 = vpack.c.b16 %v2018, %v2017
      %v2039 = vpack.c.b16 %v2020, %v2019
      %v2040 = vpack.c.b16 %v2022, %v2021
      %v2060 = vsel %vm204, %v1905, 0
      %v2063 = vsel %vm204, %v1908, 0
      %v2066 = vsel %vm204, %v1911, 0
      %v2069 = vsel %vm204, %v1914, 0
      %2071 = vmatprep.subr.bf16.mxu0 0
      %2072 = vmatpush1.bf16.msra.mxu0 %v2023
      %2073 = vmatprep.subr.bf16.mxu0 0
      %2074 = vmatpush1.bf16.msra.mxu0 %v2024
      %2075 = vmatprep.subr.bf16.mxu0 0
      %2076 = vmatpush1.bf16.msra.mxu0 %v2025
      %2077 = vmatprep.subr.bf16.mxu0 0
      %2078 = vmatpush1.bf16.msra.mxu0 %v2026
      %2079 = vmatprep.subr.bf16.mxu0 0
      %2080 = vmatpush1.bf16.msra.mxu0 %v2027
      %2081 = vmatprep.subr.bf16.mxu0 0
      %2082 = vmatpush1.bf16.msra.mxu0 %v2028
      %2083 = vmatprep.subr.bf16.mxu0 0
      %2084 = vmatpush1.bf16.msra.mxu0 %v2029
      %2085 = vmatprep.subr.bf16.mxu0 0
      %2086 = vmatpush1.bf16.msra.mxu0 %v2030
      %2087 = vmatprep.subr.bf16.mxu0 0
      %2088 = vmatpush1.bf16.msra.mxu0 %v2031
      %2089 = vmatprep.subr.bf16.mxu0 0
      %2090 = vmatpush1.bf16.msra.mxu0 %v2032
      %2091 = vmatprep.subr.bf16.mxu0 0
      %2092 = vmatpush1.bf16.msra.mxu0 %v2033
      %2093 = vmatprep.subr.bf16.mxu0 0
      %2094 = vmatpush1.bf16.msra.mxu0 %v2034
      %2095 = vmatprep.subr.bf16.mxu0 0
      %2096 = vmatpush1.bf16.msra.mxu0 %v2035
      %2097 = vmatprep.subr.bf16.mxu0 0
      %2098 = vmatpush1.bf16.msra.mxu0 %v2036
      %2099 = vmatprep.subr.bf16.mxu0 0
      %2100 = vmatpush1.bf16.msra.mxu0 %v2037
      %2101 = vmatprep.subr.bf16.mxu0 0
      %2102 = vmatpush1.bf16.msra.mxu0 %v2038
      %2103 = vmatprep.mubr.bf16.mxu0 %v1904
      %2104 = vmatmul.mubr.bf16.gmra.mrb[0].mxu0 %v1903
      %v2105 = vpop.f32.mrb[0].mxu0
      %v2106 = vadd.f32 0.0, %v2105
      %v2107 = vpop.f32.mrb[0].mxu0
      %v2108 = vpop.f32.mrb[0].mxu0
      %v2109 = vadd.f32 0.0, %v2108
      %v2110 = vpop.f32.mrb[0].mxu0
      %2111 = vmatprep.mubr.bf16.mxu0 %v1907
      %2112 = vmatmul.mubr.bf16.gmra.mrb[0].mxu0 %v1906
      %v2113 = vpop.f32.mrb[0].mxu0
      %v2114 = vadd.f32 0.0, %v2113
      %v2115 = vpop.f32.mrb[0].mxu0
      %v2116 = vpop.f32.mrb[0].mxu0
      %v2117 = vadd.f32 0.0, %v2116
      %v2118 = vpop.f32.mrb[0].mxu0
      %2119 = vmatprep.mubr.bf16.mxu0 %v1910
      %2120 = vmatmul.mubr.bf16.gmra.mrb[0].mxu0 %v1909
      %v2121 = vpop.f32.mrb[0].mxu0
      %v2122 = vadd.f32 0.0, %v2121
      %v2123 = vpop.f32.mrb[0].mxu0
      %v2124 = vpop.f32.mrb[0].mxu0
      %v2125 = vadd.f32 0.0, %v2124
      %v2126 = vpop.f32.mrb[0].mxu0
      %2127 = vmatprep.mubr.bf16.mxu0 %v1913
      %2128 = vmatmul.mubr.bf16.gmra.mrb[0].mxu0 %v1912
      %v2129 = vpop.f32.mrb[0].mxu0
      %v2130 = vadd.f32 0.0, %v2129
      %v2131 = vpop.f32.mrb[0].mxu0
      %v2132 = vpop.f32.mrb[0].mxu0
      %v2133 = vadd.f32 0.0, %v2132
      %v2134 = vpop.f32.mrb[0].mxu0
      %2135 = vdwg.mxu0
      %2136 = vmatprep.subr.bf16.mxu0 0
      %2137 = vmatpush1.bf16.msra.mxu0 %v2039
      %2138 = vmatprep.subr.bf16.mxu0 0
      %2139 = vmatpush1.bf16.msra.mxu0 %v2040
      %2140 = vmatprep.subr.bf16.mxu0 0
      %2141 = vmatpush1.bf16.msra.mxu0 0
      %2142 = vmatprep.subr.bf16.mxu0 0
      %2143 = vmatpush1.bf16.msra.mxu0 0
      %2144 = vmatprep.subr.bf16.mxu0 0
      %2145 = vmatpush1.bf16.msra.mxu0 0
      %2146 = vmatprep.subr.bf16.mxu0 0
      %2147 = vmatpush1.bf16.msra.mxu0 0
      %2148 = vmatprep.subr.bf16.mxu0 0
      %2149 = vmatpush1.bf16.msra.mxu0 0
      %2150 = vmatprep.subr.bf16.mxu0 0
      %2151 = vmatpush1.bf16.msra.mxu0 0
      %2152 = vmatprep.subr.bf16.mxu0 0
      %2153 = vmatpush1.bf16.msra.mxu0 0
      %2154 = vmatprep.subr.bf16.mxu0 0
      %2155 = vmatpush1.bf16.msra.mxu0 0
      %2156 = vmatprep.subr.bf16.mxu0 0
      %2157 = vmatpush1.bf16.msra.mxu0 0
      %2158 = vmatprep.subr.bf16.mxu0 0
      %2159 = vmatpush1.bf16.msra.mxu0 0
      %2160 = vmatprep.subr.bf16.mxu0 0
      %2161 = vmatpush1.bf16.msra.mxu0 0
      %2162 = vmatprep.subr.bf16.mxu0 0
      %2163 = vmatpush1.bf16.msra.mxu0 0
      %2164 = vmatprep.subr.bf16.mxu0 0
      %2165 = vmatpush1.bf16.msra.mxu0 0
      %2166 = vmatprep.subr.bf16.mxu0 0
      %2167 = vmatpush1.bf16.msra.mxu0 0
      %2168 = vmatprep.mubr.bf16.mxu0 0
      %2169 = vmatmul.mubr.bf16.gmra.mrb[0].mxu0 %v2060
      %v2170 = vpop.f32.mrb[0].mxu0
      %v2171 = vadd.f32 %v2106, %v2170
      %v2172 = vpop.f32.mrb[0].mxu0
      %v2173 = vpop.f32.mrb[0].mxu0
      %v2174 = vadd.f32 %v2109, %v2173
      %v2175 = vpop.f32.mrb[0].mxu0
      %2176 = vmatprep.mubr.bf16.mxu0 0
      %2177 = vmatmul.mubr.bf16.gmra.mrb[0].mxu0 %v2063
      %v2178 = vpop.f32.mrb[0].mxu0
      %v2179 = vadd.f32 %v2114, %v2178
      %v2180 = vpop.f32.mrb[0].mxu0
      %v2181 = vpop.f32.mrb[0].mxu0
      %v2182 = vadd.f32 %v2117, %v2181
      %v2183 = vpop.f32.mrb[0].mxu0
      %2184 = vmatprep.mubr.bf16.mxu0 0
      %2185 = vmatmul.mubr.bf16.gmra.mrb[0].mxu0 %v2066
      %v2186 = vpop.f32.mrb[0].mxu0
      %v2187 = vadd.f32 %v2122, %v2186
      %v2188 = vpop.f32.mrb[0].mxu0
      %v2189 = vpop.f32.mrb[0].mxu0
      %v2190 = vadd.f32 %v2125, %v2189
      %v2191 = vpop.f32.mrb[0].mxu0
      %2192 = vmatprep.mubr.bf16.mxu0 0
      %2193 = vmatmul.mubr.bf16.gmra.mrb[0].mxu0 %v2069
      %v2194 = vpop.f32.mrb[0].mxu0
      %v2195 = vadd.f32 %v2130, %v2194
      %v2196 = vpop.f32.mrb[0].mxu0
      %v2197 = vpop.f32.mrb[0].mxu0
      %v2198 = vadd.f32 %v2133, %v2197
      %v2199 = vpop.f32.mrb[0].mxu0
      %2200 = vdwg.mxu0
      %v2201 = vmax.f32 %v1523, %v2171
      %v2202 = vmax.f32 %v1524, %v2174
      %v2203 = vmax.f32 %v1525, %v2179
      %v2204 = vmax.f32 %v1526, %v2182
      %v2205 = vmax.f32 %v1527, %v2187
      %v2206 = vmax.f32 %v1528, %v2190
      %v2207 = vmax.f32 %v1529, %v2195
      %v2208 = vmax.f32 %v1530, %v2198
      %v2209 = vld [vmem:[%s347] sm:$0xf]
      %v2210 = vld [vmem:[%s347 + $0x4] sm:$0xf]
      %v2211 = vld [vmem:[%s347 + $0x8] sm:$0xf]
      %v2212 = vld [vmem:[%s347 + $0xc] sm:$0xf]
      %v2213 = vld [vmem:[%s347 + $0x10] sm:$0xf]
      %v2214 = vld [vmem:[%s347 + $0x14] sm:$0xf]
      %v2215 = vld [vmem:[%s347 + $0x18] sm:$0xf]
      %v2216 = vld [vmem:[%s347 + $0x1c] sm:$0xf]
      %v2225 = vunpack.c.l.b16 %v2209
      %v2226 = vunpack.c.l.b16 %v2210
      %v2227 = vunpack.c.l.b16 %v2211
      %v2228 = vunpack.c.l.b16 %v2212
      %v2229 = vunpack.c.l.b16 %v2213
      %v2230 = vunpack.c.l.b16 %v2214
      %v2231 = vunpack.c.l.b16 %v2215
      %v2232 = vunpack.c.l.b16 %v2216
      %v2233 = vpack.c.b16 %v2226, %v2225
      %v2234 = vpack.c.b16 %v2228, %v2227
      %v2235 = vpack.c.b16 %v2230, %v2229
      %v2236 = vpack.c.b16 %v2232, %v2231
      %2241 = vst.msk [vmem:[#allocation2] sm:$0xff] %vm204, %v2233
      %2242 = vst.msk [vmem:[#allocation2 + $0x18] sm:$0xff] %vm204, %v2234
      %2243 = vst.msk [vmem:[#allocation2 + $0x30] sm:$0xff] %vm204, %v2235
      %2244 = vst.msk [vmem:[#allocation2 + $0x48] sm:$0xff] %vm204, %v2236
      %v2245 = vld [vmem:[%s384] sm:$0xf]
      %v2246 = vld [vmem:[%s384 + $0x4] sm:$0xf]
      %v2247 = vld [vmem:[%s384 + $0x8] sm:$0xf]
      %v2248 = vld [vmem:[%s384 + $0xc] sm:$0xf]
      %v2249 = vld [vmem:[%s384 + $0x10] sm:$0xf]
      %v2250 = vld [vmem:[%s384 + $0x14] sm:$0xf]
      %v2251 = vld [vmem:[%s384 + $0x18] sm:$0xf]
      %v2252 = vld [vmem:[%s384 + $0x1c] sm:$0xf]
      %v2261 = vunpack.c.l.b16 %v2245
      %v2262 = vunpack.c.l.b16 %v2246
      %v2263 = vunpack.c.l.b16 %v2247
      %v2264 = vunpack.c.l.b16 %v2248
      %v2265 = vunpack.c.l.b16 %v2249
      %v2266 = vunpack.c.l.b16 %v2250
      %v2267 = vunpack.c.l.b16 %v2251
      %v2268 = vunpack.c.l.b16 %v2252
      %v2269 = vpack.c.b16 %v2262, %v2261
      %v2270 = vpack.c.b16 %v2264, %v2263
      %v2271 = vpack.c.b16 %v2266, %v2265
      %v2272 = vpack.c.b16 %v2268, %v2267
      %2273 = vrot.lane.b32.xlu0 %v2269, 32
      %v2274 = vpop.permute.xlu0 %2273
      %2275 = vrot.lane.b32.xlu0 %v2270, 32
      %v2276 = vpop.permute.xlu0 %2275
      %2277 = vrot.lane.b32.xlu0 %v2271, 32
      %v2278 = vpop.permute.xlu0 %2277
      %2279 = vrot.lane.b32.xlu0 %v2272, 32
      %v2280 = vpop.permute.xlu0 %2279
      %2285 = vst.msk [vmem:[#allocation2] sm:$0xff] %vm250, %v2274
      %2286 = vst.msk [vmem:[#allocation2 + $0x18] sm:$0xff] %vm250, %v2276
      %2287 = vst.msk [vmem:[#allocation2 + $0x30] sm:$0xff] %vm250, %v2278
      %2288 = vst.msk [vmem:[#allocation2 + $0x48] sm:$0xff] %vm250, %v2280
      %v2289 = vld [vmem:[%s1056] sm:$0xf]
      %v2290 = vld [vmem:[%s1056 + $0x4] sm:$0xf]
      %v2291 = vld [vmem:[%s1056 + $0x8] sm:$0xf]
      %v2292 = vld [vmem:[%s1056 + $0xc] sm:$0xf]
      %v2293 = vld [vmem:[%s1056 + $0x10] sm:$0xf]
      %v2294 = vld [vmem:[%s1056 + $0x14] sm:$0xf]
      %v2295 = vld [vmem:[%s1056 + $0x18] sm:$0xf]
      %v2296 = vld [vmem:[%s1056 + $0x1c] sm:$0xf]
      %v2305 = vunpack.c.l.b16 %v2289
      %v2306 = vunpack.c.l.b16 %v2290
      %v2307 = vunpack.c.l.b16 %v2291
      %v2308 = vunpack.c.l.b16 %v2292
      %v2309 = vunpack.c.l.b16 %v2293
      %v2310 = vunpack.c.l.b16 %v2294
      %v2311 = vunpack.c.l.b16 %v2295
      %v2312 = vunpack.c.l.b16 %v2296
      %v2313 = vpack.c.b16 %v2306, %v2305
      %v2314 = vpack.c.b16 %v2308, %v2307
      %v2315 = vpack.c.b16 %v2310, %v2309
      %v2316 = vpack.c.b16 %v2312, %v2311
      %2317 = vrot.lane.b32.xlu0 %v2313, 64
      %v2318 = vpop.permute.xlu0 %2317
      %2319 = vrot.lane.b32.xlu0 %v2314, 64
      %v2320 = vpop.permute.xlu0 %2319
      %2321 = vrot.lane.b32.xlu0 %v2315, 64
      %v2322 = vpop.permute.xlu0 %2321
      %2323 = vrot.lane.b32.xlu0 %v2316, 64
      %v2324 = vpop.permute.xlu0 %2323
      %2329 = vst.msk [vmem:[#allocation2] sm:$0xff] %vm296, %v2318
      %2330 = vst.msk [vmem:[#allocation2 + $0x18] sm:$0xff] %vm296, %v2320
      %2331 = vst.msk [vmem:[#allocation2 + $0x30] sm:$0xff] %vm296, %v2322
      %2332 = vst.msk [vmem:[#allocation2 + $0x48] sm:$0xff] %vm296, %v2324
      %v2333 = vld [vmem:[%s209 + $0x4] sm:$0xf]
      %v2334 = vld [vmem:[%s209 + $0x8] sm:$0xf]
      %v2335 = vld [vmem:[%s209 + $0xc] sm:$0xf]
      %v2336 = vld [vmem:[%s209 + $0x10] sm:$0xf]
      %v2337 = vld [vmem:[%s209 + $0x14] sm:$0xf]
      %v2338 = vld [vmem:[%s209 + $0x18] sm:$0xf]
      %v2339 = vld [vmem:[%s209 + $0x1c] sm:$0xf]
      %v2340 = vld [vmem:[%s209 + $0x20] sm:$0xf]
      %v2349 = vunpack.c.l.b16 %v2333
      %v2350 = vunpack.c.l.b16 %v2334
      %v2351 = vunpack.c.l.b16 %v2335
      %v2352 = vunpack.c.l.b16 %v2336
      %v2353 = vunpack.c.l.b16 %v2337
      %v2354 = vunpack.c.l.b16 %v2338
      %v2355 = vunpack.c.l.b16 %v2339
      %v2356 = vunpack.c.l.b16 %v2340
      %v2357 = vpack.c.b16 %v2350, %v2349
      %v2358 = vpack.c.b16 %v2352, %v2351
      %v2359 = vpack.c.b16 %v2354, %v2353
      %v2360 = vpack.c.b16 %v2356, %v2355
      %2361 = vrot.lane.b32.xlu0 %v2357, 96
      %v2362 = vpop.permute.xlu0 %2361
      %2363 = vrot.lane.b32.xlu0 %v2358, 96
      %v2364 = vpop.permute.xlu0 %2363
      %2365 = vrot.lane.b32.xlu0 %v2359, 96
      %v2366 = vpop.permute.xlu0 %2365
      %2367 = vrot.lane.b32.xlu0 %v2360, 96
      %v2368 = vpop.permute.xlu0 %2367
      %2373 = vst.msk [vmem:[#allocation2] sm:$0xff] %vm342, %v2362
      %2374 = vst.msk [vmem:[#allocation2 + $0x18] sm:$0xff] %vm342, %v2364
      %2375 = vst.msk [vmem:[#allocation2 + $0x30] sm:$0xff] %vm342, %v2366
      %2376 = vst.msk [vmem:[#allocation2 + $0x48] sm:$0xff] %vm342, %v2368
      %v2377 = vld [vmem:[%s255 + $0x4] sm:$0xf]
      %v2378 = vld [vmem:[%s255 + $0x8] sm:$0xf]
      %v2379 = vld [vmem:[%s255 + $0xc] sm:$0xf]
      %v2380 = vld [vmem:[%s255 + $0x10] sm:$0xf]
      %v2381 = vld [vmem:[%s255 + $0x14] sm:$0xf]
      %v2382 = vld [vmem:[%s255 + $0x18] sm:$0xf]
      %v2383 = vld [vmem:[%s255 + $0x1c] sm:$0xf]
      %v2384 = vld [vmem:[%s255 + $0x20] sm:$0xf]
      %v2393 = vunpack.c.l.b16 %v2377
      %v2394 = vunpack.c.l.b16 %v2378
      %v2395 = vunpack.c.l.b16 %v2379
      %v2396 = vunpack.c.l.b16 %v2380
      %v2397 = vunpack.c.l.b16 %v2381
      %v2398 = vunpack.c.l.b16 %v2382
      %v2399 = vunpack.c.l.b16 %v2383
      %v2400 = vunpack.c.l.b16 %v2384
      %v2401 = vpack.c.b16 %v2394, %v2393
      %v2402 = vpack.c.b16 %v2396, %v2395
      %v2403 = vpack.c.b16 %v2398, %v2397
      %v2404 = vpack.c.b16 %v2400, %v2399
      %2409 = vst.msk [vmem:[#allocation2 + $0x8] sm:$0xff] %vm204, %v2401
      %2410 = vst.msk [vmem:[#allocation2 + $0x20] sm:$0xff] %vm204, %v2402
      %2411 = vst.msk [vmem:[#allocation2 + $0x38] sm:$0xff] %vm204, %v2403
      %2412 = vst.msk [vmem:[#allocation2 + $0x50] sm:$0xff] %vm204, %v2404
      %v2413 = vld [vmem:[%s931 + $0x4] sm:$0xf]
      %v2414 = vld [vmem:[%s931 + $0x8] sm:$0xf]
      %v2415 = vld [vmem:[%s931 + $0xc] sm:$0xf]
      %v2416 = vld [vmem:[%s931 + $0x10] sm:$0xf]
      %v2417 = vld [vmem:[%s931 + $0x14] sm:$0xf]
      %v2418 = vld [vmem:[%s931 + $0x18] sm:$0xf]
      %v2419 = vld [vmem:[%s931 + $0x1c] sm:$0xf]
      %v2420 = vld [vmem:[%s931 + $0x20] sm:$0xf]
      %v2429 = vunpack.c.l.b16 %v2413
      %v2430 = vunpack.c.l.b16 %v2414
      %v2431 = vunpack.c.l.b16 %v2415
      %v2432 = vunpack.c.l.b16 %v2416
      %v2433 = vunpack.c.l.b16 %v2417
      %v2434 = vunpack.c.l.b16 %v2418
      %v2435 = vunpack.c.l.b16 %v2419
      %v2436 = vunpack.c.l.b16 %v2420
      %v2437 = vpack.c.b16 %v2430, %v2429
      %v2438 = vpack.c.b16 %v2432, %v2431
      %v2439 = vpack.c.b16 %v2434, %v2433
      %v2440 = vpack.c.b16 %v2436, %v2435
      %2441 = vrot.lane.b32.xlu0 %v2437, 32
      %v2442 = vpop.permute.xlu0 %2441
      %2443 = vrot.lane.b32.xlu0 %v2438, 32
      %v2444 = vpop.permute.xlu0 %2443
      %2445 = vrot.lane.b32.xlu0 %v2439, 32
      %v2446 = vpop.permute.xlu0 %2445
      %2447 = vrot.lane.b32.xlu0 %v2440, 32
      %v2448 = vpop.permute.xlu0 %2447
      %2453 = vst.msk [vmem:[#allocation2 + $0x8] sm:$0xff] %vm250, %v2442
      %2454 = vst.msk [vmem:[#allocation2 + $0x20] sm:$0xff] %vm250, %v2444
      %2455 = vst.msk [vmem:[#allocation2 + $0x38] sm:$0xff] %vm250, %v2446
      %2456 = vst.msk [vmem:[#allocation2 + $0x50] sm:$0xff] %vm250, %v2448
      %v2457 = vld [vmem:[%s347 + $0x4] sm:$0xf]
      %v2458 = vld [vmem:[%s347 + $0x8] sm:$0xf]
      %v2459 = vld [vmem:[%s347 + $0xc] sm:$0xf]
      %v2460 = vld [vmem:[%s347 + $0x10] sm:$0xf]
      %v2461 = vld [vmem:[%s347 + $0x14] sm:$0xf]
      %v2462 = vld [vmem:[%s347 + $0x18] sm:$0xf]
      %v2463 = vld [vmem:[%s347 + $0x1c] sm:$0xf]
      %v2464 = vld [vmem:[%s347 + $0x20] sm:$0xf]
      %v2473 = vunpack.c.l.b16 %v2457
      %v2474 = vunpack.c.l.b16 %v2458
      %v2475 = vunpack.c.l.b16 %v2459
      %v2476 = vunpack.c.l.b16 %v2460
      %v2477 = vunpack.c.l.b16 %v2461
      %v2478 = vunpack.c.l.b16 %v2462
      %v2479 = vunpack.c.l.b16 %v2463
      %v2480 = vunpack.c.l.b16 %v2464
      %v2481 = vpack.c.b16 %v2474, %v2473
      %v2482 = vpack.c.b16 %v2476, %v2475
      %v2483 = vpack.c.b16 %v2478, %v2477
      %v2484 = vpack.c.b16 %v2480, %v2479
      %2485 = vrot.lane.b32.xlu0 %v2481, 64
      %v2486 = vpop.permute.xlu0 %2485
      %2487 = vrot.lane.b32.xlu0 %v2482, 64
      %v2488 = vpop.permute.xlu0 %2487
      %2489 = vrot.lane.b32.xlu0 %v2483, 64
      %v2490 = vpop.permute.xlu0 %2489
      %2491 = vrot.lane.b32.xlu0 %v2484, 64
      %v2492 = vpop.permute.xlu0 %2491
      %2497 = vst.msk [vmem:[#allocation2 + $0x8] sm:$0xff] %vm296, %v2486
      %2498 = vst.msk [vmem:[#allocation2 + $0x20] sm:$0xff] %vm296, %v2488
      %2499 = vst.msk [vmem:[#allocation2 + $0x38] sm:$0xff] %vm296, %v2490
      %2500 = vst.msk [vmem:[#allocation2 + $0x50] sm:$0xff] %vm296, %v2492
      %v2501 = vld [vmem:[%s384 + $0x4] sm:$0xf]
      %v2502 = vld [vmem:[%s384 + $0x8] sm:$0xf]
      %v2503 = vld [vmem:[%s384 + $0xc] sm:$0xf]
      %v2504 = vld [vmem:[%s384 + $0x10] sm:$0xf]
      %v2505 = vld [vmem:[%s384 + $0x14] sm:$0xf]
      %v2506 = vld [vmem:[%s384 + $0x18] sm:$0xf]
      %v2507 = vld [vmem:[%s384 + $0x1c] sm:$0xf]
      %v2508 = vld [vmem:[%s384 + $0x20] sm:$0xf]
      %v2517 = vunpack.c.l.b16 %v2501
      %v2518 = vunpack.c.l.b16 %v2502
      %v2519 = vunpack.c.l.b16 %v2503
      %v2520 = vunpack.c.l.b16 %v2504
      %v2521 = vunpack.c.l.b16 %v2505
      %v2522 = vunpack.c.l.b16 %v2506
      %v2523 = vunpack.c.l.b16 %v2507
      %v2524 = vunpack.c.l.b16 %v2508
      %v2525 = vpack.c.b16 %v2518, %v2517
      %v2526 = vpack.c.b16 %v2520, %v2519
      %v2527 = vpack.c.b16 %v2522, %v2521
      %v2528 = vpack.c.b16 %v2524, %v2523
      %2529 = vrot.lane.b32.xlu0 %v2525, 96
      %v2530 = vpop.permute.xlu0 %2529
      %2531 = vrot.lane.b32.xlu0 %v2526, 96
      %v2532 = vpop.permute.xlu0 %2531
      %2533 = vrot.lane.b32.xlu0 %v2527, 96
      %v2534 = vpop.permute.xlu0 %2533
      %2535 = vrot.lane.b32.xlu0 %v2528, 96
      %v2536 = vpop.permute.xlu0 %2535
      %2541 = vst.msk [vmem:[#allocation2 + $0x8] sm:$0xff] %vm342, %v2530
      %2542 = vst.msk [vmem:[#allocation2 + $0x20] sm:$0xff] %vm342, %v2532
      %2543 = vst.msk [vmem:[#allocation2 + $0x38] sm:$0xff] %vm342, %v2534
      %2544 = vst.msk [vmem:[#allocation2 + $0x50] sm:$0xff] %vm342, %v2536
      %v2545 = vld [vmem:[%s1056 + $0x4] sm:$0xf]
      %v2546 = vld [vmem:[%s1056 + $0x8] sm:$0xf]
      %v2547 = vld [vmem:[%s1056 + $0xc] sm:$0xf]
      %v2548 = vld [vmem:[%s1056 + $0x10] sm:$0xf]
      %v2549 = vld [vmem:[%s1056 + $0x14] sm:$0xf]
      %v2550 = vld [vmem:[%s1056 + $0x18] sm:$0xf]
      %v2551 = vld [vmem:[%s1056 + $0x1c] sm:$0xf]
      %v2552 = vld [vmem:[%s1056 + $0x20] sm:$0xf]
      %v2561 = vunpack.c.l.b16 %v2545
      %v2562 = vunpack.c.l.b16 %v2546
      %v2563 = vunpack.c.l.b16 %v2547
      %v2564 = vunpack.c.l.b16 %v2548
      %v2565 = vunpack.c.l.b16 %v2549
      %v2566 = vunpack.c.l.b16 %v2550
      %v2567 = vunpack.c.l.b16 %v2551
      %v2568 = vunpack.c.l.b16 %v2552
      %v2569 = vpack.c.b16 %v2562, %v2561
      %v2570 = vpack.c.b16 %v2564, %v2563
      %v2571 = vpack.c.b16 %v2566, %v2565
      %v2572 = vpack.c.b16 %v2568, %v2567
      %2577 = vst.msk [vmem:[#allocation2 + $0x10] sm:$0xff] %vm204, %v2569
      %2578 = vst.msk [vmem:[#allocation2 + $0x28] sm:$0xff] %vm204, %v2570
      %2579 = vst.msk [vmem:[#allocation2 + $0x40] sm:$0xff] %vm204, %v2571
      %2580 = vst.msk [vmem:[#allocation2 + $0x58] sm:$0xff] %vm204, %v2572
      %v2581 = vld [vmem:[#allocation2] sm:$0xff]
      %v2582 = vld [vmem:[#allocation2 + $0x8] sm:$0xff]
      %v2583 = vld [vmem:[#allocation2 + $0x10] sm:$0xff]
      %v2584 = vld [vmem:[#allocation2 + $0x18] sm:$0xff]
      %v2585 = vld [vmem:[#allocation2 + $0x20] sm:$0xff]
      %v2586 = vld [vmem:[#allocation2 + $0x28] sm:$0xff]
      %v2587 = vld [vmem:[#allocation2 + $0x30] sm:$0xff]
      %v2588 = vld [vmem:[#allocation2 + $0x38] sm:$0xff]
      %v2589 = vld [vmem:[#allocation2 + $0x40] sm:$0xff]
      %v2590 = vld [vmem:[#allocation2 + $0x48] sm:$0xff]
      %v2591 = vld [vmem:[#allocation2 + $0x50] sm:$0xff]
      %v2592 = vld [vmem:[#allocation2 + $0x58] sm:$0xff]
      %v2593 = vld [vmem:[%s1] sm:$0xf]
      %v2594 = vld [vmem:[%s1 + $0x4] sm:$0xf]
      %v2595 = vld [vmem:[%s1 + $0x8] sm:$0xf]
      %v2596 = vld [vmem:[%s1 + $0xc] sm:$0xf]
      %v2597 = vld [vmem:[%s1 + $0x10] sm:$0xf]
      %v2598 = vld [vmem:[%s1 + $0x14] sm:$0xf]
      %v2599 = vld [vmem:[%s1 + $0x18] sm:$0xf]
      %v2600 = vld [vmem:[%s1 + $0x1c] sm:$0xf]
      %v2601 = vld [vmem:[%s1 + $0x20] sm:$0xf]
      %v2602 = vld [vmem:[%s1 + $0x24] sm:$0xf]
      %v2603 = vld [vmem:[%s1 + $0x28] sm:$0xf]
      %v2604 = vld [vmem:[%s1 + $0x2c] sm:$0xf]
      %v2605 = vld [vmem:[%s1 + $0x30] sm:$0xf]
      %v2606 = vld [vmem:[%s1 + $0x34] sm:$0xf]
      %v2607 = vld [vmem:[%s1 + $0x38] sm:$0xf]
      %v2608 = vld [vmem:[%s1 + $0x3c] sm:$0xf]
      %v2609 = vld [vmem:[%s1 + $0x40] sm:$0xf]
      %v2610 = vld [vmem:[%s1 + $0x44] sm:$0xf]
      %v2611 = vld [vmem:[%s1 + $0x48] sm:$0xf]
      %v2612 = vld [vmem:[%s1 + $0x4c] sm:$0xf]
      %v2613 = vld [vmem:[%s1 + $0x50] sm:$0xf]
      %v2614 = vld [vmem:[%s1 + $0x54] sm:$0xf]
      %v2615 = vld [vmem:[%s1 + $0x58] sm:$0xf]
      %v2616 = vld [vmem:[%s1 + $0x5c] sm:$0xf]
      %v2617 = vld [vmem:[%s1 + $0x60] sm:$0xf]
      %v2618 = vld [vmem:[%s1 + $0x64] sm:$0xf]
      %v2619 = vld [vmem:[%s1 + $0x68] sm:$0xf]
      %v2620 = vld [vmem:[%s1 + $0x6c] sm:$0xf]
      %v2621 = vld [vmem:[%s1 + $0x70] sm:$0xf]
      %v2622 = vld [vmem:[%s1 + $0x74] sm:$0xf]
      %v2623 = vld [vmem:[%s1 + $0x78] sm:$0xf]
      %v2624 = vld [vmem:[%s1 + $0x7c] sm:$0xf]
      %v2625 = vld [vmem:[%s1 + $0x80] sm:$0xf]
      %v2626 = vld [vmem:[%s1 + $0x84] sm:$0xf]
      %v2627 = vld [vmem:[%s1 + $0x88] sm:$0xf]
      %v2628 = vld [vmem:[%s1 + $0x8c] sm:$0xf]
      %v2665 = vunpack.c.l.b16 %v2593
      %v2666 = vunpack.c.l.b16 %v2594
      %v2667 = vunpack.c.l.b16 %v2595
      %v2668 = vunpack.c.l.b16 %v2596
      %v2669 = vunpack.c.l.b16 %v2597
      %v2670 = vunpack.c.l.b16 %v2598
      %v2671 = vunpack.c.l.b16 %v2599
      %v2672 = vunpack.c.l.b16 %v2600
      %v2673 = vunpack.c.l.b16 %v2601
      %v2674 = vunpack.c.l.b16 %v2602
      %v2675 = vunpack.c.l.b16 %v2603
      %v2676 = vunpack.c.l.b16 %v2604
      %v2677 = vunpack.c.l.b16 %v2605
      %v2678 = vunpack.c.l.b16 %v2606
      %v2679 = vunpack.c.l.b16 %v2607
      %v2680 = vunpack.c.l.b16 %v2608
      %v2681 = vunpack.c.l.b16 %v2609
      %v2682 = vunpack.c.l.b16 %v2610
      %v2683 = vunpack.c.l.b16 %v2611
      %v2684 = vunpack.c.l.b16 %v2612
      %v2685 = vunpack.c.l.b16 %v2613
      %v2686 = vunpack.c.l.b16 %v2614
      %v2687 = vunpack.c.l.b16 %v2615
      %v2688 = vunpack.c.l.b16 %v2616
      %v2689 = vunpack.c.l.b16 %v2617
      %v2690 = vunpack.c.l.b16 %v2618
      %v2691 = vunpack.c.l.b16 %v2619
      %v2692 = vunpack.c.l.b16 %v2620
      %v2693 = vunpack.c.l.b16 %v2621
      %v2694 = vunpack.c.l.b16 %v2622
      %v2695 = vunpack.c.l.b16 %v2623
      %v2696 = vunpack.c.l.b16 %v2624
      %v2697 = vunpack.c.l.b16 %v2625
      %v2698 = vunpack.c.l.b16 %v2626
      %v2699 = vunpack.c.l.b16 %v2627
      %v2700 = vunpack.c.l.b16 %v2628
      %v2701 = vpack.c.b16 %v2666, %v2665
      %v2702 = vpack.c.b16 %v2668, %v2667
      %v2703 = vpack.c.b16 %v2670, %v2669
      %v2704 = vpack.c.b16 %v2672, %v2671
      %v2705 = vpack.c.b16 %v2674, %v2673
      %v2706 = vpack.c.b16 %v2676, %v2675
      %v2707 = vpack.c.b16 %v2678, %v2677
      %v2708 = vpack.c.b16 %v2680, %v2679
      %v2709 = vpack.c.b16 %v2682, %v2681
      %v2710 = vpack.c.b16 %v2684, %v2683
      %v2711 = vpack.c.b16 %v2686, %v2685
      %v2712 = vpack.c.b16 %v2688, %v2687
      %v2713 = vpack.c.b16 %v2690, %v2689
      %v2714 = vpack.c.b16 %v2692, %v2691
      %v2715 = vpack.c.b16 %v2694, %v2693
      %v2716 = vpack.c.b16 %v2696, %v2695
      %v2717 = vpack.c.b16 %v2698, %v2697
      %v2718 = vpack.c.b16 %v2700, %v2699
      %v2738 = vsel %vm204, %v2583, 0
      %v2741 = vsel %vm204, %v2586, 0
      %v2744 = vsel %vm204, %v2589, 0
      %v2747 = vsel %vm204, %v2592, 0
      %2749 = vmatprep.subr.bf16.mxu0 0
      %2750 = vmatpush1.bf16.msra.mxu0 %v2701
      %2751 = vmatprep.subr.bf16.mxu0 0
      %2752 = vmatpush1.bf16.msra.mxu0 %v2702
      %2753 = vmatprep.subr.bf16.mxu0 0
      %2754 = vmatpush1.bf16.msra.mxu0 %v2703
      %2755 = vmatprep.subr.bf16.mxu0 0
      %2756 = vmatpush1.bf16.msra.mxu0 %v2704
      %2757 = vmatprep.subr.bf16.mxu0 0
      %2758 = vmatpush1.bf16.msra.mxu0 %v2705
      %2759 = vmatprep.subr.bf16.mxu0 0
      %2760 = vmatpush1.bf16.msra.mxu0 %v2706
      %2761 = vmatprep.subr.bf16.mxu0 0
      %2762 = vmatpush1.bf16.msra.mxu0 %v2707
      %2763 = vmatprep.subr.bf16.mxu0 0
      %2764 = vmatpush1.bf16.msra.mxu0 %v2708
      %2765 = vmatprep.subr.bf16.mxu0 0
      %2766 = vmatpush1.bf16.msra.mxu0 %v2709
      %2767 = vmatprep.subr.bf16.mxu0 0
      %2768 = vmatpush1.bf16.msra.mxu0 %v2710
      %2769 = vmatprep.subr.bf16.mxu0 0
      %2770 = vmatpush1.bf16.msra.mxu0 %v2711
      %2771 = vmatprep.subr.bf16.mxu0 0
      %2772 = vmatpush1.bf16.msra.mxu0 %v2712
      %2773 = vmatprep.subr.bf16.mxu0 0
      %2774 = vmatpush1.bf16.msra.mxu0 %v2713
      %2775 = vmatprep.subr.bf16.mxu0 0
      %2776 = vmatpush1.bf16.msra.mxu0 %v2714
      %2777 = vmatprep.subr.bf16.mxu0 0
      %2778 = vmatpush1.bf16.msra.mxu0 %v2715
      %2779 = vmatprep.subr.bf16.mxu0 0
      %2780 = vmatpush1.bf16.msra.mxu0 %v2716
      %2781 = vmatprep.mubr.bf16.mxu0 %v2582
      %2782 = vmatmul.mubr.bf16.gmra.mrb[0].mxu0 %v2581
      %v2783 = vpop.f32.mrb[0].mxu0
      %v2784 = vadd.f32 0.0, %v2783
      %v2785 = vpop.f32.mrb[0].mxu0
      %v2786 = vpop.f32.mrb[0].mxu0
      %v2787 = vadd.f32 0.0, %v2786
      %v2788 = vpop.f32.mrb[0].mxu0
      %2789 = vmatprep.mubr.bf16.mxu0 %v2585
      %2790 = vmatmul.mubr.bf16.gmra.mrb[0].mxu0 %v2584
      %v2791 = vpop.f32.mrb[0].mxu0
      %v2792 = vadd.f32 0.0, %v2791
      %v2793 = vpop.f32.mrb[0].mxu0
      %v2794 = vpop.f32.mrb[0].mxu0
      %v2795 = vadd.f32 0.0, %v2794
      %v2796 = vpop.f32.mrb[0].mxu0
      %2797 = vmatprep.mubr.bf16.mxu0 %v2588
      %2798 = vmatmul.mubr.bf16.gmra.mrb[0].mxu0 %v2587
      %v2799 = vpop.f32.mrb[0].mxu0
      %v2800 = vadd.f32 0.0, %v2799
      %v2801 = vpop.f32.mrb[0].mxu0
      %v2802 = vpop.f32.mrb[0].mxu0
      %v2803 = vadd.f32 0.0, %v2802
      %v2804 = vpop.f32.mrb[0].mxu0
      %2805 = vmatprep.mubr.bf16.mxu0 %v2591
      %2806 = vmatmul.mubr.bf16.gmra.mrb[0].mxu0 %v2590
      %v2807 = vpop.f32.mrb[0].mxu0
      %v2808 = vadd.f32 0.0, %v2807
      %v2809 = vpop.f32.mrb[0].mxu0
      %v2810 = vpop.f32.mrb[0].mxu0
      %v2811 = vadd.f32 0.0, %v2810
      %v2812 = vpop.f32.mrb[0].mxu0
      %2813 = vdwg.mxu0
      %2814 = vmatprep.subr.bf16.mxu0 0
      %2815 = vmatpush1.bf16.msra.mxu0 %v2717
      %2816 = vmatprep.subr.bf16.mxu0 0
      %2817 = vmatpush1.bf16.msra.mxu0 %v2718
      %2818 = vmatprep.subr.bf16.mxu0 0
      %2819 = vmatpush1.bf16.msra.mxu0 0
      %2820 = vmatprep.subr.bf16.mxu0 0
      %2821 = vmatpush1.bf16.msra.mxu0 0
      %2822 = vmatprep.subr.bf16.mxu0 0
      %2823 = vmatpush1.bf16.msra.mxu0 0
      %2824 = vmatprep.subr.bf16.mxu0 0
      %2825 = vmatpush1.bf16.msra.mxu0 0
      %2826 = vmatprep.subr.bf16.mxu0 0
      %2827 = vmatpush1.bf16.msra.mxu0 0
      %2828 = vmatprep.subr.bf16.mxu0 0
      %2829 = vmatpush1.bf16.msra.mxu0 0
      %2830 = vmatprep.subr.bf16.mxu0 0
      %2831 = vmatpush1.bf16.msra.mxu0 0
      %2832 = vmatprep.subr.bf16.mxu0 0
      %2833 = vmatpush1.bf16.msra.mxu0 0
      %2834 = vmatprep.subr.bf16.mxu0 0
      %2835 = vmatpush1.bf16.msra.mxu0 0
      %2836 = vmatprep.subr.bf16.mxu0 0
      %2837 = vmatpush1.bf16.msra.mxu0 0
      %2838 = vmatprep.subr.bf16.mxu0 0
      %2839 = vmatpush1.bf16.msra.mxu0 0
      %2840 = vmatprep.subr.bf16.mxu0 0
      %2841 = vmatpush1.bf16.msra.mxu0 0
      %2842 = vmatprep.subr.bf16.mxu0 0
      %2843 = vmatpush1.bf16.msra.mxu0 0
      %2844 = vmatprep.subr.bf16.mxu0 0
      %2845 = vmatpush1.bf16.msra.mxu0 0
      %2846 = vmatprep.mubr.bf16.mxu0 0
      %2847 = vmatmul.mubr.bf16.gmra.mrb[0].mxu0 %v2738
      %v2848 = vpop.f32.mrb[0].mxu0
      %v2849 = vadd.f32 %v2784, %v2848
      %v2850 = vpop.f32.mrb[0].mxu0
      %v2851 = vpop.f32.mrb[0].mxu0
      %v2852 = vadd.f32 %v2787, %v2851
      %v2853 = vpop.f32.mrb[0].mxu0
      %2854 = vmatprep.mubr.bf16.mxu0 0
      %2855 = vmatmul.mubr.bf16.gmra.mrb[0].mxu0 %v2741
      %v2856 = vpop.f32.mrb[0].mxu0
      %v2857 = vadd.f32 %v2792, %v2856
      %v2858 = vpop.f32.mrb[0].mxu0
      %v2859 = vpop.f32.mrb[0].mxu0
      %v2860 = vadd.f32 %v2795, %v2859
      %v2861 = vpop.f32.mrb[0].mxu0
      %2862 = vmatprep.mubr.bf16.mxu0 0
      %2863 = vmatmul.mubr.bf16.gmra.mrb[0].mxu0 %v2744
      %v2864 = vpop.f32.mrb[0].mxu0
      %v2865 = vadd.f32 %v2800, %v2864
      %v2866 = vpop.f32.mrb[0].mxu0
      %v2867 = vpop.f32.mrb[0].mxu0
      %v2868 = vadd.f32 %v2803, %v2867
      %v2869 = vpop.f32.mrb[0].mxu0
      %2870 = vmatprep.mubr.bf16.mxu0 0
      %2871 = vmatmul.mubr.bf16.gmra.mrb[0].mxu0 %v2747
      %v2872 = vpop.f32.mrb[0].mxu0
      %v2873 = vadd.f32 %v2808, %v2872
      %v2874 = vpop.f32.mrb[0].mxu0
      %v2875 = vpop.f32.mrb[0].mxu0
      %v2876 = vadd.f32 %v2811, %v2875
      %v2877 = vpop.f32.mrb[0].mxu0
      %2878 = vdwg.mxu0
      %v2879 = vmax.f32 %v2201, %v2849
      %v2880 = vmax.f32 %v2202, %v2852
      %v2881 = vmax.f32 %v2203, %v2857
      %v2882 = vmax.f32 %v2204, %v2860
      %v2883 = vmax.f32 %v2205, %v2865
      %v2884 = vmax.f32 %v2206, %v2868
      %v2885 = vmax.f32 %v2207, %v2873
      %v2886 = vmax.f32 %v2208, %v2876
      %v2887 = vld [vmem:[%s2] sm:$0x1]
      %v2889 = vlaneseq
      %v2890 = vshrl.u32 %v2889, 7
      %v2891 = vsub.s32 0, %v2890
      %v2892 = vrot.slane %v2887, %v2891
      %v2894 = vadd.f32 %v2879, %v2892
      %v2895 = vadd.f32 %v2880, %v2892
      %v2896 = vadd.f32 %v2881, %v2892
      %v2897 = vadd.f32 %v2882, %v2892
      %v2898 = vadd.f32 %v2883, %v2892
      %v2899 = vadd.f32 %v2884, %v2892
      %v2900 = vadd.f32 %v2885, %v2892
      %v2901 = vadd.f32 %v2886, %v2892
      %v2902 = vmax.f32 %v2894, 0.0
      %v2903 = vmax.f32 %v2895, 0.0
      %v2904 = vmax.f32 %v2896, 0.0
      %v2905 = vmax.f32 %v2897, 0.0
      %v2906 = vmax.f32 %v2898, 0.0
      %v2907 = vmax.f32 %v2899, 0.0
      %v2908 = vmax.f32 %v2900, 0.0
      %v2909 = vmax.f32 %v2901, 0.0
      %v2910 = vpack.c.bf16 %v2903, %v2902
      %v2911 = vpack.c.bf16 %v2905, %v2904
      %v2912 = vpack.c.bf16 %v2907, %v2906
      %v2913 = vpack.c.bf16 %v2909, %v2908
      %v2918 = vunpack.c.l.b16 %v2910
      %v2919 = vunpack.c.h.b16 %v2910
      %v2920 = vunpack.c.l.b16 %v2911
      %v2921 = vunpack.c.h.b16 %v2911
      %v2922 = vunpack.c.l.b16 %v2912
      %v2923 = vunpack.c.h.b16 %v2912
      %v2924 = vunpack.c.l.b16 %v2913
      %v2925 = vunpack.c.h.b16 %v2913
      %v2926 = vpack.c.b16 %v2918, %v2918
      %v2927 = vpack.c.b16 %v2919, %v2919
      %v2928 = vpack.c.b16 %v2920, %v2920
      %v2929 = vpack.c.b16 %v2921, %v2921
      %v2930 = vpack.c.b16 %v2922, %v2922
      %v2931 = vpack.c.b16 %v2923, %v2923
      %v2932 = vpack.c.b16 %v2924, %v2924
      %v2933 = vpack.c.b16 %v2925, %v2925
      %vm2942 = vcmask 519168
      %2943 = vst.msk [vmem:[%s170] sm:$0xf] %vm2942, %v2926
      %2944 = vst.msk [vmem:[%s170 + $0x4] sm:$0xf] %vm2942, %v2927
      %2945 = vst.msk [vmem:[%s170 + $0x8] sm:$0xf] %vm2942, %v2928
      %2946 = vst.msk [vmem:[%s170 + $0xc] sm:$0xf] %vm2942, %v2929
      %2947 = vst.msk [vmem:[%s170 + $0x10] sm:$0xf] %vm2942, %v2930
      %2948 = vst.msk [vmem:[%s170 + $0x14] sm:$0xf] %vm2942, %v2931
      %2949 = vst.msk [vmem:[%s170 + $0x18] sm:$0xf] %vm2942, %v2932
      %2950 = vst.msk [vmem:[%s170 + $0x1c] sm:$0xf] %vm2942, %v2933
      %p2951 = scmp.lt.s32.totalorder %s14, 1
      %s2952 = scalar_select %p2951, %s14, 1
      %s2953 = smul.addr %s2952, 8
      %s2954 = smul.addr %s2953, 4
      %s2955 = scalar_lea.vmem %s3, %s2954
      // Predicated region
      $region33: #{rotated_nn_forward.4} parent=31 // pred_check
        %p2956 = pneg %p100
      $region34: #{rotated_nn_forward.4} parent=31 // pred_check_branch
        %2958 = sbr.rel (%p2956) target = $region36
      $region35: #{rotated_nn_forward.4} parent=31 // pred_region
        _
      $region36: #{rotated_nn_forward.4} parent=31 // pred_fallthru
        _
    $region32: #{rotated_nn_forward.4} parent=5 // pred_fallthru
      _
    %p2959 = scmp.le.s32.totalorder 2, %s9
    // Predicated region
    $region37: #{rotated_nn_forward.4} parent=5 // pred_check
      %p2960 = pneg %p2959
    $region38: #{rotated_nn_forward.4} parent=5 // pred_check_branch
      %2962 = sbr.rel (%p2960) target = $region40
    $region39: #{rotated_nn_forward.4} parent=5 // pred_region
      %s2963 = ssub.s32 %s9, 2
      // Predicated region
      $region41: #{rotated_nn_forward.4} parent=39 // pred_check
        %p2964 = pneg %p106
      $region42: #{rotated_nn_forward.4} parent=39 // pred_check_branch
        %2966 = sbr.rel (%p2964) target = $region44
      $region43: #{rotated_nn_forward.4} parent=39 // pred_region
        %p2967 = scmp.lt.s32.totalorder %s15, 1
        %s2968 = scalar_select %p2967, %s15, 1
        %s2969 = smul.addr %s2968, 8
        %s2970 = smul.addr %s2969, 4
        %s2971 = scalar_lea.vmem %s3, %s2970
      $region44: #{rotated_nn_forward.4} parent=39 // pred_fallthru
        _
    $region40: #{rotated_nn_forward.4} parent=5 // pred_fallthru
      _
  $region6: #{rotated_nn_forward.4} parent=0 // loop_footer
    %s13 = sadd.s32 1, %s9
  $region7: #{rotated_nn_forward.4} parent=0 // loop_footer_branch
    %8 = sbr.rel target = $region3
  $region8: #{rotated_nn_forward.4} parent=0 // loop_exit
    _

// kernel: rotated_nn_forward.5
$region0: #{rotated_nn_forward.5}
  #allocation0 [shape = 'u32[]', space=smem, size = 0x4, offset = 0x4, fixed_abs, tag = 'smem constant byte address 0x4 - core index']
  #allocation1 [shape = 'u32[144,128]{1,0:T(1,128)}', space=vmem, size = 0x12000, scoped, tag = 'internal scratch']
  %s0 = inlined_call_operand.vmem [shape: bf16[8,4096], index: 0, kind: input, shape index: {}]
  %s1 = inlined_call_operand.vmem [shape: bf16[4096,128], index: 1, kind: input, shape index: {}]
  %s2 = inlined_call_operand.vmem [shape: f32[1,128], index: 2, kind: input, shape index: {}]
  %s3 = inlined_call_operand.vmem [shape: bf16[128,128], index: 3, kind: input, shape index: {}]
  %s4 = inlined_call_operand.vmem [shape: f32[1,128], index: 4, kind: input, shape index: {}]
  %s5 = inlined_call_operand.vmem [shape: f32[8,128], index: 5, kind: output, shape index: {}]
  %s6 = sld [smem:[#allocation0]]
  $region30: #{rotated_nn_forward.5} parent=0
    _
  %s8 = ssub.s32 1, %s6
  %s9 = scalar_select 0, %s8, %s6
  // Predicated region
  $region2: #{rotated_nn_forward.5} parent=0 // pred_check
    _
  $region3: #{rotated_nn_forward.5} parent=0 // pred_check_branch
    %11 = sbr.rel (0) target = $region5
  $region4: #{rotated_nn_forward.5} parent=0 // pred_region
    _
  $region5: #{rotated_nn_forward.5} parent=0 // pred_fallthru
    _
  // Predicated region
  $region6: #{rotated_nn_forward.5} parent=0 // pred_check
    _
  $region7: #{rotated_nn_forward.5} parent=0 // pred_check_branch
    %13 = sbr.rel (0) target = $region9
  $region8: #{rotated_nn_forward.5} parent=0 // pred_region
    _
  $region9: #{rotated_nn_forward.5} parent=0 // pred_fallthru
    _
  // Predicated region
  $region10: #{rotated_nn_forward.5} parent=0 // pred_check
    _
  $region11: #{rotated_nn_forward.5} parent=0 // pred_check_branch
    %15 = sbr.rel (0) target = $region13
  $region12: #{rotated_nn_forward.5} parent=0 // pred_region
    _
  $region13: #{rotated_nn_forward.5} parent=0 // pred_fallthru
    _
  // Predicated region
  $region14: #{rotated_nn_forward.5} parent=0 // pred_check
    _
  $region15: #{rotated_nn_forward.5} parent=0 // pred_check_branch
    %17 = sbr.rel (0) target = $region17
  $region16: #{rotated_nn_forward.5} parent=0 // pred_region
    _
  $region17: #{rotated_nn_forward.5} parent=0 // pred_fallthru
    _
  // Predicated region
  $region18: #{rotated_nn_forward.5} parent=0 // pred_check
    _
  $region19: #{rotated_nn_forward.5} parent=0 // pred_check_branch
    %19 = sbr.rel (0) target = $region21
  $region20: #{rotated_nn_forward.5} parent=0 // pred_region
    _
  $region21: #{rotated_nn_forward.5} parent=0 // pred_fallthru
    _
  %v21 = vld [vmem:[%s0] sm:$0xff]
  %v22 = vld [vmem:[%s0 + $0x8] sm:$0xff]
  %v23 = vld [vmem:[%s0 + $0x10] sm:$0xff]
  %v24 = vld [vmem:[%s0 + $0x18] sm:$0xff]
  %v25 = vld [vmem:[%s0 + $0x20] sm:$0xff]
  %v26 = vld [vmem:[%s0 + $0x28] sm:$0xff]
  %v27 = vld [vmem:[%s0 + $0x30] sm:$0xff]
  %v28 = vld [vmem:[%s0 + $0x38] sm:$0xff]
  %v29 = vld [vmem:[%s0 + $0x40] sm:$0xff]
  %v30 = vld [vmem:[%s0 + $0x48] sm:$0xff]
  %v31 = vld [vmem:[%s0 + $0x50] sm:$0xff]
  %v32 = vld [vmem:[%s0 + $0x58] sm:$0xff]
  %v33 = vld [vmem:[%s0 + $0x60] sm:$0xff]
  %v34 = vld [vmem:[%s0 + $0x68] sm:$0xff]
  %v35 = vld [vmem:[%s0 + $0x70] sm:$0xff]
  %v36 = vld [vmem:[%s0 + $0x78] sm:$0xff]
  %v37 = vld [vmem:[%s1] sm:$0xf]
  %v38 = vld [vmem:[%s1 + $0x4] sm:$0xf]
  %v39 = vld [vmem:[%s1 + $0x8] sm:$0xf]
  %v40 = vld [vmem:[%s1 + $0xc] sm:$0xf]
  %v41 = vld [vmem:[%s1 + $0x10] sm:$0xf]
  %v42 = vld [vmem:[%s1 + $0x14] sm:$0xf]
  %v43 = vld [vmem:[%s1 + $0x18] sm:$0xf]
  %v44 = vld [vmem:[%s1 + $0x1c] sm:$0xf]
  %v45 = vld [vmem:[%s1 + $0x20] sm:$0xf]
  %v46 = vld [vmem:[%s1 + $0x24] sm:$0xf]
  %v47 = vld [vmem:[%s1 + $0x28] sm:$0xf]
  %v48 = vld [vmem:[%s1 + $0x2c] sm:$0xf]
  %v49 = vld [vmem:[%s1 + $0x30] sm:$0xf]
  %v50 = vld [vmem:[%s1 + $0x34] sm:$0xf]
  %v51 = vld [vmem:[%s1 + $0x38] sm:$0xf]
  %v52 = vld [vmem:[%s1 + $0x3c] sm:$0xf]
  %v53 = vld [vmem:[%s1 + $0x40] sm:$0xf]
  %v54 = vld [vmem:[%s1 + $0x44] sm:$0xf]
  %v55 = vld [vmem:[%s1 + $0x48] sm:$0xf]
  %v56 = vld [vmem:[%s1 + $0x4c] sm:$0xf]
  %v57 = vld [vmem:[%s1 + $0x50] sm:$0xf]
  %v58 = vld [vmem:[%s1 + $0x54] sm:$0xf]
  %v59 = vld [vmem:[%s1 + $0x58] sm:$0xf]
  %v60 = vld [vmem:[%s1 + $0x5c] sm:$0xf]
  %v61 = vld [vmem:[%s1 + $0x60] sm:$0xf]
  %v62 = vld [vmem:[%s1 + $0x64] sm:$0xf]
  %v63 = vld [vmem:[%s1 + $0x68] sm:$0xf]
  %v64 = vld [vmem:[%s1 + $0x6c] sm:$0xf]
  %v65 = vld [vmem:[%s1 + $0x70] sm:$0xf]
  %v66 = vld [vmem:[%s1 + $0x74] sm:$0xf]
  %v67 = vld [vmem:[%s1 + $0x78] sm:$0xf]
  %v68 = vld [vmem:[%s1 + $0x7c] sm:$0xf]
  %v69 = vld [vmem:[%s1 + $0x80] sm:$0xf]
  %v70 = vld [vmem:[%s1 + $0x84] sm:$0xf]
  %v71 = vld [vmem:[%s1 + $0x88] sm:$0xf]
  %v72 = vld [vmem:[%s1 + $0x8c] sm:$0xf]
  %v73 = vld [vmem:[%s1 + $0x90] sm:$0xf]
  %v74 = vld [vmem:[%s1 + $0x94] sm:$0xf]
  %v75 = vld [vmem:[%s1 + $0x98] sm:$0xf]
  %v76 = vld [vmem:[%s1 + $0x9c] sm:$0xf]
  %v77 = vld [vmem:[%s1 + $0xa0] sm:$0xf]
  %v78 = vld [vmem:[%s1 + $0xa4] sm:$0xf]
  %v79 = vld [vmem:[%s1 + $0xa8] sm:$0xf]
  %v80 = vld [vmem:[%s1 + $0xac] sm:$0xf]
  %v81 = vld [vmem:[%s1 + $0xb0] sm:$0xf]
  %v82 = vld [vmem:[%s1 + $0xb4] sm:$0xf]
  %v83 = vld [vmem:[%s1 + $0xb8] sm:$0xf]
  %v84 = vld [vmem:[%s1 + $0xbc] sm:$0xf]
  %v85 = vld [vmem:[%s1 + $0xc0] sm:$0xf]
  %v86 = vld [vmem:[%s1 + $0xc4] sm:$0xf]
  %v87 = vld [vmem:[%s1 + $0xc8] sm:$0xf]
  %v88 = vld [vmem:[%s1 + $0xcc] sm:$0xf]
  %v89 = vld [vmem:[%s1 + $0xd0] sm:$0xf]
  %v90 = vld [vmem:[%s1 + $0xd4] sm:$0xf]
  %v91 = vld [vmem:[%s1 + $0xd8] sm:$0xf]
  %v92 = vld [vmem:[%s1 + $0xdc] sm:$0xf]
  %v93 = vld [vmem:[%s1 + $0xe0] sm:$0xf]
  %v94 = vld [vmem:[%s1 + $0xe4] sm:$0xf]
  %v95 = vld [vmem:[%s1 + $0xe8] sm:$0xf]
  %v96 = vld [vmem:[%s1 + $0xec] sm:$0xf]
  %v97 = vld [vmem:[%s1 + $0xf0] sm:$0xf]
  %v98 = vld [vmem:[%s1 + $0xf4] sm:$0xf]
  %v99 = vld [vmem:[%s1 + $0xf8] sm:$0xf]
  %v100 = vld [vmem:[%s1 + $0xfc] sm:$0xf]
  %v101 = vld [vmem:[%s1 + $0x100] sm:$0xf]
  %v102 = vld [vmem:[%s1 + $0x104] sm:$0xf]
  %v103 = vld [vmem:[%s1 + $0x108] sm:$0xf]
  %v104 = vld [vmem:[%s1 + $0x10c] sm:$0xf]
  %v105 = vld [vmem:[%s1 + $0x110] sm:$0xf]
  %v106 = vld [vmem:[%s1 + $0x114] sm:$0xf]
  %v107 = vld [vmem:[%s1 + $0x118] sm:$0xf]
  %v108 = vld [vmem:[%s1 + $0x11c] sm:$0xf]
  %v109 = vld [vmem:[%s1 + $0x120] sm:$0xf]
  %v110 = vld [vmem:[%s1 + $0x124] sm:$0xf]
  %v111 = vld [vmem:[%s1 + $0x128] sm:$0xf]
  %v112 = vld [vmem:[%s1 + $0x12c] sm:$0xf]
  %v113 = vld [vmem:[%s1 + $0x130] sm:$0xf]
  %v114 = vld [vmem:[%s1 + $0x134] sm:$0xf]
  %v115 = vld [vmem:[%s1 + $0x138] sm:$0xf]
  %v116 = vld [vmem:[%s1 + $0x13c] sm:$0xf]
  %v117 = vld [vmem:[%s1 + $0x140] sm:$0xf]
  %v118 = vld [vmem:[%s1 + $0x144] sm:$0xf]
  %v119 = vld [vmem:[%s1 + $0x148] sm:$0xf]
  %v120 = vld [vmem:[%s1 + $0x14c] sm:$0xf]
  %v121 = vld [vmem:[%s1 + $0x150] sm:$0xf]
  %v122 = vld [vmem:[%s1 + $0x154] sm:$0xf]
  %v123 = vld [vmem:[%s1 + $0x158] sm:$0xf]
  %v124 = vld [vmem:[%s1 + $0x15c] sm:$0xf]
  %v125 = vld [vmem:[%s1 + $0x160] sm:$0xf]
  %v126 = vld [vmem:[%s1 + $0x164] sm:$0xf]
  %v127 = vld [vmem:[%s1 + $0x168] sm:$0xf]
  %v128 = vld [vmem:[%s1 + $0x16c] sm:$0xf]
  %v129 = vld [vmem:[%s1 + $0x170] sm:$0xf]
  %v130 = vld [vmem:[%s1 + $0x174] sm:$0xf]
  %v131 = vld [vmem:[%s1 + $0x178] sm:$0xf]
  %v132 = vld [vmem:[%s1 + $0x17c] sm:$0xf]
  %v133 = vld [vmem:[%s1 + $0x180] sm:$0xf]
  %v134 = vld [vmem:[%s1 + $0x184] sm:$0xf]
  %v135 = vld [vmem:[%s1 + $0x188] sm:$0xf]
  %v136 = vld [vmem:[%s1 + $0x18c] sm:$0xf]
  %v137 = vld [vmem:[%s1 + $0x190] sm:$0xf]
  %v138 = vld [vmem:[%s1 + $0x194] sm:$0xf]
  %v139 = vld [vmem:[%s1 + $0x198] sm:$0xf]
  %v140 = vld [vmem:[%s1 + $0x19c] sm:$0xf]
  %v141 = vld [vmem:[%s1 + $0x1a0] sm:$0xf]
  %v142 = vld [vmem:[%s1 + $0x1a4] sm:$0xf]
  %v143 = vld [vmem:[%s1 + $0x1a8] sm:$0xf]
  %v144 = vld [vmem:[%s1 + $0x1ac] sm:$0xf]
  %v145 = vld [vmem:[%s1 + $0x1b0] sm:$0xf]
  %v146 = vld [vmem:[%s1 + $0x1b4] sm:$0xf]
  %v147 = vld [vmem:[%s1 + $0x1b8] sm:$0xf]
  %v148 = vld [vmem:[%s1 + $0x1bc] sm:$0xf]
  %v149 = vld [vmem:[%s1 + $0x1c0] sm:$0xf]
  %v150 = vld [vmem:[%s1 + $0x1c4] sm:$0xf]
  %v151 = vld [vmem:[%s1 + $0x1c8] sm:$0xf]
  %v152 = vld [vmem:[%s1 + $0x1cc] sm:$0xf]
  %v153 = vld [vmem:[%s1 + $0x1d0] sm:$0xf]
  %v154 = vld [vmem:[%s1 + $0x1d4] sm:$0xf]
  %v155 = vld [vmem:[%s1 + $0x1d8] sm:$0xf]
  %v156 = vld [vmem:[%s1 + $0x1dc] sm:$0xf]
  %v157 = vld [vmem:[%s1 + $0x1e0] sm:$0xf]
  %v158 = vld [vmem:[%s1 + $0x1e4] sm:$0xf]
  %v159 = vld [vmem:[%s1 + $0x1e8] sm:$0xf]
  %v160 = vld [vmem:[%s1 + $0x1ec] sm:$0xf]
  %v161 = vld [vmem:[%s1 + $0x1f0] sm:$0xf]
  %v162 = vld [vmem:[%s1 + $0x1f4] sm:$0xf]
  %v163 = vld [vmem:[%s1 + $0x1f8] sm:$0xf]
  %v164 = vld [vmem:[%s1 + $0x1fc] sm:$0xf]
  %v165 = vld [vmem:[%s1 + $0x200] sm:$0xf]
  %v166 = vld [vmem:[%s1 + $0x204] sm:$0xf]
  %v167 = vld [vmem:[%s1 + $0x208] sm:$0xf]
  %v168 = vld [vmem:[%s1 + $0x20c] sm:$0xf]
  %v169 = vld [vmem:[%s1 + $0x210] sm:$0xf]
  %v170 = vld [vmem:[%s1 + $0x214] sm:$0xf]
  %v171 = vld [vmem:[%s1 + $0x218] sm:$0xf]
  %v172 = vld [vmem:[%s1 + $0x21c] sm:$0xf]
  %v173 = vld [vmem:[%s1 + $0x220] sm:$0xf]
  %v174 = vld [vmem:[%s1 + $0x224] sm:$0xf]
  %v175 = vld [vmem:[%s1 + $0x228] sm:$0xf]
  %v176 = vld [vmem:[%s1 + $0x22c] sm:$0xf]
  %v177 = vld [vmem:[%s1 + $0x230] sm:$0xf]
  %v178 = vld [vmem:[%s1 + $0x234] sm:$0xf]
  %v179 = vld [vmem:[%s1 + $0x238] sm:$0xf]
  %v180 = vld [vmem:[%s1 + $0x23c] sm:$0xf]
  %v181 = vld [vmem:[%s1 + $0x240] sm:$0xf]
  %v182 = vld [vmem:[%s1 + $0x244] sm:$0xf]
  %v183 = vld [vmem:[%s1 + $0x248] sm:$0xf]
  %v184 = vld [vmem:[%s1 + $0x24c] sm:$0xf]
  %v185 = vld [vmem:[%s1 + $0x250] sm:$0xf]
  %v186 = vld [vmem:[%s1 + $0x254] sm:$0xf]
  %v187 = vld [vmem:[%s1 + $0x258] sm:$0xf]
  %v188 = vld [vmem:[%s1 + $0x25c] sm:$0xf]
  %v189 = vld [vmem:[%s1 + $0x260] sm:$0xf]
  %v190 = vld [vmem:[%s1 + $0x264] sm:$0xf]
  %v191 = vld [vmem:[%s1 + $0x268] sm:$0xf]
  %v192 = vld [vmem:[%s1 + $0x26c] sm:$0xf]
  %v193 = vld [vmem:[%s1 + $0x270] sm:$0xf]
  %v194 = vld [vmem:[%s1 + $0x274] sm:$0xf]
  %v195 = vld [vmem:[%s1 + $0x278] sm:$0xf]
  %v196 = vld [vmem:[%s1 + $0x27c] sm:$0xf]
  %v197 = vld [vmem:[%s1 + $0x280] sm:$0xf]
  %v198 = vld [vmem:[%s1 + $0x284] sm:$0xf]
  %v199 = vld [vmem:[%s1 + $0x288] sm:$0xf]
  %v200 = vld [vmem:[%s1 + $0x28c] sm:$0xf]
  %v201 = vld [vmem:[%s1 + $0x290] sm:$0xf]
  %v202 = vld [vmem:[%s1 + $0x294] sm:$0xf]
  %v203 = vld [vmem:[%s1 + $0x298] sm:$0xf]
  %v204 = vld [vmem:[%s1 + $0x29c] sm:$0xf]
  %v205 = vld [vmem:[%s1 + $0x2a0] sm:$0xf]
  %v206 = vld [vmem:[%s1 + $0x2a4] sm:$0xf]
  %v207 = vld [vmem:[%s1 + $0x2a8] sm:$0xf]
  %v208 = vld [vmem:[%s1 + $0x2ac] sm:$0xf]
  %v209 = vld [vmem:[%s1 + $0x2b0] sm:$0xf]
  %v210 = vld [vmem:[%s1 + $0x2b4] sm:$0xf]
  %v211 = vld [vmem:[%s1 + $0x2b8] sm:$0xf]
  %v212 = vld [vmem:[%s1 + $0x2bc] sm:$0xf]
  %v213 = vld [vmem:[%s1 + $0x2c0] sm:$0xf]
  %v214 = vld [vmem:[%s1 + $0x2c4] sm:$0xf]
  %v215 = vld [vmem:[%s1 + $0x2c8] sm:$0xf]
  %v216 = vld [vmem:[%s1 + $0x2cc] sm:$0xf]
  %v217 = vld [vmem:[%s1 + $0x2d0] sm:$0xf]
  %v218 = vld [vmem:[%s1 + $0x2d4] sm:$0xf]
  %v219 = vld [vmem:[%s1 + $0x2d8] sm:$0xf]
  %v220 = vld [vmem:[%s1 + $0x2dc] sm:$0xf]
  %v221 = vld [vmem:[%s1 + $0x2e0] sm:$0xf]
  %v222 = vld [vmem:[%s1 + $0x2e4] sm:$0xf]
  %v223 = vld [vmem:[%s1 + $0x2e8] sm:$0xf]
  %v224 = vld [vmem:[%s1 + $0x2ec] sm:$0xf]
  %v225 = vld [vmem:[%s1 + $0x2f0] sm:$0xf]
  %v226 = vld [vmem:[%s1 + $0x2f4] sm:$0xf]
  %v227 = vld [vmem:[%s1 + $0x2f8] sm:$0xf]
  %v228 = vld [vmem:[%s1 + $0x2fc] sm:$0xf]
  %v229 = vld [vmem:[%s1 + $0x300] sm:$0xf]
  %v230 = vld [vmem:[%s1 + $0x304] sm:$0xf]
  %v231 = vld [vmem:[%s1 + $0x308] sm:$0xf]
  %v232 = vld [vmem:[%s1 + $0x30c] sm:$0xf]
  %v233 = vld [vmem:[%s1 + $0x310] sm:$0xf]
  %v234 = vld [vmem:[%s1 + $0x314] sm:$0xf]
  %v235 = vld [vmem:[%s1 + $0x318] sm:$0xf]
  %v236 = vld [vmem:[%s1 + $0x31c] sm:$0xf]
  %v237 = vld [vmem:[%s1 + $0x320] sm:$0xf]
  %v238 = vld [vmem:[%s1 + $0x324] sm:$0xf]
  %v239 = vld [vmem:[%s1 + $0x328] sm:$0xf]
  %v240 = vld [vmem:[%s1 + $0x32c] sm:$0xf]
  %v241 = vld [vmem:[%s1 + $0x330] sm:$0xf]
  %v242 = vld [vmem:[%s1 + $0x334] sm:$0xf]
  %v243 = vld [vmem:[%s1 + $0x338] sm:$0xf]
  %v244 = vld [vmem:[%s1 + $0x33c] sm:$0xf]
  %v245 = vld [vmem:[%s1 + $0x340] sm:$0xf]
  %v246 = vld [vmem:[%s1 + $0x344] sm:$0xf]
  %v247 = vld [vmem:[%s1 + $0x348] sm:$0xf]
  %v248 = vld [vmem:[%s1 + $0x34c] sm:$0xf]
  %v249 = vld [vmem:[%s1 + $0x350] sm:$0xf]
  %v250 = vld [vmem:[%s1 + $0x354] sm:$0xf]
  %v251 = vld [vmem:[%s1 + $0x358] sm:$0xf]
  %v252 = vld [vmem:[%s1 + $0x35c] sm:$0xf]
  %v253 = vld [vmem:[%s1 + $0x360] sm:$0xf]
  %v254 = vld [vmem:[%s1 + $0x364] sm:$0xf]
  %v255 = vld [vmem:[%s1 + $0x368] sm:$0xf]
  %v256 = vld [vmem:[%s1 + $0x36c] sm:$0xf]
  %v257 = vld [vmem:[%s1 + $0x370] sm:$0xf]
  %v258 = vld [vmem:[%s1 + $0x374] sm:$0xf]
  %v259 = vld [vmem:[%s1 + $0x378] sm:$0xf]
  %v260 = vld [vmem:[%s1 + $0x37c] sm:$0xf]
  %v261 = vld [vmem:[%s1 + $0x380] sm:$0xf]
  %v262 = vld [vmem:[%s1 + $0x384] sm:$0xf]
  %v263 = vld [vmem:[%s1 + $0x388] sm:$0xf]
  %v264 = vld [vmem:[%s1 + $0x38c] sm:$0xf]
  %v265 = vld [vmem:[%s1 + $0x390] sm:$0xf]
  %v266 = vld [vmem:[%s1 + $0x394] sm:$0xf]
  %v267 = vld [vmem:[%s1 + $0x398] sm:$0xf]
  %v268 = vld [vmem:[%s1 + $0x39c] sm:$0xf]
  %v269 = vld [vmem:[%s1 + $0x3a0] sm:$0xf]
  %v270 = vld [vmem:[%s1 + $0x3a4] sm:$0xf]
  %v271 = vld [vmem:[%s1 + $0x3a8] sm:$0xf]
  %v272 = vld [vmem:[%s1 + $0x3ac] sm:$0xf]
  %v273 = vld [vmem:[%s1 + $0x3b0] sm:$0xf]
  %v274 = vld [vmem:[%s1 + $0x3b4] sm:$0xf]
  %v275 = vld [vmem:[%s1 + $0x3b8] sm:$0xf]
  %v276 = vld [vmem:[%s1 + $0x3bc] sm:$0xf]
  %v277 = vld [vmem:[%s1 + $0x3c0] sm:$0xf]
  %v278 = vld [vmem:[%s1 + $0x3c4] sm:$0xf]
  %v279 = vld [vmem:[%s1 + $0x3c8] sm:$0xf]
  %v280 = vld [vmem:[%s1 + $0x3cc] sm:$0xf]
  %v281 = vld [vmem:[%s1 + $0x3d0] sm:$0xf]
  %v282 = vld [vmem:[%s1 + $0x3d4] sm:$0xf]
  %v283 = vld [vmem:[%s1 + $0x3d8] sm:$0xf]
  %v284 = vld [vmem:[%s1 + $0x3dc] sm:$0xf]
  %v285 = vld [vmem:[%s1 + $0x3e0] sm:$0xf]
  %v286 = vld [vmem:[%s1 + $0x3e4] sm:$0xf]
  %v287 = vld [vmem:[%s1 + $0x3e8] sm:$0xf]
  %v288 = vld [vmem:[%s1 + $0x3ec] sm:$0xf]
  %v289 = vld [vmem:[%s1 + $0x3f0] sm:$0xf]
  %v290 = vld [vmem:[%s1 + $0x3f4] sm:$0xf]
  %v291 = vld [vmem:[%s1 + $0x3f8] sm:$0xf]
  %v292 = vld [vmem:[%s1 + $0x3fc] sm:$0xf]
  %v293 = vld [vmem:[%s1 + $0x400] sm:$0xf]
  %v294 = vld [vmem:[%s1 + $0x404] sm:$0xf]
  %v295 = vld [vmem:[%s1 + $0x408] sm:$0xf]
  %v296 = vld [vmem:[%s1 + $0x40c] sm:$0xf]
  %v297 = vld [vmem:[%s1 + $0x410] sm:$0xf]
  %v298 = vld [vmem:[%s1 + $0x414] sm:$0xf]
  %v299 = vld [vmem:[%s1 + $0x418] sm:$0xf]
  %v300 = vld [vmem:[%s1 + $0x41c] sm:$0xf]
  %v301 = vld [vmem:[%s1 + $0x420] sm:$0xf]
  %v302 = vld [vmem:[%s1 + $0x424] sm:$0xf]
  %v303 = vld [vmem:[%s1 + $0x428] sm:$0xf]
  %v304 = vld [vmem:[%s1 + $0x42c] sm:$0xf]
  %v305 = vld [vmem:[%s1 + $0x430] sm:$0xf]
  %v306 = vld [vmem:[%s1 + $0x434] sm:$0xf]
  %v307 = vld [vmem:[%s1 + $0x438] sm:$0xf]
  %v308 = vld [vmem:[%s1 + $0x43c] sm:$0xf]
  %v309 = vld [vmem:[%s1 + $0x440] sm:$0xf]
  %v310 = vld [vmem:[%s1 + $0x444] sm:$0xf]
  %v311 = vld [vmem:[%s1 + $0x448] sm:$0xf]
  %v312 = vld [vmem:[%s1 + $0x44c] sm:$0xf]
  %v313 = vld [vmem:[%s1 + $0x450] sm:$0xf]
  %v314 = vld [vmem:[%s1 + $0x454] sm:$0xf]
  %v315 = vld [vmem:[%s1 + $0x458] sm:$0xf]
  %v316 = vld [vmem:[%s1 + $0x45c] sm:$0xf]
  %v317 = vld [vmem:[%s1 + $0x460] sm:$0xf]
  %v318 = vld [vmem:[%s1 + $0x464] sm:$0xf]
  %v319 = vld [vmem:[%s1 + $0x468] sm:$0xf]
  %v320 = vld [vmem:[%s1 + $0x46c] sm:$0xf]
  %v321 = vld [vmem:[%s1 + $0x470] sm:$0xf]
  %v322 = vld [vmem:[%s1 + $0x474] sm:$0xf]
  %v323 = vld [vmem:[%s1 + $0x478] sm:$0xf]
  %v324 = vld [vmem:[%s1 + $0x47c] sm:$0xf]
  %v325 = vld [vmem:[%s1 + $0x480] sm:$0xf]
  %v326 = vld [vmem:[%s1 + $0x484] sm:$0xf]
  %v327 = vld [vmem:[%s1 + $0x488] sm:$0xf]
  %v328 = vld [vmem:[%s1 + $0x48c] sm:$0xf]
  %v329 = vld [vmem:[%s1 + $0x490] sm:$0xf]
  %v330 = vld [vmem:[%s1 + $0x494] sm:$0xf]
  %v331 = vld [vmem:[%s1 + $0x498] sm:$0xf]
  %v332 = vld [vmem:[%s1 + $0x49c] sm:$0xf]
  %v333 = vld [vmem:[%s1 + $0x4a0] sm:$0xf]
  %v334 = vld [vmem:[%s1 + $0x4a4] sm:$0xf]
  %v335 = vld [vmem:[%s1 + $0x4a8] sm:$0xf]
  %v336 = vld [vmem:[%s1 + $0x4ac] sm:$0xf]
  %v337 = vld [vmem:[%s1 + $0x4b0] sm:$0xf]
  %v338 = vld [vmem:[%s1 + $0x4b4] sm:$0xf]
  %v339 = vld [vmem:[%s1 + $0x4b8] sm:$0xf]
  %v340 = vld [vmem:[%s1 + $0x4bc] sm:$0xf]
  %v341 = vld [vmem:[%s1 + $0x4c0] sm:$0xf]
  %v342 = vld [vmem:[%s1 + $0x4c4] sm:$0xf]
  %v343 = vld [vmem:[%s1 + $0x4c8] sm:$0xf]
  %v344 = vld [vmem:[%s1 + $0x4cc] sm:$0xf]
  %v345 = vld [vmem:[%s1 + $0x4d0] sm:$0xf]
  %v346 = vld [vmem:[%s1 + $0x4d4] sm:$0xf]
  %v347 = vld [vmem:[%s1 + $0x4d8] sm:$0xf]
  %v348 = vld [vmem:[%s1 + $0x4dc] sm:$0xf]
  %v349 = vld [vmem:[%s1 + $0x4e0] sm:$0xf]
  %v350 = vld [vmem:[%s1 + $0x4e4] sm:$0xf]
  %v351 = vld [vmem:[%s1 + $0x4e8] sm:$0xf]
  %v352 = vld [vmem:[%s1 + $0x4ec] sm:$0xf]
  %v353 = vld [vmem:[%s1 + $0x4f0] sm:$0xf]
  %v354 = vld [vmem:[%s1 + $0x4f4] sm:$0xf]
  %v355 = vld [vmem:[%s1 + $0x4f8] sm:$0xf]
  %v356 = vld [vmem:[%s1 + $0x4fc] sm:$0xf]
  %v357 = vld [vmem:[%s1 + $0x500] sm:$0xf]
  %v358 = vld [vmem:[%s1 + $0x504] sm:$0xf]
  %v359 = vld [vmem:[%s1 + $0x508] sm:$0xf]
  %v360 = vld [vmem:[%s1 + $0x50c] sm:$0xf]
  %v361 = vld [vmem:[%s1 + $0x510] sm:$0xf]
  %v362 = vld [vmem:[%s1 + $0x514] sm:$0xf]
  %v363 = vld [vmem:[%s1 + $0x518] sm:$0xf]
  %v364 = vld [vmem:[%s1 + $0x51c] sm:$0xf]
  %v365 = vld [vmem:[%s1 + $0x520] sm:$0xf]
  %v366 = vld [vmem:[%s1 + $0x524] sm:$0xf]
  %v367 = vld [vmem:[%s1 + $0x528] sm:$0xf]
  %v368 = vld [vmem:[%s1 + $0x52c] sm:$0xf]
  %v369 = vld [vmem:[%s1 + $0x530] sm:$0xf]
  %v370 = vld [vmem:[%s1 + $0x534] sm:$0xf]
  %v371 = vld [vmem:[%s1 + $0x538] sm:$0xf]
  %v372 = vld [vmem:[%s1 + $0x53c] sm:$0xf]
  %v373 = vld [vmem:[%s1 + $0x540] sm:$0xf]
  %v374 = vld [vmem:[%s1 + $0x544] sm:$0xf]
  %v375 = vld [vmem:[%s1 + $0x548] sm:$0xf]
  %v376 = vld [vmem:[%s1 + $0x54c] sm:$0xf]
  %v377 = vld [vmem:[%s1 + $0x550] sm:$0xf]
  %v378 = vld [vmem:[%s1 + $0x554] sm:$0xf]
  %v379 = vld [vmem:[%s1 + $0x558] sm:$0xf]
  %v380 = vld [vmem:[%s1 + $0x55c] sm:$0xf]
  %v381 = vld [vmem:[%s1 + $0x560] sm:$0xf]
  %v382 = vld [vmem:[%s1 + $0x564] sm:$0xf]
  %v383 = vld [vmem:[%s1 + $0x568] sm:$0xf]
  %v384 = vld [vmem:[%s1 + $0x56c] sm:$0xf]
  %v385 = vld [vmem:[%s1 + $0x570] sm:$0xf]
  %v386 = vld [vmem:[%s1 + $0x574] sm:$0xf]
  %v387 = vld [vmem:[%s1 + $0x578] sm:$0xf]
  %v388 = vld [vmem:[%s1 + $0x57c] sm:$0xf]
  %v389 = vld [vmem:[%s1 + $0x580] sm:$0xf]
  %v390 = vld [vmem:[%s1 + $0x584] sm:$0xf]
  %v391 = vld [vmem:[%s1 + $0x588] sm:$0xf]
  %v392 = vld [vmem:[%s1 + $0x58c] sm:$0xf]
  %v393 = vld [vmem:[%s1 + $0x590] sm:$0xf]
  %v394 = vld [vmem:[%s1 + $0x594] sm:$0xf]
  %v395 = vld [vmem:[%s1 + $0x598] sm:$0xf]
  %v396 = vld [vmem:[%s1 + $0x59c] sm:$0xf]
  %v397 = vld [vmem:[%s1 + $0x5a0] sm:$0xf]
  %v398 = vld [vmem:[%s1 + $0x5a4] sm:$0xf]
  %v399 = vld [vmem:[%s1 + $0x5a8] sm:$0xf]
  %v400 = vld [vmem:[%s1 + $0x5ac] sm:$0xf]
  %v401 = vld [vmem:[%s1 + $0x5b0] sm:$0xf]
  %v402 = vld [vmem:[%s1 + $0x5b4] sm:$0xf]
  %v403 = vld [vmem:[%s1 + $0x5b8] sm:$0xf]
  %v404 = vld [vmem:[%s1 + $0x5bc] sm:$0xf]
  %v405 = vld [vmem:[%s1 + $0x5c0] sm:$0xf]
  %v406 = vld [vmem:[%s1 + $0x5c4] sm:$0xf]
  %v407 = vld [vmem:[%s1 + $0x5c8] sm:$0xf]
  %v408 = vld [vmem:[%s1 + $0x5cc] sm:$0xf]
  %v409 = vld [vmem:[%s1 + $0x5d0] sm:$0xf]
  %v410 = vld [vmem:[%s1 + $0x5d4] sm:$0xf]
  %v411 = vld [vmem:[%s1 + $0x5d8] sm:$0xf]
  %v412 = vld [vmem:[%s1 + $0x5dc] sm:$0xf]
  %v413 = vld [vmem:[%s1 + $0x5e0] sm:$0xf]
  %v414 = vld [vmem:[%s1 + $0x5e4] sm:$0xf]
  %v415 = vld [vmem:[%s1 + $0x5e8] sm:$0xf]
  %v416 = vld [vmem:[%s1 + $0x5ec] sm:$0xf]
  %v417 = vld [vmem:[%s1 + $0x5f0] sm:$0xf]
  %v418 = vld [vmem:[%s1 + $0x5f4] sm:$0xf]
  %v419 = vld [vmem:[%s1 + $0x5f8] sm:$0xf]
  %v420 = vld [vmem:[%s1 + $0x5fc] sm:$0xf]
  %v421 = vld [vmem:[%s1 + $0x600] sm:$0xf]
  %v422 = vld [vmem:[%s1 + $0x604] sm:$0xf]
  %v423 = vld [vmem:[%s1 + $0x608] sm:$0xf]
  %v424 = vld [vmem:[%s1 + $0x60c] sm:$0xf]
  %v425 = vld [vmem:[%s1 + $0x610] sm:$0xf]
  %v426 = vld [vmem:[%s1 + $0x614] sm:$0xf]
  %v427 = vld [vmem:[%s1 + $0x618] sm:$0xf]
  %v428 = vld [vmem:[%s1 + $0x61c] sm:$0xf]
  %v429 = vld [vmem:[%s1 + $0x620] sm:$0xf]
  %v430 = vld [vmem:[%s1 + $0x624] sm:$0xf]
  %v431 = vld [vmem:[%s1 + $0x628] sm:$0xf]
  %v432 = vld [vmem:[%s1 + $0x62c] sm:$0xf]
  %v433 = vld [vmem:[%s1 + $0x630] sm:$0xf]
  %v434 = vld [vmem:[%s1 + $0x634] sm:$0xf]
  %v435 = vld [vmem:[%s1 + $0x638] sm:$0xf]
  %v436 = vld [vmem:[%s1 + $0x63c] sm:$0xf]
  %v437 = vld [vmem:[%s1 + $0x640] sm:$0xf]
  %v438 = vld [vmem:[%s1 + $0x644] sm:$0xf]
  %v439 = vld [vmem:[%s1 + $0x648] sm:$0xf]
  %v440 = vld [vmem:[%s1 + $0x64c] sm:$0xf]
  %v441 = vld [vmem:[%s1 + $0x650] sm:$0xf]
  %v442 = vld [vmem:[%s1 + $0x654] sm:$0xf]
  %v443 = vld [vmem:[%s1 + $0x658] sm:$0xf]
  %v444 = vld [vmem:[%s1 + $0x65c] sm:$0xf]
  %v445 = vld [vmem:[%s1 + $0x660] sm:$0xf]
  %v446 = vld [vmem:[%s1 + $0x664] sm:$0xf]
  %v447 = vld [vmem:[%s1 + $0x668] sm:$0xf]
  %v448 = vld [vmem:[%s1 + $0x66c] sm:$0xf]
  %v449 = vld [vmem:[%s1 + $0x670] sm:$0xf]
  %v450 = vld [vmem:[%s1 + $0x674] sm:$0xf]
  %v451 = vld [vmem:[%s1 + $0x678] sm:$0xf]
  %v452 = vld [vmem:[%s1 + $0x67c] sm:$0xf]
  %v453 = vld [vmem:[%s1 + $0x680] sm:$0xf]
  %v454 = vld [vmem:[%s1 + $0x684] sm:$0xf]
  %v455 = vld [vmem:[%s1 + $0x688] sm:$0xf]
  %v456 = vld [vmem:[%s1 + $0x68c] sm:$0xf]
  %v457 = vld [vmem:[%s1 + $0x690] sm:$0xf]
  %v458 = vld [vmem:[%s1 + $0x694] sm:$0xf]
  %v459 = vld [vmem:[%s1 + $0x698] sm:$0xf]
  %v460 = vld [vmem:[%s1 + $0x69c] sm:$0xf]
  %v461 = vld [vmem:[%s1 + $0x6a0] sm:$0xf]
  %v462 = vld [vmem:[%s1 + $0x6a4] sm:$0xf]
  %v463 = vld [vmem:[%s1 + $0x6a8] sm:$0xf]
  %v464 = vld [vmem:[%s1 + $0x6ac] sm:$0xf]
  %v465 = vld [vmem:[%s1 + $0x6b0] sm:$0xf]
  %v466 = vld [vmem:[%s1 + $0x6b4] sm:$0xf]
  %v467 = vld [vmem:[%s1 + $0x6b8] sm:$0xf]
  %v468 = vld [vmem:[%s1 + $0x6bc] sm:$0xf]
  %v469 = vld [vmem:[%s1 + $0x6c0] sm:$0xf]
  %v470 = vld [vmem:[%s1 + $0x6c4] sm:$0xf]
  %v471 = vld [vmem:[%s1 + $0x6c8] sm:$0xf]
  %v472 = vld [vmem:[%s1 + $0x6cc] sm:$0xf]
  %v473 = vld [vmem:[%s1 + $0x6d0] sm:$0xf]
  %v474 = vld [vmem:[%s1 + $0x6d4] sm:$0xf]
  %v475 = vld [vmem:[%s1 + $0x6d8] sm:$0xf]
  %v476 = vld [vmem:[%s1 + $0x6dc] sm:$0xf]
  %v477 = vld [vmem:[%s1 + $0x6e0] sm:$0xf]
  %v478 = vld [vmem:[%s1 + $0x6e4] sm:$0xf]
  %v479 = vld [vmem:[%s1 + $0x6e8] sm:$0xf]
  %v480 = vld [vmem:[%s1 + $0x6ec] sm:$0xf]
  %v481 = vld [vmem:[%s1 + $0x6f0] sm:$0xf]
  %v482 = vld [vmem:[%s1 + $0x6f4] sm:$0xf]
  %v483 = vld [vmem:[%s1 + $0x6f8] sm:$0xf]
  %v484 = vld [vmem:[%s1 + $0x6fc] sm:$0xf]
  %v485 = vld [vmem:[%s1 + $0x700] sm:$0xf]
  %v486 = vld [vmem:[%s1 + $0x704] sm:$0xf]
  %v487 = vld [vmem:[%s1 + $0x708] sm:$0xf]
  %v488 = vld [vmem:[%s1 + $0x70c] sm:$0xf]
  %v489 = vld [vmem:[%s1 + $0x710] sm:$0xf]
  %v490 = vld [vmem:[%s1 + $0x714] sm:$0xf]
  %v491 = vld [vmem:[%s1 + $0x718] sm:$0xf]
  %v492 = vld [vmem:[%s1 + $0x71c] sm:$0xf]
  %v493 = vld [vmem:[%s1 + $0x720] sm:$0xf]
  %v494 = vld [vmem:[%s1 + $0x724] sm:$0xf]
  %v495 = vld [vmem:[%s1 + $0x728] sm:$0xf]
  %v496 = vld [vmem:[%s1 + $0x72c] sm:$0xf]
  %v497 = vld [vmem:[%s1 + $0x730] sm:$0xf]
  %v498 = vld [vmem:[%s1 + $0x734] sm:$0xf]
  %v499 = vld [vmem:[%s1 + $0x738] sm:$0xf]
  %v500 = vld [vmem:[%s1 + $0x73c] sm:$0xf]
  %v501 = vld [vmem:[%s1 + $0x740] sm:$0xf]
  %v502 = vld [vmem:[%s1 + $0x744] sm:$0xf]
  %v503 = vld [vmem:[%s1 + $0x748] sm:$0xf]
  %v504 = vld [vmem:[%s1 + $0x74c] sm:$0xf]
  %v505 = vld [vmem:[%s1 + $0x750] sm:$0xf]
  %v506 = vld [vmem:[%s1 + $0x754] sm:$0xf]
  %v507 = vld [vmem:[%s1 + $0x758] sm:$0xf]
  %v508 = vld [vmem:[%s1 + $0x75c] sm:$0xf]
  %v509 = vld [vmem:[%s1 + $0x760] sm:$0xf]
  %v510 = vld [vmem:[%s1 + $0x764] sm:$0xf]
  %v511 = vld [vmem:[%s1 + $0x768] sm:$0xf]
  %v512 = vld [vmem:[%s1 + $0x76c] sm:$0xf]
  %v513 = vld [vmem:[%s1 + $0x770] sm:$0xf]
  %v514 = vld [vmem:[%s1 + $0x774] sm:$0xf]
  %v515 = vld [vmem:[%s1 + $0x778] sm:$0xf]
  %v516 = vld [vmem:[%s1 + $0x77c] sm:$0xf]
  %v517 = vld [vmem:[%s1 + $0x780] sm:$0xf]
  %v518 = vld [vmem:[%s1 + $0x784] sm:$0xf]
  %v519 = vld [vmem:[%s1 + $0x788] sm:$0xf]
  %v520 = vld [vmem:[%s1 + $0x78c] sm:$0xf]
  %v521 = vld [vmem:[%s1 + $0x790] sm:$0xf]
  %v522 = vld [vmem:[%s1 + $0x794] sm:$0xf]
  %v523 = vld [vmem:[%s1 + $0x798] sm:$0xf]
  %v524 = vld [vmem:[%s1 + $0x79c] sm:$0xf]
  %v525 = vld [vmem:[%s1 + $0x7a0] sm:$0xf]
  %v526 = vld [vmem:[%s1 + $0x7a4] sm:$0xf]
  %v527 = vld [vmem:[%s1 + $0x7a8] sm:$0xf]
  %v528 = vld [vmem:[%s1 + $0x7ac] sm:$0xf]
  %v529 = vld [vmem:[%s1 + $0x7b0] sm:$0xf]
  %v530 = vld [vmem:[%s1 + $0x7b4] sm:$0xf]
  %v531 = vld [vmem:[%s1 + $0x7b8] sm:$0xf]
  %v532 = vld [vmem:[%s1 + $0x7bc] sm:$0xf]
  %v533 = vld [vmem:[%s1 + $0x7c0] sm:$0xf]
  %v534 = vld [vmem:[%s1 + $0x7c4] sm:$0xf]
  %v535 = vld [vmem:[%s1 + $0x7c8] sm:$0xf]
  %v536 = vld [vmem:[%s1 + $0x7cc] sm:$0xf]
  %v537 = vld [vmem:[%s1 + $0x7d0] sm:$0xf]
  %v538 = vld [vmem:[%s1 + $0x7d4] sm:$0xf]
  %v539 = vld [vmem:[%s1 + $0x7d8] sm:$0xf]
  %v540 = vld [vmem:[%s1 + $0x7dc] sm:$0xf]
  %v541 = vld [vmem:[%s1 + $0x7e0] sm:$0xf]
  %v542 = vld [vmem:[%s1 + $0x7e4] sm:$0xf]
  %v543 = vld [vmem:[%s1 + $0x7e8] sm:$0xf]
  %v544 = vld [vmem:[%s1 + $0x7ec] sm:$0xf]
  %v545 = vld [vmem:[%s1 + $0x7f0] sm:$0xf]
  %v546 = vld [vmem:[%s1 + $0x7f4] sm:$0xf]
  %v547 = vld [vmem:[%s1 + $0x7f8] sm:$0xf]
  %v548 = vld [vmem:[%s1 + $0x7fc] sm:$0xf]
  %v549 = vld [vmem:[%s2] sm:$0x1]
  %v551 = vlaneseq
  %v552 = vshrl.u32 %v551, 7
  %v553 = vsub.s32 0, %v552
  %v554 = vrot.slane %v549, %v553
  %v572 = vunpack.c.l.b16 %v21
  %v573 = vunpack.c.h.b16 %v21
  %v574 = vunpack.c.l.b16 %v22
  %v575 = vunpack.c.h.b16 %v22
  %v576 = vunpack.c.l.b16 %v23
  %v577 = vunpack.c.h.b16 %v23
  %v578 = vunpack.c.l.b16 %v24
  %v579 = vunpack.c.h.b16 %v24
  %v580 = vunpack.c.l.b16 %v25
  %v581 = vunpack.c.h.b16 %v25
  %v582 = vunpack.c.l.b16 %v26
  %v583 = vunpack.c.h.b16 %v26
  %v584 = vunpack.c.l.b16 %v27
  %v585 = vunpack.c.h.b16 %v27
  %v586 = vunpack.c.l.b16 %v28
  %v587 = vunpack.c.h.b16 %v28
  %v588 = vunpack.c.l.b16 %v29
  %v589 = vunpack.c.h.b16 %v29
  %v590 = vunpack.c.l.b16 %v30
  %v591 = vunpack.c.h.b16 %v30
  %v592 = vunpack.c.l.b16 %v31
  %v593 = vunpack.c.h.b16 %v31
  %v594 = vunpack.c.l.b16 %v32
  %v595 = vunpack.c.h.b16 %v32
  %v596 = vunpack.c.l.b16 %v33
  %v597 = vunpack.c.h.b16 %v33
  %v598 = vunpack.c.l.b16 %v34
  %v599 = vunpack.c.h.b16 %v34
  %v600 = vunpack.c.l.b16 %v35
  %v601 = vunpack.c.h.b16 %v35
  %v602 = vunpack.c.l.b16 %v36
  %v603 = vunpack.c.h.b16 %v36
  %v604 = vpack.c.b16 %v572, %v572
  %v605 = vpack.c.b16 %v573, %v573
  %v606 = vpack.c.b16 %v574, %v574
  %v607 = vpack.c.b16 %v575, %v575
  %v608 = vpack.c.b16 %v576, %v576
  %v609 = vpack.c.b16 %v577, %v577
  %v610 = vpack.c.b16 %v578, %v578
  %v611 = vpack.c.b16 %v579, %v579
  %v612 = vpack.c.b16 %v580, %v580
  %v613 = vpack.c.b16 %v581, %v581
  %v614 = vpack.c.b16 %v582, %v582
  %v615 = vpack.c.b16 %v583, %v583
  %v616 = vpack.c.b16 %v584, %v584
  %v617 = vpack.c.b16 %v585, %v585
  %v618 = vpack.c.b16 %v586, %v586
  %v619 = vpack.c.b16 %v587, %v587
  %v620 = vpack.c.b16 %v588, %v588
  %v621 = vpack.c.b16 %v589, %v589
  %v622 = vpack.c.b16 %v590, %v590
  %v623 = vpack.c.b16 %v591, %v591
  %v624 = vpack.c.b16 %v592, %v592
  %v625 = vpack.c.b16 %v593, %v593
  %v626 = vpack.c.b16 %v594, %v594
  %v627 = vpack.c.b16 %v595, %v595
  %v628 = vpack.c.b16 %v596, %v596
  %v629 = vpack.c.b16 %v597, %v597
  %v630 = vpack.c.b16 %v598, %v598
  %v631 = vpack.c.b16 %v599, %v599
  %v632 = vpack.c.b16 %v600, %v600
  %v633 = vpack.c.b16 %v601, %v601
  %v634 = vpack.c.b16 %v602, %v602
  %v635 = vpack.c.b16 %v603, %v603
  %v1180 = vunpack.c.l.b16 %v37
  %v1181 = vunpack.c.l.b16 %v38
  %v1182 = vunpack.c.l.b16 %v39
  %v1183 = vunpack.c.l.b16 %v40
  %v1184 = vunpack.c.l.b16 %v41
  %v1185 = vunpack.c.l.b16 %v42
  %v1186 = vunpack.c.l.b16 %v43
  %v1187 = vunpack.c.l.b16 %v44
  %v1188 = vunpack.c.l.b16 %v45
  %v1189 = vunpack.c.l.b16 %v46
  %v1190 = vunpack.c.l.b16 %v47
  %v1191 = vunpack.c.l.b16 %v48
  %v1192 = vunpack.c.l.b16 %v49
  %v1193 = vunpack.c.l.b16 %v50
  %v1194 = vunpack.c.l.b16 %v51
  %v1195 = vunpack.c.l.b16 %v52
  %v1196 = vunpack.c.l.b16 %v53
  %v1197 = vunpack.c.l.b16 %v54
  %v1198 = vunpack.c.l.b16 %v55
  %v1199 = vunpack.c.l.b16 %v56
  %v1200 = vunpack.c.l.b16 %v57
  %v1201 = vunpack.c.l.b16 %v58
  %v1202 = vunpack.c.l.b16 %v59
  %v1203 = vunpack.c.l.b16 %v60
  %v1204 = vunpack.c.l.b16 %v61
  %v1205 = vunpack.c.l.b16 %v62
  %v1206 = vunpack.c.l.b16 %v63
  %v1207 = vunpack.c.l.b16 %v64
  %v1208 = vunpack.c.l.b16 %v65
  %v1209 = vunpack.c.l.b16 %v66
  %v1210 = vunpack.c.l.b16 %v67
  %v1211 = vunpack.c.l.b16 %v68
  %v1212 = vunpack.c.l.b16 %v69
  %v1213 = vunpack.c.l.b16 %v70
  %v1214 = vunpack.c.l.b16 %v71
  %v1215 = vunpack.c.l.b16 %v72
  %v1216 = vunpack.c.l.b16 %v73
  %v1217 = vunpack.c.l.b16 %v74
  %v1218 = vunpack.c.l.b16 %v75
  %v1219 = vunpack.c.l.b16 %v76
  %v1220 = vunpack.c.l.b16 %v77
  %v1221 = vunpack.c.l.b16 %v78
  %v1222 = vunpack.c.l.b16 %v79
  %v1223 = vunpack.c.l.b16 %v80
  %v1224 = vunpack.c.l.b16 %v81
  %v1225 = vunpack.c.l.b16 %v82
  %v1226 = vunpack.c.l.b16 %v83
  %v1227 = vunpack.c.l.b16 %v84
  %v1228 = vunpack.c.l.b16 %v85
  %v1229 = vunpack.c.l.b16 %v86
  %v1230 = vunpack.c.l.b16 %v87
  %v1231 = vunpack.c.l.b16 %v88
  %v1232 = vunpack.c.l.b16 %v89
  %v1233 = vunpack.c.l.b16 %v90
  %v1234 = vunpack.c.l.b16 %v91
  %v1235 = vunpack.c.l.b16 %v92
  %v1236 = vunpack.c.l.b16 %v93
  %v1237 = vunpack.c.l.b16 %v94
  %v1238 = vunpack.c.l.b16 %v95
  %v1239 = vunpack.c.l.b16 %v96
  %v1240 = vunpack.c.l.b16 %v97
  %v1241 = vunpack.c.l.b16 %v98
  %v1242 = vunpack.c.l.b16 %v99
  %v1243 = vunpack.c.l.b16 %v100
  %v1244 = vunpack.c.l.b16 %v101
  %v1245 = vunpack.c.l.b16 %v102
  %v1246 = vunpack.c.l.b16 %v103
  %v1247 = vunpack.c.l.b16 %v104
  %v1248 = vunpack.c.l.b16 %v105
  %v1249 = vunpack.c.l.b16 %v106
  %v1250 = vunpack.c.l.b16 %v107
  %v1251 = vunpack.c.l.b16 %v108
  %v1252 = vunpack.c.l.b16 %v109
  %v1253 = vunpack.c.l.b16 %v110
  %v1254 = vunpack.c.l.b16 %v111
  %v1255 = vunpack.c.l.b16 %v112
  %v1256 = vunpack.c.l.b16 %v113
  %v1257 = vunpack.c.l.b16 %v114
  %v1258 = vunpack.c.l.b16 %v115
  %v1259 = vunpack.c.l.b16 %v116
  %v1260 = vunpack.c.l.b16 %v117
  %v1261 = vunpack.c.l.b16 %v118
  %v1262 = vunpack.c.l.b16 %v119
  %v1263 = vunpack.c.l.b16 %v120
  %v1264 = vunpack.c.l.b16 %v121
  %v1265 = vunpack.c.l.b16 %v122
  %v1266 = vunpack.c.l.b16 %v123
  %v1267 = vunpack.c.l.b16 %v124
  %v1268 = vunpack.c.l.b16 %v125
  %v1269 = vunpack.c.l.b16 %v126
  %v1270 = vunpack.c.l.b16 %v127
  %v1271 = vunpack.c.l.b16 %v128
  %v1272 = vunpack.c.l.b16 %v129
  %v1273 = vunpack.c.l.b16 %v130
  %v1274 = vunpack.c.l.b16 %v131
  %v1275 = vunpack.c.l.b16 %v132
  %v1276 = vunpack.c.l.b16 %v133
  %v1277 = vunpack.c.l.b16 %v134
  %v1278 = vunpack.c.l.b16 %v135
  %v1279 = vunpack.c.l.b16 %v136
  %v1280 = vunpack.c.l.b16 %v137
  %v1281 = vunpack.c.l.b16 %v138
  %v1282 = vunpack.c.l.b16 %v139
  %v1283 = vunpack.c.l.b16 %v140
  %v1284 = vunpack.c.l.b16 %v141
  %v1285 = vunpack.c.l.b16 %v142
  %v1286 = vunpack.c.l.b16 %v143
  %v1287 = vunpack.c.l.b16 %v144
  %v1288 = vunpack.c.l.b16 %v145
  %v1289 = vunpack.c.l.b16 %v146
  %v1290 = vunpack.c.l.b16 %v147
  %v1291 = vunpack.c.l.b16 %v148
  %v1292 = vunpack.c.l.b16 %v149
  %v1293 = vunpack.c.l.b16 %v150
  %v1294 = vunpack.c.l.b16 %v151
  %v1295 = vunpack.c.l.b16 %v152
  %v1296 = vunpack.c.l.b16 %v153
  %v1297 = vunpack.c.l.b16 %v154
  %v1298 = vunpack.c.l.b16 %v155
  %v1299 = vunpack.c.l.b16 %v156
  %v1300 = vunpack.c.l.b16 %v157
  %v1301 = vunpack.c.l.b16 %v158
  %v1302 = vunpack.c.l.b16 %v159
  %v1303 = vunpack.c.l.b16 %v160
  %v1304 = vunpack.c.l.b16 %v161
  %v1305 = vunpack.c.l.b16 %v162
  %v1306 = vunpack.c.l.b16 %v163
  %v1307 = vunpack.c.l.b16 %v164
  %v1308 = vunpack.c.l.b16 %v165
  %v1309 = vunpack.c.l.b16 %v166
  %v1310 = vunpack.c.l.b16 %v167
  %v1311 = vunpack.c.l.b16 %v168
  %v1312 = vunpack.c.l.b16 %v169
  %v1313 = vunpack.c.l.b16 %v170
  %v1314 = vunpack.c.l.b16 %v171
  %v1315 = vunpack.c.l.b16 %v172
  %v1316 = vunpack.c.l.b16 %v173
  %v1317 = vunpack.c.l.b16 %v174
  %v1318 = vunpack.c.l.b16 %v175
  %v1319 = vunpack.c.l.b16 %v176
  %v1320 = vunpack.c.l.b16 %v177
  %v1321 = vunpack.c.l.b16 %v178
  %v1322 = vunpack.c.l.b16 %v179
  %v1323 = vunpack.c.l.b16 %v180
  %v1324 = vunpack.c.l.b16 %v181
  %v1325 = vunpack.c.l.b16 %v182
  %v1326 = vunpack.c.l.b16 %v183
  %v1327 = vunpack.c.l.b16 %v184
  %v1328 = vunpack.c.l.b16 %v185
  %v1329 = vunpack.c.l.b16 %v186
  %v1330 = vunpack.c.l.b16 %v187
  %v1331 = vunpack.c.l.b16 %v188
  %v1332 = vunpack.c.l.b16 %v189
  %v1333 = vunpack.c.l.b16 %v190
  %v1334 = vunpack.c.l.b16 %v191
  %v1335 = vunpack.c.l.b16 %v192
  %v1336 = vunpack.c.l.b16 %v193
  %v1337 = vunpack.c.l.b16 %v194
  %v1338 = vunpack.c.l.b16 %v195
  %v1339 = vunpack.c.l.b16 %v196
  %v1340 = vunpack.c.l.b16 %v197
  %v1341 = vunpack.c.l.b16 %v198
  %v1342 = vunpack.c.l.b16 %v199
  %v1343 = vunpack.c.l.b16 %v200
  %v1344 = vunpack.c.l.b16 %v201
  %v1345 = vunpack.c.l.b16 %v202
  %v1346 = vunpack.c.l.b16 %v203
  %v1347 = vunpack.c.l.b16 %v204
  %v1348 = vunpack.c.l.b16 %v205
  %v1349 = vunpack.c.l.b16 %v206
  %v1350 = vunpack.c.l.b16 %v207
  %v1351 = vunpack.c.l.b16 %v208
  %v1352 = vunpack.c.l.b16 %v209
  %v1353 = vunpack.c.l.b16 %v210
  %v1354 = vunpack.c.l.b16 %v211
  %v1355 = vunpack.c.l.b16 %v212
  %v1356 = vunpack.c.l.b16 %v213
  %v1357 = vunpack.c.l.b16 %v214
  %v1358 = vunpack.c.l.b16 %v215
  %v1359 = vunpack.c.l.b16 %v216
  %v1360 = vunpack.c.l.b16 %v217
  %v1361 = vunpack.c.l.b16 %v218
  %v1362 = vunpack.c.l.b16 %v219
  %v1363 = vunpack.c.l.b16 %v220
  %v1364 = vunpack.c.l.b16 %v221
  %v1365 = vunpack.c.l.b16 %v222
  %v1366 = vunpack.c.l.b16 %v223
  %v1367 = vunpack.c.l.b16 %v224
  %v1368 = vunpack.c.l.b16 %v225
  %v1369 = vunpack.c.l.b16 %v226
  %v1370 = vunpack.c.l.b16 %v227
  %v1371 = vunpack.c.l.b16 %v228
  %v1372 = vunpack.c.l.b16 %v229
  %v1373 = vunpack.c.l.b16 %v230
  %v1374 = vunpack.c.l.b16 %v231
  %v1375 = vunpack.c.l.b16 %v232
  %v1376 = vunpack.c.l.b16 %v233
  %v1377 = vunpack.c.l.b16 %v234
  %v1378 = vunpack.c.l.b16 %v235
  %v1379 = vunpack.c.l.b16 %v236
  %v1380 = vunpack.c.l.b16 %v237
  %v1381 = vunpack.c.l.b16 %v238
  %v1382 = vunpack.c.l.b16 %v239
  %v1383 = vunpack.c.l.b16 %v240
  %v1384 = vunpack.c.l.b16 %v241
  %v1385 = vunpack.c.l.b16 %v242
  %v1386 = vunpack.c.l.b16 %v243
  %v1387 = vunpack.c.l.b16 %v244
  %v1388 = vunpack.c.l.b16 %v245
  %v1389 = vunpack.c.l.b16 %v246
  %v1390 = vunpack.c.l.b16 %v247
  %v1391 = vunpack.c.l.b16 %v248
  %v1392 = vunpack.c.l.b16 %v249
  %v1393 = vunpack.c.l.b16 %v250
  %v1394 = vunpack.c.l.b16 %v251
  %v1395 = vunpack.c.l.b16 %v252
  %v1396 = vunpack.c.l.b16 %v253
  %v1397 = vunpack.c.l.b16 %v254
  %v1398 = vunpack.c.l.b16 %v255
  %v1399 = vunpack.c.l.b16 %v256
  %v1400 = vunpack.c.l.b16 %v257
  %v1401 = vunpack.c.l.b16 %v258
  %v1402 = vunpack.c.l.b16 %v259
  %v1403 = vunpack.c.l.b16 %v260
  %v1404 = vunpack.c.l.b16 %v261
  %v1405 = vunpack.c.l.b16 %v262
  %v1406 = vunpack.c.l.b16 %v263
  %v1407 = vunpack.c.l.b16 %v264
  %v1408 = vunpack.c.l.b16 %v265
  %v1409 = vunpack.c.l.b16 %v266
  %v1410 = vunpack.c.l.b16 %v267
  %v1411 = vunpack.c.l.b16 %v268
  %v1412 = vunpack.c.l.b16 %v269
  %v1413 = vunpack.c.l.b16 %v270
  %v1414 = vunpack.c.l.b16 %v271
  %v1415 = vunpack.c.l.b16 %v272
  %v1416 = vunpack.c.l.b16 %v273
  %v1417 = vunpack.c.l.b16 %v274
  %v1418 = vunpack.c.l.b16 %v275
  %v1419 = vunpack.c.l.b16 %v276
  %v1420 = vunpack.c.l.b16 %v277
  %v1421 = vunpack.c.l.b16 %v278
  %v1422 = vunpack.c.l.b16 %v279
  %v1423 = vunpack.c.l.b16 %v280
  %v1424 = vunpack.c.l.b16 %v281
  %v1425 = vunpack.c.l.b16 %v282
  %v1426 = vunpack.c.l.b16 %v283
  %v1427 = vunpack.c.l.b16 %v284
  %v1428 = vunpack.c.l.b16 %v285
  %v1429 = vunpack.c.l.b16 %v286
  %v1430 = vunpack.c.l.b16 %v287
  %v1431 = vunpack.c.l.b16 %v288
  %v1432 = vunpack.c.l.b16 %v289
  %v1433 = vunpack.c.l.b16 %v290
  %v1434 = vunpack.c.l.b16 %v291
  %v1435 = vunpack.c.l.b16 %v292
  %v1436 = vunpack.c.l.b16 %v293
  %v1437 = vunpack.c.l.b16 %v294
  %v1438 = vunpack.c.l.b16 %v295
  %v1439 = vunpack.c.l.b16 %v296
  %v1440 = vunpack.c.l.b16 %v297
  %v1441 = vunpack.c.l.b16 %v298
  %v1442 = vunpack.c.l.b16 %v299
  %v1443 = vunpack.c.l.b16 %v300
  %v1444 = vunpack.c.l.b16 %v301
  %v1445 = vunpack.c.l.b16 %v302
  %v1446 = vunpack.c.l.b16 %v303
  %v1447 = vunpack.c.l.b16 %v304
  %v1448 = vunpack.c.l.b16 %v305
  %v1449 = vunpack.c.l.b16 %v306
  %v1450 = vunpack.c.l.b16 %v307
  %v1451 = vunpack.c.l.b16 %v308
  %v1452 = vunpack.c.l.b16 %v309
  %v1453 = vunpack.c.l.b16 %v310
  %v1454 = vunpack.c.l.b16 %v311
  %v1455 = vunpack.c.l.b16 %v312
  %v1456 = vunpack.c.l.b16 %v313
  %v1457 = vunpack.c.l.b16 %v314
  %v1458 = vunpack.c.l.b16 %v315
  %v1459 = vunpack.c.l.b16 %v316
  %v1460 = vunpack.c.l.b16 %v317
  %v1461 = vunpack.c.l.b16 %v318
  %v1462 = vunpack.c.l.b16 %v319
  %v1463 = vunpack.c.l.b16 %v320
  %v1464 = vunpack.c.l.b16 %v321
  %v1465 = vunpack.c.l.b16 %v322
  %v1466 = vunpack.c.l.b16 %v323
  %v1467 = vunpack.c.l.b16 %v324
  %v1468 = vunpack.c.l.b16 %v325
  %v1469 = vunpack.c.l.b16 %v326
  %v1470 = vunpack.c.l.b16 %v327
  %v1471 = vunpack.c.l.b16 %v328
  %v1472 = vunpack.c.l.b16 %v329
  %v1473 = vunpack.c.l.b16 %v330
  %v1474 = vunpack.c.l.b16 %v331
  %v1475 = vunpack.c.l.b16 %v332
  %v1476 = vunpack.c.l.b16 %v333
  %v1477 = vunpack.c.l.b16 %v334
  %v1478 = vunpack.c.l.b16 %v335
  %v1479 = vunpack.c.l.b16 %v336
  %v1480 = vunpack.c.l.b16 %v337
  %v1481 = vunpack.c.l.b16 %v338
  %v1482 = vunpack.c.l.b16 %v339
  %v1483 = vunpack.c.l.b16 %v340
  %v1484 = vunpack.c.l.b16 %v341
  %v1485 = vunpack.c.l.b16 %v342
  %v1486 = vunpack.c.l.b16 %v343
  %v1487 = vunpack.c.l.b16 %v344
  %v1488 = vunpack.c.l.b16 %v345
  %v1489 = vunpack.c.l.b16 %v346
  %v1490 = vunpack.c.l.b16 %v347
  %v1491 = vunpack.c.l.b16 %v348
  %v1492 = vunpack.c.l.b16 %v349
  %v1493 = vunpack.c.l.b16 %v350
  %v1494 = vunpack.c.l.b16 %v351
  %v1495 = vunpack.c.l.b16 %v352
  %v1496 = vunpack.c.l.b16 %v353
  %v1497 = vunpack.c.l.b16 %v354
  %v1498 = vunpack.c.l.b16 %v355
  %v1499 = vunpack.c.l.b16 %v356
  %v1500 = vunpack.c.l.b16 %v357
  %v1501 = vunpack.c.l.b16 %v358
  %v1502 = vunpack.c.l.b16 %v359
  %v1503 = vunpack.c.l.b16 %v360
  %v1504 = vunpack.c.l.b16 %v361
  %v1505 = vunpack.c.l.b16 %v362
  %v1506 = vunpack.c.l.b16 %v363
  %v1507 = vunpack.c.l.b16 %v364
  %v1508 = vunpack.c.l.b16 %v365
  %v1509 = vunpack.c.l.b16 %v366
  %v1510 = vunpack.c.l.b16 %v367
  %v1511 = vunpack.c.l.b16 %v368
  %v1512 = vunpack.c.l.b16 %v369
  %v1513 = vunpack.c.l.b16 %v370
  %v1514 = vunpack.c.l.b16 %v371
  %v1515 = vunpack.c.l.b16 %v372
  %v1516 = vunpack.c.l.b16 %v373
  %v1517 = vunpack.c.l.b16 %v374
  %v1518 = vunpack.c.l.b16 %v375
  %v1519 = vunpack.c.l.b16 %v376
  %v1520 = vunpack.c.l.b16 %v377
  %v1521 = vunpack.c.l.b16 %v378
  %v1522 = vunpack.c.l.b16 %v379
  %v1523 = vunpack.c.l.b16 %v380
  %v1524 = vunpack.c.l.b16 %v381
  %v1525 = vunpack.c.l.b16 %v382
  %v1526 = vunpack.c.l.b16 %v383
  %v1527 = vunpack.c.l.b16 %v384
  %v1528 = vunpack.c.l.b16 %v385
  %v1529 = vunpack.c.l.b16 %v386
  %v1530 = vunpack.c.l.b16 %v387
  %v1531 = vunpack.c.l.b16 %v388
  %v1532 = vunpack.c.l.b16 %v389
  %v1533 = vunpack.c.l.b16 %v390
  %v1534 = vunpack.c.l.b16 %v391
  %v1535 = vunpack.c.l.b16 %v392
  %v1536 = vunpack.c.l.b16 %v393
  %v1537 = vunpack.c.l.b16 %v394
  %v1538 = vunpack.c.l.b16 %v395
  %v1539 = vunpack.c.l.b16 %v396
  %v1540 = vunpack.c.l.b16 %v397
  %v1541 = vunpack.c.l.b16 %v398
  %v1542 = vunpack.c.l.b16 %v399
  %v1543 = vunpack.c.l.b16 %v400
  %v1544 = vunpack.c.l.b16 %v401
  %v1545 = vunpack.c.l.b16 %v402
  %v1546 = vunpack.c.l.b16 %v403
  %v1547 = vunpack.c.l.b16 %v404
  %v1548 = vunpack.c.l.b16 %v405
  %v1549 = vunpack.c.l.b16 %v406
  %v1550 = vunpack.c.l.b16 %v407
  %v1551 = vunpack.c.l.b16 %v408
  %v1552 = vunpack.c.l.b16 %v409
  %v1553 = vunpack.c.l.b16 %v410
  %v1554 = vunpack.c.l.b16 %v411
  %v1555 = vunpack.c.l.b16 %v412
  %v1556 = vunpack.c.l.b16 %v413
  %v1557 = vunpack.c.l.b16 %v414
  %v1558 = vunpack.c.l.b16 %v415
  %v1559 = vunpack.c.l.b16 %v416
  %v1560 = vunpack.c.l.b16 %v417
  %v1561 = vunpack.c.l.b16 %v418
  %v1562 = vunpack.c.l.b16 %v419
  %v1563 = vunpack.c.l.b16 %v420
  %v1564 = vunpack.c.l.b16 %v421
  %v1565 = vunpack.c.l.b16 %v422
  %v1566 = vunpack.c.l.b16 %v423
  %v1567 = vunpack.c.l.b16 %v424
  %v1568 = vunpack.c.l.b16 %v425
  %v1569 = vunpack.c.l.b16 %v426
  %v1570 = vunpack.c.l.b16 %v427
  %v1571 = vunpack.c.l.b16 %v428
  %v1572 = vunpack.c.l.b16 %v429
  %v1573 = vunpack.c.l.b16 %v430
  %v1574 = vunpack.c.l.b16 %v431
  %v1575 = vunpack.c.l.b16 %v432
  %v1576 = vunpack.c.l.b16 %v433
  %v1577 = vunpack.c.l.b16 %v434
  %v1578 = vunpack.c.l.b16 %v435
  %v1579 = vunpack.c.l.b16 %v436
  %v1580 = vunpack.c.l.b16 %v437
  %v1581 = vunpack.c.l.b16 %v438
  %v1582 = vunpack.c.l.b16 %v439
  %v1583 = vunpack.c.l.b16 %v440
  %v1584 = vunpack.c.l.b16 %v441
  %v1585 = vunpack.c.l.b16 %v442
  %v1586 = vunpack.c.l.b16 %v443
  %v1587 = vunpack.c.l.b16 %v444
  %v1588 = vunpack.c.l.b16 %v445
  %v1589 = vunpack.c.l.b16 %v446
  %v1590 = vunpack.c.l.b16 %v447
  %v1591 = vunpack.c.l.b16 %v448
  %v1592 = vunpack.c.l.b16 %v449
  %v1593 = vunpack.c.l.b16 %v450
  %v1594 = vunpack.c.l.b16 %v451
  %v1595 = vunpack.c.l.b16 %v452
  %v1596 = vunpack.c.l.b16 %v453
  %v1597 = vunpack.c.l.b16 %v454
  %v1598 = vunpack.c.l.b16 %v455
  %v1599 = vunpack.c.l.b16 %v456
  %v1600 = vunpack.c.l.b16 %v457
  %v1601 = vunpack.c.l.b16 %v458
  %v1602 = vunpack.c.l.b16 %v459
  %v1603 = vunpack.c.l.b16 %v460
  %v1604 = vunpack.c.l.b16 %v461
  %v1605 = vunpack.c.l.b16 %v462
  %v1606 = vunpack.c.l.b16 %v463
  %v1607 = vunpack.c.l.b16 %v464
  %v1608 = vunpack.c.l.b16 %v465
  %v1609 = vunpack.c.l.b16 %v466
  %v1610 = vunpack.c.l.b16 %v467
  %v1611 = vunpack.c.l.b16 %v468
  %v1612 = vunpack.c.l.b16 %v469
  %v1613 = vunpack.c.l.b16 %v470
  %v1614 = vunpack.c.l.b16 %v471
  %v1615 = vunpack.c.l.b16 %v472
  %v1616 = vunpack.c.l.b16 %v473
  %v1617 = vunpack.c.l.b16 %v474
  %v1618 = vunpack.c.l.b16 %v475
  %v1619 = vunpack.c.l.b16 %v476
  %v1620 = vunpack.c.l.b16 %v477
  %v1621 = vunpack.c.l.b16 %v478
  %v1622 = vunpack.c.l.b16 %v479
  %v1623 = vunpack.c.l.b16 %v480
  %v1624 = vunpack.c.l.b16 %v481
  %v1625 = vunpack.c.l.b16 %v482
  %v1626 = vunpack.c.l.b16 %v483
  %v1627 = vunpack.c.l.b16 %v484
  %v1628 = vunpack.c.l.b16 %v485
  %v1629 = vunpack.c.l.b16 %v486
  %v1630 = vunpack.c.l.b16 %v487
  %v1631 = vunpack.c.l.b16 %v488
  %v1632 = vunpack.c.l.b16 %v489
  %v1633 = vunpack.c.l.b16 %v490
  %v1634 = vunpack.c.l.b16 %v491
  %v1635 = vunpack.c.l.b16 %v492
  %v1636 = vunpack.c.l.b16 %v493
  %v1637 = vunpack.c.l.b16 %v494
  %v1638 = vunpack.c.l.b16 %v495
  %v1639 = vunpack.c.l.b16 %v496
  %v1640 = vunpack.c.l.b16 %v497
  %v1641 = vunpack.c.l.b16 %v498
  %v1642 = vunpack.c.l.b16 %v499
  %v1643 = vunpack.c.l.b16 %v500
  %v1644 = vunpack.c.l.b16 %v501
  %v1645 = vunpack.c.l.b16 %v502
  %v1646 = vunpack.c.l.b16 %v503
  %v1647 = vunpack.c.l.b16 %v504
  %v1648 = vunpack.c.l.b16 %v505
  %v1649 = vunpack.c.l.b16 %v506
  %v1650 = vunpack.c.l.b16 %v507
  %v1651 = vunpack.c.l.b16 %v508
  %v1652 = vunpack.c.l.b16 %v509
  %v1653 = vunpack.c.l.b16 %v510
  %v1654 = vunpack.c.l.b16 %v511
  %v1655 = vunpack.c.l.b16 %v512
  %v1656 = vunpack.c.l.b16 %v513
  %v1657 = vunpack.c.l.b16 %v514
  %v1658 = vunpack.c.l.b16 %v515
  %v1659 = vunpack.c.l.b16 %v516
  %v1660 = vunpack.c.l.b16 %v517
  %v1661 = vunpack.c.l.b16 %v518
  %v1662 = vunpack.c.l.b16 %v519
  %v1663 = vunpack.c.l.b16 %v520
  %v1664 = vunpack.c.l.b16 %v521
  %v1665 = vunpack.c.l.b16 %v522
  %v1666 = vunpack.c.l.b16 %v523
  %v1667 = vunpack.c.l.b16 %v524
  %v1668 = vunpack.c.l.b16 %v525
  %v1669 = vunpack.c.l.b16 %v526
  %v1670 = vunpack.c.l.b16 %v527
  %v1671 = vunpack.c.l.b16 %v528
  %v1672 = vunpack.c.l.b16 %v529
  %v1673 = vunpack.c.l.b16 %v530
  %v1674 = vunpack.c.l.b16 %v531
  %v1675 = vunpack.c.l.b16 %v532
  %v1676 = vunpack.c.l.b16 %v533
  %v1677 = vunpack.c.l.b16 %v534
  %v1678 = vunpack.c.l.b16 %v535
  %v1679 = vunpack.c.l.b16 %v536
  %v1680 = vunpack.c.l.b16 %v537
  %v1681 = vunpack.c.l.b16 %v538
  %v1682 = vunpack.c.l.b16 %v539
  %v1683 = vunpack.c.l.b16 %v540
  %v1684 = vunpack.c.l.b16 %v541
  %v1685 = vunpack.c.l.b16 %v542
  %v1686 = vunpack.c.l.b16 %v543
  %v1687 = vunpack.c.l.b16 %v544
  %v1688 = vunpack.c.l.b16 %v545
  %v1689 = vunpack.c.l.b16 %v546
  %v1690 = vunpack.c.l.b16 %v547
  %v1691 = vunpack.c.l.b16 %v548
  %v1692 = vpack.c.b16 %v1181, %v1180
  %v1693 = vpack.c.b16 %v1183, %v1182
  %v1694 = vpack.c.b16 %v1185, %v1184
  %v1695 = vpack.c.b16 %v1187, %v1186
  %v1696 = vpack.c.b16 %v1189, %v1188
  %v1697 = vpack.c.b16 %v1191, %v1190
  %v1698 = vpack.c.b16 %v1193, %v1192
  %v1699 = vpack.c.b16 %v1195, %v1194
  %v1700 = vpack.c.b16 %v1197, %v1196
  %v1701 = vpack.c.b16 %v1199, %v1198
  %v1702 = vpack.c.b16 %v1201, %v1200
  %v1703 = vpack.c.b16 %v1203, %v1202
  %v1704 = vpack.c.b16 %v1205, %v1204
  %v1705 = vpack.c.b16 %v1207, %v1206
  %v1706 = vpack.c.b16 %v1209, %v1208
  %v1707 = vpack.c.b16 %v1211, %v1210
  %v1708 = vpack.c.b16 %v1213, %v1212
  %v1709 = vpack.c.b16 %v1215, %v1214
  %v1710 = vpack.c.b16 %v1217, %v1216
  %v1711 = vpack.c.b16 %v1219, %v1218
  %v1712 = vpack.c.b16 %v1221, %v1220
  %v1713 = vpack.c.b16 %v1223, %v1222
  %v1714 = vpack.c.b16 %v1225, %v1224
  %v1715 = vpack.c.b16 %v1227, %v1226
  %v1716 = vpack.c.b16 %v1229, %v1228
  %v1717 = vpack.c.b16 %v1231, %v1230
  %v1718 = vpack.c.b16 %v1233, %v1232
  %v1719 = vpack.c.b16 %v1235, %v1234
  %v1720 = vpack.c.b16 %v1237, %v1236
  %v1721 = vpack.c.b16 %v1239, %v1238
  %v1722 = vpack.c.b16 %v1241, %v1240
  %v1723 = vpack.c.b16 %v1243, %v1242
  %v1724 = vpack.c.b16 %v1245, %v1244
  %v1725 = vpack.c.b16 %v1247, %v1246
  %v1726 = vpack.c.b16 %v1249, %v1248
  %v1727 = vpack.c.b16 %v1251, %v1250
  %v1728 = vpack.c.b16 %v1253, %v1252
  %v1729 = vpack.c.b16 %v1255, %v1254
  %v1730 = vpack.c.b16 %v1257, %v1256
  %v1731 = vpack.c.b16 %v1259, %v1258
  %v1732 = vpack.c.b16 %v1261, %v1260
  %v1733 = vpack.c.b16 %v1263, %v1262
  %v1734 = vpack.c.b16 %v1265, %v1264
  %v1735 = vpack.c.b16 %v1267, %v1266
  %v1736 = vpack.c.b16 %v1269, %v1268
  %v1737 = vpack.c.b16 %v1271, %v1270
  %v1738 = vpack.c.b16 %v1273, %v1272
  %v1739 = vpack.c.b16 %v1275, %v1274
  %v1740 = vpack.c.b16 %v1277, %v1276
  %v1741 = vpack.c.b16 %v1279, %v1278
  %v1742 = vpack.c.b16 %v1281, %v1280
  %v1743 = vpack.c.b16 %v1283, %v1282
  %v1744 = vpack.c.b16 %v1285, %v1284
  %v1745 = vpack.c.b16 %v1287, %v1286
  %v1746 = vpack.c.b16 %v1289, %v1288
  %v1747 = vpack.c.b16 %v1291, %v1290
  %v1748 = vpack.c.b16 %v1293, %v1292
  %v1749 = vpack.c.b16 %v1295, %v1294
  %v1750 = vpack.c.b16 %v1297, %v1296
  %v1751 = vpack.c.b16 %v1299, %v1298
  %v1752 = vpack.c.b16 %v1301, %v1300
  %v1753 = vpack.c.b16 %v1303, %v1302
  %v1754 = vpack.c.b16 %v1305, %v1304
  %v1755 = vpack.c.b16 %v1307, %v1306
  %v1756 = vpack.c.b16 %v1309, %v1308
  %v1757 = vpack.c.b16 %v1311, %v1310
  %v1758 = vpack.c.b16 %v1313, %v1312
  %v1759 = vpack.c.b16 %v1315, %v1314
  %v1760 = vpack.c.b16 %v1317, %v1316
  %v1761 = vpack.c.b16 %v1319, %v1318
  %v1762 = vpack.c.b16 %v1321, %v1320
  %v1763 = vpack.c.b16 %v1323, %v1322
  %v1764 = vpack.c.b16 %v1325, %v1324
  %v1765 = vpack.c.b16 %v1327, %v1326
  %v1766 = vpack.c.b16 %v1329, %v1328
  %v1767 = vpack.c.b16 %v1331, %v1330
  %v1768 = vpack.c.b16 %v1333, %v1332
  %v1769 = vpack.c.b16 %v1335, %v1334
  %v1770 = vpack.c.b16 %v1337, %v1336
  %v1771 = vpack.c.b16 %v1339, %v1338
  %v1772 = vpack.c.b16 %v1341, %v1340
  %v1773 = vpack.c.b16 %v1343, %v1342
  %v1774 = vpack.c.b16 %v1345, %v1344
  %v1775 = vpack.c.b16 %v1347, %v1346
  %v1776 = vpack.c.b16 %v1349, %v1348
  %v1777 = vpack.c.b16 %v1351, %v1350
  %v1778 = vpack.c.b16 %v1353, %v1352
  %v1779 = vpack.c.b16 %v1355, %v1354
  %v1780 = vpack.c.b16 %v1357, %v1356
  %v1781 = vpack.c.b16 %v1359, %v1358
  %v1782 = vpack.c.b16 %v1361, %v1360
  %v1783 = vpack.c.b16 %v1363, %v1362
  %v1784 = vpack.c.b16 %v1365, %v1364
  %v1785 = vpack.c.b16 %v1367, %v1366
  %v1786 = vpack.c.b16 %v1369, %v1368
  %v1787 = vpack.c.b16 %v1371, %v1370
  %v1788 = vpack.c.b16 %v1373, %v1372
  %v1789 = vpack.c.b16 %v1375, %v1374
  %v1790 = vpack.c.b16 %v1377, %v1376
  %v1791 = vpack.c.b16 %v1379, %v1378
  %v1792 = vpack.c.b16 %v1381, %v1380
  %v1793 = vpack.c.b16 %v1383, %v1382
  %v1794 = vpack.c.b16 %v1385, %v1384
  %v1795 = vpack.c.b16 %v1387, %v1386
  %v1796 = vpack.c.b16 %v1389, %v1388
  %v1797 = vpack.c.b16 %v1391, %v1390
  %v1798 = vpack.c.b16 %v1393, %v1392
  %v1799 = vpack.c.b16 %v1395, %v1394
  %v1800 = vpack.c.b16 %v1397, %v1396
  %v1801 = vpack.c.b16 %v1399, %v1398
  %v1802 = vpack.c.b16 %v1401, %v1400
  %v1803 = vpack.c.b16 %v1403, %v1402
  %v1804 = vpack.c.b16 %v1405, %v1404
  %v1805 = vpack.c.b16 %v1407, %v1406
  %v1806 = vpack.c.b16 %v1409, %v1408
  %v1807 = vpack.c.b16 %v1411, %v1410
  %v1808 = vpack.c.b16 %v1413, %v1412
  %v1809 = vpack.c.b16 %v1415, %v1414
  %v1810 = vpack.c.b16 %v1417, %v1416
  %v1811 = vpack.c.b16 %v1419, %v1418
  %v1812 = vpack.c.b16 %v1421, %v1420
  %v1813 = vpack.c.b16 %v1423, %v1422
  %v1814 = vpack.c.b16 %v1425, %v1424
  %v1815 = vpack.c.b16 %v1427, %v1426
  %v1816 = vpack.c.b16 %v1429, %v1428
  %v1817 = vpack.c.b16 %v1431, %v1430
  %v1818 = vpack.c.b16 %v1433, %v1432
  %v1819 = vpack.c.b16 %v1435, %v1434
  %v1820 = vpack.c.b16 %v1437, %v1436
  %v1821 = vpack.c.b16 %v1439, %v1438
  %v1822 = vpack.c.b16 %v1441, %v1440
  %v1823 = vpack.c.b16 %v1443, %v1442
  %v1824 = vpack.c.b16 %v1445, %v1444
  %v1825 = vpack.c.b16 %v1447, %v1446
  %v1826 = vpack.c.b16 %v1449, %v1448
  %v1827 = vpack.c.b16 %v1451, %v1450
  %v1828 = vpack.c.b16 %v1453, %v1452
  %v1829 = vpack.c.b16 %v1455, %v1454
  %v1830 = vpack.c.b16 %v1457, %v1456
  %v1831 = vpack.c.b16 %v1459, %v1458
  %v1832 = vpack.c.b16 %v1461, %v1460
  %v1833 = vpack.c.b16 %v1463, %v1462
  %v1834 = vpack.c.b16 %v1465, %v1464
  %v1835 = vpack.c.b16 %v1467, %v1466
  %v1836 = vpack.c.b16 %v1469, %v1468
  %v1837 = vpack.c.b16 %v1471, %v1470
  %v1838 = vpack.c.b16 %v1473, %v1472
  %v1839 = vpack.c.b16 %v1475, %v1474
  %v1840 = vpack.c.b16 %v1477, %v1476
  %v1841 = vpack.c.b16 %v1479, %v1478
  %v1842 = vpack.c.b16 %v1481, %v1480
  %v1843 = vpack.c.b16 %v1483, %v1482
  %v1844 = vpack.c.b16 %v1485, %v1484
  %v1845 = vpack.c.b16 %v1487, %v1486
  %v1846 = vpack.c.b16 %v1489, %v1488
  %v1847 = vpack.c.b16 %v1491, %v1490
  %v1848 = vpack.c.b16 %v1493, %v1492
  %v1849 = vpack.c.b16 %v1495, %v1494
  %v1850 = vpack.c.b16 %v1497, %v1496
  %v1851 = vpack.c.b16 %v1499, %v1498
  %v1852 = vpack.c.b16 %v1501, %v1500
  %v1853 = vpack.c.b16 %v1503, %v1502
  %v1854 = vpack.c.b16 %v1505, %v1504
  %v1855 = vpack.c.b16 %v1507, %v1506
  %v1856 = vpack.c.b16 %v1509, %v1508
  %v1857 = vpack.c.b16 %v1511, %v1510
  %v1858 = vpack.c.b16 %v1513, %v1512
  %v1859 = vpack.c.b16 %v1515, %v1514
  %v1860 = vpack.c.b16 %v1517, %v1516
  %v1861 = vpack.c.b16 %v1519, %v1518
  %v1862 = vpack.c.b16 %v1521, %v1520
  %v1863 = vpack.c.b16 %v1523, %v1522
  %v1864 = vpack.c.b16 %v1525, %v1524
  %v1865 = vpack.c.b16 %v1527, %v1526
  %v1866 = vpack.c.b16 %v1529, %v1528
  %v1867 = vpack.c.b16 %v1531, %v1530
  %v1868 = vpack.c.b16 %v1533, %v1532
  %v1869 = vpack.c.b16 %v1535, %v1534
  %v1870 = vpack.c.b16 %v1537, %v1536
  %v1871 = vpack.c.b16 %v1539, %v1538
  %v1872 = vpack.c.b16 %v1541, %v1540
  %v1873 = vpack.c.b16 %v1543, %v1542
  %v1874 = vpack.c.b16 %v1545, %v1544
  %v1875 = vpack.c.b16 %v1547, %v1546
  %v1876 = vpack.c.b16 %v1549, %v1548
  %v1877 = vpack.c.b16 %v1551, %v1550
  %v1878 = vpack.c.b16 %v1553, %v1552
  %v1879 = vpack.c.b16 %v1555, %v1554
  %v1880 = vpack.c.b16 %v1557, %v1556
  %v1881 = vpack.c.b16 %v1559, %v1558
  %v1882 = vpack.c.b16 %v1561, %v1560
  %v1883 = vpack.c.b16 %v1563, %v1562
  %v1884 = vpack.c.b16 %v1565, %v1564
  %v1885 = vpack.c.b16 %v1567, %v1566
  %v1886 = vpack.c.b16 %v1569, %v1568
  %v1887 = vpack.c.b16 %v1571, %v1570
  %v1888 = vpack.c.b16 %v1573, %v1572
  %v1889 = vpack.c.b16 %v1575, %v1574
  %v1890 = vpack.c.b16 %v1577, %v1576
  %v1891 = vpack.c.b16 %v1579, %v1578
  %v1892 = vpack.c.b16 %v1581, %v1580
  %v1893 = vpack.c.b16 %v1583, %v1582
  %v1894 = vpack.c.b16 %v1585, %v1584
  %v1895 = vpack.c.b16 %v1587, %v1586
  %v1896 = vpack.c.b16 %v1589, %v1588
  %v1897 = vpack.c.b16 %v1591, %v1590
  %v1898 = vpack.c.b16 %v1593, %v1592
  %v1899 = vpack.c.b16 %v1595, %v1594
  %v1900 = vpack.c.b16 %v1597, %v1596
  %v1901 = vpack.c.b16 %v1599, %v1598
  %v1902 = vpack.c.b16 %v1601, %v1600
  %v1903 = vpack.c.b16 %v1603, %v1602
  %v1904 = vpack.c.b16 %v1605, %v1604
  %v1905 = vpack.c.b16 %v1607, %v1606
  %v1906 = vpack.c.b16 %v1609, %v1608
  %v1907 = vpack.c.b16 %v1611, %v1610
  %v1908 = vpack.c.b16 %v1613, %v1612
  %v1909 = vpack.c.b16 %v1615, %v1614
  %v1910 = vpack.c.b16 %v1617, %v1616
  %v1911 = vpack.c.b16 %v1619, %v1618
  %v1912 = vpack.c.b16 %v1621, %v1620
  %v1913 = vpack.c.b16 %v1623, %v1622
  %v1914 = vpack.c.b16 %v1625, %v1624
  %v1915 = vpack.c.b16 %v1627, %v1626
  %v1916 = vpack.c.b16 %v1629, %v1628
  %v1917 = vpack.c.b16 %v1631, %v1630
  %v1918 = vpack.c.b16 %v1633, %v1632
  %v1919 = vpack.c.b16 %v1635, %v1634
  %v1920 = vpack.c.b16 %v1637, %v1636
  %v1921 = vpack.c.b16 %v1639, %v1638
  %v1922 = vpack.c.b16 %v1641, %v1640
  %v1923 = vpack.c.b16 %v1643, %v1642
  %v1924 = vpack.c.b16 %v1645, %v1644
  %v1925 = vpack.c.b16 %v1647, %v1646
  %v1926 = vpack.c.b16 %v1649, %v1648
  %v1927 = vpack.c.b16 %v1651, %v1650
  %v1928 = vpack.c.b16 %v1653, %v1652
  %v1929 = vpack.c.b16 %v1655, %v1654
  %v1930 = vpack.c.b16 %v1657, %v1656
  %v1931 = vpack.c.b16 %v1659, %v1658
  %v1932 = vpack.c.b16 %v1661, %v1660
  %v1933 = vpack.c.b16 %v1663, %v1662
  %v1934 = vpack.c.b16 %v1665, %v1664
  %v1935 = vpack.c.b16 %v1667, %v1666
  %v1936 = vpack.c.b16 %v1669, %v1668
  %v1937 = vpack.c.b16 %v1671, %v1670
  %v1938 = vpack.c.b16 %v1673, %v1672
  %v1939 = vpack.c.b16 %v1675, %v1674
  %v1940 = vpack.c.b16 %v1677, %v1676
  %v1941 = vpack.c.b16 %v1679, %v1678
  %v1942 = vpack.c.b16 %v1681, %v1680
  %v1943 = vpack.c.b16 %v1683, %v1682
  %v1944 = vpack.c.b16 %v1685, %v1684
  %v1945 = vpack.c.b16 %v1687, %v1686
  %v1946 = vpack.c.b16 %v1689, %v1688
  %v1947 = vpack.c.b16 %v1691, %v1690
  %2204 = vmatprep.subr.bf16.mxu0 0
  %2205 = vmatpush1.bf16.msra.mxu0 %v1692
  %2206 = vmatprep.subr.bf16.mxu0 0
  %2207 = vmatpush1.bf16.msra.mxu0 %v1693
  %2208 = vmatprep.subr.bf16.mxu0 0
  %2209 = vmatpush1.bf16.msra.mxu0 %v1694
  %2210 = vmatprep.subr.bf16.mxu0 0
  %2211 = vmatpush1.bf16.msra.mxu0 %v1695
  %2212 = vmatprep.subr.bf16.mxu0 0
  %2213 = vmatpush1.bf16.msra.mxu0 %v1696
  %2214 = vmatprep.subr.bf16.mxu0 0
  %2215 = vmatpush1.bf16.msra.mxu0 %v1697
  %2216 = vmatprep.subr.bf16.mxu0 0
  %2217 = vmatpush1.bf16.msra.mxu0 %v1698
  %2218 = vmatprep.subr.bf16.mxu0 0
  %2219 = vmatpush1.bf16.msra.mxu0 %v1699
  %2220 = vmatprep.subr.bf16.mxu0 0
  %2221 = vmatpush1.bf16.msra.mxu0 %v1700
  %2222 = vmatprep.subr.bf16.mxu0 0
  %2223 = vmatpush1.bf16.msra.mxu0 %v1701
  %2224 = vmatprep.subr.bf16.mxu0 0
  %2225 = vmatpush1.bf16.msra.mxu0 %v1702
  %2226 = vmatprep.subr.bf16.mxu0 0
  %2227 = vmatpush1.bf16.msra.mxu0 %v1703
  %2228 = vmatprep.subr.bf16.mxu0 0
  %2229 = vmatpush1.bf16.msra.mxu0 %v1704
  %2230 = vmatprep.subr.bf16.mxu0 0
  %2231 = vmatpush1.bf16.msra.mxu0 %v1705
  %2232 = vmatprep.subr.bf16.mxu0 0
  %2233 = vmatpush1.bf16.msra.mxu0 %v1706
  %2234 = vmatprep.subr.bf16.mxu0 0
  %2235 = vmatpush1.bf16.msra.mxu0 %v1707
  %2236 = vmatprep.mubr.bf16.mxu0 %v605
  %2237 = vmatmul.mubr.bf16.gmra.mrb[0].mxu0 %v604
  %v2238 = vpop.f32.mrb[0].mxu0
  %v2239 = vadd.f32 %v554, %v2238
  %v2240 = vpop.f32.mrb[0].mxu0
  %v2241 = vpop.f32.mrb[0].mxu0
  %v2242 = vpop.f32.mrb[0].mxu0
  %2243 = vdwg.mxu0
  %2244 = vmatprep.subr.bf16.mxu0 0
  %2245 = vmatpush1.bf16.msra.mxu0 %v1708
  %2246 = vmatprep.subr.bf16.mxu0 0
  %2247 = vmatpush1.bf16.msra.mxu0 %v1709
  %2248 = vmatprep.subr.bf16.mxu0 0
  %2249 = vmatpush1.bf16.msra.mxu0 %v1710
  %2250 = vmatprep.subr.bf16.mxu0 0
  %2251 = vmatpush1.bf16.msra.mxu0 %v1711
  %2252 = vmatprep.subr.bf16.mxu0 0
  %2253 = vmatpush1.bf16.msra.mxu0 %v1712
  %2254 = vmatprep.subr.bf16.mxu0 0
  %2255 = vmatpush1.bf16.msra.mxu0 %v1713
  %2256 = vmatprep.subr.bf16.mxu0 0
  %2257 = vmatpush1.bf16.msra.mxu0 %v1714
  %2258 = vmatprep.subr.bf16.mxu0 0
  %2259 = vmatpush1.bf16.msra.mxu0 %v1715
  %2260 = vmatprep.subr.bf16.mxu0 0
  %2261 = vmatpush1.bf16.msra.mxu0 %v1716
  %2262 = vmatprep.subr.bf16.mxu0 0
  %2263 = vmatpush1.bf16.msra.mxu0 %v1717
  %2264 = vmatprep.subr.bf16.mxu0 0
  %2265 = vmatpush1.bf16.msra.mxu0 %v1718
  %2266 = vmatprep.subr.bf16.mxu0 0
  %2267 = vmatpush1.bf16.msra.mxu0 %v1719
  %2268 = vmatprep.subr.bf16.mxu0 0
  %2269 = vmatpush1.bf16.msra.mxu0 %v1720
  %2270 = vmatprep.subr.bf16.mxu0 0
  %2271 = vmatpush1.bf16.msra.mxu0 %v1721
  %2272 = vmatprep.subr.bf16.mxu0 0
  %2273 = vmatpush1.bf16.msra.mxu0 %v1722
  %2274 = vmatprep.subr.bf16.mxu0 0
  %2275 = vmatpush1.bf16.msra.mxu0 %v1723
  %2276 = vmatprep.mubr.bf16.mxu0 %v607
  %2277 = vmatmul.mubr.bf16.gmra.mrb[0].mxu0 %v606
  %v2278 = vpop.f32.mrb[0].mxu0
  %v2279 = vadd.f32 %v2239, %v2278
  %v2280 = vpop.f32.mrb[0].mxu0
  %v2281 = vpop.f32.mrb[0].mxu0
  %v2282 = vpop.f32.mrb[0].mxu0
  %2283 = vdwg.mxu0
  %2284 = vmatprep.subr.bf16.mxu0 0
  %2285 = vmatpush1.bf16.msra.mxu0 %v1724
  %2286 = vmatprep.subr.bf16.mxu0 0
  %2287 = vmatpush1.bf16.msra.mxu0 %v1725
  %2288 = vmatprep.subr.bf16.mxu0 0
  %2289 = vmatpush1.bf16.msra.mxu0 %v1726
  %2290 = vmatprep.subr.bf16.mxu0 0
  %2291 = vmatpush1.bf16.msra.mxu0 %v1727
  %2292 = vmatprep.subr.bf16.mxu0 0
  %2293 = vmatpush1.bf16.msra.mxu0 %v1728
  %2294 = vmatprep.subr.bf16.mxu0 0
  %2295 = vmatpush1.bf16.msra.mxu0 %v1729
  %2296 = vmatprep.subr.bf16.mxu0 0
  %2297 = vmatpush1.bf16.msra.mxu0 %v1730
  %2298 = vmatprep.subr.bf16.mxu0 0
  %2299 = vmatpush1.bf16.msra.mxu0 %v1731
  %2300 = vmatprep.subr.bf16.mxu0 0
  %2301 = vmatpush1.bf16.msra.mxu0 %v1732
  %2302 = vmatprep.subr.bf16.mxu0 0
  %2303 = vmatpush1.bf16.msra.mxu0 %v1733
  %2304 = vmatprep.subr.bf16.mxu0 0
  %2305 = vmatpush1.bf16.msra.mxu0 %v1734
  %2306 = vmatprep.subr.bf16.mxu0 0
  %2307 = vmatpush1.bf16.msra.mxu0 %v1735
  %2308 = vmatprep.subr.bf16.mxu0 0
  %2309 = vmatpush1.bf16.msra.mxu0 %v1736
  %2310 = vmatprep.subr.bf16.mxu0 0
  %2311 = vmatpush1.bf16.msra.mxu0 %v1737
  %2312 = vmatprep.subr.bf16.mxu0 0
  %2313 = vmatpush1.bf16.msra.mxu0 %v1738
  %2314 = vmatprep.subr.bf16.mxu0 0
  %2315 = vmatpush1.bf16.msra.mxu0 %v1739
  %2316 = vmatprep.mubr.bf16.mxu0 %v609
  %2317 = vmatmul.mubr.bf16.gmra.mrb[0].mxu0 %v608
  %v2318 = vpop.f32.mrb[0].mxu0
  %v2319 = vadd.f32 %v2279, %v2318
  %v2320 = vpop.f32.mrb[0].mxu0
  %v2321 = vpop.f32.mrb[0].mxu0
  %v2322 = vpop.f32.mrb[0].mxu0
  %2323 = vdwg.mxu0
  %2324 = vmatprep.subr.bf16.mxu0 0
  %2325 = vmatpush1.bf16.msra.mxu0 %v1740
  %2326 = vmatprep.subr.bf16.mxu0 0
  %2327 = vmatpush1.bf16.msra.mxu0 %v1741
  %2328 = vmatprep.subr.bf16.mxu0 0
  %2329 = vmatpush1.bf16.msra.mxu0 %v1742
  %2330 = vmatprep.subr.bf16.mxu0 0
  %2331 = vmatpush1.bf16.msra.mxu0 %v1743
  %2332 = vmatprep.subr.bf16.mxu0 0
  %2333 = vmatpush1.bf16.msra.mxu0 %v1744
  %2334 = vmatprep.subr.bf16.mxu0 0
  %2335 = vmatpush1.bf16.msra.mxu0 %v1745
  %2336 = vmatprep.subr.bf16.mxu0 0
  %2337 = vmatpush1.bf16.msra.mxu0 %v1746
  %2338 = vmatprep.subr.bf16.mxu0 0
  %2339 = vmatpush1.bf16.msra.mxu0 %v1747
  %2340 = vmatprep.subr.bf16.mxu0 0
  %2341 = vmatpush1.bf16.msra.mxu0 %v1748
  %2342 = vmatprep.subr.bf16.mxu0 0
  %2343 = vmatpush1.bf16.msra.mxu0 %v1749
  %2344 = vmatprep.subr.bf16.mxu0 0
  %2345 = vmatpush1.bf16.msra.mxu0 %v1750
  %2346 = vmatprep.subr.bf16.mxu0 0
  %2347 = vmatpush1.bf16.msra.mxu0 %v1751
  %2348 = vmatprep.subr.bf16.mxu0 0
  %2349 = vmatpush1.bf16.msra.mxu0 %v1752
  %2350 = vmatprep.subr.bf16.mxu0 0
  %2351 = vmatpush1.bf16.msra.mxu0 %v1753
  %2352 = vmatprep.subr.bf16.mxu0 0
  %2353 = vmatpush1.bf16.msra.mxu0 %v1754
  %2354 = vmatprep.subr.bf16.mxu0 0
  %2355 = vmatpush1.bf16.msra.mxu0 %v1755
  %2356 = vmatprep.mubr.bf16.mxu0 %v611
  %2357 = vmatmul.mubr.bf16.gmra.mrb[0].mxu0 %v610
  %v2358 = vpop.f32.mrb[0].mxu0
  %v2359 = vadd.f32 %v2319, %v2358
  %v2360 = vpop.f32.mrb[0].mxu0
  %v2361 = vpop.f32.mrb[0].mxu0
  %v2362 = vpop.f32.mrb[0].mxu0
  %2363 = vdwg.mxu0
  %2364 = vmatprep.subr.bf16.mxu0 0
  %2365 = vmatpush1.bf16.msra.mxu0 %v1756
  %2366 = vmatprep.subr.bf16.mxu0 0
  %2367 = vmatpush1.bf16.msra.mxu0 %v1757
  %2368 = vmatprep.subr.bf16.mxu0 0
  %2369 = vmatpush1.bf16.msra.mxu0 %v1758
  %2370 = vmatprep.subr.bf16.mxu0 0
  %2371 = vmatpush1.bf16.msra.mxu0 %v1759
  %2372 = vmatprep.subr.bf16.mxu0 0
  %2373 = vmatpush1.bf16.msra.mxu0 %v1760
  %2374 = vmatprep.subr.bf16.mxu0 0
  %2375 = vmatpush1.bf16.msra.mxu0 %v1761
  %2376 = vmatprep.subr.bf16.mxu0 0
  %2377 = vmatpush1.bf16.msra.mxu0 %v1762
  %2378 = vmatprep.subr.bf16.mxu0 0
  %2379 = vmatpush1.bf16.msra.mxu0 %v1763
  %2380 = vmatprep.subr.bf16.mxu0 0
  %2381 = vmatpush1.bf16.msra.mxu0 %v1764
  %2382 = vmatprep.subr.bf16.mxu0 0
  %2383 = vmatpush1.bf16.msra.mxu0 %v1765
  %2384 = vmatprep.subr.bf16.mxu0 0
  %2385 = vmatpush1.bf16.msra.mxu0 %v1766
  %2386 = vmatprep.subr.bf16.mxu0 0
  %2387 = vmatpush1.bf16.msra.mxu0 %v1767
  %2388 = vmatprep.subr.bf16.mxu0 0
  %2389 = vmatpush1.bf16.msra.mxu0 %v1768
  %2390 = vmatprep.subr.bf16.mxu0 0
  %2391 = vmatpush1.bf16.msra.mxu0 %v1769
  %2392 = vmatprep.subr.bf16.mxu0 0
  %2393 = vmatpush1.bf16.msra.mxu0 %v1770
  %2394 = vmatprep.subr.bf16.mxu0 0
  %2395 = vmatpush1.bf16.msra.mxu0 %v1771
  %2396 = vmatprep.mubr.bf16.mxu0 %v613
  %2397 = vmatmul.mubr.bf16.gmra.mrb[0].mxu0 %v612
  %v2398 = vpop.f32.mrb[0].mxu0
  %v2399 = vadd.f32 %v2359, %v2398
  %v2400 = vpop.f32.mrb[0].mxu0
  %v2401 = vpop.f32.mrb[0].mxu0
  %v2402 = vpop.f32.mrb[0].mxu0
  %2403 = vdwg.mxu0
  %2404 = vmatprep.subr.bf16.mxu0 0
  %2405 = vmatpush1.bf16.msra.mxu0 %v1772
  %2406 = vmatprep.subr.bf16.mxu0 0
  %2407 = vmatpush1.bf16.msra.mxu0 %v1773
  %2408 = vmatprep.subr.bf16.mxu0 0
  %2409 = vmatpush1.bf16.msra.mxu0 %v1774
  %2410 = vmatprep.subr.bf16.mxu0 0
  %2411 = vmatpush1.bf16.msra.mxu0 %v1775
  %2412 = vmatprep.subr.bf16.mxu0 0
  %2413 = vmatpush1.bf16.msra.mxu0 %v1776
  %2414 = vmatprep.subr.bf16.mxu0 0
  %2415 = vmatpush1.bf16.msra.mxu0 %v1777
  %2416 = vmatprep.subr.bf16.mxu0 0
  %2417 = vmatpush1.bf16.msra.mxu0 %v1778
  %2418 = vmatprep.subr.bf16.mxu0 0
  %2419 = vmatpush1.bf16.msra.mxu0 %v1779
  %2420 = vmatprep.subr.bf16.mxu0 0
  %2421 = vmatpush1.bf16.msra.mxu0 %v1780
  %2422 = vmatprep.subr.bf16.mxu0 0
  %2423 = vmatpush1.bf16.msra.mxu0 %v1781
  %2424 = vmatprep.subr.bf16.mxu0 0
  %2425 = vmatpush1.bf16.msra.mxu0 %v1782
  %2426 = vmatprep.subr.bf16.mxu0 0
  %2427 = vmatpush1.bf16.msra.mxu0 %v1783
  %2428 = vmatprep.subr.bf16.mxu0 0
  %2429 = vmatpush1.bf16.msra.mxu0 %v1784
  %2430 = vmatprep.subr.bf16.mxu0 0
  %2431 = vmatpush1.bf16.msra.mxu0 %v1785
  %2432 = vmatprep.subr.bf16.mxu0 0
  %2433 = vmatpush1.bf16.msra.mxu0 %v1786
  %2434 = vmatprep.subr.bf16.mxu0 0
  %2435 = vmatpush1.bf16.msra.mxu0 %v1787
  %2436 = vmatprep.mubr.bf16.mxu0 %v615
  %2437 = vmatmul.mubr.bf16.gmra.mrb[0].mxu0 %v614
  %v2438 = vpop.f32.mrb[0].mxu0
  %v2439 = vadd.f32 %v2399, %v2438
  %v2440 = vpop.f32.mrb[0].mxu0
  %v2441 = vpop.f32.mrb[0].mxu0
  %v2442 = vpop.f32.mrb[0].mxu0
  %2443 = vdwg.mxu0
  %2444 = vmatprep.subr.bf16.mxu0 0
  %2445 = vmatpush1.bf16.msra.mxu0 %v1788
  %2446 = vmatprep.subr.bf16.mxu0 0
  %2447 = vmatpush1.bf16.msra.mxu0 %v1789
  %2448 = vmatprep.subr.bf16.mxu0 0
  %2449 = vmatpush1.bf16.msra.mxu0 %v1790
  %2450 = vmatprep.subr.bf16.mxu0 0
  %2451 = vmatpush1.bf16.msra.mxu0 %v1791
  %2452 = vmatprep.subr.bf16.mxu0 0
  %2453 = vmatpush1.bf16.msra.mxu0 %v1792
  %2454 = vmatprep.subr.bf16.mxu0 0
  %2455 = vmatpush1.bf16.msra.mxu0 %v1793
  %2456 = vmatprep.subr.bf16.mxu0 0
  %2457 = vmatpush1.bf16.msra.mxu0 %v1794
  %2458 = vmatprep.subr.bf16.mxu0 0
  %2459 = vmatpush1.bf16.msra.mxu0 %v1795
  %2460 = vmatprep.subr.bf16.mxu0 0
  %2461 = vmatpush1.bf16.msra.mxu0 %v1796
  %2462 = vmatprep.subr.bf16.mxu0 0
  %2463 = vmatpush1.bf16.msra.mxu0 %v1797
  %2464 = vmatprep.subr.bf16.mxu0 0
  %2465 = vmatpush1.bf16.msra.mxu0 %v1798
  %2466 = vmatprep.subr.bf16.mxu0 0
  %2467 = vmatpush1.bf16.msra.mxu0 %v1799
  %2468 = vmatprep.subr.bf16.mxu0 0
  %2469 = vmatpush1.bf16.msra.mxu0 %v1800
  %2470 = vmatprep.subr.bf16.mxu0 0
  %2471 = vmatpush1.bf16.msra.mxu0 %v1801
  %2472 = vmatprep.subr.bf16.mxu0 0
  %2473 = vmatpush1.bf16.msra.mxu0 %v1802
  %2474 = vmatprep.subr.bf16.mxu0 0
  %2475 = vmatpush1.bf16.msra.mxu0 %v1803
  %2476 = vmatprep.mubr.bf16.mxu0 %v617
  %2477 = vmatmul.mubr.bf16.gmra.mrb[0].mxu0 %v616
  %v2478 = vpop.f32.mrb[0].mxu0
  %v2479 = vadd.f32 %v2439, %v2478
  %v2480 = vpop.f32.mrb[0].mxu0
  %v2481 = vpop.f32.mrb[0].mxu0
  %v2482 = vpop.f32.mrb[0].mxu0
  %2483 = vdwg.mxu0
  %2484 = vmatprep.subr.bf16.mxu0 0
  %2485 = vmatpush1.bf16.msra.mxu0 %v1804
  %2486 = vmatprep.subr.bf16.mxu0 0
  %2487 = vmatpush1.bf16.msra.mxu0 %v1805
  %2488 = vmatprep.subr.bf16.mxu0 0
  %2489 = vmatpush1.bf16.msra.mxu0 %v1806
  %2490 = vmatprep.subr.bf16.mxu0 0
  %2491 = vmatpush1.bf16.msra.mxu0 %v1807
  %2492 = vmatprep.subr.bf16.mxu0 0
  %2493 = vmatpush1.bf16.msra.mxu0 %v1808
  %2494 = vmatprep.subr.bf16.mxu0 0
  %2495 = vmatpush1.bf16.msra.mxu0 %v1809
  %2496 = vmatprep.subr.bf16.mxu0 0
  %2497 = vmatpush1.bf16.msra.mxu0 %v1810
  %2498 = vmatprep.subr.bf16.mxu0 0
  %2499 = vmatpush1.bf16.msra.mxu0 %v1811
  %2500 = vmatprep.subr.bf16.mxu0 0
  %2501 = vmatpush1.bf16.msra.mxu0 %v1812
  %2502 = vmatprep.subr.bf16.mxu0 0
  %2503 = vmatpush1.bf16.msra.mxu0 %v1813
  %2504 = vmatprep.subr.bf16.mxu0 0
  %2505 = vmatpush1.bf16.msra.mxu0 %v1814
  %2506 = vmatprep.subr.bf16.mxu0 0
  %2507 = vmatpush1.bf16.msra.mxu0 %v1815
  %2508 = vmatprep.subr.bf16.mxu0 0
  %2509 = vmatpush1.bf16.msra.mxu0 %v1816
  %2510 = vmatprep.subr.bf16.mxu0 0
  %2511 = vmatpush1.bf16.msra.mxu0 %v1817
  %2512 = vmatprep.subr.bf16.mxu0 0
  %2513 = vmatpush1.bf16.msra.mxu0 %v1818
  %2514 = vmatprep.subr.bf16.mxu0 0
  %2515 = vmatpush1.bf16.msra.mxu0 %v1819
  %2516 = vmatprep.mubr.bf16.mxu0 %v619
  %2517 = vmatmul.mubr.bf16.gmra.mrb[0].mxu0 %v618
  %v2518 = vpop.f32.mrb[0].mxu0
  %v2519 = vadd.f32 %v2479, %v2518
  %v2520 = vpop.f32.mrb[0].mxu0
  %v2521 = vpop.f32.mrb[0].mxu0
  %v2522 = vpop.f32.mrb[0].mxu0
  %2523 = vdwg.mxu0
  %2524 = vmatprep.subr.bf16.mxu0 0
  %2525 = vmatpush1.bf16.msra.mxu0 %v1820
  %2526 = vmatprep.subr.bf16.mxu0 0
  %2527 = vmatpush1.bf16.msra.mxu0 %v1821
  %2528 = vmatprep.subr.bf16.mxu0 0
  %2529 = vmatpush1.bf16.msra.mxu0 %v1822
  %2530 = vmatprep.subr.bf16.mxu0 0
  %2531 = vmatpush1.bf16.msra.mxu0 %v1823
  %2532 = vmatprep.subr.bf16.mxu0 0
  %2533 = vmatpush1.bf16.msra.mxu0 %v1824
  %2534 = vmatprep.subr.bf16.mxu0 0
  %2535 = vmatpush1.bf16.msra.mxu0 %v1825
  %2536 = vmatprep.subr.bf16.mxu0 0
  %2537 = vmatpush1.bf16.msra.mxu0 %v1826
  %2538 = vmatprep.subr.bf16.mxu0 0
  %2539 = vmatpush1.bf16.msra.mxu0 %v1827
  %2540 = vmatprep.subr.bf16.mxu0 0
  %2541 = vmatpush1.bf16.msra.mxu0 %v1828
  %2542 = vmatprep.subr.bf16.mxu0 0
  %2543 = vmatpush1.bf16.msra.mxu0 %v1829
  %2544 = vmatprep.subr.bf16.mxu0 0
  %2545 = vmatpush1.bf16.msra.mxu0 %v1830
  %2546 = vmatprep.subr.bf16.mxu0 0
  %2547 = vmatpush1.bf16.msra.mxu0 %v1831
  %2548 = vmatprep.subr.bf16.mxu0 0
  %2549 = vmatpush1.bf16.msra.mxu0 %v1832
  %2550 = vmatprep.subr.bf16.mxu0 0
  %2551 = vmatpush1.bf16.msra.mxu0 %v1833
  %2552 = vmatprep.subr.bf16.mxu0 0
  %2553 = vmatpush1.bf16.msra.mxu0 %v1834
  %2554 = vmatprep.subr.bf16.mxu0 0
  %2555 = vmatpush1.bf16.msra.mxu0 %v1835
  %2556 = vmatprep.mubr.bf16.mxu0 %v621
  %2557 = vmatmul.mubr.bf16.gmra.mrb[0].mxu0 %v620
  %v2558 = vpop.f32.mrb[0].mxu0
  %v2559 = vadd.f32 %v2519, %v2558
  %v2560 = vpop.f32.mrb[0].mxu0
  %v2561 = vpop.f32.mrb[0].mxu0
  %v2562 = vpop.f32.mrb[0].mxu0
  %2563 = vdwg.mxu0
  %2564 = vmatprep.subr.bf16.mxu0 0
  %2565 = vmatpush1.bf16.msra.mxu0 %v1836
  %2566 = vmatprep.subr.bf16.mxu0 0
  %2567 = vmatpush1.bf16.msra.mxu0 %v1837
  %2568 = vmatprep.subr.bf16.mxu0 0
  %2569 = vmatpush1.bf16.msra.mxu0 %v1838
  %2570 = vmatprep.subr.bf16.mxu0 0
  %2571 = vmatpush1.bf16.msra.mxu0 %v1839
  %2572 = vmatprep.subr.bf16.mxu0 0
  %2573 = vmatpush1.bf16.msra.mxu0 %v1840
  %2574 = vmatprep.subr.bf16.mxu0 0
  %2575 = vmatpush1.bf16.msra.mxu0 %v1841
  %2576 = vmatprep.subr.bf16.mxu0 0
  %2577 = vmatpush1.bf16.msra.mxu0 %v1842
  %2578 = vmatprep.subr.bf16.mxu0 0
  %2579 = vmatpush1.bf16.msra.mxu0 %v1843
  %2580 = vmatprep.subr.bf16.mxu0 0
  %2581 = vmatpush1.bf16.msra.mxu0 %v1844
  %2582 = vmatprep.subr.bf16.mxu0 0
  %2583 = vmatpush1.bf16.msra.mxu0 %v1845
  %2584 = vmatprep.subr.bf16.mxu0 0
  %2585 = vmatpush1.bf16.msra.mxu0 %v1846
  %2586 = vmatprep.subr.bf16.mxu0 0
  %2587 = vmatpush1.bf16.msra.mxu0 %v1847
  %2588 = vmatprep.subr.bf16.mxu0 0
  %2589 = vmatpush1.bf16.msra.mxu0 %v1848
  %2590 = vmatprep.subr.bf16.mxu0 0
  %2591 = vmatpush1.bf16.msra.mxu0 %v1849
  %2592 = vmatprep.subr.bf16.mxu0 0
  %2593 = vmatpush1.bf16.msra.mxu0 %v1850
  %2594 = vmatprep.subr.bf16.mxu0 0
  %2595 = vmatpush1.bf16.msra.mxu0 %v1851
  %2596 = vmatprep.mubr.bf16.mxu0 %v623
  %2597 = vmatmul.mubr.bf16.gmra.mrb[0].mxu0 %v622
  %v2598 = vpop.f32.mrb[0].mxu0
  %v2599 = vadd.f32 %v2559, %v2598
  %v2600 = vpop.f32.mrb[0].mxu0
  %v2601 = vpop.f32.mrb[0].mxu0
  %v2602 = vpop.f32.mrb[0].mxu0
  %2603 = vdwg.mxu0
  %2604 = vmatprep.subr.bf16.mxu0 0
  %2605 = vmatpush1.bf16.msra.mxu0 %v1852
  %2606 = vmatprep.subr.bf16.mxu0 0
  %2607 = vmatpush1.bf16.msra.mxu0 %v1853
  %2608 = vmatprep.subr.bf16.mxu0 0
  %2609 = vmatpush1.bf16.msra.mxu0 %v1854
  %2610 = vmatprep.subr.bf16.mxu0 0
  %2611 = vmatpush1.bf16.msra.mxu0 %v1855
  %2612 = vmatprep.subr.bf16.mxu0 0
  %2613 = vmatpush1.bf16.msra.mxu0 %v1856
  %2614 = vmatprep.subr.bf16.mxu0 0
  %2615 = vmatpush1.bf16.msra.mxu0 %v1857
  %2616 = vmatprep.subr.bf16.mxu0 0
  %2617 = vmatpush1.bf16.msra.mxu0 %v1858
  %2618 = vmatprep.subr.bf16.mxu0 0
  %2619 = vmatpush1.bf16.msra.mxu0 %v1859
  %2620 = vmatprep.subr.bf16.mxu0 0
  %2621 = vmatpush1.bf16.msra.mxu0 %v1860
  %2622 = vmatprep.subr.bf16.mxu0 0
  %2623 = vmatpush1.bf16.msra.mxu0 %v1861
  %2624 = vmatprep.subr.bf16.mxu0 0
  %2625 = vmatpush1.bf16.msra.mxu0 %v1862
  %2626 = vmatprep.subr.bf16.mxu0 0
  %2627 = vmatpush1.bf16.msra.mxu0 %v1863
  %2628 = vmatprep.subr.bf16.mxu0 0
  %2629 = vmatpush1.bf16.msra.mxu0 %v1864
  %2630 = vmatprep.subr.bf16.mxu0 0
  %2631 = vmatpush1.bf16.msra.mxu0 %v1865
  %2632 = vmatprep.subr.bf16.mxu0 0
  %2633 = vmatpush1.bf16.msra.mxu0 %v1866
  %2634 = vmatprep.subr.bf16.mxu0 0
  %2635 = vmatpush1.bf16.msra.mxu0 %v1867
  %2636 = vmatprep.mubr.bf16.mxu0 %v625
  %2637 = vmatmul.mubr.bf16.gmra.mrb[0].mxu0 %v624
  %v2638 = vpop.f32.mrb[0].mxu0
  %v2639 = vadd.f32 %v2599, %v2638
  %v2640 = vpop.f32.mrb[0].mxu0
  %v2641 = vpop.f32.mrb[0].mxu0
  %v2642 = vpop.f32.mrb[0].mxu0
  %2643 = vdwg.mxu0
  %2644 = vmatprep.subr.bf16.mxu0 0
  %2645 = vmatpush1.bf16.msra.mxu0 %v1868
  %2646 = vmatprep.subr.bf16.mxu0 0
  %2647 = vmatpush1.bf16.msra.mxu0 %v1869
  %2648 = vmatprep.subr.bf16.mxu0 0
  %2649 = vmatpush1.bf16.msra.mxu0 %v1870
  %2650 = vmatprep.subr.bf16.mxu0 0
  %2651 = vmatpush1.bf16.msra.mxu0 %v1871
  %2652 = vmatprep.subr.bf16.mxu0 0
  %2653 = vmatpush1.bf16.msra.mxu0 %v1872
  %2654 = vmatprep.subr.bf16.mxu0 0
  %2655 = vmatpush1.bf16.msra.mxu0 %v1873
  %2656 = vmatprep.subr.bf16.mxu0 0
  %2657 = vmatpush1.bf16.msra.mxu0 %v1874
  %2658 = vmatprep.subr.bf16.mxu0 0
  %2659 = vmatpush1.bf16.msra.mxu0 %v1875
  %2660 = vmatprep.subr.bf16.mxu0 0
  %2661 = vmatpush1.bf16.msra.mxu0 %v1876
  %2662 = vmatprep.subr.bf16.mxu0 0
  %2663 = vmatpush1.bf16.msra.mxu0 %v1877
  %2664 = vmatprep.subr.bf16.mxu0 0
  %2665 = vmatpush1.bf16.msra.mxu0 %v1878
  %2666 = vmatprep.subr.bf16.mxu0 0
  %2667 = vmatpush1.bf16.msra.mxu0 %v1879
  %2668 = vmatprep.subr.bf16.mxu0 0
  %2669 = vmatpush1.bf16.msra.mxu0 %v1880
  %2670 = vmatprep.subr.bf16.mxu0 0
  %2671 = vmatpush1.bf16.msra.mxu0 %v1881
  %2672 = vmatprep.subr.bf16.mxu0 0
  %2673 = vmatpush1.bf16.msra.mxu0 %v1882
  %2674 = vmatprep.subr.bf16.mxu0 0
  %2675 = vmatpush1.bf16.msra.mxu0 %v1883
  %2676 = vmatprep.mubr.bf16.mxu0 %v627
  %2677 = vmatmul.mubr.bf16.gmra.mrb[0].mxu0 %v626
  %v2678 = vpop.f32.mrb[0].mxu0
  %v2679 = vadd.f32 %v2639, %v2678
  %v2680 = vpop.f32.mrb[0].mxu0
  %v2681 = vpop.f32.mrb[0].mxu0
  %v2682 = vpop.f32.mrb[0].mxu0
  %2683 = vdwg.mxu0
  %2684 = vmatprep.subr.bf16.mxu0 0
  %2685 = vmatpush1.bf16.msra.mxu0 %v1884
  %2686 = vmatprep.subr.bf16.mxu0 0
  %2687 = vmatpush1.bf16.msra.mxu0 %v1885
  %2688 = vmatprep.subr.bf16.mxu0 0
  %2689 = vmatpush1.bf16.msra.mxu0 %v1886
  %2690 = vmatprep.subr.bf16.mxu0 0
  %2691 = vmatpush1.bf16.msra.mxu0 %v1887
  %2692 = vmatprep.subr.bf16.mxu0 0
  %2693 = vmatpush1.bf16.msra.mxu0 %v1888
  %2694 = vmatprep.subr.bf16.mxu0 0
  %2695 = vmatpush1.bf16.msra.mxu0 %v1889
  %2696 = vmatprep.subr.bf16.mxu0 0
  %2697 = vmatpush1.bf16.msra.mxu0 %v1890
  %2698 = vmatprep.subr.bf16.mxu0 0
  %2699 = vmatpush1.bf16.msra.mxu0 %v1891
  %2700 = vmatprep.subr.bf16.mxu0 0
  %2701 = vmatpush1.bf16.msra.mxu0 %v1892
  %2702 = vmatprep.subr.bf16.mxu0 0
  %2703 = vmatpush1.bf16.msra.mxu0 %v1893
  %2704 = vmatprep.subr.bf16.mxu0 0
  %2705 = vmatpush1.bf16.msra.mxu0 %v1894
  %2706 = vmatprep.subr.bf16.mxu0 0
  %2707 = vmatpush1.bf16.msra.mxu0 %v1895
  %2708 = vmatprep.subr.bf16.mxu0 0
  %2709 = vmatpush1.bf16.msra.mxu0 %v1896
  %2710 = vmatprep.subr.bf16.mxu0 0
  %2711 = vmatpush1.bf16.msra.mxu0 %v1897
  %2712 = vmatprep.subr.bf16.mxu0 0
  %2713 = vmatpush1.bf16.msra.mxu0 %v1898
  %2714 = vmatprep.subr.bf16.mxu0 0
  %2715 = vmatpush1.bf16.msra.mxu0 %v1899
  %2716 = vmatprep.mubr.bf16.mxu0 %v629
  %2717 = vmatmul.mubr.bf16.gmra.mrb[0].mxu0 %v628
  %v2718 = vpop.f32.mrb[0].mxu0
  %v2719 = vadd.f32 %v2679, %v2718
  %v2720 = vpop.f32.mrb[0].mxu0
  %v2721 = vpop.f32.mrb[0].mxu0
  %v2722 = vpop.f32.mrb[0].mxu0
  %2723 = vdwg.mxu0
  %2724 = vmatprep.subr.bf16.mxu0 0
  %2725 = vmatpush1.bf16.msra.mxu0 %v1900
  %2726 = vmatprep.subr.bf16.mxu0 0
  %2727 = vmatpush1.bf16.msra.mxu0 %v1901
  %2728 = vmatprep.subr.bf16.mxu0 0
  %2729 = vmatpush1.bf16.msra.mxu0 %v1902
  %2730 = vmatprep.subr.bf16.mxu0 0
  %2731 = vmatpush1.bf16.msra.mxu0 %v1903
  %2732 = vmatprep.subr.bf16.mxu0 0
  %2733 = vmatpush1.bf16.msra.mxu0 %v1904
  %2734 = vmatprep.subr.bf16.mxu0 0
  %2735 = vmatpush1.bf16.msra.mxu0 %v1905
  %2736 = vmatprep.subr.bf16.mxu0 0
  %2737 = vmatpush1.bf16.msra.mxu0 %v1906
  %2738 = vmatprep.subr.bf16.mxu0 0
  %2739 = vmatpush1.bf16.msra.mxu0 %v1907
  %2740 = vmatprep.subr.bf16.mxu0 0
  %2741 = vmatpush1.bf16.msra.mxu0 %v1908
  %2742 = vmatprep.subr.bf16.mxu0 0
  %2743 = vmatpush1.bf16.msra.mxu0 %v1909
  %2744 = vmatprep.subr.bf16.mxu0 0
  %2745 = vmatpush1.bf16.msra.mxu0 %v1910
  %2746 = vmatprep.subr.bf16.mxu0 0
  %2747 = vmatpush1.bf16.msra.mxu0 %v1911
  %2748 = vmatprep.subr.bf16.mxu0 0
  %2749 = vmatpush1.bf16.msra.mxu0 %v1912
  %2750 = vmatprep.subr.bf16.mxu0 0
  %2751 = vmatpush1.bf16.msra.mxu0 %v1913
  %2752 = vmatprep.subr.bf16.mxu0 0
  %2753 = vmatpush1.bf16.msra.mxu0 %v1914
  %2754 = vmatprep.subr.bf16.mxu0 0
  %2755 = vmatpush1.bf16.msra.mxu0 %v1915
  %2756 = vmatprep.mubr.bf16.mxu0 %v631
  %2757 = vmatmul.mubr.bf16.gmra.mrb[0].mxu0 %v630
  %v2758 = vpop.f32.mrb[0].mxu0
  %v2759 = vadd.f32 %v2719, %v2758
  %v2760 = vpop.f32.mrb[0].mxu0
  %v2761 = vpop.f32.mrb[0].mxu0
  %v2762 = vpop.f32.mrb[0].mxu0
  %2763 = vdwg.mxu0
  %2764 = vmatprep.subr.bf16.mxu0 0
  %2765 = vmatpush1.bf16.msra.mxu0 %v1916
  %2766 = vmatprep.subr.bf16.mxu0 0
  %2767 = vmatpush1.bf16.msra.mxu0 %v1917
  %2768 = vmatprep.subr.bf16.mxu0 0
  %2769 = vmatpush1.bf16.msra.mxu0 %v1918
  %2770 = vmatprep.subr.bf16.mxu0 0
  %2771 = vmatpush1.bf16.msra.mxu0 %v1919
  %2772 = vmatprep.subr.bf16.mxu0 0
  %2773 = vmatpush1.bf16.msra.mxu0 %v1920
  %2774 = vmatprep.subr.bf16.mxu0 0
  %2775 = vmatpush1.bf16.msra.mxu0 %v1921
  %2776 = vmatprep.subr.bf16.mxu0 0
  %2777 = vmatpush1.bf16.msra.mxu0 %v1922
  %2778 = vmatprep.subr.bf16.mxu0 0
  %2779 = vmatpush1.bf16.msra.mxu0 %v1923
  %2780 = vmatprep.subr.bf16.mxu0 0
  %2781 = vmatpush1.bf16.msra.mxu0 %v1924
  %2782 = vmatprep.subr.bf16.mxu0 0
  %2783 = vmatpush1.bf16.msra.mxu0 %v1925
  %2784 = vmatprep.subr.bf16.mxu0 0
  %2785 = vmatpush1.bf16.msra.mxu0 %v1926
  %2786 = vmatprep.subr.bf16.mxu0 0
  %2787 = vmatpush1.bf16.msra.mxu0 %v1927
  %2788 = vmatprep.subr.bf16.mxu0 0
  %2789 = vmatpush1.bf16.msra.mxu0 %v1928
  %2790 = vmatprep.subr.bf16.mxu0 0
  %2791 = vmatpush1.bf16.msra.mxu0 %v1929
  %2792 = vmatprep.subr.bf16.mxu0 0
  %2793 = vmatpush1.bf16.msra.mxu0 %v1930
  %2794 = vmatprep.subr.bf16.mxu0 0
  %2795 = vmatpush1.bf16.msra.mxu0 %v1931
  %2796 = vmatprep.mubr.bf16.mxu0 %v633
  %2797 = vmatmul.mubr.bf16.gmra.mrb[0].mxu0 %v632
  %v2798 = vpop.f32.mrb[0].mxu0
  %v2799 = vadd.f32 %v2759, %v2798
  %v2800 = vpop.f32.mrb[0].mxu0
  %v2801 = vpop.f32.mrb[0].mxu0
  %v2802 = vpop.f32.mrb[0].mxu0
  %2803 = vdwg.mxu0
  %2804 = vmatprep.subr.bf16.mxu0 0
  %2805 = vmatpush1.bf16.msra.mxu0 %v1932
  %2806 = vmatprep.subr.bf16.mxu0 0
  %2807 = vmatpush1.bf16.msra.mxu0 %v1933
  %2808 = vmatprep.subr.bf16.mxu0 0
  %2809 = vmatpush1.bf16.msra.mxu0 %v1934
  %2810 = vmatprep.subr.bf16.mxu0 0
  %2811 = vmatpush1.bf16.msra.mxu0 %v1935
  %2812 = vmatprep.subr.bf16.mxu0 0
  %2813 = vmatpush1.bf16.msra.mxu0 %v1936
  %2814 = vmatprep.subr.bf16.mxu0 0
  %2815 = vmatpush1.bf16.msra.mxu0 %v1937
  %2816 = vmatprep.subr.bf16.mxu0 0
  %2817 = vmatpush1.bf16.msra.mxu0 %v1938
  %2818 = vmatprep.subr.bf16.mxu0 0
  %2819 = vmatpush1.bf16.msra.mxu0 %v1939
  %2820 = vmatprep.subr.bf16.mxu0 0
  %2821 = vmatpush1.bf16.msra.mxu0 %v1940
  %2822 = vmatprep.subr.bf16.mxu0 0
  %2823 = vmatpush1.bf16.msra.mxu0 %v1941
  %2824 = vmatprep.subr.bf16.mxu0 0
  %2825 = vmatpush1.bf16.msra.mxu0 %v1942
  %2826 = vmatprep.subr.bf16.mxu0 0
  %2827 = vmatpush1.bf16.msra.mxu0 %v1943
  %2828 = vmatprep.subr.bf16.mxu0 0
  %2829 = vmatpush1.bf16.msra.mxu0 %v1944
  %2830 = vmatprep.subr.bf16.mxu0 0
  %2831 = vmatpush1.bf16.msra.mxu0 %v1945
  %2832 = vmatprep.subr.bf16.mxu0 0
  %2833 = vmatpush1.bf16.msra.mxu0 %v1946
  %2834 = vmatprep.subr.bf16.mxu0 0
  %2835 = vmatpush1.bf16.msra.mxu0 %v1947
  %2836 = vmatprep.mubr.bf16.mxu0 %v635
  %2837 = vmatmul.mubr.bf16.gmra.mrb[0].mxu0 %v634
  %v2838 = vpop.f32.mrb[0].mxu0
  %v2839 = vadd.f32 %v2799, %v2838
  %v2840 = vpop.f32.mrb[0].mxu0
  %v2841 = vpop.f32.mrb[0].mxu0
  %v2842 = vpop.f32.mrb[0].mxu0
  %2843 = vdwg.mxu0
  %v2844 = vmax.f32 %v2839, 0.0
  %v2845 = vpack.c.bf16 %v2844, %v2844
  %v2846 = vld [vmem:[%s3] sm:$0xf]
  %v2847 = vld [vmem:[%s3 + $0x4] sm:$0xf]
  %v2848 = vld [vmem:[%s3 + $0x8] sm:$0xf]
  %v2849 = vld [vmem:[%s3 + $0xc] sm:$0xf]
  %v2850 = vld [vmem:[%s3 + $0x10] sm:$0xf]
  %v2851 = vld [vmem:[%s3 + $0x14] sm:$0xf]
  %v2852 = vld [vmem:[%s3 + $0x18] sm:$0xf]
  %v2853 = vld [vmem:[%s3 + $0x1c] sm:$0xf]
  %v2854 = vld [vmem:[%s3 + $0x20] sm:$0xf]
  %v2855 = vld [vmem:[%s3 + $0x24] sm:$0xf]
  %v2856 = vld [vmem:[%s3 + $0x28] sm:$0xf]
  %v2857 = vld [vmem:[%s3 + $0x2c] sm:$0xf]
  %v2858 = vld [vmem:[%s3 + $0x30] sm:$0xf]
  %v2859 = vld [vmem:[%s3 + $0x34] sm:$0xf]
  %v2860 = vld [vmem:[%s3 + $0x38] sm:$0xf]
  %v2861 = vld [vmem:[%s3 + $0x3c] sm:$0xf]
  %v2862 = vld [vmem:[%s4] sm:$0x1]
  %v2864 = vlaneseq
  %v2865 = vshrl.u32 %v2864, 7
  %v2866 = vsub.s32 0, %v2865
  %v2867 = vrot.slane %v2862, %v2866
  %v2885 = vunpack.c.l.b16 %v2846
  %v2886 = vunpack.c.l.b16 %v2847
  %v2887 = vunpack.c.l.b16 %v2848
  %v2888 = vunpack.c.l.b16 %v2849
  %v2889 = vunpack.c.l.b16 %v2850
  %v2890 = vunpack.c.l.b16 %v2851
  %v2891 = vunpack.c.l.b16 %v2852
  %v2892 = vunpack.c.l.b16 %v2853
  %v2893 = vunpack.c.l.b16 %v2854
  %v2894 = vunpack.c.l.b16 %v2855
  %v2895 = vunpack.c.l.b16 %v2856
  %v2896 = vunpack.c.l.b16 %v2857
  %v2897 = vunpack.c.l.b16 %v2858
  %v2898 = vunpack.c.l.b16 %v2859
  %v2899 = vunpack.c.l.b16 %v2860
  %v2900 = vunpack.c.l.b16 %v2861
  %v2901 = vpack.c.b16 %v2886, %v2885
  %v2902 = vpack.c.b16 %v2888, %v2887
  %v2903 = vpack.c.b16 %v2890, %v2889
  %v2904 = vpack.c.b16 %v2892, %v2891
  %v2905 = vpack.c.b16 %v2894, %v2893
  %v2906 = vpack.c.b16 %v2896, %v2895
  %v2907 = vpack.c.b16 %v2898, %v2897
  %v2908 = vpack.c.b16 %v2900, %v2899
  %2917 = vmatprep.subr.bf16.mxu0 0
  %2918 = vmatpush1.bf16.msra.mxu0 %v2901
  %2919 = vmatprep.subr.bf16.mxu0 0
  %2920 = vmatpush1.bf16.msra.mxu0 %v2902
  %2921 = vmatprep.subr.bf16.mxu0 0
  %2922 = vmatpush1.bf16.msra.mxu0 %v2903
  %2923 = vmatprep.subr.bf16.mxu0 0
  %2924 = vmatpush1.bf16.msra.mxu0 %v2904
  %2925 = vmatprep.subr.bf16.mxu0 0
  %2926 = vmatpush1.bf16.msra.mxu0 %v2905
  %2927 = vmatprep.subr.bf16.mxu0 0
  %2928 = vmatpush1.bf16.msra.mxu0 %v2906
  %2929 = vmatprep.subr.bf16.mxu0 0
  %2930 = vmatpush1.bf16.msra.mxu0 %v2907
  %2931 = vmatprep.subr.bf16.mxu0 0
  %2932 = vmatpush1.bf16.msra.mxu0 %v2908
  %2933 = vmatprep.subr.bf16.mxu0 0
  %2934 = vmatpush1.bf16.msra.mxu0 0
  %2935 = vmatprep.subr.bf16.mxu0 0
  %2936 = vmatpush1.bf16.msra.mxu0 0
  %2937 = vmatprep.subr.bf16.mxu0 0
  %2938 = vmatpush1.bf16.msra.mxu0 0
  %2939 = vmatprep.subr.bf16.mxu0 0
  %2940 = vmatpush1.bf16.msra.mxu0 0
  %2941 = vmatprep.subr.bf16.mxu0 0
  %2942 = vmatpush1.bf16.msra.mxu0 0
  %2943 = vmatprep.subr.bf16.mxu0 0
  %2944 = vmatpush1.bf16.msra.mxu0 0
  %2945 = vmatprep.subr.bf16.mxu0 0
  %2946 = vmatpush1.bf16.msra.mxu0 0
  %2947 = vmatprep.subr.bf16.mxu0 0
  %2948 = vmatpush1.bf16.msra.mxu0 0
  %2949 = vmatprep.mubr.bf16.mxu0 0
  %2950 = vmatmul.mubr.bf16.gmra.mrb[0].mxu0 %v2845
  %v2951 = vpop.f32.mrb[0].mxu0
  %v2952 = vadd.f32 %v2867, %v2951
  %v2953 = vpop.f32.mrb[0].mxu0
  %v2954 = vpop.f32.mrb[0].mxu0
  %v2955 = vpop.f32.mrb[0].mxu0
  %2956 = vdwg.mxu0
  %2957 = vst [vmem:[%s5] sm:$0xff] %v2952
  // Predicated region
  $region22: #{rotated_nn_forward.5} parent=0 // pred_check
    _
  $region23: #{rotated_nn_forward.5} parent=0 // pred_check_branch
    %2959 = sbr.rel (0) target = $region25
  $region24: #{rotated_nn_forward.5} parent=0 // pred_region
    _
  $region25: #{rotated_nn_forward.5} parent=0 // pred_fallthru
    _
  // Predicated region
  $region26: #{rotated_nn_forward.5} parent=0 // pred_check
    _
  $region27: #{rotated_nn_forward.5} parent=0 // pred_check_branch
    %2961 = sbr.rel (0) target = $region29
  $region28: #{rotated_nn_forward.5} parent=0 // pred_region
    _
  $region29: #{rotated_nn_forward.5} parent=0 // pred_fallthru
    _

</llo_original>
